<compile_context>
chip_gen: v7x
topology: tpu7x:2x2x1
jax: 0.10.0
libtpu: 0.0.40
codegen_flags: <defaults>
</compile_context>

<pallas_src>
import jax
import jax.numpy as jnp
from jax.experimental import pallas as pl
from jax.experimental.pallas import tpu as pltpu


# ------------------------------ fused kernel -------------------------------

def _siamese_branch_kernel(x_ref, w1_ref, b1_ref, wb1_ref, bb1_ref,
                           wb2_ref, bb2_ref, wfc_ref, bfc_ref,
                           feat_ref,
                           pad_ref, patch_ref):
    """One weight-shared branch: conv1 -> residual block -> GAP -> base_fc.

    Per grid step (= one branch) the block shapes are:
      x_ref     : (n, H, W, C)      f32   branch images, channels zero-extended
                                          to the backbone width C
      w*_ref    : (9*C, C) / (C, F) bf16  im2col / fc weights, (in, out) layout
      b*_ref    : (1, C) / (1, F)   f32   biases
      feat_ref  : (1, n, F)         f32   branch features (output block)
      pad_ref   : (n, H+2, W+2, C)  f32   zero-padded activation scratch
      patch_ref : (n, H, W, 9*C)    bf16  im2col patch scratch
    """
    n, h, w, c = x_ref.shape
    m = n * h * w
    inv_hw = 1.0 / (h * w)

    def conv3x3(wt_ref, bias_ref):
        # In-kernel im2col: 9 static-slice taps of the padded activation are
        # written (as bf16) into the patch scratch, then ONE MXU matmul with
        # K = 9*C and the bias add fused into the f32 epilogue.
        for dh in range(3):
            for dw in range(3):
                k0 = (dh * 3 + dw) * c            # matches w.reshape(9*C, C)
                patch_ref[:, :, :, k0:k0 + c] = (
                    pad_ref[:, dh:dh + h, dw:dw + w, :].astype(patch_ref.dtype))
        acc = jnp.dot(patch_ref[...].reshape(m, 9 * c), wt_ref[...],
                      preferred_element_type=jnp.float32)
        return acc + bias_ref[...]                # (m, C) f32

    # Zero the halo once per grid step (scratch is per-core under "parallel"
    # semantics); the interior is overwritten before every conv below.
    pad_ref[...] = jnp.zeros(pad_ref.shape, pad_ref.dtype)

    # stem: conv1 + ReLU
    pad_ref[:, 1:1 + h, 1:1 + w, :] = x_ref[...]
    y1 = jnp.maximum(conv3x3(w1_ref, b1_ref), 0.0)

    # residual block, conv1 + ReLU
    pad_ref[:, 1:1 + h, 1:1 + w, :] = y1.reshape(n, h, w, c)
    r = jnp.maximum(conv3x3(wb1_ref, bb1_ref), 0.0)

    # residual block, conv2 + skip-add + ReLU (fused epilogue, no extra pass)
    pad_ref[:, 1:1 + h, 1:1 + w, :] = r.reshape(n, h, w, c)
    z = jnp.maximum(conv3x3(wb2_ref, bb2_ref) + y1, 0.0)

    # global average pool folded into base_fc: mean(z) @ Wfc == (sum(z) @ Wfc)/HW
    pooled = jnp.sum(z.reshape(n, h * w, c), axis=1) * inv_hw          # (n, C)
    feat = jnp.dot(pooled.astype(jnp.bfloat16), wfc_ref[...],
                   preferred_element_type=jnp.float32) + bfc_ref[...]  # (n, F)
    feat_ref[0, :, :] = feat.astype(feat_ref.dtype)


# ----------------------------- model forward -------------------------------

def siamese_resnet_forward(params, input1, input2):
    """SiameseResNet.forward with the whole shared backbone in one Pallas call."""
    n, cin, h, w = input1.shape
    cmid = params["conv1_b"].shape[0]
    feat_dim = params["base_fc_b"].shape[0]
    bf16, f32 = jnp.bfloat16, jnp.float32
    assert cin <= cmid, "backbone width must be >= input channels"

    # Batch the two weight-shared branches -> (2*n, H, W, C), channels-last,
    # with input channels zero-extended to the backbone width so every conv in
    # the kernel shares identical scratch / weight layouts.
    x_all = jnp.concatenate([input1, input2], axis=0)
    x_all = jnp.transpose(x_all, (0, 2, 3, 1)).astype(f32)
    if cin < cmid:
        x_all = jnp.pad(x_all, ((0, 0), (0, 0), (0, 0), (0, cmid - cin)))

    # im2col weight layout (9*C, Cout); linear weights kept as (in, out).
    # NOTE: a real PyTorch checkpoint stores nn.Linear as (out, in) and conv as
    # (Cout, Cin, kh, kw) -- converting real weights would require transposes.
    w1 = params["conv1_w"]
    if cin < cmid:
        w1 = jnp.pad(w1, ((0, 0), (0, 0), (0, cmid - cin), (0, 0)))
    w1 = w1.reshape(9 * cmid, cmid).astype(bf16)
    wb1 = params["block_w1"].reshape(9 * cmid, cmid).astype(bf16)
    wb2 = params["block_w2"].reshape(9 * cmid, cmid).astype(bf16)
    wfc = params["base_fc_w"].astype(bf16)                       # (cmid, feat_dim)
    b1 = params["conv1_b"].reshape(1, cmid).astype(f32)
    bb1 = params["block_b1"].reshape(1, cmid).astype(f32)
    bb2 = params["block_b2"].reshape(1, cmid).astype(f32)
    bfc = params["base_fc_b"].reshape(1, feat_dim).astype(f32)

    const2 = lambda i: (0, 0)                  # weights: same block every step
    feats = pl.pallas_call(
        _siamese_branch_kernel,
        out_shape=jax.ShapeDtypeStruct((2, n, feat_dim), f32),
        grid_spec=pltpu.PrefetchScalarGridSpec(
            num_scalar_prefetch=0,
            grid=(2,),                         # one grid step per branch
            in_specs=[
                pl.BlockSpec((n, h, w, cmid), lambda i: (i, 0, 0, 0)),
                pl.BlockSpec((9 * cmid, cmid), const2),
                pl.BlockSpec((1, cmid), const2),
                pl.BlockSpec((9 * cmid, cmid), const2),
                pl.BlockSpec((1, cmid), const2),
                pl.BlockSpec((9 * cmid, cmid), const2),
                pl.BlockSpec((1, cmid), const2),
                pl.BlockSpec((cmid, feat_dim), const2),
                pl.BlockSpec((1, feat_dim), const2),
            ],
            out_specs=pl.BlockSpec((1, n, feat_dim), lambda i: (i, 0, 0)),
            scratch_shapes=[
                pltpu.VMEM((n, h + 2, w + 2, cmid), f32),     # padded activation
                pltpu.VMEM((n, h, w, 9 * cmid), bf16),        # im2col patches
            ],
        ),
        compiler_params=pltpu.CompilerParams(
            dimension_semantics=("parallel",),   # 2-TC chips: one branch per core
            vmem_limit_bytes=32 * 1024 * 1024,
        ),
    )(x_all, w1, b1, wb1, bb1, wb2, bb2, wfc, bfc)

    # Siamese head over concat(feat1, feat2): 2x32 @ 32x5 is smaller than one
    # kernel-launch overhead, so it stays in plain XLA.
    combined = jnp.concatenate([feats[0], feats[1]], axis=1)      # (n, 2*feat_dim)
    return combined @ params["head_w"] + params["head_b"]


# --------------------------- deterministic init ----------------------------

def init_params(key, in_ch=4, width=8, feat_dim=16, num_out=5):
    ks = jax.random.split(key, 8)

    def rand(k, shape, fan_in):
        return jax.random.normal(k, shape, jnp.float32) / jnp.sqrt(float(fan_in))

    return {
        "conv1_w": rand(ks[0], (3, 3, in_ch, width), 9 * in_ch),
        "conv1_b": jnp.zeros((width,), jnp.float32),
        "block_w1": rand(ks[1], (3, 3, width, width), 9 * width),
        "block_b1": jnp.zeros((width,), jnp.float32),
        "block_w2": rand(ks[2], (3, 3, width, width), 9 * width),
        "block_b2": jnp.zeros((width,), jnp.float32),
        "base_fc_w": rand(ks[3], (width, feat_dim), width),
        "base_fc_b": rand(ks[4], (feat_dim,), width),
        "head_w": rand(ks[5], (2 * feat_dim, num_out), 2 * feat_dim),
        "head_b": rand(ks[6], (num_out,), 2 * feat_dim),
    }


# --------------------------------- main ------------------------------------

if __name__ == "__main__":
    key = jax.random.PRNGKey(0)
    k1, k2, kp = jax.random.split(key, 3)

    # Small shapes: batch=2, channels=4, spatial=16x16 (NCHW like PyTorch).
    input1 = jax.random.normal(k1, (2, 4, 16, 16), jnp.float32)
    input2 = jax.random.normal(k2, (2, 4, 16, 16), jnp.float32)
    params = init_params(kp, in_ch=4, width=8, feat_dim=16, num_out=5)

    fwd = jax.jit(siamese_resnet_forward)
    out = fwd(params, input1, input2)
    jax.block_until_ready(out)

    assert out.shape == (2, 5) and out.dtype == jnp.float32
    print("KERNEL_OK")
</pallas_src>

<mosaic_0001>
module attributes {stable_mosaic.version = 11 : i64} {
  func.func @_siamese_branch_kernel(%arg0: i32, %arg1: memref<2x16x16x8xf32, #tpu.memory_space<vmem>>, %arg2: memref<72x8xbf16, #tpu.memory_space<vmem>>, %arg3: memref<1x8xf32, #tpu.memory_space<vmem>>, %arg4: memref<72x8xbf16, #tpu.memory_space<vmem>>, %arg5: memref<1x8xf32, #tpu.memory_space<vmem>>, %arg6: memref<72x8xbf16, #tpu.memory_space<vmem>>, %arg7: memref<1x8xf32, #tpu.memory_space<vmem>>, %arg8: memref<8x16xbf16, #tpu.memory_space<vmem>>, %arg9: memref<1x16xf32, #tpu.memory_space<vmem>>, %arg10: memref<1x2x16xf32, #tpu.memory_space<vmem>>, %arg11: memref<2x18x18x8xf32, #tpu.memory_space<vmem>>, %arg12: memref<2x16x16x72xbf16, #tpu.memory_space<vmem>>) attributes {dimension_semantics = [#tpu.dimension_semantics<parallel>], iteration_bounds = array<i64: 2>, scalar_prefetch = 0 : i64, scratch_operands = 2 : i64, tpu.core_type = #tpu.core_type<tc>, window_params = [{transform_indices = @transform_0, window_bounds = array<i64: 2, 16, 16, 8>}, {pipeline_mode = #tpu.pipeline_mode<synchronous>, transform_indices = @transform_1, window_bounds = array<i64: 72, 8>}, {pipeline_mode = #tpu.pipeline_mode<synchronous>, transform_indices = @transform_2, window_bounds = array<i64: 1, 8>}, {pipeline_mode = #tpu.pipeline_mode<synchronous>, transform_indices = @transform_3, window_bounds = array<i64: 72, 8>}, {pipeline_mode = #tpu.pipeline_mode<synchronous>, transform_indices = @transform_4, window_bounds = array<i64: 1, 8>}, {pipeline_mode = #tpu.pipeline_mode<synchronous>, transform_indices = @transform_5, window_bounds = array<i64: 72, 8>}, {pipeline_mode = #tpu.pipeline_mode<synchronous>, transform_indices = @transform_6, window_bounds = array<i64: 1, 8>}, {pipeline_mode = #tpu.pipeline_mode<synchronous>, transform_indices = @transform_7, window_bounds = array<i64: 8, 16>}, {pipeline_mode = #tpu.pipeline_mode<synchronous>, transform_indices = @transform_8, window_bounds = array<i64: 1, 16>}, {transform_indices = @transform_9, window_bounds = array<i64: 1, 2, 16>}]} {
    %cst = arith.constant 0.000000e+00 : f32
    %0 = vector.broadcast %cst : f32 to vector<2x18x18x8xf32>
    %c0 = arith.constant 0 : index
    %c0_0 = arith.constant 0 : index
    %c0_1 = arith.constant 0 : index
    %c0_2 = arith.constant 0 : index
    %1 = vector.load %arg11[%c0, %c0_0, %c0_1, %c0_2] : memref<2x18x18x8xf32, #tpu.memory_space<vmem>>, vector<2x18x18x8xf32>
    tpu.vector_store %arg11[%c0, %c0_0, %c0_1, %c0_2], %0 {strides = array<i32>} : memref<2x18x18x8xf32, #tpu.memory_space<vmem>>, vector<2x18x18x8xf32>,
    %c0_3 = arith.constant 0 : index
    %c0_4 = arith.constant 0 : index
    %c0_5 = arith.constant 0 : index
    %c0_6 = arith.constant 0 : index
    %2 = vector.load %arg1[%c0_3, %c0_4, %c0_5, %c0_6] : memref<2x16x16x8xf32, #tpu.memory_space<vmem>>, vector<2x16x16x8xf32>
    %c0_7 = arith.constant 0 : index
    %c1 = arith.constant 1 : index
    %c1_8 = arith.constant 1 : index
    %c0_9 = arith.constant 0 : index
    %3 = vector.load %arg11[%c0_7, %c1, %c1_8, %c0_9] : memref<2x18x18x8xf32, #tpu.memory_space<vmem>>, vector<2x16x16x8xf32>
    tpu.vector_store %arg11[%c0_7, %c1, %c1_8, %c0_9], %2 {strides = array<i32>} : memref<2x18x18x8xf32, #tpu.memory_space<vmem>>, vector<2x16x16x8xf32>,
    %c0_10 = arith.constant 0 : index
    %c0_11 = arith.constant 0 : index
    %c0_12 = arith.constant 0 : index
    %c0_13 = arith.constant 0 : index
    %4 = vector.load %arg11[%c0_10, %c0_11, %c0_12, %c0_13] : memref<2x18x18x8xf32, #tpu.memory_space<vmem>>, vector<2x16x16x8xf32>
    %5 = arith.truncf %4 : vector<2x16x16x8xf32> to vector<2x16x16x8xbf16>
    %c0_14 = arith.constant 0 : index
    %c0_15 = arith.constant 0 : index
    %c0_16 = arith.constant 0 : index
    %c0_17 = arith.constant 0 : index
    %6 = vector.load %arg12[%c0_14, %c0_15, %c0_16, %c0_17] : memref<2x16x16x72xbf16, #tpu.memory_space<vmem>>, vector<2x16x16x8xbf16>
    tpu.vector_store %arg12[%c0_14, %c0_15, %c0_16, %c0_17], %5 {strides = array<i32>} : memref<2x16x16x72xbf16, #tpu.memory_space<vmem>>, vector<2x16x16x8xbf16>,
    %c0_18 = arith.constant 0 : index
    %c0_19 = arith.constant 0 : index
    %c1_20 = arith.constant 1 : index
    %c0_21 = arith.constant 0 : index
    %7 = vector.load %arg11[%c0_18, %c0_19, %c1_20, %c0_21] : memref<2x18x18x8xf32, #tpu.memory_space<vmem>>, vector<2x16x16x8xf32>
    %8 = arith.truncf %7 : vector<2x16x16x8xf32> to vector<2x16x16x8xbf16>
    %c0_22 = arith.constant 0 : index
    %c0_23 = arith.constant 0 : index
    %c0_24 = arith.constant 0 : index
    %c8 = arith.constant 8 : index
    %9 = vector.load %arg12[%c0_22, %c0_23, %c0_24, %c8] : memref<2x16x16x72xbf16, #tpu.memory_space<vmem>>, vector<2x16x16x8xbf16>
    tpu.vector_store %arg12[%c0_22, %c0_23, %c0_24, %c8], %8 {strides = array<i32>} : memref<2x16x16x72xbf16, #tpu.memory_space<vmem>>, vector<2x16x16x8xbf16>,
    %c0_25 = arith.constant 0 : index
    %c0_26 = arith.constant 0 : index
    %c2 = arith.constant 2 : index
    %c0_27 = arith.constant 0 : index
    %10 = vector.load %arg11[%c0_25, %c0_26, %c2, %c0_27] : memref<2x18x18x8xf32, #tpu.memory_space<vmem>>, vector<2x16x16x8xf32>
    %11 = arith.truncf %10 : vector<2x16x16x8xf32> to vector<2x16x16x8xbf16>
    %c0_28 = arith.constant 0 : index
    %c0_29 = arith.constant 0 : index
    %c0_30 = arith.constant 0 : index
    %c16 = arith.constant 16 : index
    %12 = vector.load %arg12[%c0_28, %c0_29, %c0_30, %c16] : memref<2x16x16x72xbf16, #tpu.memory_space<vmem>>, vector<2x16x16x8xbf16>
    tpu.vector_store %arg12[%c0_28, %c0_29, %c0_30, %c16], %11 {strides = array<i32>} : memref<2x16x16x72xbf16, #tpu.memory_space<vmem>>, vector<2x16x16x8xbf16>,
    %c0_31 = arith.constant 0 : index
    %c1_32 = arith.constant 1 : index
    %c0_33 = arith.constant 0 : index
    %c0_34 = arith.constant 0 : index
    %13 = vector.load %arg11[%c0_31, %c1_32, %c0_33, %c0_34] : memref<2x18x18x8xf32, #tpu.memory_space<vmem>>, vector<2x16x16x8xf32>
    %14 = arith.truncf %13 : vector<2x16x16x8xf32> to vector<2x16x16x8xbf16>
    %c0_35 = arith.constant 0 : index
    %c0_36 = arith.constant 0 : index
    %c0_37 = arith.constant 0 : index
    %c24 = arith.constant 24 : index
    %15 = vector.load %arg12[%c0_35, %c0_36, %c0_37, %c24] : memref<2x16x16x72xbf16, #tpu.memory_space<vmem>>, vector<2x16x16x8xbf16>
    tpu.vector_store %arg12[%c0_35, %c0_36, %c0_37, %c24], %14 {strides = array<i32>} : memref<2x16x16x72xbf16, #tpu.memory_space<vmem>>, vector<2x16x16x8xbf16>,
    %c0_38 = arith.constant 0 : index
    %c1_39 = arith.constant 1 : index
    %c1_40 = arith.constant 1 : index
    %c0_41 = arith.constant 0 : index
    %16 = vector.load %arg11[%c0_38, %c1_39, %c1_40, %c0_41] : memref<2x18x18x8xf32, #tpu.memory_space<vmem>>, vector<2x16x16x8xf32>
    %17 = arith.truncf %16 : vector<2x16x16x8xf32> to vector<2x16x16x8xbf16>
    %c0_42 = arith.constant 0 : index
    %c0_43 = arith.constant 0 : index
    %c0_44 = arith.constant 0 : index
    %c32 = arith.constant 32 : index
    %18 = vector.load %arg12[%c0_42, %c0_43, %c0_44, %c32] : memref<2x16x16x72xbf16, #tpu.memory_space<vmem>>, vector<2x16x16x8xbf16>
    tpu.vector_store %arg12[%c0_42, %c0_43, %c0_44, %c32], %17 {strides = array<i32>} : memref<2x16x16x72xbf16, #tpu.memory_space<vmem>>, vector<2x16x16x8xbf16>,
    %c0_45 = arith.constant 0 : index
    %c1_46 = arith.constant 1 : index
    %c2_47 = arith.constant 2 : index
    %c0_48 = arith.constant 0 : index
    %19 = vector.load %arg11[%c0_45, %c1_46, %c2_47, %c0_48] : memref<2x18x18x8xf32, #tpu.memory_space<vmem>>, vector<2x16x16x8xf32>
    %20 = arith.truncf %19 : vector<2x16x16x8xf32> to vector<2x16x16x8xbf16>
    %c0_49 = arith.constant 0 : index
    %c0_50 = arith.constant 0 : index
    %c0_51 = arith.constant 0 : index
    %c40 = arith.constant 40 : index
    %21 = vector.load %arg12[%c0_49, %c0_50, %c0_51, %c40] : memref<2x16x16x72xbf16, #tpu.memory_space<vmem>>, vector<2x16x16x8xbf16>
    tpu.vector_store %arg12[%c0_49, %c0_50, %c0_51, %c40], %20 {strides = array<i32>} : memref<2x16x16x72xbf16, #tpu.memory_space<vmem>>, vector<2x16x16x8xbf16>,
    %c0_52 = arith.constant 0 : index
    %c2_53 = arith.constant 2 : index
    %c0_54 = arith.constant 0 : index
    %c0_55 = arith.constant 0 : index
    %22 = vector.load %arg11[%c0_52, %c2_53, %c0_54, %c0_55] : memref<2x18x18x8xf32, #tpu.memory_space<vmem>>, vector<2x16x16x8xf32>
    %23 = arith.truncf %22 : vector<2x16x16x8xf32> to vector<2x16x16x8xbf16>
    %c0_56 = arith.constant 0 : index
    %c0_57 = arith.constant 0 : index
    %c0_58 = arith.constant 0 : index
    %c48 = arith.constant 48 : index
    %24 = vector.load %arg12[%c0_56, %c0_57, %c0_58, %c48] : memref<2x16x16x72xbf16, #tpu.memory_space<vmem>>, vector<2x16x16x8xbf16>
    tpu.vector_store %arg12[%c0_56, %c0_57, %c0_58, %c48], %23 {strides = array<i32>} : memref<2x16x16x72xbf16, #tpu.memory_space<vmem>>, vector<2x16x16x8xbf16>,
    %c0_59 = arith.constant 0 : index
    %c2_60 = arith.constant 2 : index
    %c1_61 = arith.constant 1 : index
    %c0_62 = arith.constant 0 : index
    %25 = vector.load %arg11[%c0_59, %c2_60, %c1_61, %c0_62] : memref<2x18x18x8xf32, #tpu.memory_space<vmem>>, vector<2x16x16x8xf32>
    %26 = arith.truncf %25 : vector<2x16x16x8xf32> to vector<2x16x16x8xbf16>
    %c0_63 = arith.constant 0 : index
    %c0_64 = arith.constant 0 : index
    %c0_65 = arith.constant 0 : index
    %c56 = arith.constant 56 : index
    %27 = vector.load %arg12[%c0_63, %c0_64, %c0_65, %c56] : memref<2x16x16x72xbf16, #tpu.memory_space<vmem>>, vector<2x16x16x8xbf16>
    tpu.vector_store %arg12[%c0_63, %c0_64, %c0_65, %c56], %26 {strides = array<i32>} : memref<2x16x16x72xbf16, #tpu.memory_space<vmem>>, vector<2x16x16x8xbf16>,
    %c0_66 = arith.constant 0 : index
    %c2_67 = arith.constant 2 : index
    %c2_68 = arith.constant 2 : index
    %c0_69 = arith.constant 0 : index
    %28 = vector.load %arg11[%c0_66, %c2_67, %c2_68, %c0_69] : memref<2x18x18x8xf32, #tpu.memory_space<vmem>>, vector<2x16x16x8xf32>
    %29 = arith.truncf %28 : vector<2x16x16x8xf32> to vector<2x16x16x8xbf16>
    %c0_70 = arith.constant 0 : index
    %c0_71 = arith.constant 0 : index
    %c0_72 = arith.constant 0 : index
    %c64 = arith.constant 64 : index
    %30 = vector.load %arg12[%c0_70, %c0_71, %c0_72, %c64] : memref<2x16x16x72xbf16, #tpu.memory_space<vmem>>, vector<2x16x16x8xbf16>
    tpu.vector_store %arg12[%c0_70, %c0_71, %c0_72, %c64], %29 {strides = array<i32>} : memref<2x16x16x72xbf16, #tpu.memory_space<vmem>>, vector<2x16x16x8xbf16>,
    %c0_73 = arith.constant 0 : index
    %c0_74 = arith.constant 0 : index
    %c0_75 = arith.constant 0 : index
    %c0_76 = arith.constant 0 : index
    %31 = vector.load %arg12[%c0_73, %c0_74, %c0_75, %c0_76] : memref<2x16x16x72xbf16, #tpu.memory_space<vmem>>, vector<2x16x16x72xbf16>
    %32 = vector.shape_cast %31 : vector<2x16x16x72xbf16> to vector<512x72xbf16>
    %c0_77 = arith.constant 0 : index
    %c0_78 = arith.constant 0 : index
    %33 = vector.load %arg2[%c0_77, %c0_78] : memref<72x8xbf16, #tpu.memory_space<vmem>>, vector<72x8xbf16>
    %cst_79 = arith.constant dense<0.000000e+00> : vector<512x8xf32>
    %34 = tpu.matmul %32, %33, %cst_79 {dimension_numbers = #tpu.dot_dimension_numbers<[1], [0], [0], [1], [0, 0, 1, 1], [], []>} : vector<512x72xbf16>, vector<72x8xbf16>, vector<512x8xf32> -> vector<512x8xf32>
    %c0_80 = arith.constant 0 : index
    %c0_81 = arith.constant 0 : index
    %35 = vector.load %arg3[%c0_80, %c0_81] : memref<1x8xf32, #tpu.memory_space<vmem>>, vector<1x8xf32>
    %36 = vector.broadcast %35 : vector<1x8xf32> to vector<512x8xf32>
    %37 = arith.addf %34, %36 : vector<512x8xf32>
    %cst_82 = arith.constant 0.000000e+00 : f32
    %38 = vector.broadcast %cst_82 : f32 to vector<512x8xf32>
    %39 = arith.maximumf %37, %38 : vector<512x8xf32>
    %40 = vector.shape_cast %39 : vector<512x8xf32> to vector<2x16x16x8xf32>
    %c0_83 = arith.constant 0 : index
    %c1_84 = arith.constant 1 : index
    %c1_85 = arith.constant 1 : index
    %c0_86 = arith.constant 0 : index
    %41 = vector.load %arg11[%c0_83, %c1_84, %c1_85, %c0_86] : memref<2x18x18x8xf32, #tpu.memory_space<vmem>>, vector<2x16x16x8xf32>
    tpu.vector_store %arg11[%c0_83, %c1_84, %c1_85, %c0_86], %40 {strides = array<i32>} : memref<2x18x18x8xf32, #tpu.memory_space<vmem>>, vector<2x16x16x8xf32>,
    %c0_87 = arith.constant 0 : index
    %c0_88 = arith.constant 0 : index
    %c0_89 = arith.constant 0 : index
    %c0_90 = arith.constant 0 : index
    %42 = vector.load %arg11[%c0_87, %c0_88, %c0_89, %c0_90] : memref<2x18x18x8xf32, #tpu.memory_space<vmem>>, vector<2x16x16x8xf32>
    %43 = arith.truncf %42 : vector<2x16x16x8xf32> to vector<2x16x16x8xbf16>
    %c0_91 = arith.constant 0 : index
    %c0_92 = arith.constant 0 : index
    %c0_93 = arith.constant 0 : index
    %c0_94 = arith.constant 0 : index
    %44 = vector.load %arg12[%c0_91, %c0_92, %c0_93, %c0_94] : memref<2x16x16x72xbf16, #tpu.memory_space<vmem>>, vector<2x16x16x8xbf16>
    tpu.vector_store %arg12[%c0_91, %c0_92, %c0_93, %c0_94], %43 {strides = array<i32>} : memref<2x16x16x72xbf16, #tpu.memory_space<vmem>>, vector<2x16x16x8xbf16>,
    %c0_95 = arith.constant 0 : index
    %c0_96 = arith.constant 0 : index
    %c1_97 = arith.constant 1 : index
    %c0_98 = arith.constant 0 : index
    %45 = vector.load %arg11[%c0_95, %c0_96, %c1_97, %c0_98] : memref<2x18x18x8xf32, #tpu.memory_space<vmem>>, vector<2x16x16x8xf32>
    %46 = arith.truncf %45 : vector<2x16x16x8xf32> to vector<2x16x16x8xbf16>
    %c0_99 = arith.constant 0 : index
    %c0_100 = arith.constant 0 : index
    %c0_101 = arith.constant 0 : index
    %c8_102 = arith.constant 8 : index
    %47 = vector.load %arg12[%c0_99, %c0_100, %c0_101, %c8_102] : memref<2x16x16x72xbf16, #tpu.memory_space<vmem>>, vector<2x16x16x8xbf16>
    tpu.vector_store %arg12[%c0_99, %c0_100, %c0_101, %c8_102], %46 {strides = array<i32>} : memref<2x16x16x72xbf16, #tpu.memory_space<vmem>>, vector<2x16x16x8xbf16>,
    %c0_103 = arith.constant 0 : index
    %c0_104 = arith.constant 0 : index
    %c2_105 = arith.constant 2 : index
    %c0_106 = arith.constant 0 : index
    %48 = vector.load %arg11[%c0_103, %c0_104, %c2_105, %c0_106] : memref<2x18x18x8xf32, #tpu.memory_space<vmem>>, vector<2x16x16x8xf32>
    %49 = arith.truncf %48 : vector<2x16x16x8xf32> to vector<2x16x16x8xbf16>
    %c0_107 = arith.constant 0 : index
    %c0_108 = arith.constant 0 : index
    %c0_109 = arith.constant 0 : index
    %c16_110 = arith.constant 16 : index
    %50 = vector.load %arg12[%c0_107, %c0_108, %c0_109, %c16_110] : memref<2x16x16x72xbf16, #tpu.memory_space<vmem>>, vector<2x16x16x8xbf16>
    tpu.vector_store %arg12[%c0_107, %c0_108, %c0_109, %c16_110], %49 {strides = array<i32>} : memref<2x16x16x72xbf16, #tpu.memory_space<vmem>>, vector<2x16x16x8xbf16>,
    %c0_111 = arith.constant 0 : index
    %c1_112 = arith.constant 1 : index
    %c0_113 = arith.constant 0 : index
    %c0_114 = arith.constant 0 : index
    %51 = vector.load %arg11[%c0_111, %c1_112, %c0_113, %c0_114] : memref<2x18x18x8xf32, #tpu.memory_space<vmem>>, vector<2x16x16x8xf32>
    %52 = arith.truncf %51 : vector<2x16x16x8xf32> to vector<2x16x16x8xbf16>
    %c0_115 = arith.constant 0 : index
    %c0_116 = arith.constant 0 : index
    %c0_117 = arith.constant 0 : index
    %c24_118 = arith.constant 24 : index
    %53 = vector.load %arg12[%c0_115, %c0_116, %c0_117, %c24_118] : memref<2x16x16x72xbf16, #tpu.memory_space<vmem>>, vector<2x16x16x8xbf16>
    tpu.vector_store %arg12[%c0_115, %c0_116, %c0_117, %c24_118], %52 {strides = array<i32>} : memref<2x16x16x72xbf16, #tpu.memory_space<vmem>>, vector<2x16x16x8xbf16>,
    %c0_119 = arith.constant 0 : index
    %c1_120 = arith.constant 1 : index
    %c1_121 = arith.constant 1 : index
    %c0_122 = arith.constant 0 : index
    %54 = vector.load %arg11[%c0_119, %c1_120, %c1_121, %c0_122] : memref<2x18x18x8xf32, #tpu.memory_space<vmem>>, vector<2x16x16x8xf32>
    %55 = arith.truncf %54 : vector<2x16x16x8xf32> to vector<2x16x16x8xbf16>
    %c0_123 = arith.constant 0 : index
    %c0_124 = arith.constant 0 : index
    %c0_125 = arith.constant 0 : index
    %c32_126 = arith.constant 32 : index
    %56 = vector.load %arg12[%c0_123, %c0_124, %c0_125, %c32_126] : memref<2x16x16x72xbf16, #tpu.memory_space<vmem>>, vector<2x16x16x8xbf16>
    tpu.vector_store %arg12[%c0_123, %c0_124, %c0_125, %c32_126], %55 {strides = array<i32>} : memref<2x16x16x72xbf16, #tpu.memory_space<vmem>>, vector<2x16x16x8xbf16>,
    %c0_127 = arith.constant 0 : index
    %c1_128 = arith.constant 1 : index
    %c2_129 = arith.constant 2 : index
    %c0_130 = arith.constant 0 : index
    %57 = vector.load %arg11[%c0_127, %c1_128, %c2_129, %c0_130] : memref<2x18x18x8xf32, #tpu.memory_space<vmem>>, vector<2x16x16x8xf32>
    %58 = arith.truncf %57 : vector<2x16x16x8xf32> to vector<2x16x16x8xbf16>
    %c0_131 = arith.constant 0 : index
    %c0_132 = arith.constant 0 : index
    %c0_133 = arith.constant 0 : index
    %c40_134 = arith.constant 40 : index
    %59 = vector.load %arg12[%c0_131, %c0_132, %c0_133, %c40_134] : memref<2x16x16x72xbf16, #tpu.memory_space<vmem>>, vector<2x16x16x8xbf16>
    tpu.vector_store %arg12[%c0_131, %c0_132, %c0_133, %c40_134], %58 {strides = array<i32>} : memref<2x16x16x72xbf16, #tpu.memory_space<vmem>>, vector<2x16x16x8xbf16>,
    %c0_135 = arith.constant 0 : index
    %c2_136 = arith.constant 2 : index
    %c0_137 = arith.constant 0 : index
    %c0_138 = arith.constant 0 : index
    %60 = vector.load %arg11[%c0_135, %c2_136, %c0_137, %c0_138] : memref<2x18x18x8xf32, #tpu.memory_space<vmem>>, vector<2x16x16x8xf32>
    %61 = arith.truncf %60 : vector<2x16x16x8xf32> to vector<2x16x16x8xbf16>
    %c0_139 = arith.constant 0 : index
    %c0_140 = arith.constant 0 : index
    %c0_141 = arith.constant 0 : index
    %c48_142 = arith.constant 48 : index
    %62 = vector.load %arg12[%c0_139, %c0_140, %c0_141, %c48_142] : memref<2x16x16x72xbf16, #tpu.memory_space<vmem>>, vector<2x16x16x8xbf16>
    tpu.vector_store %arg12[%c0_139, %c0_140, %c0_141, %c48_142], %61 {strides = array<i32>} : memref<2x16x16x72xbf16, #tpu.memory_space<vmem>>, vector<2x16x16x8xbf16>,
    %c0_143 = arith.constant 0 : index
    %c2_144 = arith.constant 2 : index
    %c1_145 = arith.constant 1 : index
    %c0_146 = arith.constant 0 : index
    %63 = vector.load %arg11[%c0_143, %c2_144, %c1_145, %c0_146] : memref<2x18x18x8xf32, #tpu.memory_space<vmem>>, vector<2x16x16x8xf32>
    %64 = arith.truncf %63 : vector<2x16x16x8xf32> to vector<2x16x16x8xbf16>
    %c0_147 = arith.constant 0 : index
    %c0_148 = arith.constant 0 : index
    %c0_149 = arith.constant 0 : index
    %c56_150 = arith.constant 56 : index
    %65 = vector.load %arg12[%c0_147, %c0_148, %c0_149, %c56_150] : memref<2x16x16x72xbf16, #tpu.memory_space<vmem>>, vector<2x16x16x8xbf16>
    tpu.vector_store %arg12[%c0_147, %c0_148, %c0_149, %c56_150], %64 {strides = array<i32>} : memref<2x16x16x72xbf16, #tpu.memory_space<vmem>>, vector<2x16x16x8xbf16>,
    %c0_151 = arith.constant 0 : index
    %c2_152 = arith.constant 2 : index
    %c2_153 = arith.constant 2 : index
    %c0_154 = arith.constant 0 : index
    %66 = vector.load %arg11[%c0_151, %c2_152, %c2_153, %c0_154] : memref<2x18x18x8xf32, #tpu.memory_space<vmem>>, vector<2x16x16x8xf32>
    %67 = arith.truncf %66 : vector<2x16x16x8xf32> to vector<2x16x16x8xbf16>
    %c0_155 = arith.constant 0 : index
    %c0_156 = arith.constant 0 : index
    %c0_157 = arith.constant 0 : index
    %c64_158 = arith.constant 64 : index
    %68 = vector.load %arg12[%c0_155, %c0_156, %c0_157, %c64_158] : memref<2x16x16x72xbf16, #tpu.memory_space<vmem>>, vector<2x16x16x8xbf16>
    tpu.vector_store %arg12[%c0_155, %c0_156, %c0_157, %c64_158], %67 {strides = array<i32>} : memref<2x16x16x72xbf16, #tpu.memory_space<vmem>>, vector<2x16x16x8xbf16>,
    %c0_159 = arith.constant 0 : index
    %c0_160 = arith.constant 0 : index
    %c0_161 = arith.constant 0 : index
    %c0_162 = arith.constant 0 : index
    %69 = vector.load %arg12[%c0_159, %c0_160, %c0_161, %c0_162] : memref<2x16x16x72xbf16, #tpu.memory_space<vmem>>, vector<2x16x16x72xbf16>
    %70 = vector.shape_cast %69 : vector<2x16x16x72xbf16> to vector<512x72xbf16>
    %c0_163 = arith.constant 0 : index
    %c0_164 = arith.constant 0 : index
    %71 = vector.load %arg4[%c0_163, %c0_164] : memref<72x8xbf16, #tpu.memory_space<vmem>>, vector<72x8xbf16>
    %cst_165 = arith.constant dense<0.000000e+00> : vector<512x8xf32>
    %72 = tpu.matmul %70, %71, %cst_165 {dimension_numbers = #tpu.dot_dimension_numbers<[1], [0], [0], [1], [0, 0, 1, 1], [], []>} : vector<512x72xbf16>, vector<72x8xbf16>, vector<512x8xf32> -> vector<512x8xf32>
    %c0_166 = arith.constant 0 : index
    %c0_167 = arith.constant 0 : index
    %73 = vector.load %arg5[%c0_166, %c0_167] : memref<1x8xf32, #tpu.memory_space<vmem>>, vector<1x8xf32>
    %74 = vector.broadcast %73 : vector<1x8xf32> to vector<512x8xf32>
    %75 = arith.addf %72, %74 : vector<512x8xf32>
    %cst_168 = arith.constant 0.000000e+00 : f32
    %76 = vector.broadcast %cst_168 : f32 to vector<512x8xf32>
    %77 = arith.maximumf %75, %76 : vector<512x8xf32>
    %78 = vector.shape_cast %77 : vector<512x8xf32> to vector<2x16x16x8xf32>
    %c0_169 = arith.constant 0 : index
    %c1_170 = arith.constant 1 : index
    %c1_171 = arith.constant 1 : index
    %c0_172 = arith.constant 0 : index
    %79 = vector.load %arg11[%c0_169, %c1_170, %c1_171, %c0_172] : memref<2x18x18x8xf32, #tpu.memory_space<vmem>>, vector<2x16x16x8xf32>
    tpu.vector_store %arg11[%c0_169, %c1_170, %c1_171, %c0_172], %78 {strides = array<i32>} : memref<2x18x18x8xf32, #tpu.memory_space<vmem>>, vector<2x16x16x8xf32>,
    %c0_173 = arith.constant 0 : index
    %c0_174 = arith.constant 0 : index
    %c0_175 = arith.constant 0 : index
    %c0_176 = arith.constant 0 : index
    %80 = vector.load %arg11[%c0_173, %c0_174, %c0_175, %c0_176] : memref<2x18x18x8xf32, #tpu.memory_space<vmem>>, vector<2x16x16x8xf32>
    %81 = arith.truncf %80 : vector<2x16x16x8xf32> to vector<2x16x16x8xbf16>
    %c0_177 = arith.constant 0 : index
    %c0_178 = arith.constant 0 : index
    %c0_179 = arith.constant 0 : index
    %c0_180 = arith.constant 0 : index
    %82 = vector.load %arg12[%c0_177, %c0_178, %c0_179, %c0_180] : memref<2x16x16x72xbf16, #tpu.memory_space<vmem>>, vector<2x16x16x8xbf16>
    tpu.vector_store %arg12[%c0_177, %c0_178, %c0_179, %c0_180], %81 {strides = array<i32>} : memref<2x16x16x72xbf16, #tpu.memory_space<vmem>>, vector<2x16x16x8xbf16>,
    %c0_181 = arith.constant 0 : index
    %c0_182 = arith.constant 0 : index
    %c1_183 = arith.constant 1 : index
    %c0_184 = arith.constant 0 : index
    %83 = vector.load %arg11[%c0_181, %c0_182, %c1_183, %c0_184] : memref<2x18x18x8xf32, #tpu.memory_space<vmem>>, vector<2x16x16x8xf32>
    %84 = arith.truncf %83 : vector<2x16x16x8xf32> to vector<2x16x16x8xbf16>
    %c0_185 = arith.constant 0 : index
    %c0_186 = arith.constant 0 : index
    %c0_187 = arith.constant 0 : index
    %c8_188 = arith.constant 8 : index
    %85 = vector.load %arg12[%c0_185, %c0_186, %c0_187, %c8_188] : memref<2x16x16x72xbf16, #tpu.memory_space<vmem>>, vector<2x16x16x8xbf16>
    tpu.vector_store %arg12[%c0_185, %c0_186, %c0_187, %c8_188], %84 {strides = array<i32>} : memref<2x16x16x72xbf16, #tpu.memory_space<vmem>>, vector<2x16x16x8xbf16>,
    %c0_189 = arith.constant 0 : index
    %c0_190 = arith.constant 0 : index
    %c2_191 = arith.constant 2 : index
    %c0_192 = arith.constant 0 : index
    %86 = vector.load %arg11[%c0_189, %c0_190, %c2_191, %c0_192] : memref<2x18x18x8xf32, #tpu.memory_space<vmem>>, vector<2x16x16x8xf32>
    %87 = arith.truncf %86 : vector<2x16x16x8xf32> to vector<2x16x16x8xbf16>
    %c0_193 = arith.constant 0 : index
    %c0_194 = arith.constant 0 : index
    %c0_195 = arith.constant 0 : index
    %c16_196 = arith.constant 16 : index
    %88 = vector.load %arg12[%c0_193, %c0_194, %c0_195, %c16_196] : memref<2x16x16x72xbf16, #tpu.memory_space<vmem>>, vector<2x16x16x8xbf16>
    tpu.vector_store %arg12[%c0_193, %c0_194, %c0_195, %c16_196], %87 {strides = array<i32>} : memref<2x16x16x72xbf16, #tpu.memory_space<vmem>>, vector<2x16x16x8xbf16>,
    %c0_197 = arith.constant 0 : index
    %c1_198 = arith.constant 1 : index
    %c0_199 = arith.constant 0 : index
    %c0_200 = arith.constant 0 : index
    %89 = vector.load %arg11[%c0_197, %c1_198, %c0_199, %c0_200] : memref<2x18x18x8xf32, #tpu.memory_space<vmem>>, vector<2x16x16x8xf32>
    %90 = arith.truncf %89 : vector<2x16x16x8xf32> to vector<2x16x16x8xbf16>
    %c0_201 = arith.constant 0 : index
    %c0_202 = arith.constant 0 : index
    %c0_203 = arith.constant 0 : index
    %c24_204 = arith.constant 24 : index
    %91 = vector.load %arg12[%c0_201, %c0_202, %c0_203, %c24_204] : memref<2x16x16x72xbf16, #tpu.memory_space<vmem>>, vector<2x16x16x8xbf16>
    tpu.vector_store %arg12[%c0_201, %c0_202, %c0_203, %c24_204], %90 {strides = array<i32>} : memref<2x16x16x72xbf16, #tpu.memory_space<vmem>>, vector<2x16x16x8xbf16>,
    %c0_205 = arith.constant 0 : index
    %c1_206 = arith.constant 1 : index
    %c1_207 = arith.constant 1 : index
    %c0_208 = arith.constant 0 : index
    %92 = vector.load %arg11[%c0_205, %c1_206, %c1_207, %c0_208] : memref<2x18x18x8xf32, #tpu.memory_space<vmem>>, vector<2x16x16x8xf32>
    %93 = arith.truncf %92 : vector<2x16x16x8xf32> to vector<2x16x16x8xbf16>
    %c0_209 = arith.constant 0 : index
    %c0_210 = arith.constant 0 : index
    %c0_211 = arith.constant 0 : index
    %c32_212 = arith.constant 32 : index
    %94 = vector.load %arg12[%c0_209, %c0_210, %c0_211, %c32_212] : memref<2x16x16x72xbf16, #tpu.memory_space<vmem>>, vector<2x16x16x8xbf16>
    tpu.vector_store %arg12[%c0_209, %c0_210, %c0_211, %c32_212], %93 {strides = array<i32>} : memref<2x16x16x72xbf16, #tpu.memory_space<vmem>>, vector<2x16x16x8xbf16>,
    %c0_213 = arith.constant 0 : index
    %c1_214 = arith.constant 1 : index
    %c2_215 = arith.constant 2 : index
    %c0_216 = arith.constant 0 : index
    %95 = vector.load %arg11[%c0_213, %c1_214, %c2_215, %c0_216] : memref<2x18x18x8xf32, #tpu.memory_space<vmem>>, vector<2x16x16x8xf32>
    %96 = arith.truncf %95 : vector<2x16x16x8xf32> to vector<2x16x16x8xbf16>
    %c0_217 = arith.constant 0 : index
    %c0_218 = arith.constant 0 : index
    %c0_219 = arith.constant 0 : index
    %c40_220 = arith.constant 40 : index
    %97 = vector.load %arg12[%c0_217, %c0_218, %c0_219, %c40_220] : memref<2x16x16x72xbf16, #tpu.memory_space<vmem>>, vector<2x16x16x8xbf16>
    tpu.vector_store %arg12[%c0_217, %c0_218, %c0_219, %c40_220], %96 {strides = array<i32>} : memref<2x16x16x72xbf16, #tpu.memory_space<vmem>>, vector<2x16x16x8xbf16>,
    %c0_221 = arith.constant 0 : index
    %c2_222 = arith.constant 2 : index
    %c0_223 = arith.constant 0 : index
    %c0_224 = arith.constant 0 : index
    %98 = vector.load %arg11[%c0_221, %c2_222, %c0_223, %c0_224] : memref<2x18x18x8xf32, #tpu.memory_space<vmem>>, vector<2x16x16x8xf32>
    %99 = arith.truncf %98 : vector<2x16x16x8xf32> to vector<2x16x16x8xbf16>
    %c0_225 = arith.constant 0 : index
    %c0_226 = arith.constant 0 : index
    %c0_227 = arith.constant 0 : index
    %c48_228 = arith.constant 48 : index
    %100 = vector.load %arg12[%c0_225, %c0_226, %c0_227, %c48_228] : memref<2x16x16x72xbf16, #tpu.memory_space<vmem>>, vector<2x16x16x8xbf16>
    tpu.vector_store %arg12[%c0_225, %c0_226, %c0_227, %c48_228], %99 {strides = array<i32>} : memref<2x16x16x72xbf16, #tpu.memory_space<vmem>>, vector<2x16x16x8xbf16>,
    %c0_229 = arith.constant 0 : index
    %c2_230 = arith.constant 2 : index
    %c1_231 = arith.constant 1 : index
    %c0_232 = arith.constant 0 : index
    %101 = vector.load %arg11[%c0_229, %c2_230, %c1_231, %c0_232] : memref<2x18x18x8xf32, #tpu.memory_space<vmem>>, vector<2x16x16x8xf32>
    %102 = arith.truncf %101 : vector<2x16x16x8xf32> to vector<2x16x16x8xbf16>
    %c0_233 = arith.constant 0 : index
    %c0_234 = arith.constant 0 : index
    %c0_235 = arith.constant 0 : index
    %c56_236 = arith.constant 56 : index
    %103 = vector.load %arg12[%c0_233, %c0_234, %c0_235, %c56_236] : memref<2x16x16x72xbf16, #tpu.memory_space<vmem>>, vector<2x16x16x8xbf16>
    tpu.vector_store %arg12[%c0_233, %c0_234, %c0_235, %c56_236], %102 {strides = array<i32>} : memref<2x16x16x72xbf16, #tpu.memory_space<vmem>>, vector<2x16x16x8xbf16>,
    %c0_237 = arith.constant 0 : index
    %c2_238 = arith.constant 2 : index
    %c2_239 = arith.constant 2 : index
    %c0_240 = arith.constant 0 : index
    %104 = vector.load %arg11[%c0_237, %c2_238, %c2_239, %c0_240] : memref<2x18x18x8xf32, #tpu.memory_space<vmem>>, vector<2x16x16x8xf32>
    %105 = arith.truncf %104 : vector<2x16x16x8xf32> to vector<2x16x16x8xbf16>
    %c0_241 = arith.constant 0 : index
    %c0_242 = arith.constant 0 : index
    %c0_243 = arith.constant 0 : index
    %c64_244 = arith.constant 64 : index
    %106 = vector.load %arg12[%c0_241, %c0_242, %c0_243, %c64_244] : memref<2x16x16x72xbf16, #tpu.memory_space<vmem>>, vector<2x16x16x8xbf16>
    tpu.vector_store %arg12[%c0_241, %c0_242, %c0_243, %c64_244], %105 {strides = array<i32>} : memref<2x16x16x72xbf16, #tpu.memory_space<vmem>>, vector<2x16x16x8xbf16>,
    %c0_245 = arith.constant 0 : index
    %c0_246 = arith.constant 0 : index
    %c0_247 = arith.constant 0 : index
    %c0_248 = arith.constant 0 : index
    %107 = vector.load %arg12[%c0_245, %c0_246, %c0_247, %c0_248] : memref<2x16x16x72xbf16, #tpu.memory_space<vmem>>, vector<2x16x16x72xbf16>
    %108 = vector.shape_cast %107 : vector<2x16x16x72xbf16> to vector<512x72xbf16>
    %c0_249 = arith.constant 0 : index
    %c0_250 = arith.constant 0 : index
    %109 = vector.load %arg6[%c0_249, %c0_250] : memref<72x8xbf16, #tpu.memory_space<vmem>>, vector<72x8xbf16>
    %cst_251 = arith.constant dense<0.000000e+00> : vector<512x8xf32>
    %110 = tpu.matmul %108, %109, %cst_251 {dimension_numbers = #tpu.dot_dimension_numbers<[1], [0], [0], [1], [0, 0, 1, 1], [], []>} : vector<512x72xbf16>, vector<72x8xbf16>, vector<512x8xf32> -> vector<512x8xf32>
    %c0_252 = arith.constant 0 : index
    %c0_253 = arith.constant 0 : index
    %111 = vector.load %arg7[%c0_252, %c0_253] : memref<1x8xf32, #tpu.memory_space<vmem>>, vector<1x8xf32>
    %112 = vector.broadcast %111 : vector<1x8xf32> to vector<512x8xf32>
    %113 = arith.addf %110, %112 : vector<512x8xf32>
    %114 = arith.addf %113, %39 : vector<512x8xf32>
    %cst_254 = arith.constant 0.000000e+00 : f32
    %115 = vector.broadcast %cst_254 : f32 to vector<512x8xf32>
    %116 = arith.maximumf %114, %115 : vector<512x8xf32>
    %117 = vector.shape_cast %116 : vector<512x8xf32> to vector<2x256x8xf32>
    %cst_255 = arith.constant dense<0.000000e+00> : vector<2x8xf32>
    %118 = vector.multi_reduction <add>, %117, %cst_255 [1] : vector<2x256x8xf32> to vector<2x8xf32>
    %cst_256 = arith.constant 3.906250e-03 : f32
    %119 = vector.broadcast %cst_256 : f32 to vector<2x8xf32>
    %120 = arith.mulf %118, %119 : vector<2x8xf32>
    %121 = arith.truncf %120 : vector<2x8xf32> to vector<2x8xbf16>
    %c0_257 = arith.constant 0 : index
    %c0_258 = arith.constant 0 : index
    %122 = vector.load %arg8[%c0_257, %c0_258] : memref<8x16xbf16, #tpu.memory_space<vmem>>, vector<8x16xbf16>
    %cst_259 = arith.constant dense<0.000000e+00> : vector<2x16xf32>
    %123 = tpu.matmul %121, %122, %cst_259 {dimension_numbers = #tpu.dot_dimension_numbers<[1], [0], [0], [1], [0, 0, 1, 1], [], []>} : vector<2x8xbf16>, vector<8x16xbf16>, vector<2x16xf32> -> vector<2x16xf32>
    %c0_260 = arith.constant 0 : index
    %c0_261 = arith.constant 0 : index
    %124 = vector.load %arg9[%c0_260, %c0_261] : memref<1x16xf32, #tpu.memory_space<vmem>>, vector<1x16xf32>
    %125 = vector.broadcast %124 : vector<1x16xf32> to vector<2x16xf32>
    %126 = arith.addf %123, %125 : vector<2x16xf32>
    %c0_262 = arith.constant 0 : index
    %c0_263 = arith.constant 0 : index
    %c0_264 = arith.constant 0 : index
    %127 = vector.load %arg10[%c0_262, %c0_263, %c0_264] : memref<1x2x16xf32, #tpu.memory_space<vmem>>, vector<1x2x16xf32>
    %128 = vector.shape_cast %127 : vector<1x2x16xf32> to vector<2x16xf32>
    %129 = vector.shape_cast %126 : vector<2x16xf32> to vector<1x2x16xf32>
    tpu.vector_store %arg10[%c0_262, %c0_263, %c0_264], %129 {strides = array<i32>} : memref<1x2x16xf32, #tpu.memory_space<vmem>>, vector<1x2x16xf32>,
    return
  }
  func.func @transform_0(%arg0: i32) -> (i32, i32, i32, i32) {
    %c0_i32 = arith.constant 0 : i32
    %c0_i32_0 = arith.constant 0 : i32
    %c0_i32_1 = arith.constant 0 : i32
    %c0_i32_2 = arith.constant 0 : i32
    return %arg0, %c0_i32, %c0_i32_0, %c0_i32_1 : i32, i32, i32, i32
  }
  func.func @transform_1(%arg0: i32) -> (i32, i32) {
    %c0_i32 = arith.constant 0 : i32
    %c0_i32_0 = arith.constant 0 : i32
    %c0_i32_1 = arith.constant 0 : i32
    return %c0_i32, %c0_i32_0 : i32, i32
  }
  func.func @transform_2(%arg0: i32) -> (i32, i32) {
    %c0_i32 = arith.constant 0 : i32
    %c0_i32_0 = arith.constant 0 : i32
    %c0_i32_1 = arith.constant 0 : i32
    return %c0_i32, %c0_i32_0 : i32, i32
  }
  func.func @transform_3(%arg0: i32) -> (i32, i32) {
    %c0_i32 = arith.constant 0 : i32
    %c0_i32_0 = arith.constant 0 : i32
    %c0_i32_1 = arith.constant 0 : i32
    return %c0_i32, %c0_i32_0 : i32, i32
  }
  func.func @transform_4(%arg0: i32) -> (i32, i32) {
    %c0_i32 = arith.constant 0 : i32
    %c0_i32_0 = arith.constant 0 : i32
    %c0_i32_1 = arith.constant 0 : i32
    return %c0_i32, %c0_i32_0 : i32, i32
  }
  func.func @transform_5(%arg0: i32) -> (i32, i32) {
    %c0_i32 = arith.constant 0 : i32
    %c0_i32_0 = arith.constant 0 : i32
    %c0_i32_1 = arith.constant 0 : i32
    return %c0_i32, %c0_i32_0 : i32, i32
  }
  func.func @transform_6(%arg0: i32) -> (i32, i32) {
    %c0_i32 = arith.constant 0 : i32
    %c0_i32_0 = arith.constant 0 : i32
    %c0_i32_1 = arith.constant 0 : i32
    return %c0_i32, %c0_i32_0 : i32, i32
  }
  func.func @transform_7(%arg0: i32) -> (i32, i32) {
    %c0_i32 = arith.constant 0 : i32
    %c0_i32_0 = arith.constant 0 : i32
    %c0_i32_1 = arith.constant 0 : i32
    return %c0_i32, %c0_i32_0 : i32, i32
  }
  func.func @transform_8(%arg0: i32) -> (i32, i32) {
    %c0_i32 = arith.constant 0 : i32
    %c0_i32_0 = arith.constant 0 : i32
    %c0_i32_1 = arith.constant 0 : i32
    return %c0_i32, %c0_i32_0 : i32, i32
  }
  func.func @transform_9(%arg0: i32) -> (i32, i32, i32) {
    %c0_i32 = arith.constant 0 : i32
    %c0_i32_0 = arith.constant 0 : i32
    %c0_i32_1 = arith.constant 0 : i32
    return %arg0, %c0_i32, %c0_i32_0 : i32, i32, i32
  }
}

</mosaic_0001>

<llo_original>
// kernel: siamese_resnet_forward.1
$region0: #{siamese_resnet_forward.1}
  #allocation0 [shape = 'u32[]', space=smem, size = 0x4, offset = 0x4, fixed_abs, tag = 'smem constant byte address 0x4 - core index']
  #allocation1 [shape = 'u32[144,128]{1,0:T(1,128)}', space=vmem, size = 0x12000, scoped, tag = 'internal scratch']
  #allocation2 [shape = 'f32[2,18,18,8]{3,2,1,0:T(8,128)}', space=vmem, size = 0x6c000, scoped, tag = 'scratch operand']
  #allocation3 [shape = 'bf16[2,16,16,72]{3,2,1,0:T(16,128)(2,1)}', space=vmem, size = 0x20000, scoped, tag = 'scratch operand']
  %s0 = inlined_call_operand.vmem [shape: f32[4,16,16,8], index: 0, kind: input, shape index: {}]
  %s1 = inlined_call_operand.vmem [shape: bf16[72,8], index: 1, kind: input, shape index: {}]
  %s2 = inlined_call_operand.vmem [shape: f32[1,8], index: 2, kind: input, shape index: {}]
  %s3 = inlined_call_operand.vmem [shape: bf16[72,8], index: 3, kind: input, shape index: {}]
  %s4 = inlined_call_operand.vmem [shape: f32[1,8], index: 4, kind: input, shape index: {}]
  %s5 = inlined_call_operand.vmem [shape: bf16[72,8], index: 5, kind: input, shape index: {}]
  %s6 = inlined_call_operand.vmem [shape: f32[1,8], index: 6, kind: input, shape index: {}]
  %s7 = inlined_call_operand.vmem [shape: bf16[8,16], index: 7, kind: input, shape index: {}]
  %s8 = inlined_call_operand.vmem [shape: f32[1,16], index: 8, kind: input, shape index: {}]
  %s9 = inlined_call_operand.vmem [shape: f32[2,2,16], index: 9, kind: output, shape index: {}]
  %s10 = sld [smem:[#allocation0]]
  $region69: #{siamese_resnet_forward.1} parent=0
    _
  %s12 = ssub.s32 1, %s10
  %s13 = scalar_select 0, %s12, %s10
  loop: start=0, step=1, limit=4
  $region2: #{siamese_resnet_forward.1} parent=0 // loop_pre_header
    _
  $region3: #{siamese_resnet_forward.1} parent=0 // loop_header
    %s15 = sphi 0, %s19
    %p16 = scmp.ge.s32.totalorder %s15, 4
    %s25 = sphi 0, %s27
    %s28 = sphi 0, %s25
    %s29 = sphi 0, %s28
    %s45 = sphi 0, %s29
    %s49 = sphi 0, %s49
    %s51 = sphi 0, %s49
    %s52 = sphi 0, %s51
    %s66 = sphi 0, %s52
    %s70 = sphi 0, %s70
    %s72 = sphi 0, %s70
    %s73 = sphi 0, %s72
    %s87 = sphi 0, %s73
    %s91 = sphi 0, %s91
    %s93 = sphi 0, %s91
    %s94 = sphi 0, %s93
    %s108 = sphi 0, %s94
    %s112 = sphi 0, %s112
    %s114 = sphi 0, %s112
    %s115 = sphi 0, %s114
    %s129 = sphi 0, %s115
    %s133 = sphi 0, %s133
    %s135 = sphi 0, %s133
    %s136 = sphi 0, %s135
    %s150 = sphi 0, %s136
    %s154 = sphi 0, %s154
    %s156 = sphi 0, %s154
    %s157 = sphi 0, %s156
    %s171 = sphi 0, %s157
    %s175 = sphi 0, %s175
    %s177 = sphi 0, %s175
    %s178 = sphi 0, %s177
    %s192 = sphi 0, %s178
    %s196 = sphi 0, %s196
    %s198 = sphi 0, %s196
    %s199 = sphi 0, %s198
    %s213 = sphi 0, %s199
    %s219 = sphi 0, %s221
    %s222 = sphi 0, %s219
    %s223 = sphi 0, %s222
    %s239 = sphi 0, %s223
  $region4: #{siamese_resnet_forward.1} parent=0 // loop_header_branch
    %18 = sbr.rel (%p16) target = $region8
  $region5: #{siamese_resnet_forward.1} parent=0 // loop_body
    %s20 = ssub.s32 %s15, 1
    %s21 = ssub.s32 %s15, 2
    %s22 = sadd.s32 %s15, 1
    %s23 = ssub.s32 %s15, %s22
    %p24 = scmp.eq.s32.totalorder %s23, 0
    %s26 = sadd.s32 %s25, 1
    %s27 = scalar_select %p24, %s25, %s26
    %p30 = pneg %p24
    %p31 = scmp.eq.s32.totalorder %s15, 1
    %p32 = por %p30, %p31
    %p33 = scmp.ne.s32.totalorder %s25, %s28
    %p34 = scmp.eq.s32.totalorder %s15, 0
    %p35 = por %p33, %p34
    %p36 = scmp.ne.s32.totalorder %s25, %s28
    %p37 = scmp.eq.s32.totalorder %s20, 1
    %p38 = por %p36, %p37
    %p39 = scmp.ne.s32.totalorder %s28, %s29
    %p40 = scmp.eq.s32.totalorder %s20, 0
    %p41 = por %p39, %p40
    %p42 = scmp.ne.s32.totalorder %s28, %s29
    %p43 = scmp.eq.s32.totalorder %s21, 1
    %p44 = por %p42, %p43
    %p46 = scmp.ne.s32.totalorder %s29, %s45
    %p47 = scmp.eq.s32.totalorder %s21, 0
    %p48 = por %p46, %p47
    %s50 = sadd.s32 %s49, 1
    %p53 = scmp.eq.s32.totalorder %s15, 1
    %p54 = scmp.ne.s32.totalorder %s49, %s51
    %p55 = scmp.eq.s32.totalorder %s15, 0
    %p56 = por %p54, %p55
    %p57 = scmp.ne.s32.totalorder %s49, %s51
    %p58 = scmp.eq.s32.totalorder %s20, 1
    %p59 = por %p57, %p58
    %p60 = scmp.ne.s32.totalorder %s51, %s52
    %p61 = scmp.eq.s32.totalorder %s20, 0
    %p62 = por %p60, %p61
    %p63 = scmp.ne.s32.totalorder %s51, %s52
    %p64 = scmp.eq.s32.totalorder %s21, 1
    %p65 = por %p63, %p64
    %p67 = scmp.ne.s32.totalorder %s52, %s66
    %p68 = scmp.eq.s32.totalorder %s21, 0
    %p69 = por %p67, %p68
    %s71 = sadd.s32 %s70, 1
    %p74 = scmp.eq.s32.totalorder %s15, 1
    %p75 = scmp.ne.s32.totalorder %s70, %s72
    %p76 = scmp.eq.s32.totalorder %s15, 0
    %p77 = por %p75, %p76
    %p78 = scmp.ne.s32.totalorder %s70, %s72
    %p79 = scmp.eq.s32.totalorder %s20, 1
    %p80 = por %p78, %p79
    %p81 = scmp.ne.s32.totalorder %s72, %s73
    %p82 = scmp.eq.s32.totalorder %s20, 0
    %p83 = por %p81, %p82
    %p84 = scmp.ne.s32.totalorder %s72, %s73
    %p85 = scmp.eq.s32.totalorder %s21, 1
    %p86 = por %p84, %p85
    %p88 = scmp.ne.s32.totalorder %s73, %s87
    %p89 = scmp.eq.s32.totalorder %s21, 0
    %p90 = por %p88, %p89
    %s92 = sadd.s32 %s91, 1
    %p95 = scmp.eq.s32.totalorder %s15, 1
    %p96 = scmp.ne.s32.totalorder %s91, %s93
    %p97 = scmp.eq.s32.totalorder %s15, 0
    %p98 = por %p96, %p97
    %p99 = scmp.ne.s32.totalorder %s91, %s93
    %p100 = scmp.eq.s32.totalorder %s20, 1
    %p101 = por %p99, %p100
    %p102 = scmp.ne.s32.totalorder %s93, %s94
    %p103 = scmp.eq.s32.totalorder %s20, 0
    %p104 = por %p102, %p103
    %p105 = scmp.ne.s32.totalorder %s93, %s94
    %p106 = scmp.eq.s32.totalorder %s21, 1
    %p107 = por %p105, %p106
    %p109 = scmp.ne.s32.totalorder %s94, %s108
    %p110 = scmp.eq.s32.totalorder %s21, 0
    %p111 = por %p109, %p110
    %s113 = sadd.s32 %s112, 1
    %p116 = scmp.eq.s32.totalorder %s15, 1
    %p117 = scmp.ne.s32.totalorder %s112, %s114
    %p118 = scmp.eq.s32.totalorder %s15, 0
    %p119 = por %p117, %p118
    %p120 = scmp.ne.s32.totalorder %s112, %s114
    %p121 = scmp.eq.s32.totalorder %s20, 1
    %p122 = por %p120, %p121
    %p123 = scmp.ne.s32.totalorder %s114, %s115
    %p124 = scmp.eq.s32.totalorder %s20, 0
    %p125 = por %p123, %p124
    %p126 = scmp.ne.s32.totalorder %s114, %s115
    %p127 = scmp.eq.s32.totalorder %s21, 1
    %p128 = por %p126, %p127
    %p130 = scmp.ne.s32.totalorder %s115, %s129
    %p131 = scmp.eq.s32.totalorder %s21, 0
    %p132 = por %p130, %p131
    %s134 = sadd.s32 %s133, 1
    %p137 = scmp.eq.s32.totalorder %s15, 1
    %p138 = scmp.ne.s32.totalorder %s133, %s135
    %p139 = scmp.eq.s32.totalorder %s15, 0
    %p140 = por %p138, %p139
    %p141 = scmp.ne.s32.totalorder %s133, %s135
    %p142 = scmp.eq.s32.totalorder %s20, 1
    %p143 = por %p141, %p142
    %p144 = scmp.ne.s32.totalorder %s135, %s136
    %p145 = scmp.eq.s32.totalorder %s20, 0
    %p146 = por %p144, %p145
    %p147 = scmp.ne.s32.totalorder %s135, %s136
    %p148 = scmp.eq.s32.totalorder %s21, 1
    %p149 = por %p147, %p148
    %p151 = scmp.ne.s32.totalorder %s136, %s150
    %p152 = scmp.eq.s32.totalorder %s21, 0
    %p153 = por %p151, %p152
    %s155 = sadd.s32 %s154, 1
    %p158 = scmp.eq.s32.totalorder %s15, 1
    %p159 = scmp.ne.s32.totalorder %s154, %s156
    %p160 = scmp.eq.s32.totalorder %s15, 0
    %p161 = por %p159, %p160
    %p162 = scmp.ne.s32.totalorder %s154, %s156
    %p163 = scmp.eq.s32.totalorder %s20, 1
    %p164 = por %p162, %p163
    %p165 = scmp.ne.s32.totalorder %s156, %s157
    %p166 = scmp.eq.s32.totalorder %s20, 0
    %p167 = por %p165, %p166
    %p168 = scmp.ne.s32.totalorder %s156, %s157
    %p169 = scmp.eq.s32.totalorder %s21, 1
    %p170 = por %p168, %p169
    %p172 = scmp.ne.s32.totalorder %s157, %s171
    %p173 = scmp.eq.s32.totalorder %s21, 0
    %p174 = por %p172, %p173
    %s176 = sadd.s32 %s175, 1
    %p179 = scmp.eq.s32.totalorder %s15, 1
    %p180 = scmp.ne.s32.totalorder %s175, %s177
    %p181 = scmp.eq.s32.totalorder %s15, 0
    %p182 = por %p180, %p181
    %p183 = scmp.ne.s32.totalorder %s175, %s177
    %p184 = scmp.eq.s32.totalorder %s20, 1
    %p185 = por %p183, %p184
    %p186 = scmp.ne.s32.totalorder %s177, %s178
    %p187 = scmp.eq.s32.totalorder %s20, 0
    %p188 = por %p186, %p187
    %p189 = scmp.ne.s32.totalorder %s177, %s178
    %p190 = scmp.eq.s32.totalorder %s21, 1
    %p191 = por %p189, %p190
    %p193 = scmp.ne.s32.totalorder %s178, %s192
    %p194 = scmp.eq.s32.totalorder %s21, 0
    %p195 = por %p193, %p194
    %s197 = sadd.s32 %s196, 1
    %p200 = scmp.eq.s32.totalorder %s15, 1
    %p201 = scmp.ne.s32.totalorder %s196, %s198
    %p202 = scmp.eq.s32.totalorder %s15, 0
    %p203 = por %p201, %p202
    %p204 = scmp.ne.s32.totalorder %s196, %s198
    %p205 = scmp.eq.s32.totalorder %s20, 1
    %p206 = por %p204, %p205
    %p207 = scmp.ne.s32.totalorder %s198, %s199
    %p208 = scmp.eq.s32.totalorder %s20, 0
    %p209 = por %p207, %p208
    %p210 = scmp.ne.s32.totalorder %s198, %s199
    %p211 = scmp.eq.s32.totalorder %s21, 1
    %p212 = por %p210, %p211
    %p214 = scmp.ne.s32.totalorder %s199, %s213
    %p215 = scmp.eq.s32.totalorder %s21, 0
    %p216 = por %p214, %p215
    %s217 = ssub.s32 %s15, %s22
    %p218 = scmp.eq.s32.totalorder %s217, 0
    %s220 = sadd.s32 %s219, 1
    %s221 = scalar_select %p218, %s219, %s220
    %p224 = pneg %p218
    %p225 = scmp.eq.s32.totalorder %s15, 1
    %p226 = por %p224, %p225
    %p227 = scmp.ne.s32.totalorder %s219, %s222
    %p228 = scmp.eq.s32.totalorder %s15, 0
    %p229 = por %p227, %p228
    %p230 = scmp.ne.s32.totalorder %s219, %s222
    %p231 = scmp.eq.s32.totalorder %s20, 1
    %p232 = por %p230, %p231
    %p233 = scmp.ne.s32.totalorder %s222, %s223
    %p234 = scmp.eq.s32.totalorder %s20, 0
    %p235 = por %p233, %p234
    %p236 = scmp.ne.s32.totalorder %s222, %s223
    %p237 = scmp.eq.s32.totalorder %s21, 1
    %p238 = por %p236, %p237
    %p240 = scmp.ne.s32.totalorder %s223, %s239
    %p241 = scmp.eq.s32.totalorder %s21, 0
    %p242 = por %p240, %p241
    %p243 = scmp.le.s32.totalorder 1, %s15
    %p244 = scmp.lt.s32.totalorder %s15, 3
    %p245 = pnand %p243, %p244
    %p246 = pneg %p245
    // Predicated region
    $region9: #{siamese_resnet_forward.1} parent=5 // pred_check
      _
    $region10: #{siamese_resnet_forward.1} parent=5 // pred_check_branch
      %248 = sbr.rel (%p245) target = $region12
    $region11: #{siamese_resnet_forward.1} parent=5 // pred_region
      %s249 = ssub.s32 %s15, 1
      // Predicated region
      $region13: #{siamese_resnet_forward.1} parent=11 // pred_check
        %p250 = pneg %p62
      $region14: #{siamese_resnet_forward.1} parent=11 // pred_check_branch
        %252 = sbr.rel (%p250) target = $region16
      $region15: #{siamese_resnet_forward.1} parent=11 // pred_region
        _
      $region16: #{siamese_resnet_forward.1} parent=11 // pred_fallthru
        _
      // Predicated region
      $region17: #{siamese_resnet_forward.1} parent=11 // pred_check
        %p253 = pneg %p83
      $region18: #{siamese_resnet_forward.1} parent=11 // pred_check_branch
        %255 = sbr.rel (%p253) target = $region20
      $region19: #{siamese_resnet_forward.1} parent=11 // pred_region
        _
      $region20: #{siamese_resnet_forward.1} parent=11 // pred_fallthru
        _
      // Predicated region
      $region21: #{siamese_resnet_forward.1} parent=11 // pred_check
        %p256 = pneg %p104
      $region22: #{siamese_resnet_forward.1} parent=11 // pred_check_branch
        %258 = sbr.rel (%p256) target = $region24
      $region23: #{siamese_resnet_forward.1} parent=11 // pred_region
        _
      $region24: #{siamese_resnet_forward.1} parent=11 // pred_fallthru
        _
      // Predicated region
      $region25: #{siamese_resnet_forward.1} parent=11 // pred_check
        %p259 = pneg %p125
      $region26: #{siamese_resnet_forward.1} parent=11 // pred_check_branch
        %261 = sbr.rel (%p259) target = $region28
      $region27: #{siamese_resnet_forward.1} parent=11 // pred_region
        _
      $region28: #{siamese_resnet_forward.1} parent=11 // pred_fallthru
        _
      // Predicated region
      $region29: #{siamese_resnet_forward.1} parent=11 // pred_check
        %p262 = pneg %p146
      $region30: #{siamese_resnet_forward.1} parent=11 // pred_check_branch
        %264 = sbr.rel (%p262) target = $region32
      $region31: #{siamese_resnet_forward.1} parent=11 // pred_region
        _
      $region32: #{siamese_resnet_forward.1} parent=11 // pred_fallthru
        _
      // Predicated region
      $region33: #{siamese_resnet_forward.1} parent=11 // pred_check
        %p265 = pneg %p167
      $region34: #{siamese_resnet_forward.1} parent=11 // pred_check_branch
        %267 = sbr.rel (%p265) target = $region36
      $region35: #{siamese_resnet_forward.1} parent=11 // pred_region
        _
      $region36: #{siamese_resnet_forward.1} parent=11 // pred_fallthru
        _
      // Predicated region
      $region37: #{siamese_resnet_forward.1} parent=11 // pred_check
        %p268 = pneg %p188
      $region38: #{siamese_resnet_forward.1} parent=11 // pred_check_branch
        %270 = sbr.rel (%p268) target = $region40
      $region39: #{siamese_resnet_forward.1} parent=11 // pred_region
        _
      $region40: #{siamese_resnet_forward.1} parent=11 // pred_fallthru
        _
      // Predicated region
      $region41: #{siamese_resnet_forward.1} parent=11 // pred_check
        %p271 = pneg %p209
      $region42: #{siamese_resnet_forward.1} parent=11 // pred_check_branch
        %273 = sbr.rel (%p271) target = $region44
      $region43: #{siamese_resnet_forward.1} parent=11 // pred_region
        _
      $region44: #{siamese_resnet_forward.1} parent=11 // pred_fallthru
        _
    $region12: #{siamese_resnet_forward.1} parent=5 // pred_fallthru
      _
    %p274 = scmp.lt.s32.totalorder %s15, 2
    // Predicated region
    $region45: #{siamese_resnet_forward.1} parent=5 // pred_check
      %p275 = pneg %p274
    $region46: #{siamese_resnet_forward.1} parent=5 // pred_check_branch
      %277 = sbr.rel (%p275) target = $region48
    $region47: #{siamese_resnet_forward.1} parent=5 // pred_region
      // Predicated region
      $region49: #{siamese_resnet_forward.1} parent=47 // pred_check
        %p278 = pneg %p35
      $region50: #{siamese_resnet_forward.1} parent=47 // pred_check_branch
        %280 = sbr.rel (%p278) target = $region52
      $region51: #{siamese_resnet_forward.1} parent=47 // pred_region
        %s281 = smul.u32 2, %s15
        %p282 = scmp.lt.s32.totalorder %s281, 3
        %s283 = scalar_select %p282, %s281, 3
        %s284 = smul.addr %s283, 32
        %s285 = smul.addr %s284, 8
        %s286 = scalar_lea.vmem %s0, %s285
        %s287 = smul.u32 2, %s15
      $region52: #{siamese_resnet_forward.1} parent=47 // pred_fallthru
        _
    $region48: #{siamese_resnet_forward.1} parent=5 // pred_fallthru
      _
    %p288 = scmp.le.s32.totalorder 1, %s15
    %p289 = scmp.lt.s32.totalorder %s15, 3
    %p290 = pnand %p288, %p289
    %p291 = pneg %p290
    // Predicated region
    $region53: #{siamese_resnet_forward.1} parent=5 // pred_check
      _
    $region54: #{siamese_resnet_forward.1} parent=5 // pred_check_branch
      %293 = sbr.rel (%p290) target = $region56
    $region55: #{siamese_resnet_forward.1} parent=5 // pred_region
      %s294 = ssub.s32 %s15, 1
      %s295 = smul.u32 2, %s20
      %p296 = scmp.lt.s32.totalorder %s295, 3
      %s297 = scalar_select %p296, %s295, 3
      %s298 = smul.addr %s297, 32
      %s299 = smul.addr %s298, 8
      %s300 = scalar_lea.vmem %s0, %s299
      %p301 = pneg %p41
      %p302 = pneg %p38
      %p303 = pneg %p62
      %p304 = pneg %p59
      %p305 = pneg %p83
      %p306 = pneg %p80
      %p307 = pneg %p104
      %p308 = pneg %p101
      %p309 = pneg %p125
      %p310 = pneg %p122
      %p311 = pneg %p146
      %p312 = pneg %p143
      %p313 = pneg %p167
      %p314 = pneg %p164
      %p315 = pneg %p188
      %p316 = pneg %p185
      %p317 = pneg %p209
      %p318 = pneg %p206
      %p319 = pneg %p235
      %p320 = pneg %p232
      %p321 = scmp.lt.s32.totalorder %s20, 1
      %s322 = scalar_select %p321, %s20, 1
      %s323 = smul.addr %s322, 2
      %s324 = scalar_lea.vmem %s9, %s323
      %s325 = smul.u32 2, %s20
      %p326 = scmp.lt.s32.totalorder %s325, 3
      %s327 = scalar_select %p326, %s325, 3
      %s328 = smul.addr %s327, 32
      %s329 = smul.addr %s328, 8
      %s330 = scalar_lea.vmem %s0, %s329
      %s331 = smul.u32 2, %s20
      %p332 = scmp.lt.s32.totalorder %s20, 1
      %s333 = scalar_select %p332, %s20, 1
      %s334 = smul.addr %s333, 2
      %s335 = scalar_lea.vmem %s9, %s334
      %vm337 = vcmask 64512
      %338 = vst.msk [vmem:[#allocation2] sm:$0xff] %vm337, 0.0
      %339 = vst.msk [vmem:[#allocation2 + $0x8] sm:$0xff] %vm337, 0.0
      %vm340 = vcmask 58368
      %341 = vst.msk [vmem:[#allocation2 + $0x10] sm:$0x3] %vm340, 0.0
      %342 = vst.msk [vmem:[#allocation2 + $0x18] sm:$0xff] %vm337, 0.0
      %343 = vst.msk [vmem:[#allocation2 + $0x20] sm:$0xff] %vm337, 0.0
      %344 = vst.msk [vmem:[#allocation2 + $0x28] sm:$0x3] %vm340, 0.0
      %345 = vst.msk [vmem:[#allocation2 + $0x30] sm:$0xff] %vm337, 0.0
      %346 = vst.msk [vmem:[#allocation2 + $0x38] sm:$0xff] %vm337, 0.0
      %347 = vst.msk [vmem:[#allocation2 + $0x40] sm:$0x3] %vm340, 0.0
      %348 = vst.msk [vmem:[#allocation2 + $0x48] sm:$0xff] %vm337, 0.0
      %349 = vst.msk [vmem:[#allocation2 + $0x50] sm:$0xff] %vm337, 0.0
      %350 = vst.msk [vmem:[#allocation2 + $0x58] sm:$0x3] %vm340, 0.0
      %351 = vst.msk [vmem:[#allocation2 + $0x60] sm:$0xff] %vm337, 0.0
      %352 = vst.msk [vmem:[#allocation2 + $0x68] sm:$0xff] %vm337, 0.0
      %353 = vst.msk [vmem:[#allocation2 + $0x70] sm:$0x3] %vm340, 0.0
      %354 = vst.msk [vmem:[#allocation2 + $0x78] sm:$0xff] %vm337, 0.0
      %355 = vst.msk [vmem:[#allocation2 + $0x80] sm:$0xff] %vm337, 0.0
      %356 = vst.msk [vmem:[#allocation2 + $0x88] sm:$0x3] %vm340, 0.0
      %357 = vst.msk [vmem:[#allocation2 + $0x90] sm:$0xff] %vm337, 0.0
      %358 = vst.msk [vmem:[#allocation2 + $0x98] sm:$0xff] %vm337, 0.0
      %359 = vst.msk [vmem:[#allocation2 + $0xa0] sm:$0x3] %vm340, 0.0
      %360 = vst.msk [vmem:[#allocation2 + $0xa8] sm:$0xff] %vm337, 0.0
      %361 = vst.msk [vmem:[#allocation2 + $0xb0] sm:$0xff] %vm337, 0.0
      %362 = vst.msk [vmem:[#allocation2 + $0xb8] sm:$0x3] %vm340, 0.0
      %363 = vst.msk [vmem:[#allocation2 + $0xc0] sm:$0xff] %vm337, 0.0
      %364 = vst.msk [vmem:[#allocation2 + $0xc8] sm:$0xff] %vm337, 0.0
      %365 = vst.msk [vmem:[#allocation2 + $0xd0] sm:$0x3] %vm340, 0.0
      %366 = vst.msk [vmem:[#allocation2 + $0xd8] sm:$0xff] %vm337, 0.0
      %367 = vst.msk [vmem:[#allocation2 + $0xe0] sm:$0xff] %vm337, 0.0
      %368 = vst.msk [vmem:[#allocation2 + $0xe8] sm:$0x3] %vm340, 0.0
      %369 = vst.msk [vmem:[#allocation2 + $0xf0] sm:$0xff] %vm337, 0.0
      %370 = vst.msk [vmem:[#allocation2 + $0xf8] sm:$0xff] %vm337, 0.0
      %371 = vst.msk [vmem:[#allocation2 + $0x100] sm:$0x3] %vm340, 0.0
      %372 = vst.msk [vmem:[#allocation2 + $0x108] sm:$0xff] %vm337, 0.0
      %373 = vst.msk [vmem:[#allocation2 + $0x110] sm:$0xff] %vm337, 0.0
      %374 = vst.msk [vmem:[#allocation2 + $0x118] sm:$0x3] %vm340, 0.0
      %375 = vst.msk [vmem:[#allocation2 + $0x120] sm:$0xff] %vm337, 0.0
      %376 = vst.msk [vmem:[#allocation2 + $0x128] sm:$0xff] %vm337, 0.0
      %377 = vst.msk [vmem:[#allocation2 + $0x130] sm:$0x3] %vm340, 0.0
      %378 = vst.msk [vmem:[#allocation2 + $0x138] sm:$0xff] %vm337, 0.0
      %379 = vst.msk [vmem:[#allocation2 + $0x140] sm:$0xff] %vm337, 0.0
      %380 = vst.msk [vmem:[#allocation2 + $0x148] sm:$0x3] %vm340, 0.0
      %381 = vst.msk [vmem:[#allocation2 + $0x150] sm:$0xff] %vm337, 0.0
      %382 = vst.msk [vmem:[#allocation2 + $0x158] sm:$0xff] %vm337, 0.0
      %383 = vst.msk [vmem:[#allocation2 + $0x160] sm:$0x3] %vm340, 0.0
      %384 = vst.msk [vmem:[#allocation2 + $0x168] sm:$0xff] %vm337, 0.0
      %385 = vst.msk [vmem:[#allocation2 + $0x170] sm:$0xff] %vm337, 0.0
      %386 = vst.msk [vmem:[#allocation2 + $0x178] sm:$0x3] %vm340, 0.0
      %387 = vst.msk [vmem:[#allocation2 + $0x180] sm:$0xff] %vm337, 0.0
      %388 = vst.msk [vmem:[#allocation2 + $0x188] sm:$0xff] %vm337, 0.0
      %389 = vst.msk [vmem:[#allocation2 + $0x190] sm:$0x3] %vm340, 0.0
      %390 = vst.msk [vmem:[#allocation2 + $0x198] sm:$0xff] %vm337, 0.0
      %391 = vst.msk [vmem:[#allocation2 + $0x1a0] sm:$0xff] %vm337, 0.0
      %392 = vst.msk [vmem:[#allocation2 + $0x1a8] sm:$0x3] %vm340, 0.0
      %393 = vst.msk [vmem:[#allocation2 + $0x1b0] sm:$0xff] %vm337, 0.0
      %394 = vst.msk [vmem:[#allocation2 + $0x1b8] sm:$0xff] %vm337, 0.0
      %395 = vst.msk [vmem:[#allocation2 + $0x1c0] sm:$0x3] %vm340, 0.0
      %396 = vst.msk [vmem:[#allocation2 + $0x1c8] sm:$0xff] %vm337, 0.0
      %397 = vst.msk [vmem:[#allocation2 + $0x1d0] sm:$0xff] %vm337, 0.0
      %398 = vst.msk [vmem:[#allocation2 + $0x1d8] sm:$0x3] %vm340, 0.0
      %399 = vst.msk [vmem:[#allocation2 + $0x1e0] sm:$0xff] %vm337, 0.0
      %400 = vst.msk [vmem:[#allocation2 + $0x1e8] sm:$0xff] %vm337, 0.0
      %401 = vst.msk [vmem:[#allocation2 + $0x1f0] sm:$0x3] %vm340, 0.0
      %402 = vst.msk [vmem:[#allocation2 + $0x1f8] sm:$0xff] %vm337, 0.0
      %403 = vst.msk [vmem:[#allocation2 + $0x200] sm:$0xff] %vm337, 0.0
      %404 = vst.msk [vmem:[#allocation2 + $0x208] sm:$0x3] %vm340, 0.0
      %405 = vst.msk [vmem:[#allocation2 + $0x210] sm:$0xff] %vm337, 0.0
      %406 = vst.msk [vmem:[#allocation2 + $0x218] sm:$0xff] %vm337, 0.0
      %407 = vst.msk [vmem:[#allocation2 + $0x220] sm:$0x3] %vm340, 0.0
      %408 = vst.msk [vmem:[#allocation2 + $0x228] sm:$0xff] %vm337, 0.0
      %409 = vst.msk [vmem:[#allocation2 + $0x230] sm:$0xff] %vm337, 0.0
      %410 = vst.msk [vmem:[#allocation2 + $0x238] sm:$0x3] %vm340, 0.0
      %411 = vst.msk [vmem:[#allocation2 + $0x240] sm:$0xff] %vm337, 0.0
      %412 = vst.msk [vmem:[#allocation2 + $0x248] sm:$0xff] %vm337, 0.0
      %413 = vst.msk [vmem:[#allocation2 + $0x250] sm:$0x3] %vm340, 0.0
      %414 = vst.msk [vmem:[#allocation2 + $0x258] sm:$0xff] %vm337, 0.0
      %415 = vst.msk [vmem:[#allocation2 + $0x260] sm:$0xff] %vm337, 0.0
      %416 = vst.msk [vmem:[#allocation2 + $0x268] sm:$0x3] %vm340, 0.0
      %417 = vst.msk [vmem:[#allocation2 + $0x270] sm:$0xff] %vm337, 0.0
      %418 = vst.msk [vmem:[#allocation2 + $0x278] sm:$0xff] %vm337, 0.0
      %419 = vst.msk [vmem:[#allocation2 + $0x280] sm:$0x3] %vm340, 0.0
      %420 = vst.msk [vmem:[#allocation2 + $0x288] sm:$0xff] %vm337, 0.0
      %421 = vst.msk [vmem:[#allocation2 + $0x290] sm:$0xff] %vm337, 0.0
      %422 = vst.msk [vmem:[#allocation2 + $0x298] sm:$0x3] %vm340, 0.0
      %423 = vst.msk [vmem:[#allocation2 + $0x2a0] sm:$0xff] %vm337, 0.0
      %424 = vst.msk [vmem:[#allocation2 + $0x2a8] sm:$0xff] %vm337, 0.0
      %425 = vst.msk [vmem:[#allocation2 + $0x2b0] sm:$0x3] %vm340, 0.0
      %426 = vst.msk [vmem:[#allocation2 + $0x2b8] sm:$0xff] %vm337, 0.0
      %427 = vst.msk [vmem:[#allocation2 + $0x2c0] sm:$0xff] %vm337, 0.0
      %428 = vst.msk [vmem:[#allocation2 + $0x2c8] sm:$0x3] %vm340, 0.0
      %429 = vst.msk [vmem:[#allocation2 + $0x2d0] sm:$0xff] %vm337, 0.0
      %430 = vst.msk [vmem:[#allocation2 + $0x2d8] sm:$0xff] %vm337, 0.0
      %431 = vst.msk [vmem:[#allocation2 + $0x2e0] sm:$0x3] %vm340, 0.0
      %432 = vst.msk [vmem:[#allocation2 + $0x2e8] sm:$0xff] %vm337, 0.0
      %433 = vst.msk [vmem:[#allocation2 + $0x2f0] sm:$0xff] %vm337, 0.0
      %434 = vst.msk [vmem:[#allocation2 + $0x2f8] sm:$0x3] %vm340, 0.0
      %435 = vst.msk [vmem:[#allocation2 + $0x300] sm:$0xff] %vm337, 0.0
      %436 = vst.msk [vmem:[#allocation2 + $0x308] sm:$0xff] %vm337, 0.0
      %437 = vst.msk [vmem:[#allocation2 + $0x310] sm:$0x3] %vm340, 0.0
      %438 = vst.msk [vmem:[#allocation2 + $0x318] sm:$0xff] %vm337, 0.0
      %439 = vst.msk [vmem:[#allocation2 + $0x320] sm:$0xff] %vm337, 0.0
      %440 = vst.msk [vmem:[#allocation2 + $0x328] sm:$0x3] %vm340, 0.0
      %441 = vst.msk [vmem:[#allocation2 + $0x330] sm:$0xff] %vm337, 0.0
      %442 = vst.msk [vmem:[#allocation2 + $0x338] sm:$0xff] %vm337, 0.0
      %443 = vst.msk [vmem:[#allocation2 + $0x340] sm:$0x3] %vm340, 0.0
      %444 = vst.msk [vmem:[#allocation2 + $0x348] sm:$0xff] %vm337, 0.0
      %445 = vst.msk [vmem:[#allocation2 + $0x350] sm:$0xff] %vm337, 0.0
      %446 = vst.msk [vmem:[#allocation2 + $0x358] sm:$0x3] %vm340, 0.0
      %v447 = vld [vmem:[%s330] sm:$0xff]
      %v448 = vld [vmem:[%s330 + $0x8] sm:$0xff]
      %v449 = vld [vmem:[%s330 + $0x10] sm:$0xff]
      %v450 = vld [vmem:[%s330 + $0x18] sm:$0xff]
      %v451 = vld [vmem:[%s330 + $0x20] sm:$0xff]
      %v452 = vld [vmem:[%s330 + $0x28] sm:$0xff]
      %v453 = vld [vmem:[%s330 + $0x30] sm:$0xff]
      %v454 = vld [vmem:[%s330 + $0x38] sm:$0xff]
      %v455 = vld [vmem:[%s330 + $0x40] sm:$0xff]
      %v456 = vld [vmem:[%s330 + $0x48] sm:$0xff]
      %v457 = vld [vmem:[%s330 + $0x50] sm:$0xff]
      %v458 = vld [vmem:[%s330 + $0x58] sm:$0xff]
      %v459 = vld [vmem:[%s330 + $0x60] sm:$0xff]
      %v460 = vld [vmem:[%s330 + $0x68] sm:$0xff]
      %v461 = vld [vmem:[%s330 + $0x70] sm:$0xff]
      %v462 = vld [vmem:[%s330 + $0x78] sm:$0xff]
      %v463 = vld [vmem:[%s330 + $0x80] sm:$0xff]
      %v464 = vld [vmem:[%s330 + $0x88] sm:$0xff]
      %v465 = vld [vmem:[%s330 + $0x90] sm:$0xff]
      %v466 = vld [vmem:[%s330 + $0x98] sm:$0xff]
      %v467 = vld [vmem:[%s330 + $0xa0] sm:$0xff]
      %v468 = vld [vmem:[%s330 + $0xa8] sm:$0xff]
      %v469 = vld [vmem:[%s330 + $0xb0] sm:$0xff]
      %v470 = vld [vmem:[%s330 + $0xb8] sm:$0xff]
      %v471 = vld [vmem:[%s330 + $0xc0] sm:$0xff]
      %v472 = vld [vmem:[%s330 + $0xc8] sm:$0xff]
      %v473 = vld [vmem:[%s330 + $0xd0] sm:$0xff]
      %v474 = vld [vmem:[%s330 + $0xd8] sm:$0xff]
      %v475 = vld [vmem:[%s330 + $0xe0] sm:$0xff]
      %v476 = vld [vmem:[%s330 + $0xe8] sm:$0xff]
      %v477 = vld [vmem:[%s330 + $0xf0] sm:$0xff]
      %v478 = vld [vmem:[%s330 + $0xf8] sm:$0xff]
      %v479 = vld [vmem:[%s330 + $0x100] sm:$0xff]
      %v480 = vld [vmem:[%s330 + $0x108] sm:$0xff]
      %v481 = vld [vmem:[%s330 + $0x110] sm:$0xff]
      %v482 = vld [vmem:[%s330 + $0x118] sm:$0xff]
      %v483 = vld [vmem:[%s330 + $0x120] sm:$0xff]
      %v484 = vld [vmem:[%s330 + $0x128] sm:$0xff]
      %v485 = vld [vmem:[%s330 + $0x130] sm:$0xff]
      %v486 = vld [vmem:[%s330 + $0x138] sm:$0xff]
      %v487 = vld [vmem:[%s330 + $0x140] sm:$0xff]
      %v488 = vld [vmem:[%s330 + $0x148] sm:$0xff]
      %v489 = vld [vmem:[%s330 + $0x150] sm:$0xff]
      %v490 = vld [vmem:[%s330 + $0x158] sm:$0xff]
      %v491 = vld [vmem:[%s330 + $0x160] sm:$0xff]
      %v492 = vld [vmem:[%s330 + $0x168] sm:$0xff]
      %v493 = vld [vmem:[%s330 + $0x170] sm:$0xff]
      %v494 = vld [vmem:[%s330 + $0x178] sm:$0xff]
      %v495 = vld [vmem:[%s330 + $0x180] sm:$0xff]
      %v496 = vld [vmem:[%s330 + $0x188] sm:$0xff]
      %v497 = vld [vmem:[%s330 + $0x190] sm:$0xff]
      %v498 = vld [vmem:[%s330 + $0x198] sm:$0xff]
      %v499 = vld [vmem:[%s330 + $0x1a0] sm:$0xff]
      %v500 = vld [vmem:[%s330 + $0x1a8] sm:$0xff]
      %v501 = vld [vmem:[%s330 + $0x1b0] sm:$0xff]
      %v502 = vld [vmem:[%s330 + $0x1b8] sm:$0xff]
      %v503 = vld [vmem:[%s330 + $0x1c0] sm:$0xff]
      %v504 = vld [vmem:[%s330 + $0x1c8] sm:$0xff]
      %v505 = vld [vmem:[%s330 + $0x1d0] sm:$0xff]
      %v506 = vld [vmem:[%s330 + $0x1d8] sm:$0xff]
      %v507 = vld [vmem:[%s330 + $0x1e0] sm:$0xff]
      %v508 = vld [vmem:[%s330 + $0x1e8] sm:$0xff]
      %v509 = vld [vmem:[%s330 + $0x1f0] sm:$0xff]
      %v510 = vld [vmem:[%s330 + $0x1f8] sm:$0xff]
      %s511 = scalar_lea.vmem [#allocation2], 24
      %512 = vst.msk [vmem:[%s511 + $0x1] sm:$0xff] %vm337, %v447
      %513 = vst.msk [vmem:[%s511 + $0x9] sm:$0xff] %vm337, %v448
      %514 = vst.msk [vmem:[%s511 + $0x19] sm:$0xff] %vm337, %v449
      %515 = vst.msk [vmem:[%s511 + $0x21] sm:$0xff] %vm337, %v450
      %516 = vst.msk [vmem:[%s511 + $0x31] sm:$0xff] %vm337, %v451
      %517 = vst.msk [vmem:[%s511 + $0x39] sm:$0xff] %vm337, %v452
      %518 = vst.msk [vmem:[%s511 + $0x49] sm:$0xff] %vm337, %v453
      %519 = vst.msk [vmem:[%s511 + $0x51] sm:$0xff] %vm337, %v454
      %520 = vst.msk [vmem:[%s511 + $0x61] sm:$0xff] %vm337, %v455
      %521 = vst.msk [vmem:[%s511 + $0x69] sm:$0xff] %vm337, %v456
      %522 = vst.msk [vmem:[%s511 + $0x79] sm:$0xff] %vm337, %v457
      %523 = vst.msk [vmem:[%s511 + $0x81] sm:$0xff] %vm337, %v458
      %524 = vst.msk [vmem:[%s511 + $0x91] sm:$0xff] %vm337, %v459
      %525 = vst.msk [vmem:[%s511 + $0x99] sm:$0xff] %vm337, %v460
      %526 = vst.msk [vmem:[%s511 + $0xa9] sm:$0xff] %vm337, %v461
      %527 = vst.msk [vmem:[%s511 + $0xb1] sm:$0xff] %vm337, %v462
      %528 = vst.msk [vmem:[%s511 + $0xc1] sm:$0xff] %vm337, %v463
      %529 = vst.msk [vmem:[%s511 + $0xc9] sm:$0xff] %vm337, %v464
      %530 = vst.msk [vmem:[%s511 + $0xd9] sm:$0xff] %vm337, %v465
      %531 = vst.msk [vmem:[%s511 + $0xe1] sm:$0xff] %vm337, %v466
      %532 = vst.msk [vmem:[%s511 + $0xf1] sm:$0xff] %vm337, %v467
      %533 = vst.msk [vmem:[%s511 + $0xf9] sm:$0xff] %vm337, %v468
      %534 = vst.msk [vmem:[%s511 + $0x109] sm:$0xff] %vm337, %v469
      %535 = vst.msk [vmem:[%s511 + $0x111] sm:$0xff] %vm337, %v470
      %536 = vst.msk [vmem:[%s511 + $0x121] sm:$0xff] %vm337, %v471
      %537 = vst.msk [vmem:[%s511 + $0x129] sm:$0xff] %vm337, %v472
      %538 = vst.msk [vmem:[%s511 + $0x139] sm:$0xff] %vm337, %v473
      %539 = vst.msk [vmem:[%s511 + $0x141] sm:$0xff] %vm337, %v474
      %540 = vst.msk [vmem:[%s511 + $0x151] sm:$0xff] %vm337, %v475
      %541 = vst.msk [vmem:[%s511 + $0x159] sm:$0xff] %vm337, %v476
      %542 = vst.msk [vmem:[%s511 + $0x169] sm:$0xff] %vm337, %v477
      %543 = vst.msk [vmem:[%s511 + $0x171] sm:$0xff] %vm337, %v478
      %544 = vst.msk [vmem:[%s511 + $0x1b1] sm:$0xff] %vm337, %v479
      %545 = vst.msk [vmem:[%s511 + $0x1b9] sm:$0xff] %vm337, %v480
      %546 = vst.msk [vmem:[%s511 + $0x1c9] sm:$0xff] %vm337, %v481
      %547 = vst.msk [vmem:[%s511 + $0x1d1] sm:$0xff] %vm337, %v482
      %548 = vst.msk [vmem:[%s511 + $0x1e1] sm:$0xff] %vm337, %v483
      %549 = vst.msk [vmem:[%s511 + $0x1e9] sm:$0xff] %vm337, %v484
      %550 = vst.msk [vmem:[%s511 + $0x1f9] sm:$0xff] %vm337, %v485
      %551 = vst.msk [vmem:[%s511 + $0x201] sm:$0xff] %vm337, %v486
      %552 = vst.msk [vmem:[%s511 + $0x211] sm:$0xff] %vm337, %v487
      %553 = vst.msk [vmem:[%s511 + $0x219] sm:$0xff] %vm337, %v488
      %554 = vst.msk [vmem:[%s511 + $0x229] sm:$0xff] %vm337, %v489
      %555 = vst.msk [vmem:[%s511 + $0x231] sm:$0xff] %vm337, %v490
      %556 = vst.msk [vmem:[%s511 + $0x241] sm:$0xff] %vm337, %v491
      %557 = vst.msk [vmem:[%s511 + $0x249] sm:$0xff] %vm337, %v492
      %558 = vst.msk [vmem:[%s511 + $0x259] sm:$0xff] %vm337, %v493
      %559 = vst.msk [vmem:[%s511 + $0x261] sm:$0xff] %vm337, %v494
      %560 = vst.msk [vmem:[%s511 + $0x271] sm:$0xff] %vm337, %v495
      %561 = vst.msk [vmem:[%s511 + $0x279] sm:$0xff] %vm337, %v496
      %562 = vst.msk [vmem:[%s511 + $0x289] sm:$0xff] %vm337, %v497
      %563 = vst.msk [vmem:[%s511 + $0x291] sm:$0xff] %vm337, %v498
      %564 = vst.msk [vmem:[%s511 + $0x2a1] sm:$0xff] %vm337, %v499
      %565 = vst.msk [vmem:[%s511 + $0x2a9] sm:$0xff] %vm337, %v500
      %566 = vst.msk [vmem:[%s511 + $0x2b9] sm:$0xff] %vm337, %v501
      %567 = vst.msk [vmem:[%s511 + $0x2c1] sm:$0xff] %vm337, %v502
      %568 = vst.msk [vmem:[%s511 + $0x2d1] sm:$0xff] %vm337, %v503
      %569 = vst.msk [vmem:[%s511 + $0x2d9] sm:$0xff] %vm337, %v504
      %570 = vst.msk [vmem:[%s511 + $0x2e9] sm:$0xff] %vm337, %v505
      %571 = vst.msk [vmem:[%s511 + $0x2f1] sm:$0xff] %vm337, %v506
      %572 = vst.msk [vmem:[%s511 + $0x301] sm:$0xff] %vm337, %v507
      %573 = vst.msk [vmem:[%s511 + $0x309] sm:$0xff] %vm337, %v508
      %574 = vst.msk [vmem:[%s511 + $0x319] sm:$0xff] %vm337, %v509
      %575 = vst.msk [vmem:[%s511 + $0x321] sm:$0xff] %vm337, %v510
      %v576 = vld [vmem:[#allocation2] sm:$0xff]
      %v577 = vld [vmem:[#allocation2 + $0x8] sm:$0xff]
      %v578 = vld [vmem:[#allocation2 + $0x18] sm:$0xff]
      %v579 = vld [vmem:[#allocation2 + $0x20] sm:$0xff]
      %v580 = vld [vmem:[#allocation2 + $0x30] sm:$0xff]
      %v581 = vld [vmem:[#allocation2 + $0x38] sm:$0xff]
      %v582 = vld [vmem:[#allocation2 + $0x48] sm:$0xff]
      %v583 = vld [vmem:[#allocation2 + $0x50] sm:$0xff]
      %v584 = vld [vmem:[#allocation2 + $0x60] sm:$0xff]
      %v585 = vld [vmem:[#allocation2 + $0x68] sm:$0xff]
      %v586 = vld [vmem:[#allocation2 + $0x78] sm:$0xff]
      %v587 = vld [vmem:[#allocation2 + $0x80] sm:$0xff]
      %v588 = vld [vmem:[#allocation2 + $0x90] sm:$0xff]
      %v589 = vld [vmem:[#allocation2 + $0x98] sm:$0xff]
      %v590 = vld [vmem:[#allocation2 + $0xa8] sm:$0xff]
      %v591 = vld [vmem:[#allocation2 + $0xb0] sm:$0xff]
      %v592 = vld [vmem:[#allocation2 + $0xc0] sm:$0xff]
      %v593 = vld [vmem:[#allocation2 + $0xc8] sm:$0xff]
      %v594 = vld [vmem:[#allocation2 + $0xd8] sm:$0xff]
      %v595 = vld [vmem:[#allocation2 + $0xe0] sm:$0xff]
      %v596 = vld [vmem:[#allocation2 + $0xf0] sm:$0xff]
      %v597 = vld [vmem:[#allocation2 + $0xf8] sm:$0xff]
      %v598 = vld [vmem:[#allocation2 + $0x108] sm:$0xff]
      %v599 = vld [vmem:[#allocation2 + $0x110] sm:$0xff]
      %v600 = vld [vmem:[#allocation2 + $0x120] sm:$0xff]
      %v601 = vld [vmem:[#allocation2 + $0x128] sm:$0xff]
      %v602 = vld [vmem:[#allocation2 + $0x138] sm:$0xff]
      %v603 = vld [vmem:[#allocation2 + $0x140] sm:$0xff]
      %v604 = vld [vmem:[#allocation2 + $0x150] sm:$0xff]
      %v605 = vld [vmem:[#allocation2 + $0x158] sm:$0xff]
      %v606 = vld [vmem:[#allocation2 + $0x168] sm:$0xff]
      %v607 = vld [vmem:[#allocation2 + $0x170] sm:$0xff]
      %v608 = vld [vmem:[#allocation2 + $0x1b0] sm:$0xff]
      %v609 = vld [vmem:[#allocation2 + $0x1b8] sm:$0xff]
      %v610 = vld [vmem:[#allocation2 + $0x1c8] sm:$0xff]
      %v611 = vld [vmem:[#allocation2 + $0x1d0] sm:$0xff]
      %v612 = vld [vmem:[#allocation2 + $0x1e0] sm:$0xff]
      %v613 = vld [vmem:[#allocation2 + $0x1e8] sm:$0xff]
      %v614 = vld [vmem:[#allocation2 + $0x1f8] sm:$0xff]
      %v615 = vld [vmem:[#allocation2 + $0x200] sm:$0xff]
      %v616 = vld [vmem:[#allocation2 + $0x210] sm:$0xff]
      %v617 = vld [vmem:[#allocation2 + $0x218] sm:$0xff]
      %v618 = vld [vmem:[#allocation2 + $0x228] sm:$0xff]
      %v619 = vld [vmem:[#allocation2 + $0x230] sm:$0xff]
      %v620 = vld [vmem:[#allocation2 + $0x240] sm:$0xff]
      %v621 = vld [vmem:[#allocation2 + $0x248] sm:$0xff]
      %v622 = vld [vmem:[#allocation2 + $0x258] sm:$0xff]
      %v623 = vld [vmem:[#allocation2 + $0x260] sm:$0xff]
      %v624 = vld [vmem:[#allocation2 + $0x270] sm:$0xff]
      %v625 = vld [vmem:[#allocation2 + $0x278] sm:$0xff]
      %v626 = vld [vmem:[#allocation2 + $0x288] sm:$0xff]
      %v627 = vld [vmem:[#allocation2 + $0x290] sm:$0xff]
      %v628 = vld [vmem:[#allocation2 + $0x2a0] sm:$0xff]
      %v629 = vld [vmem:[#allocation2 + $0x2a8] sm:$0xff]
      %v630 = vld [vmem:[#allocation2 + $0x2b8] sm:$0xff]
      %v631 = vld [vmem:[#allocation2 + $0x2c0] sm:$0xff]
      %v632 = vld [vmem:[#allocation2 + $0x2d0] sm:$0xff]
      %v633 = vld [vmem:[#allocation2 + $0x2d8] sm:$0xff]
      %v634 = vld [vmem:[#allocation2 + $0x2e8] sm:$0xff]
      %v635 = vld [vmem:[#allocation2 + $0x2f0] sm:$0xff]
      %v636 = vld [vmem:[#allocation2 + $0x300] sm:$0xff]
      %v637 = vld [vmem:[#allocation2 + $0x308] sm:$0xff]
      %v638 = vld [vmem:[#allocation2 + $0x318] sm:$0xff]
      %v639 = vld [vmem:[#allocation2 + $0x320] sm:$0xff]
      %v640 = vpack.c.bf16 %v577, %v576
      %v641 = vpack.c.bf16 %v579, %v578
      %v642 = vpack.c.bf16 %v581, %v580
      %v643 = vpack.c.bf16 %v583, %v582
      %v644 = vpack.c.bf16 %v585, %v584
      %v645 = vpack.c.bf16 %v587, %v586
      %v646 = vpack.c.bf16 %v589, %v588
      %v647 = vpack.c.bf16 %v591, %v590
      %v648 = vpack.c.bf16 %v593, %v592
      %v649 = vpack.c.bf16 %v595, %v594
      %v650 = vpack.c.bf16 %v597, %v596
      %v651 = vpack.c.bf16 %v599, %v598
      %v652 = vpack.c.bf16 %v601, %v600
      %v653 = vpack.c.bf16 %v603, %v602
      %v654 = vpack.c.bf16 %v605, %v604
      %v655 = vpack.c.bf16 %v607, %v606
      %v656 = vpack.c.bf16 %v609, %v608
      %v657 = vpack.c.bf16 %v611, %v610
      %v658 = vpack.c.bf16 %v613, %v612
      %v659 = vpack.c.bf16 %v615, %v614
      %v660 = vpack.c.bf16 %v617, %v616
      %v661 = vpack.c.bf16 %v619, %v618
      %v662 = vpack.c.bf16 %v621, %v620
      %v663 = vpack.c.bf16 %v623, %v622
      %v664 = vpack.c.bf16 %v625, %v624
      %v665 = vpack.c.bf16 %v627, %v626
      %v666 = vpack.c.bf16 %v629, %v628
      %v667 = vpack.c.bf16 %v631, %v630
      %v668 = vpack.c.bf16 %v633, %v632
      %v669 = vpack.c.bf16 %v635, %v634
      %v670 = vpack.c.bf16 %v637, %v636
      %v671 = vpack.c.bf16 %v639, %v638
      %672 = vst.msk [vmem:[#allocation3] sm:$0xff] %vm337, %v640
      %673 = vst.msk [vmem:[#allocation3 + $0x8] sm:$0xff] %vm337, %v641
      %674 = vst.msk [vmem:[#allocation3 + $0x10] sm:$0xff] %vm337, %v642
      %675 = vst.msk [vmem:[#allocation3 + $0x18] sm:$0xff] %vm337, %v643
      %676 = vst.msk [vmem:[#allocation3 + $0x20] sm:$0xff] %vm337, %v644
      %677 = vst.msk [vmem:[#allocation3 + $0x28] sm:$0xff] %vm337, %v645
      %678 = vst.msk [vmem:[#allocation3 + $0x30] sm:$0xff] %vm337, %v646
      %679 = vst.msk [vmem:[#allocation3 + $0x38] sm:$0xff] %vm337, %v647
      %680 = vst.msk [vmem:[#allocation3 + $0x40] sm:$0xff] %vm337, %v648
      %681 = vst.msk [vmem:[#allocation3 + $0x48] sm:$0xff] %vm337, %v649
      %682 = vst.msk [vmem:[#allocation3 + $0x50] sm:$0xff] %vm337, %v650
      %683 = vst.msk [vmem:[#allocation3 + $0x58] sm:$0xff] %vm337, %v651
      %684 = vst.msk [vmem:[#allocation3 + $0x60] sm:$0xff] %vm337, %v652
      %685 = vst.msk [vmem:[#allocation3 + $0x68] sm:$0xff] %vm337, %v653
      %686 = vst.msk [vmem:[#allocation3 + $0x70] sm:$0xff] %vm337, %v654
      %687 = vst.msk [vmem:[#allocation3 + $0x78] sm:$0xff] %vm337, %v655
      %688 = vst.msk [vmem:[#allocation3 + $0x80] sm:$0xff] %vm337, %v656
      %689 = vst.msk [vmem:[#allocation3 + $0x88] sm:$0xff] %vm337, %v657
      %690 = vst.msk [vmem:[#allocation3 + $0x90] sm:$0xff] %vm337, %v658
      %691 = vst.msk [vmem:[#allocation3 + $0x98] sm:$0xff] %vm337, %v659
      %692 = vst.msk [vmem:[#allocation3 + $0xa0] sm:$0xff] %vm337, %v660
      %693 = vst.msk [vmem:[#allocation3 + $0xa8] sm:$0xff] %vm337, %v661
      %694 = vst.msk [vmem:[#allocation3 + $0xb0] sm:$0xff] %vm337, %v662
      %695 = vst.msk [vmem:[#allocation3 + $0xb8] sm:$0xff] %vm337, %v663
      %696 = vst.msk [vmem:[#allocation3 + $0xc0] sm:$0xff] %vm337, %v664
      %697 = vst.msk [vmem:[#allocation3 + $0xc8] sm:$0xff] %vm337, %v665
      %698 = vst.msk [vmem:[#allocation3 + $0xd0] sm:$0xff] %vm337, %v666
      %699 = vst.msk [vmem:[#allocation3 + $0xd8] sm:$0xff] %vm337, %v667
      %700 = vst.msk [vmem:[#allocation3 + $0xe0] sm:$0xff] %vm337, %v668
      %701 = vst.msk [vmem:[#allocation3 + $0xe8] sm:$0xff] %vm337, %v669
      %702 = vst.msk [vmem:[#allocation3 + $0xf0] sm:$0xff] %vm337, %v670
      %703 = vst.msk [vmem:[#allocation3 + $0xf8] sm:$0xff] %vm337, %v671
      %v704 = vld [vmem:[#allocation2 + $0x1] sm:$0xff]
      %v705 = vld [vmem:[#allocation2 + $0x9] sm:$0xff]
      %v706 = vld [vmem:[#allocation2 + $0x19] sm:$0xff]
      %v707 = vld [vmem:[#allocation2 + $0x21] sm:$0xff]
      %v708 = vld [vmem:[#allocation2 + $0x31] sm:$0xff]
      %v709 = vld [vmem:[#allocation2 + $0x39] sm:$0xff]
      %v710 = vld [vmem:[#allocation2 + $0x49] sm:$0xff]
      %v711 = vld [vmem:[#allocation2 + $0x51] sm:$0xff]
      %v712 = vld [vmem:[#allocation2 + $0x61] sm:$0xff]
      %v713 = vld [vmem:[#allocation2 + $0x69] sm:$0xff]
      %v714 = vld [vmem:[#allocation2 + $0x79] sm:$0xff]
      %v715 = vld [vmem:[#allocation2 + $0x81] sm:$0xff]
      %v716 = vld [vmem:[#allocation2 + $0x91] sm:$0xff]
      %v717 = vld [vmem:[#allocation2 + $0x99] sm:$0xff]
      %v718 = vld [vmem:[#allocation2 + $0xa9] sm:$0xff]
      %v719 = vld [vmem:[#allocation2 + $0xb1] sm:$0xff]
      %v720 = vld [vmem:[#allocation2 + $0xc1] sm:$0xff]
      %v721 = vld [vmem:[#allocation2 + $0xc9] sm:$0xff]
      %v722 = vld [vmem:[#allocation2 + $0xd9] sm:$0xff]
      %v723 = vld [vmem:[#allocation2 + $0xe1] sm:$0xff]
      %v724 = vld [vmem:[#allocation2 + $0xf1] sm:$0xff]
      %v725 = vld [vmem:[#allocation2 + $0xf9] sm:$0xff]
      %v726 = vld [vmem:[#allocation2 + $0x109] sm:$0xff]
      %v727 = vld [vmem:[#allocation2 + $0x111] sm:$0xff]
      %v728 = vld [vmem:[#allocation2 + $0x121] sm:$0xff]
      %v729 = vld [vmem:[#allocation2 + $0x129] sm:$0xff]
      %v730 = vld [vmem:[#allocation2 + $0x139] sm:$0xff]
      %v731 = vld [vmem:[#allocation2 + $0x141] sm:$0xff]
      %v732 = vld [vmem:[#allocation2 + $0x151] sm:$0xff]
      %v733 = vld [vmem:[#allocation2 + $0x159] sm:$0xff]
      %v734 = vld [vmem:[#allocation2 + $0x169] sm:$0xff]
      %v735 = vld [vmem:[#allocation2 + $0x171] sm:$0xff]
      %v736 = vld [vmem:[#allocation2 + $0x1b1] sm:$0xff]
      %v737 = vld [vmem:[#allocation2 + $0x1b9] sm:$0xff]
      %v738 = vld [vmem:[#allocation2 + $0x1c9] sm:$0xff]
      %v739 = vld [vmem:[#allocation2 + $0x1d1] sm:$0xff]
      %v740 = vld [vmem:[#allocation2 + $0x1e1] sm:$0xff]
      %v741 = vld [vmem:[#allocation2 + $0x1e9] sm:$0xff]
      %v742 = vld [vmem:[#allocation2 + $0x1f9] sm:$0xff]
      %v743 = vld [vmem:[#allocation2 + $0x201] sm:$0xff]
      %v744 = vld [vmem:[#allocation2 + $0x211] sm:$0xff]
      %v745 = vld [vmem:[#allocation2 + $0x219] sm:$0xff]
      %v746 = vld [vmem:[#allocation2 + $0x229] sm:$0xff]
      %v747 = vld [vmem:[#allocation2 + $0x231] sm:$0xff]
      %v748 = vld [vmem:[#allocation2 + $0x241] sm:$0xff]
      %v749 = vld [vmem:[#allocation2 + $0x249] sm:$0xff]
      %v750 = vld [vmem:[#allocation2 + $0x259] sm:$0xff]
      %v751 = vld [vmem:[#allocation2 + $0x261] sm:$0xff]
      %v752 = vld [vmem:[#allocation2 + $0x271] sm:$0xff]
      %v753 = vld [vmem:[#allocation2 + $0x279] sm:$0xff]
      %v754 = vld [vmem:[#allocation2 + $0x289] sm:$0xff]
      %v755 = vld [vmem:[#allocation2 + $0x291] sm:$0xff]
      %v756 = vld [vmem:[#allocation2 + $0x2a1] sm:$0xff]
      %v757 = vld [vmem:[#allocation2 + $0x2a9] sm:$0xff]
      %v758 = vld [vmem:[#allocation2 + $0x2b9] sm:$0xff]
      %v759 = vld [vmem:[#allocation2 + $0x2c1] sm:$0xff]
      %v760 = vld [vmem:[#allocation2 + $0x2d1] sm:$0xff]
      %v761 = vld [vmem:[#allocation2 + $0x2d9] sm:$0xff]
      %v762 = vld [vmem:[#allocation2 + $0x2e9] sm:$0xff]
      %v763 = vld [vmem:[#allocation2 + $0x2f1] sm:$0xff]
      %v764 = vld [vmem:[#allocation2 + $0x301] sm:$0xff]
      %v765 = vld [vmem:[#allocation2 + $0x309] sm:$0xff]
      %v766 = vld [vmem:[#allocation2 + $0x319] sm:$0xff]
      %v767 = vld [vmem:[#allocation2 + $0x321] sm:$0xff]
      %v768 = vpack.c.bf16 %v705, %v704
      %v769 = vpack.c.bf16 %v707, %v706
      %v770 = vpack.c.bf16 %v709, %v708
      %v771 = vpack.c.bf16 %v711, %v710
      %v772 = vpack.c.bf16 %v713, %v712
      %v773 = vpack.c.bf16 %v715, %v714
      %v774 = vpack.c.bf16 %v717, %v716
      %v775 = vpack.c.bf16 %v719, %v718
      %v776 = vpack.c.bf16 %v721, %v720
      %v777 = vpack.c.bf16 %v723, %v722
      %v778 = vpack.c.bf16 %v725, %v724
      %v779 = vpack.c.bf16 %v727, %v726
      %v780 = vpack.c.bf16 %v729, %v728
      %v781 = vpack.c.bf16 %v731, %v730
      %v782 = vpack.c.bf16 %v733, %v732
      %v783 = vpack.c.bf16 %v735, %v734
      %v784 = vpack.c.bf16 %v737, %v736
      %v785 = vpack.c.bf16 %v739, %v738
      %v786 = vpack.c.bf16 %v741, %v740
      %v787 = vpack.c.bf16 %v743, %v742
      %v788 = vpack.c.bf16 %v745, %v744
      %v789 = vpack.c.bf16 %v747, %v746
      %v790 = vpack.c.bf16 %v749, %v748
      %v791 = vpack.c.bf16 %v751, %v750
      %v792 = vpack.c.bf16 %v753, %v752
      %v793 = vpack.c.bf16 %v755, %v754
      %v794 = vpack.c.bf16 %v757, %v756
      %v795 = vpack.c.bf16 %v759, %v758
      %v796 = vpack.c.bf16 %v761, %v760
      %v797 = vpack.c.bf16 %v763, %v762
      %v798 = vpack.c.bf16 %v765, %v764
      %v799 = vpack.c.bf16 %v767, %v766
      %832 = vrot.lane.b32.xlu0 %v768, 8
      %v833 = vpop.permute.xlu0 %832
      %834 = vrot.lane.b32.xlu0 %v769, 8
      %v835 = vpop.permute.xlu0 %834
      %836 = vrot.lane.b32.xlu0 %v770, 8
      %v837 = vpop.permute.xlu0 %836
      %838 = vrot.lane.b32.xlu0 %v771, 8
      %v839 = vpop.permute.xlu0 %838
      %840 = vrot.lane.b32.xlu0 %v772, 8
      %v841 = vpop.permute.xlu0 %840
      %842 = vrot.lane.b32.xlu0 %v773, 8
      %v843 = vpop.permute.xlu0 %842
      %844 = vrot.lane.b32.xlu0 %v774, 8
      %v845 = vpop.permute.xlu0 %844
      %846 = vrot.lane.b32.xlu0 %v775, 8
      %v847 = vpop.permute.xlu0 %846
      %848 = vrot.lane.b32.xlu0 %v776, 8
      %v849 = vpop.permute.xlu0 %848
      %850 = vrot.lane.b32.xlu0 %v777, 8
      %v851 = vpop.permute.xlu0 %850
      %852 = vrot.lane.b32.xlu0 %v778, 8
      %v853 = vpop.permute.xlu0 %852
      %854 = vrot.lane.b32.xlu0 %v779, 8
      %v855 = vpop.permute.xlu0 %854
      %856 = vrot.lane.b32.xlu0 %v780, 8
      %v857 = vpop.permute.xlu0 %856
      %858 = vrot.lane.b32.xlu0 %v781, 8
      %v859 = vpop.permute.xlu0 %858
      %860 = vrot.lane.b32.xlu0 %v782, 8
      %v861 = vpop.permute.xlu0 %860
      %862 = vrot.lane.b32.xlu0 %v783, 8
      %v863 = vpop.permute.xlu0 %862
      %864 = vrot.lane.b32.xlu0 %v784, 8
      %v865 = vpop.permute.xlu0 %864
      %866 = vrot.lane.b32.xlu0 %v785, 8
      %v867 = vpop.permute.xlu0 %866
      %868 = vrot.lane.b32.xlu0 %v786, 8
      %v869 = vpop.permute.xlu0 %868
      %870 = vrot.lane.b32.xlu0 %v787, 8
      %v871 = vpop.permute.xlu0 %870
      %872 = vrot.lane.b32.xlu0 %v788, 8
      %v873 = vpop.permute.xlu0 %872
      %874 = vrot.lane.b32.xlu0 %v789, 8
      %v875 = vpop.permute.xlu0 %874
      %876 = vrot.lane.b32.xlu0 %v790, 8
      %v877 = vpop.permute.xlu0 %876
      %878 = vrot.lane.b32.xlu0 %v791, 8
      %v879 = vpop.permute.xlu0 %878
      %880 = vrot.lane.b32.xlu0 %v792, 8
      %v881 = vpop.permute.xlu0 %880
      %882 = vrot.lane.b32.xlu0 %v793, 8
      %v883 = vpop.permute.xlu0 %882
      %884 = vrot.lane.b32.xlu0 %v794, 8
      %v885 = vpop.permute.xlu0 %884
      %886 = vrot.lane.b32.xlu0 %v795, 8
      %v887 = vpop.permute.xlu0 %886
      %888 = vrot.lane.b32.xlu0 %v796, 8
      %v889 = vpop.permute.xlu0 %888
      %890 = vrot.lane.b32.xlu0 %v797, 8
      %v891 = vpop.permute.xlu0 %890
      %892 = vrot.lane.b32.xlu0 %v798, 8
      %v893 = vpop.permute.xlu0 %892
      %894 = vrot.lane.b32.xlu0 %v799, 8
      %v895 = vpop.permute.xlu0 %894
      %vm928 = vcmask 130112
      %929 = vst.msk [vmem:[#allocation3] sm:$0xff] %vm928, %v833
      %930 = vst.msk [vmem:[#allocation3 + $0x8] sm:$0xff] %vm928, %v835
      %931 = vst.msk [vmem:[#allocation3 + $0x10] sm:$0xff] %vm928, %v837
      %932 = vst.msk [vmem:[#allocation3 + $0x18] sm:$0xff] %vm928, %v839
      %933 = vst.msk [vmem:[#allocation3 + $0x20] sm:$0xff] %vm928, %v841
      %934 = vst.msk [vmem:[#allocation3 + $0x28] sm:$0xff] %vm928, %v843
      %935 = vst.msk [vmem:[#allocation3 + $0x30] sm:$0xff] %vm928, %v845
      %936 = vst.msk [vmem:[#allocation3 + $0x38] sm:$0xff] %vm928, %v847
      %937 = vst.msk [vmem:[#allocation3 + $0x40] sm:$0xff] %vm928, %v849
      %938 = vst.msk [vmem:[#allocation3 + $0x48] sm:$0xff] %vm928, %v851
      %939 = vst.msk [vmem:[#allocation3 + $0x50] sm:$0xff] %vm928, %v853
      %940 = vst.msk [vmem:[#allocation3 + $0x58] sm:$0xff] %vm928, %v855
      %941 = vst.msk [vmem:[#allocation3 + $0x60] sm:$0xff] %vm928, %v857
      %942 = vst.msk [vmem:[#allocation3 + $0x68] sm:$0xff] %vm928, %v859
      %943 = vst.msk [vmem:[#allocation3 + $0x70] sm:$0xff] %vm928, %v861
      %944 = vst.msk [vmem:[#allocation3 + $0x78] sm:$0xff] %vm928, %v863
      %945 = vst.msk [vmem:[#allocation3 + $0x80] sm:$0xff] %vm928, %v865
      %946 = vst.msk [vmem:[#allocation3 + $0x88] sm:$0xff] %vm928, %v867
      %947 = vst.msk [vmem:[#allocation3 + $0x90] sm:$0xff] %vm928, %v869
      %948 = vst.msk [vmem:[#allocation3 + $0x98] sm:$0xff] %vm928, %v871
      %949 = vst.msk [vmem:[#allocation3 + $0xa0] sm:$0xff] %vm928, %v873
      %950 = vst.msk [vmem:[#allocation3 + $0xa8] sm:$0xff] %vm928, %v875
      %951 = vst.msk [vmem:[#allocation3 + $0xb0] sm:$0xff] %vm928, %v877
      %952 = vst.msk [vmem:[#allocation3 + $0xb8] sm:$0xff] %vm928, %v879
      %953 = vst.msk [vmem:[#allocation3 + $0xc0] sm:$0xff] %vm928, %v881
      %954 = vst.msk [vmem:[#allocation3 + $0xc8] sm:$0xff] %vm928, %v883
      %955 = vst.msk [vmem:[#allocation3 + $0xd0] sm:$0xff] %vm928, %v885
      %956 = vst.msk [vmem:[#allocation3 + $0xd8] sm:$0xff] %vm928, %v887
      %957 = vst.msk [vmem:[#allocation3 + $0xe0] sm:$0xff] %vm928, %v889
      %958 = vst.msk [vmem:[#allocation3 + $0xe8] sm:$0xff] %vm928, %v891
      %959 = vst.msk [vmem:[#allocation3 + $0xf0] sm:$0xff] %vm928, %v893
      %960 = vst.msk [vmem:[#allocation3 + $0xf8] sm:$0xff] %vm928, %v895
      %v961 = vld [vmem:[#allocation2 + $0x2] sm:$0xff]
      %v962 = vld [vmem:[#allocation2 + $0xa] sm:$0xff]
      %v963 = vld [vmem:[#allocation2 + $0x1a] sm:$0xff]
      %v964 = vld [vmem:[#allocation2 + $0x22] sm:$0xff]
      %v965 = vld [vmem:[#allocation2 + $0x32] sm:$0xff]
      %v966 = vld [vmem:[#allocation2 + $0x3a] sm:$0xff]
      %v967 = vld [vmem:[#allocation2 + $0x4a] sm:$0xff]
      %v968 = vld [vmem:[#allocation2 + $0x52] sm:$0xff]
      %v969 = vld [vmem:[#allocation2 + $0x62] sm:$0xff]
      %v970 = vld [vmem:[#allocation2 + $0x6a] sm:$0xff]
      %v971 = vld [vmem:[#allocation2 + $0x7a] sm:$0xff]
      %v972 = vld [vmem:[#allocation2 + $0x82] sm:$0xff]
      %v973 = vld [vmem:[#allocation2 + $0x92] sm:$0xff]
      %v974 = vld [vmem:[#allocation2 + $0x9a] sm:$0xff]
      %v975 = vld [vmem:[#allocation2 + $0xaa] sm:$0xff]
      %v976 = vld [vmem:[#allocation2 + $0xb2] sm:$0xff]
      %v977 = vld [vmem:[#allocation2 + $0xc2] sm:$0xff]
      %v978 = vld [vmem:[#allocation2 + $0xca] sm:$0xff]
      %v979 = vld [vmem:[#allocation2 + $0xda] sm:$0xff]
      %v980 = vld [vmem:[#allocation2 + $0xe2] sm:$0xff]
      %v981 = vld [vmem:[#allocation2 + $0xf2] sm:$0xff]
      %v982 = vld [vmem:[#allocation2 + $0xfa] sm:$0xff]
      %v983 = vld [vmem:[#allocation2 + $0x10a] sm:$0xff]
      %v984 = vld [vmem:[#allocation2 + $0x112] sm:$0xff]
      %v985 = vld [vmem:[#allocation2 + $0x122] sm:$0xff]
      %v986 = vld [vmem:[#allocation2 + $0x12a] sm:$0xff]
      %v987 = vld [vmem:[#allocation2 + $0x13a] sm:$0xff]
      %v988 = vld [vmem:[#allocation2 + $0x142] sm:$0xff]
      %v989 = vld [vmem:[#allocation2 + $0x152] sm:$0xff]
      %v990 = vld [vmem:[#allocation2 + $0x15a] sm:$0xff]
      %v991 = vld [vmem:[#allocation2 + $0x16a] sm:$0xff]
      %v992 = vld [vmem:[#allocation2 + $0x172] sm:$0xff]
      %v993 = vld [vmem:[#allocation2 + $0x1b2] sm:$0xff]
      %v994 = vld [vmem:[#allocation2 + $0x1ba] sm:$0xff]
      %v995 = vld [vmem:[#allocation2 + $0x1ca] sm:$0xff]
      %v996 = vld [vmem:[#allocation2 + $0x1d2] sm:$0xff]
      %v997 = vld [vmem:[#allocation2 + $0x1e2] sm:$0xff]
      %v998 = vld [vmem:[#allocation2 + $0x1ea] sm:$0xff]
      %v999 = vld [vmem:[#allocation2 + $0x1fa] sm:$0xff]
      %v1000 = vld [vmem:[#allocation2 + $0x202] sm:$0xff]
      %v1001 = vld [vmem:[#allocation2 + $0x212] sm:$0xff]
      %v1002 = vld [vmem:[#allocation2 + $0x21a] sm:$0xff]
      %v1003 = vld [vmem:[#allocation2 + $0x22a] sm:$0xff]
      %v1004 = vld [vmem:[#allocation2 + $0x232] sm:$0xff]
      %v1005 = vld [vmem:[#allocation2 + $0x242] sm:$0xff]
      %v1006 = vld [vmem:[#allocation2 + $0x24a] sm:$0xff]
      %v1007 = vld [vmem:[#allocation2 + $0x25a] sm:$0xff]
      %v1008 = vld [vmem:[#allocation2 + $0x262] sm:$0xff]
      %v1009 = vld [vmem:[#allocation2 + $0x272] sm:$0xff]
      %v1010 = vld [vmem:[#allocation2 + $0x27a] sm:$0xff]
      %v1011 = vld [vmem:[#allocation2 + $0x28a] sm:$0xff]
      %v1012 = vld [vmem:[#allocation2 + $0x292] sm:$0xff]
      %v1013 = vld [vmem:[#allocation2 + $0x2a2] sm:$0xff]
      %v1014 = vld [vmem:[#allocation2 + $0x2aa] sm:$0xff]
      %v1015 = vld [vmem:[#allocation2 + $0x2ba] sm:$0xff]
      %v1016 = vld [vmem:[#allocation2 + $0x2c2] sm:$0xff]
      %v1017 = vld [vmem:[#allocation2 + $0x2d2] sm:$0xff]
      %v1018 = vld [vmem:[#allocation2 + $0x2da] sm:$0xff]
      %v1019 = vld [vmem:[#allocation2 + $0x2ea] sm:$0xff]
      %v1020 = vld [vmem:[#allocation2 + $0x2f2] sm:$0xff]
      %v1021 = vld [vmem:[#allocation2 + $0x302] sm:$0xff]
      %v1022 = vld [vmem:[#allocation2 + $0x30a] sm:$0xff]
      %v1023 = vld [vmem:[#allocation2 + $0x31a] sm:$0xff]
      %v1024 = vld [vmem:[#allocation2 + $0x322] sm:$0xff]
      %v1025 = vpack.c.bf16 %v962, %v961
      %v1026 = vpack.c.bf16 %v964, %v963
      %v1027 = vpack.c.bf16 %v966, %v965
      %v1028 = vpack.c.bf16 %v968, %v967
      %v1029 = vpack.c.bf16 %v970, %v969
      %v1030 = vpack.c.bf16 %v972, %v971
      %v1031 = vpack.c.bf16 %v974, %v973
      %v1032 = vpack.c.bf16 %v976, %v975
      %v1033 = vpack.c.bf16 %v978, %v977
      %v1034 = vpack.c.bf16 %v980, %v979
      %v1035 = vpack.c.bf16 %v982, %v981
      %v1036 = vpack.c.bf16 %v984, %v983
      %v1037 = vpack.c.bf16 %v986, %v985
      %v1038 = vpack.c.bf16 %v988, %v987
      %v1039 = vpack.c.bf16 %v990, %v989
      %v1040 = vpack.c.bf16 %v992, %v991
      %v1041 = vpack.c.bf16 %v994, %v993
      %v1042 = vpack.c.bf16 %v996, %v995
      %v1043 = vpack.c.bf16 %v998, %v997
      %v1044 = vpack.c.bf16 %v1000, %v999
      %v1045 = vpack.c.bf16 %v1002, %v1001
      %v1046 = vpack.c.bf16 %v1004, %v1003
      %v1047 = vpack.c.bf16 %v1006, %v1005
      %v1048 = vpack.c.bf16 %v1008, %v1007
      %v1049 = vpack.c.bf16 %v1010, %v1009
      %v1050 = vpack.c.bf16 %v1012, %v1011
      %v1051 = vpack.c.bf16 %v1014, %v1013
      %v1052 = vpack.c.bf16 %v1016, %v1015
      %v1053 = vpack.c.bf16 %v1018, %v1017
      %v1054 = vpack.c.bf16 %v1020, %v1019
      %v1055 = vpack.c.bf16 %v1022, %v1021
      %v1056 = vpack.c.bf16 %v1024, %v1023
      %1089 = vrot.lane.b32.xlu0 %v1025, 16
      %v1090 = vpop.permute.xlu0 %1089
      %1091 = vrot.lane.b32.xlu0 %v1026, 16
      %v1092 = vpop.permute.xlu0 %1091
      %1093 = vrot.lane.b32.xlu0 %v1027, 16
      %v1094 = vpop.permute.xlu0 %1093
      %1095 = vrot.lane.b32.xlu0 %v1028, 16
      %v1096 = vpop.permute.xlu0 %1095
      %1097 = vrot.lane.b32.xlu0 %v1029, 16
      %v1098 = vpop.permute.xlu0 %1097
      %1099 = vrot.lane.b32.xlu0 %v1030, 16
      %v1100 = vpop.permute.xlu0 %1099
      %1101 = vrot.lane.b32.xlu0 %v1031, 16
      %v1102 = vpop.permute.xlu0 %1101
      %1103 = vrot.lane.b32.xlu0 %v1032, 16
      %v1104 = vpop.permute.xlu0 %1103
      %1105 = vrot.lane.b32.xlu0 %v1033, 16
      %v1106 = vpop.permute.xlu0 %1105
      %1107 = vrot.lane.b32.xlu0 %v1034, 16
      %v1108 = vpop.permute.xlu0 %1107
      %1109 = vrot.lane.b32.xlu0 %v1035, 16
      %v1110 = vpop.permute.xlu0 %1109
      %1111 = vrot.lane.b32.xlu0 %v1036, 16
      %v1112 = vpop.permute.xlu0 %1111
      %1113 = vrot.lane.b32.xlu0 %v1037, 16
      %v1114 = vpop.permute.xlu0 %1113
      %1115 = vrot.lane.b32.xlu0 %v1038, 16
      %v1116 = vpop.permute.xlu0 %1115
      %1117 = vrot.lane.b32.xlu0 %v1039, 16
      %v1118 = vpop.permute.xlu0 %1117
      %1119 = vrot.lane.b32.xlu0 %v1040, 16
      %v1120 = vpop.permute.xlu0 %1119
      %1121 = vrot.lane.b32.xlu0 %v1041, 16
      %v1122 = vpop.permute.xlu0 %1121
      %1123 = vrot.lane.b32.xlu0 %v1042, 16
      %v1124 = vpop.permute.xlu0 %1123
      %1125 = vrot.lane.b32.xlu0 %v1043, 16
      %v1126 = vpop.permute.xlu0 %1125
      %1127 = vrot.lane.b32.xlu0 %v1044, 16
      %v1128 = vpop.permute.xlu0 %1127
      %1129 = vrot.lane.b32.xlu0 %v1045, 16
      %v1130 = vpop.permute.xlu0 %1129
      %1131 = vrot.lane.b32.xlu0 %v1046, 16
      %v1132 = vpop.permute.xlu0 %1131
      %1133 = vrot.lane.b32.xlu0 %v1047, 16
      %v1134 = vpop.permute.xlu0 %1133
      %1135 = vrot.lane.b32.xlu0 %v1048, 16
      %v1136 = vpop.permute.xlu0 %1135
      %1137 = vrot.lane.b32.xlu0 %v1049, 16
      %v1138 = vpop.permute.xlu0 %1137
      %1139 = vrot.lane.b32.xlu0 %v1050, 16
      %v1140 = vpop.permute.xlu0 %1139
      %1141 = vrot.lane.b32.xlu0 %v1051, 16
      %v1142 = vpop.permute.xlu0 %1141
      %1143 = vrot.lane.b32.xlu0 %v1052, 16
      %v1144 = vpop.permute.xlu0 %1143
      %1145 = vrot.lane.b32.xlu0 %v1053, 16
      %v1146 = vpop.permute.xlu0 %1145
      %1147 = vrot.lane.b32.xlu0 %v1054, 16
      %v1148 = vpop.permute.xlu0 %1147
      %1149 = vrot.lane.b32.xlu0 %v1055, 16
      %v1150 = vpop.permute.xlu0 %1149
      %1151 = vrot.lane.b32.xlu0 %v1056, 16
      %v1152 = vpop.permute.xlu0 %1151
      %vm1185 = vcmask 195712
      %1186 = vst.msk [vmem:[#allocation3] sm:$0xff] %vm1185, %v1090
      %1187 = vst.msk [vmem:[#allocation3 + $0x8] sm:$0xff] %vm1185, %v1092
      %1188 = vst.msk [vmem:[#allocation3 + $0x10] sm:$0xff] %vm1185, %v1094
      %1189 = vst.msk [vmem:[#allocation3 + $0x18] sm:$0xff] %vm1185, %v1096
      %1190 = vst.msk [vmem:[#allocation3 + $0x20] sm:$0xff] %vm1185, %v1098
      %1191 = vst.msk [vmem:[#allocation3 + $0x28] sm:$0xff] %vm1185, %v1100
      %1192 = vst.msk [vmem:[#allocation3 + $0x30] sm:$0xff] %vm1185, %v1102
      %1193 = vst.msk [vmem:[#allocation3 + $0x38] sm:$0xff] %vm1185, %v1104
      %1194 = vst.msk [vmem:[#allocation3 + $0x40] sm:$0xff] %vm1185, %v1106
      %1195 = vst.msk [vmem:[#allocation3 + $0x48] sm:$0xff] %vm1185, %v1108
      %1196 = vst.msk [vmem:[#allocation3 + $0x50] sm:$0xff] %vm1185, %v1110
      %1197 = vst.msk [vmem:[#allocation3 + $0x58] sm:$0xff] %vm1185, %v1112
      %1198 = vst.msk [vmem:[#allocation3 + $0x60] sm:$0xff] %vm1185, %v1114
      %1199 = vst.msk [vmem:[#allocation3 + $0x68] sm:$0xff] %vm1185, %v1116
      %1200 = vst.msk [vmem:[#allocation3 + $0x70] sm:$0xff] %vm1185, %v1118
      %1201 = vst.msk [vmem:[#allocation3 + $0x78] sm:$0xff] %vm1185, %v1120
      %1202 = vst.msk [vmem:[#allocation3 + $0x80] sm:$0xff] %vm1185, %v1122
      %1203 = vst.msk [vmem:[#allocation3 + $0x88] sm:$0xff] %vm1185, %v1124
      %1204 = vst.msk [vmem:[#allocation3 + $0x90] sm:$0xff] %vm1185, %v1126
      %1205 = vst.msk [vmem:[#allocation3 + $0x98] sm:$0xff] %vm1185, %v1128
      %1206 = vst.msk [vmem:[#allocation3 + $0xa0] sm:$0xff] %vm1185, %v1130
      %1207 = vst.msk [vmem:[#allocation3 + $0xa8] sm:$0xff] %vm1185, %v1132
      %1208 = vst.msk [vmem:[#allocation3 + $0xb0] sm:$0xff] %vm1185, %v1134
      %1209 = vst.msk [vmem:[#allocation3 + $0xb8] sm:$0xff] %vm1185, %v1136
      %1210 = vst.msk [vmem:[#allocation3 + $0xc0] sm:$0xff] %vm1185, %v1138
      %1211 = vst.msk [vmem:[#allocation3 + $0xc8] sm:$0xff] %vm1185, %v1140
      %1212 = vst.msk [vmem:[#allocation3 + $0xd0] sm:$0xff] %vm1185, %v1142
      %1213 = vst.msk [vmem:[#allocation3 + $0xd8] sm:$0xff] %vm1185, %v1144
      %1214 = vst.msk [vmem:[#allocation3 + $0xe0] sm:$0xff] %vm1185, %v1146
      %1215 = vst.msk [vmem:[#allocation3 + $0xe8] sm:$0xff] %vm1185, %v1148
      %1216 = vst.msk [vmem:[#allocation3 + $0xf0] sm:$0xff] %vm1185, %v1150
      %1217 = vst.msk [vmem:[#allocation3 + $0xf8] sm:$0xff] %vm1185, %v1152
      %v1218 = vld [vmem:[%s511] sm:$0xff]
      %v1219 = vld [vmem:[%s511 + $0x8] sm:$0xff]
      %v1220 = vld [vmem:[%s511 + $0x18] sm:$0xff]
      %v1221 = vld [vmem:[%s511 + $0x20] sm:$0xff]
      %v1222 = vld [vmem:[%s511 + $0x30] sm:$0xff]
      %v1223 = vld [vmem:[%s511 + $0x38] sm:$0xff]
      %v1224 = vld [vmem:[%s511 + $0x48] sm:$0xff]
      %v1225 = vld [vmem:[%s511 + $0x50] sm:$0xff]
      %v1226 = vld [vmem:[%s511 + $0x60] sm:$0xff]
      %v1227 = vld [vmem:[%s511 + $0x68] sm:$0xff]
      %v1228 = vld [vmem:[%s511 + $0x78] sm:$0xff]
      %v1229 = vld [vmem:[%s511 + $0x80] sm:$0xff]
      %v1230 = vld [vmem:[%s511 + $0x90] sm:$0xff]
      %v1231 = vld [vmem:[%s511 + $0x98] sm:$0xff]
      %v1232 = vld [vmem:[%s511 + $0xa8] sm:$0xff]
      %v1233 = vld [vmem:[%s511 + $0xb0] sm:$0xff]
      %v1234 = vld [vmem:[%s511 + $0xc0] sm:$0xff]
      %v1235 = vld [vmem:[%s511 + $0xc8] sm:$0xff]
      %v1236 = vld [vmem:[%s511 + $0xd8] sm:$0xff]
      %v1237 = vld [vmem:[%s511 + $0xe0] sm:$0xff]
      %v1238 = vld [vmem:[%s511 + $0xf0] sm:$0xff]
      %v1239 = vld [vmem:[%s511 + $0xf8] sm:$0xff]
      %v1240 = vld [vmem:[%s511 + $0x108] sm:$0xff]
      %v1241 = vld [vmem:[%s511 + $0x110] sm:$0xff]
      %v1242 = vld [vmem:[%s511 + $0x120] sm:$0xff]
      %v1243 = vld [vmem:[%s511 + $0x128] sm:$0xff]
      %v1244 = vld [vmem:[%s511 + $0x138] sm:$0xff]
      %v1245 = vld [vmem:[%s511 + $0x140] sm:$0xff]
      %v1246 = vld [vmem:[%s511 + $0x150] sm:$0xff]
      %v1247 = vld [vmem:[%s511 + $0x158] sm:$0xff]
      %v1248 = vld [vmem:[%s511 + $0x168] sm:$0xff]
      %v1249 = vld [vmem:[%s511 + $0x170] sm:$0xff]
      %v1250 = vld [vmem:[%s511 + $0x1b0] sm:$0xff]
      %v1251 = vld [vmem:[%s511 + $0x1b8] sm:$0xff]
      %v1252 = vld [vmem:[%s511 + $0x1c8] sm:$0xff]
      %v1253 = vld [vmem:[%s511 + $0x1d0] sm:$0xff]
      %v1254 = vld [vmem:[%s511 + $0x1e0] sm:$0xff]
      %v1255 = vld [vmem:[%s511 + $0x1e8] sm:$0xff]
      %v1256 = vld [vmem:[%s511 + $0x1f8] sm:$0xff]
      %v1257 = vld [vmem:[%s511 + $0x200] sm:$0xff]
      %v1258 = vld [vmem:[%s511 + $0x210] sm:$0xff]
      %v1259 = vld [vmem:[%s511 + $0x218] sm:$0xff]
      %v1260 = vld [vmem:[%s511 + $0x228] sm:$0xff]
      %v1261 = vld [vmem:[%s511 + $0x230] sm:$0xff]
      %v1262 = vld [vmem:[%s511 + $0x240] sm:$0xff]
      %v1263 = vld [vmem:[%s511 + $0x248] sm:$0xff]
      %v1264 = vld [vmem:[%s511 + $0x258] sm:$0xff]
      %v1265 = vld [vmem:[%s511 + $0x260] sm:$0xff]
      %v1266 = vld [vmem:[%s511 + $0x270] sm:$0xff]
      %v1267 = vld [vmem:[%s511 + $0x278] sm:$0xff]
      %v1268 = vld [vmem:[%s511 + $0x288] sm:$0xff]
      %v1269 = vld [vmem:[%s511 + $0x290] sm:$0xff]
      %v1270 = vld [vmem:[%s511 + $0x2a0] sm:$0xff]
      %v1271 = vld [vmem:[%s511 + $0x2a8] sm:$0xff]
      %v1272 = vld [vmem:[%s511 + $0x2b8] sm:$0xff]
      %v1273 = vld [vmem:[%s511 + $0x2c0] sm:$0xff]
      %v1274 = vld [vmem:[%s511 + $0x2d0] sm:$0xff]
      %v1275 = vld [vmem:[%s511 + $0x2d8] sm:$0xff]
      %v1276 = vld [vmem:[%s511 + $0x2e8] sm:$0xff]
      %v1277 = vld [vmem:[%s511 + $0x2f0] sm:$0xff]
      %v1278 = vld [vmem:[%s511 + $0x300] sm:$0xff]
      %v1279 = vld [vmem:[%s511 + $0x308] sm:$0xff]
      %v1280 = vld [vmem:[%s511 + $0x318] sm:$0xff]
      %v1281 = vld [vmem:[%s511 + $0x320] sm:$0xff]
      %v1282 = vpack.c.bf16 %v1219, %v1218
      %v1283 = vpack.c.bf16 %v1221, %v1220
      %v1284 = vpack.c.bf16 %v1223, %v1222
      %v1285 = vpack.c.bf16 %v1225, %v1224
      %v1286 = vpack.c.bf16 %v1227, %v1226
      %v1287 = vpack.c.bf16 %v1229, %v1228
      %v1288 = vpack.c.bf16 %v1231, %v1230
      %v1289 = vpack.c.bf16 %v1233, %v1232
      %v1290 = vpack.c.bf16 %v1235, %v1234
      %v1291 = vpack.c.bf16 %v1237, %v1236
      %v1292 = vpack.c.bf16 %v1239, %v1238
      %v1293 = vpack.c.bf16 %v1241, %v1240
      %v1294 = vpack.c.bf16 %v1243, %v1242
      %v1295 = vpack.c.bf16 %v1245, %v1244
      %v1296 = vpack.c.bf16 %v1247, %v1246
      %v1297 = vpack.c.bf16 %v1249, %v1248
      %v1298 = vpack.c.bf16 %v1251, %v1250
      %v1299 = vpack.c.bf16 %v1253, %v1252
      %v1300 = vpack.c.bf16 %v1255, %v1254
      %v1301 = vpack.c.bf16 %v1257, %v1256
      %v1302 = vpack.c.bf16 %v1259, %v1258
      %v1303 = vpack.c.bf16 %v1261, %v1260
      %v1304 = vpack.c.bf16 %v1263, %v1262
      %v1305 = vpack.c.bf16 %v1265, %v1264
      %v1306 = vpack.c.bf16 %v1267, %v1266
      %v1307 = vpack.c.bf16 %v1269, %v1268
      %v1308 = vpack.c.bf16 %v1271, %v1270
      %v1309 = vpack.c.bf16 %v1273, %v1272
      %v1310 = vpack.c.bf16 %v1275, %v1274
      %v1311 = vpack.c.bf16 %v1277, %v1276
      %v1312 = vpack.c.bf16 %v1279, %v1278
      %v1313 = vpack.c.bf16 %v1281, %v1280
      %1346 = vrot.lane.b32.xlu0 %v1282, 24
      %v1347 = vpop.permute.xlu0 %1346
      %1348 = vrot.lane.b32.xlu0 %v1283, 24
      %v1349 = vpop.permute.xlu0 %1348
      %1350 = vrot.lane.b32.xlu0 %v1284, 24
      %v1351 = vpop.permute.xlu0 %1350
      %1352 = vrot.lane.b32.xlu0 %v1285, 24
      %v1353 = vpop.permute.xlu0 %1352
      %1354 = vrot.lane.b32.xlu0 %v1286, 24
      %v1355 = vpop.permute.xlu0 %1354
      %1356 = vrot.lane.b32.xlu0 %v1287, 24
      %v1357 = vpop.permute.xlu0 %1356
      %1358 = vrot.lane.b32.xlu0 %v1288, 24
      %v1359 = vpop.permute.xlu0 %1358
      %1360 = vrot.lane.b32.xlu0 %v1289, 24
      %v1361 = vpop.permute.xlu0 %1360
      %1362 = vrot.lane.b32.xlu0 %v1290, 24
      %v1363 = vpop.permute.xlu0 %1362
      %1364 = vrot.lane.b32.xlu0 %v1291, 24
      %v1365 = vpop.permute.xlu0 %1364
      %1366 = vrot.lane.b32.xlu0 %v1292, 24
      %v1367 = vpop.permute.xlu0 %1366
      %1368 = vrot.lane.b32.xlu0 %v1293, 24
      %v1369 = vpop.permute.xlu0 %1368
      %1370 = vrot.lane.b32.xlu0 %v1294, 24
      %v1371 = vpop.permute.xlu0 %1370
      %1372 = vrot.lane.b32.xlu0 %v1295, 24
      %v1373 = vpop.permute.xlu0 %1372
      %1374 = vrot.lane.b32.xlu0 %v1296, 24
      %v1375 = vpop.permute.xlu0 %1374
      %1376 = vrot.lane.b32.xlu0 %v1297, 24
      %v1377 = vpop.permute.xlu0 %1376
      %1378 = vrot.lane.b32.xlu0 %v1298, 24
      %v1379 = vpop.permute.xlu0 %1378
      %1380 = vrot.lane.b32.xlu0 %v1299, 24
      %v1381 = vpop.permute.xlu0 %1380
      %1382 = vrot.lane.b32.xlu0 %v1300, 24
      %v1383 = vpop.permute.xlu0 %1382
      %1384 = vrot.lane.b32.xlu0 %v1301, 24
      %v1385 = vpop.permute.xlu0 %1384
      %1386 = vrot.lane.b32.xlu0 %v1302, 24
      %v1387 = vpop.permute.xlu0 %1386
      %1388 = vrot.lane.b32.xlu0 %v1303, 24
      %v1389 = vpop.permute.xlu0 %1388
      %1390 = vrot.lane.b32.xlu0 %v1304, 24
      %v1391 = vpop.permute.xlu0 %1390
      %1392 = vrot.lane.b32.xlu0 %v1305, 24
      %v1393 = vpop.permute.xlu0 %1392
      %1394 = vrot.lane.b32.xlu0 %v1306, 24
      %v1395 = vpop.permute.xlu0 %1394
      %1396 = vrot.lane.b32.xlu0 %v1307, 24
      %v1397 = vpop.permute.xlu0 %1396
      %1398 = vrot.lane.b32.xlu0 %v1308, 24
      %v1399 = vpop.permute.xlu0 %1398
      %1400 = vrot.lane.b32.xlu0 %v1309, 24
      %v1401 = vpop.permute.xlu0 %1400
      %1402 = vrot.lane.b32.xlu0 %v1310, 24
      %v1403 = vpop.permute.xlu0 %1402
      %1404 = vrot.lane.b32.xlu0 %v1311, 24
      %v1405 = vpop.permute.xlu0 %1404
      %1406 = vrot.lane.b32.xlu0 %v1312, 24
      %v1407 = vpop.permute.xlu0 %1406
      %1408 = vrot.lane.b32.xlu0 %v1313, 24
      %v1409 = vpop.permute.xlu0 %1408
      %vm1442 = vcmask 261312
      %1443 = vst.msk [vmem:[#allocation3] sm:$0xff] %vm1442, %v1347
      %1444 = vst.msk [vmem:[#allocation3 + $0x8] sm:$0xff] %vm1442, %v1349
      %1445 = vst.msk [vmem:[#allocation3 + $0x10] sm:$0xff] %vm1442, %v1351
      %1446 = vst.msk [vmem:[#allocation3 + $0x18] sm:$0xff] %vm1442, %v1353
      %1447 = vst.msk [vmem:[#allocation3 + $0x20] sm:$0xff] %vm1442, %v1355
      %1448 = vst.msk [vmem:[#allocation3 + $0x28] sm:$0xff] %vm1442, %v1357
      %1449 = vst.msk [vmem:[#allocation3 + $0x30] sm:$0xff] %vm1442, %v1359
      %1450 = vst.msk [vmem:[#allocation3 + $0x38] sm:$0xff] %vm1442, %v1361
      %1451 = vst.msk [vmem:[#allocation3 + $0x40] sm:$0xff] %vm1442, %v1363
      %1452 = vst.msk [vmem:[#allocation3 + $0x48] sm:$0xff] %vm1442, %v1365
      %1453 = vst.msk [vmem:[#allocation3 + $0x50] sm:$0xff] %vm1442, %v1367
      %1454 = vst.msk [vmem:[#allocation3 + $0x58] sm:$0xff] %vm1442, %v1369
      %1455 = vst.msk [vmem:[#allocation3 + $0x60] sm:$0xff] %vm1442, %v1371
      %1456 = vst.msk [vmem:[#allocation3 + $0x68] sm:$0xff] %vm1442, %v1373
      %1457 = vst.msk [vmem:[#allocation3 + $0x70] sm:$0xff] %vm1442, %v1375
      %1458 = vst.msk [vmem:[#allocation3 + $0x78] sm:$0xff] %vm1442, %v1377
      %1459 = vst.msk [vmem:[#allocation3 + $0x80] sm:$0xff] %vm1442, %v1379
      %1460 = vst.msk [vmem:[#allocation3 + $0x88] sm:$0xff] %vm1442, %v1381
      %1461 = vst.msk [vmem:[#allocation3 + $0x90] sm:$0xff] %vm1442, %v1383
      %1462 = vst.msk [vmem:[#allocation3 + $0x98] sm:$0xff] %vm1442, %v1385
      %1463 = vst.msk [vmem:[#allocation3 + $0xa0] sm:$0xff] %vm1442, %v1387
      %1464 = vst.msk [vmem:[#allocation3 + $0xa8] sm:$0xff] %vm1442, %v1389
      %1465 = vst.msk [vmem:[#allocation3 + $0xb0] sm:$0xff] %vm1442, %v1391
      %1466 = vst.msk [vmem:[#allocation3 + $0xb8] sm:$0xff] %vm1442, %v1393
      %1467 = vst.msk [vmem:[#allocation3 + $0xc0] sm:$0xff] %vm1442, %v1395
      %1468 = vst.msk [vmem:[#allocation3 + $0xc8] sm:$0xff] %vm1442, %v1397
      %1469 = vst.msk [vmem:[#allocation3 + $0xd0] sm:$0xff] %vm1442, %v1399
      %1470 = vst.msk [vmem:[#allocation3 + $0xd8] sm:$0xff] %vm1442, %v1401
      %1471 = vst.msk [vmem:[#allocation3 + $0xe0] sm:$0xff] %vm1442, %v1403
      %1472 = vst.msk [vmem:[#allocation3 + $0xe8] sm:$0xff] %vm1442, %v1405
      %1473 = vst.msk [vmem:[#allocation3 + $0xf0] sm:$0xff] %vm1442, %v1407
      %1474 = vst.msk [vmem:[#allocation3 + $0xf8] sm:$0xff] %vm1442, %v1409
      %v1475 = vld [vmem:[%s511 + $0x1] sm:$0xff]
      %v1476 = vld [vmem:[%s511 + $0x9] sm:$0xff]
      %v1477 = vld [vmem:[%s511 + $0x19] sm:$0xff]
      %v1478 = vld [vmem:[%s511 + $0x21] sm:$0xff]
      %v1479 = vld [vmem:[%s511 + $0x31] sm:$0xff]
      %v1480 = vld [vmem:[%s511 + $0x39] sm:$0xff]
      %v1481 = vld [vmem:[%s511 + $0x49] sm:$0xff]
      %v1482 = vld [vmem:[%s511 + $0x51] sm:$0xff]
      %v1483 = vld [vmem:[%s511 + $0x61] sm:$0xff]
      %v1484 = vld [vmem:[%s511 + $0x69] sm:$0xff]
      %v1485 = vld [vmem:[%s511 + $0x79] sm:$0xff]
      %v1486 = vld [vmem:[%s511 + $0x81] sm:$0xff]
      %v1487 = vld [vmem:[%s511 + $0x91] sm:$0xff]
      %v1488 = vld [vmem:[%s511 + $0x99] sm:$0xff]
      %v1489 = vld [vmem:[%s511 + $0xa9] sm:$0xff]
      %v1490 = vld [vmem:[%s511 + $0xb1] sm:$0xff]
      %v1491 = vld [vmem:[%s511 + $0xc1] sm:$0xff]
      %v1492 = vld [vmem:[%s511 + $0xc9] sm:$0xff]
      %v1493 = vld [vmem:[%s511 + $0xd9] sm:$0xff]
      %v1494 = vld [vmem:[%s511 + $0xe1] sm:$0xff]
      %v1495 = vld [vmem:[%s511 + $0xf1] sm:$0xff]
      %v1496 = vld [vmem:[%s511 + $0xf9] sm:$0xff]
      %v1497 = vld [vmem:[%s511 + $0x109] sm:$0xff]
      %v1498 = vld [vmem:[%s511 + $0x111] sm:$0xff]
      %v1499 = vld [vmem:[%s511 + $0x121] sm:$0xff]
      %v1500 = vld [vmem:[%s511 + $0x129] sm:$0xff]
      %v1501 = vld [vmem:[%s511 + $0x139] sm:$0xff]
      %v1502 = vld [vmem:[%s511 + $0x141] sm:$0xff]
      %v1503 = vld [vmem:[%s511 + $0x151] sm:$0xff]
      %v1504 = vld [vmem:[%s511 + $0x159] sm:$0xff]
      %v1505 = vld [vmem:[%s511 + $0x169] sm:$0xff]
      %v1506 = vld [vmem:[%s511 + $0x171] sm:$0xff]
      %v1507 = vld [vmem:[%s511 + $0x1b1] sm:$0xff]
      %v1508 = vld [vmem:[%s511 + $0x1b9] sm:$0xff]
      %v1509 = vld [vmem:[%s511 + $0x1c9] sm:$0xff]
      %v1510 = vld [vmem:[%s511 + $0x1d1] sm:$0xff]
      %v1511 = vld [vmem:[%s511 + $0x1e1] sm:$0xff]
      %v1512 = vld [vmem:[%s511 + $0x1e9] sm:$0xff]
      %v1513 = vld [vmem:[%s511 + $0x1f9] sm:$0xff]
      %v1514 = vld [vmem:[%s511 + $0x201] sm:$0xff]
      %v1515 = vld [vmem:[%s511 + $0x211] sm:$0xff]
      %v1516 = vld [vmem:[%s511 + $0x219] sm:$0xff]
      %v1517 = vld [vmem:[%s511 + $0x229] sm:$0xff]
      %v1518 = vld [vmem:[%s511 + $0x231] sm:$0xff]
      %v1519 = vld [vmem:[%s511 + $0x241] sm:$0xff]
      %v1520 = vld [vmem:[%s511 + $0x249] sm:$0xff]
      %v1521 = vld [vmem:[%s511 + $0x259] sm:$0xff]
      %v1522 = vld [vmem:[%s511 + $0x261] sm:$0xff]
      %v1523 = vld [vmem:[%s511 + $0x271] sm:$0xff]
      %v1524 = vld [vmem:[%s511 + $0x279] sm:$0xff]
      %v1525 = vld [vmem:[%s511 + $0x289] sm:$0xff]
      %v1526 = vld [vmem:[%s511 + $0x291] sm:$0xff]
      %v1527 = vld [vmem:[%s511 + $0x2a1] sm:$0xff]
      %v1528 = vld [vmem:[%s511 + $0x2a9] sm:$0xff]
      %v1529 = vld [vmem:[%s511 + $0x2b9] sm:$0xff]
      %v1530 = vld [vmem:[%s511 + $0x2c1] sm:$0xff]
      %v1531 = vld [vmem:[%s511 + $0x2d1] sm:$0xff]
      %v1532 = vld [vmem:[%s511 + $0x2d9] sm:$0xff]
      %v1533 = vld [vmem:[%s511 + $0x2e9] sm:$0xff]
      %v1534 = vld [vmem:[%s511 + $0x2f1] sm:$0xff]
      %v1535 = vld [vmem:[%s511 + $0x301] sm:$0xff]
      %v1536 = vld [vmem:[%s511 + $0x309] sm:$0xff]
      %v1537 = vld [vmem:[%s511 + $0x319] sm:$0xff]
      %v1538 = vld [vmem:[%s511 + $0x321] sm:$0xff]
      %v1539 = vpack.c.bf16 %v1476, %v1475
      %v1540 = vpack.c.bf16 %v1478, %v1477
      %v1541 = vpack.c.bf16 %v1480, %v1479
      %v1542 = vpack.c.bf16 %v1482, %v1481
      %v1543 = vpack.c.bf16 %v1484, %v1483
      %v1544 = vpack.c.bf16 %v1486, %v1485
      %v1545 = vpack.c.bf16 %v1488, %v1487
      %v1546 = vpack.c.bf16 %v1490, %v1489
      %v1547 = vpack.c.bf16 %v1492, %v1491
      %v1548 = vpack.c.bf16 %v1494, %v1493
      %v1549 = vpack.c.bf16 %v1496, %v1495
      %v1550 = vpack.c.bf16 %v1498, %v1497
      %v1551 = vpack.c.bf16 %v1500, %v1499
      %v1552 = vpack.c.bf16 %v1502, %v1501
      %v1553 = vpack.c.bf16 %v1504, %v1503
      %v1554 = vpack.c.bf16 %v1506, %v1505
      %v1555 = vpack.c.bf16 %v1508, %v1507
      %v1556 = vpack.c.bf16 %v1510, %v1509
      %v1557 = vpack.c.bf16 %v1512, %v1511
      %v1558 = vpack.c.bf16 %v1514, %v1513
      %v1559 = vpack.c.bf16 %v1516, %v1515
      %v1560 = vpack.c.bf16 %v1518, %v1517
      %v1561 = vpack.c.bf16 %v1520, %v1519
      %v1562 = vpack.c.bf16 %v1522, %v1521
      %v1563 = vpack.c.bf16 %v1524, %v1523
      %v1564 = vpack.c.bf16 %v1526, %v1525
      %v1565 = vpack.c.bf16 %v1528, %v1527
      %v1566 = vpack.c.bf16 %v1530, %v1529
      %v1567 = vpack.c.bf16 %v1532, %v1531
      %v1568 = vpack.c.bf16 %v1534, %v1533
      %v1569 = vpack.c.bf16 %v1536, %v1535
      %v1570 = vpack.c.bf16 %v1538, %v1537
      %1603 = vrot.lane.b32.xlu0 %v1539, 32
      %v1604 = vpop.permute.xlu0 %1603
      %1605 = vrot.lane.b32.xlu0 %v1540, 32
      %v1606 = vpop.permute.xlu0 %1605
      %1607 = vrot.lane.b32.xlu0 %v1541, 32
      %v1608 = vpop.permute.xlu0 %1607
      %1609 = vrot.lane.b32.xlu0 %v1542, 32
      %v1610 = vpop.permute.xlu0 %1609
      %1611 = vrot.lane.b32.xlu0 %v1543, 32
      %v1612 = vpop.permute.xlu0 %1611
      %1613 = vrot.lane.b32.xlu0 %v1544, 32
      %v1614 = vpop.permute.xlu0 %1613
      %1615 = vrot.lane.b32.xlu0 %v1545, 32
      %v1616 = vpop.permute.xlu0 %1615
      %1617 = vrot.lane.b32.xlu0 %v1546, 32
      %v1618 = vpop.permute.xlu0 %1617
      %1619 = vrot.lane.b32.xlu0 %v1547, 32
      %v1620 = vpop.permute.xlu0 %1619
      %1621 = vrot.lane.b32.xlu0 %v1548, 32
      %v1622 = vpop.permute.xlu0 %1621
      %1623 = vrot.lane.b32.xlu0 %v1549, 32
      %v1624 = vpop.permute.xlu0 %1623
      %1625 = vrot.lane.b32.xlu0 %v1550, 32
      %v1626 = vpop.permute.xlu0 %1625
      %1627 = vrot.lane.b32.xlu0 %v1551, 32
      %v1628 = vpop.permute.xlu0 %1627
      %1629 = vrot.lane.b32.xlu0 %v1552, 32
      %v1630 = vpop.permute.xlu0 %1629
      %1631 = vrot.lane.b32.xlu0 %v1553, 32
      %v1632 = vpop.permute.xlu0 %1631
      %1633 = vrot.lane.b32.xlu0 %v1554, 32
      %v1634 = vpop.permute.xlu0 %1633
      %1635 = vrot.lane.b32.xlu0 %v1555, 32
      %v1636 = vpop.permute.xlu0 %1635
      %1637 = vrot.lane.b32.xlu0 %v1556, 32
      %v1638 = vpop.permute.xlu0 %1637
      %1639 = vrot.lane.b32.xlu0 %v1557, 32
      %v1640 = vpop.permute.xlu0 %1639
      %1641 = vrot.lane.b32.xlu0 %v1558, 32
      %v1642 = vpop.permute.xlu0 %1641
      %1643 = vrot.lane.b32.xlu0 %v1559, 32
      %v1644 = vpop.permute.xlu0 %1643
      %1645 = vrot.lane.b32.xlu0 %v1560, 32
      %v1646 = vpop.permute.xlu0 %1645
      %1647 = vrot.lane.b32.xlu0 %v1561, 32
      %v1648 = vpop.permute.xlu0 %1647
      %1649 = vrot.lane.b32.xlu0 %v1562, 32
      %v1650 = vpop.permute.xlu0 %1649
      %1651 = vrot.lane.b32.xlu0 %v1563, 32
      %v1652 = vpop.permute.xlu0 %1651
      %1653 = vrot.lane.b32.xlu0 %v1564, 32
      %v1654 = vpop.permute.xlu0 %1653
      %1655 = vrot.lane.b32.xlu0 %v1565, 32
      %v1656 = vpop.permute.xlu0 %1655
      %1657 = vrot.lane.b32.xlu0 %v1566, 32
      %v1658 = vpop.permute.xlu0 %1657
      %1659 = vrot.lane.b32.xlu0 %v1567, 32
      %v1660 = vpop.permute.xlu0 %1659
      %1661 = vrot.lane.b32.xlu0 %v1568, 32
      %v1662 = vpop.permute.xlu0 %1661
      %1663 = vrot.lane.b32.xlu0 %v1569, 32
      %v1664 = vpop.permute.xlu0 %1663
      %1665 = vrot.lane.b32.xlu0 %v1570, 32
      %v1666 = vpop.permute.xlu0 %1665
      %vm1699 = vcmask 326912
      %1700 = vst.msk [vmem:[#allocation3] sm:$0xff] %vm1699, %v1604
      %1701 = vst.msk [vmem:[#allocation3 + $0x8] sm:$0xff] %vm1699, %v1606
      %1702 = vst.msk [vmem:[#allocation3 + $0x10] sm:$0xff] %vm1699, %v1608
      %1703 = vst.msk [vmem:[#allocation3 + $0x18] sm:$0xff] %vm1699, %v1610
      %1704 = vst.msk [vmem:[#allocation3 + $0x20] sm:$0xff] %vm1699, %v1612
      %1705 = vst.msk [vmem:[#allocation3 + $0x28] sm:$0xff] %vm1699, %v1614
      %1706 = vst.msk [vmem:[#allocation3 + $0x30] sm:$0xff] %vm1699, %v1616
      %1707 = vst.msk [vmem:[#allocation3 + $0x38] sm:$0xff] %vm1699, %v1618
      %1708 = vst.msk [vmem:[#allocation3 + $0x40] sm:$0xff] %vm1699, %v1620
      %1709 = vst.msk [vmem:[#allocation3 + $0x48] sm:$0xff] %vm1699, %v1622
      %1710 = vst.msk [vmem:[#allocation3 + $0x50] sm:$0xff] %vm1699, %v1624
      %1711 = vst.msk [vmem:[#allocation3 + $0x58] sm:$0xff] %vm1699, %v1626
      %1712 = vst.msk [vmem:[#allocation3 + $0x60] sm:$0xff] %vm1699, %v1628
      %1713 = vst.msk [vmem:[#allocation3 + $0x68] sm:$0xff] %vm1699, %v1630
      %1714 = vst.msk [vmem:[#allocation3 + $0x70] sm:$0xff] %vm1699, %v1632
      %1715 = vst.msk [vmem:[#allocation3 + $0x78] sm:$0xff] %vm1699, %v1634
      %1716 = vst.msk [vmem:[#allocation3 + $0x80] sm:$0xff] %vm1699, %v1636
      %1717 = vst.msk [vmem:[#allocation3 + $0x88] sm:$0xff] %vm1699, %v1638
      %1718 = vst.msk [vmem:[#allocation3 + $0x90] sm:$0xff] %vm1699, %v1640
      %1719 = vst.msk [vmem:[#allocation3 + $0x98] sm:$0xff] %vm1699, %v1642
      %1720 = vst.msk [vmem:[#allocation3 + $0xa0] sm:$0xff] %vm1699, %v1644
      %1721 = vst.msk [vmem:[#allocation3 + $0xa8] sm:$0xff] %vm1699, %v1646
      %1722 = vst.msk [vmem:[#allocation3 + $0xb0] sm:$0xff] %vm1699, %v1648
      %1723 = vst.msk [vmem:[#allocation3 + $0xb8] sm:$0xff] %vm1699, %v1650
      %1724 = vst.msk [vmem:[#allocation3 + $0xc0] sm:$0xff] %vm1699, %v1652
      %1725 = vst.msk [vmem:[#allocation3 + $0xc8] sm:$0xff] %vm1699, %v1654
      %1726 = vst.msk [vmem:[#allocation3 + $0xd0] sm:$0xff] %vm1699, %v1656
      %1727 = vst.msk [vmem:[#allocation3 + $0xd8] sm:$0xff] %vm1699, %v1658
      %1728 = vst.msk [vmem:[#allocation3 + $0xe0] sm:$0xff] %vm1699, %v1660
      %1729 = vst.msk [vmem:[#allocation3 + $0xe8] sm:$0xff] %vm1699, %v1662
      %1730 = vst.msk [vmem:[#allocation3 + $0xf0] sm:$0xff] %vm1699, %v1664
      %1731 = vst.msk [vmem:[#allocation3 + $0xf8] sm:$0xff] %vm1699, %v1666
      %v1732 = vld [vmem:[%s511 + $0x2] sm:$0xff]
      %v1733 = vld [vmem:[%s511 + $0xa] sm:$0xff]
      %v1734 = vld [vmem:[%s511 + $0x1a] sm:$0xff]
      %v1735 = vld [vmem:[%s511 + $0x22] sm:$0xff]
      %v1736 = vld [vmem:[%s511 + $0x32] sm:$0xff]
      %v1737 = vld [vmem:[%s511 + $0x3a] sm:$0xff]
      %v1738 = vld [vmem:[%s511 + $0x4a] sm:$0xff]
      %v1739 = vld [vmem:[%s511 + $0x52] sm:$0xff]
      %v1740 = vld [vmem:[%s511 + $0x62] sm:$0xff]
      %v1741 = vld [vmem:[%s511 + $0x6a] sm:$0xff]
      %v1742 = vld [vmem:[%s511 + $0x7a] sm:$0xff]
      %v1743 = vld [vmem:[%s511 + $0x82] sm:$0xff]
      %v1744 = vld [vmem:[%s511 + $0x92] sm:$0xff]
      %v1745 = vld [vmem:[%s511 + $0x9a] sm:$0xff]
      %v1746 = vld [vmem:[%s511 + $0xaa] sm:$0xff]
      %v1747 = vld [vmem:[%s511 + $0xb2] sm:$0xff]
      %v1748 = vld [vmem:[%s511 + $0xc2] sm:$0xff]
      %v1749 = vld [vmem:[%s511 + $0xca] sm:$0xff]
      %v1750 = vld [vmem:[%s511 + $0xda] sm:$0xff]
      %v1751 = vld [vmem:[%s511 + $0xe2] sm:$0xff]
      %v1752 = vld [vmem:[%s511 + $0xf2] sm:$0xff]
      %v1753 = vld [vmem:[%s511 + $0xfa] sm:$0xff]
      %v1754 = vld [vmem:[%s511 + $0x10a] sm:$0xff]
      %v1755 = vld [vmem:[%s511 + $0x112] sm:$0xff]
      %v1756 = vld [vmem:[%s511 + $0x122] sm:$0xff]
      %v1757 = vld [vmem:[%s511 + $0x12a] sm:$0xff]
      %v1758 = vld [vmem:[%s511 + $0x13a] sm:$0xff]
      %v1759 = vld [vmem:[%s511 + $0x142] sm:$0xff]
      %v1760 = vld [vmem:[%s511 + $0x152] sm:$0xff]
      %v1761 = vld [vmem:[%s511 + $0x15a] sm:$0xff]
      %v1762 = vld [vmem:[%s511 + $0x16a] sm:$0xff]
      %v1763 = vld [vmem:[%s511 + $0x172] sm:$0xff]
      %v1764 = vld [vmem:[%s511 + $0x1b2] sm:$0xff]
      %v1765 = vld [vmem:[%s511 + $0x1ba] sm:$0xff]
      %v1766 = vld [vmem:[%s511 + $0x1ca] sm:$0xff]
      %v1767 = vld [vmem:[%s511 + $0x1d2] sm:$0xff]
      %v1768 = vld [vmem:[%s511 + $0x1e2] sm:$0xff]
      %v1769 = vld [vmem:[%s511 + $0x1ea] sm:$0xff]
      %v1770 = vld [vmem:[%s511 + $0x1fa] sm:$0xff]
      %v1771 = vld [vmem:[%s511 + $0x202] sm:$0xff]
      %v1772 = vld [vmem:[%s511 + $0x212] sm:$0xff]
      %v1773 = vld [vmem:[%s511 + $0x21a] sm:$0xff]
      %v1774 = vld [vmem:[%s511 + $0x22a] sm:$0xff]
      %v1775 = vld [vmem:[%s511 + $0x232] sm:$0xff]
      %v1776 = vld [vmem:[%s511 + $0x242] sm:$0xff]
      %v1777 = vld [vmem:[%s511 + $0x24a] sm:$0xff]
      %v1778 = vld [vmem:[%s511 + $0x25a] sm:$0xff]
      %v1779 = vld [vmem:[%s511 + $0x262] sm:$0xff]
      %v1780 = vld [vmem:[%s511 + $0x272] sm:$0xff]
      %v1781 = vld [vmem:[%s511 + $0x27a] sm:$0xff]
      %v1782 = vld [vmem:[%s511 + $0x28a] sm:$0xff]
      %v1783 = vld [vmem:[%s511 + $0x292] sm:$0xff]
      %v1784 = vld [vmem:[%s511 + $0x2a2] sm:$0xff]
      %v1785 = vld [vmem:[%s511 + $0x2aa] sm:$0xff]
      %v1786 = vld [vmem:[%s511 + $0x2ba] sm:$0xff]
      %v1787 = vld [vmem:[%s511 + $0x2c2] sm:$0xff]
      %v1788 = vld [vmem:[%s511 + $0x2d2] sm:$0xff]
      %v1789 = vld [vmem:[%s511 + $0x2da] sm:$0xff]
      %v1790 = vld [vmem:[%s511 + $0x2ea] sm:$0xff]
      %v1791 = vld [vmem:[%s511 + $0x2f2] sm:$0xff]
      %v1792 = vld [vmem:[%s511 + $0x302] sm:$0xff]
      %v1793 = vld [vmem:[%s511 + $0x30a] sm:$0xff]
      %v1794 = vld [vmem:[%s511 + $0x31a] sm:$0xff]
      %v1795 = vld [vmem:[%s511 + $0x322] sm:$0xff]
      %v1796 = vpack.c.bf16 %v1733, %v1732
      %v1797 = vpack.c.bf16 %v1735, %v1734
      %v1798 = vpack.c.bf16 %v1737, %v1736
      %v1799 = vpack.c.bf16 %v1739, %v1738
      %v1800 = vpack.c.bf16 %v1741, %v1740
      %v1801 = vpack.c.bf16 %v1743, %v1742
      %v1802 = vpack.c.bf16 %v1745, %v1744
      %v1803 = vpack.c.bf16 %v1747, %v1746
      %v1804 = vpack.c.bf16 %v1749, %v1748
      %v1805 = vpack.c.bf16 %v1751, %v1750
      %v1806 = vpack.c.bf16 %v1753, %v1752
      %v1807 = vpack.c.bf16 %v1755, %v1754
      %v1808 = vpack.c.bf16 %v1757, %v1756
      %v1809 = vpack.c.bf16 %v1759, %v1758
      %v1810 = vpack.c.bf16 %v1761, %v1760
      %v1811 = vpack.c.bf16 %v1763, %v1762
      %v1812 = vpack.c.bf16 %v1765, %v1764
      %v1813 = vpack.c.bf16 %v1767, %v1766
      %v1814 = vpack.c.bf16 %v1769, %v1768
      %v1815 = vpack.c.bf16 %v1771, %v1770
      %v1816 = vpack.c.bf16 %v1773, %v1772
      %v1817 = vpack.c.bf16 %v1775, %v1774
      %v1818 = vpack.c.bf16 %v1777, %v1776
      %v1819 = vpack.c.bf16 %v1779, %v1778
      %v1820 = vpack.c.bf16 %v1781, %v1780
      %v1821 = vpack.c.bf16 %v1783, %v1782
      %v1822 = vpack.c.bf16 %v1785, %v1784
      %v1823 = vpack.c.bf16 %v1787, %v1786
      %v1824 = vpack.c.bf16 %v1789, %v1788
      %v1825 = vpack.c.bf16 %v1791, %v1790
      %v1826 = vpack.c.bf16 %v1793, %v1792
      %v1827 = vpack.c.bf16 %v1795, %v1794
      %1860 = vrot.lane.b32.xlu0 %v1796, 40
      %v1861 = vpop.permute.xlu0 %1860
      %1862 = vrot.lane.b32.xlu0 %v1797, 40
      %v1863 = vpop.permute.xlu0 %1862
      %1864 = vrot.lane.b32.xlu0 %v1798, 40
      %v1865 = vpop.permute.xlu0 %1864
      %1866 = vrot.lane.b32.xlu0 %v1799, 40
      %v1867 = vpop.permute.xlu0 %1866
      %1868 = vrot.lane.b32.xlu0 %v1800, 40
      %v1869 = vpop.permute.xlu0 %1868
      %1870 = vrot.lane.b32.xlu0 %v1801, 40
      %v1871 = vpop.permute.xlu0 %1870
      %1872 = vrot.lane.b32.xlu0 %v1802, 40
      %v1873 = vpop.permute.xlu0 %1872
      %1874 = vrot.lane.b32.xlu0 %v1803, 40
      %v1875 = vpop.permute.xlu0 %1874
      %1876 = vrot.lane.b32.xlu0 %v1804, 40
      %v1877 = vpop.permute.xlu0 %1876
      %1878 = vrot.lane.b32.xlu0 %v1805, 40
      %v1879 = vpop.permute.xlu0 %1878
      %1880 = vrot.lane.b32.xlu0 %v1806, 40
      %v1881 = vpop.permute.xlu0 %1880
      %1882 = vrot.lane.b32.xlu0 %v1807, 40
      %v1883 = vpop.permute.xlu0 %1882
      %1884 = vrot.lane.b32.xlu0 %v1808, 40
      %v1885 = vpop.permute.xlu0 %1884
      %1886 = vrot.lane.b32.xlu0 %v1809, 40
      %v1887 = vpop.permute.xlu0 %1886
      %1888 = vrot.lane.b32.xlu0 %v1810, 40
      %v1889 = vpop.permute.xlu0 %1888
      %1890 = vrot.lane.b32.xlu0 %v1811, 40
      %v1891 = vpop.permute.xlu0 %1890
      %1892 = vrot.lane.b32.xlu0 %v1812, 40
      %v1893 = vpop.permute.xlu0 %1892
      %1894 = vrot.lane.b32.xlu0 %v1813, 40
      %v1895 = vpop.permute.xlu0 %1894
      %1896 = vrot.lane.b32.xlu0 %v1814, 40
      %v1897 = vpop.permute.xlu0 %1896
      %1898 = vrot.lane.b32.xlu0 %v1815, 40
      %v1899 = vpop.permute.xlu0 %1898
      %1900 = vrot.lane.b32.xlu0 %v1816, 40
      %v1901 = vpop.permute.xlu0 %1900
      %1902 = vrot.lane.b32.xlu0 %v1817, 40
      %v1903 = vpop.permute.xlu0 %1902
      %1904 = vrot.lane.b32.xlu0 %v1818, 40
      %v1905 = vpop.permute.xlu0 %1904
      %1906 = vrot.lane.b32.xlu0 %v1819, 40
      %v1907 = vpop.permute.xlu0 %1906
      %1908 = vrot.lane.b32.xlu0 %v1820, 40
      %v1909 = vpop.permute.xlu0 %1908
      %1910 = vrot.lane.b32.xlu0 %v1821, 40
      %v1911 = vpop.permute.xlu0 %1910
      %1912 = vrot.lane.b32.xlu0 %v1822, 40
      %v1913 = vpop.permute.xlu0 %1912
      %1914 = vrot.lane.b32.xlu0 %v1823, 40
      %v1915 = vpop.permute.xlu0 %1914
      %1916 = vrot.lane.b32.xlu0 %v1824, 40
      %v1917 = vpop.permute.xlu0 %1916
      %1918 = vrot.lane.b32.xlu0 %v1825, 40
      %v1919 = vpop.permute.xlu0 %1918
      %1920 = vrot.lane.b32.xlu0 %v1826, 40
      %v1921 = vpop.permute.xlu0 %1920
      %1922 = vrot.lane.b32.xlu0 %v1827, 40
      %v1923 = vpop.permute.xlu0 %1922
      %vm1956 = vcmask 392512
      %1957 = vst.msk [vmem:[#allocation3] sm:$0xff] %vm1956, %v1861
      %1958 = vst.msk [vmem:[#allocation3 + $0x8] sm:$0xff] %vm1956, %v1863
      %1959 = vst.msk [vmem:[#allocation3 + $0x10] sm:$0xff] %vm1956, %v1865
      %1960 = vst.msk [vmem:[#allocation3 + $0x18] sm:$0xff] %vm1956, %v1867
      %1961 = vst.msk [vmem:[#allocation3 + $0x20] sm:$0xff] %vm1956, %v1869
      %1962 = vst.msk [vmem:[#allocation3 + $0x28] sm:$0xff] %vm1956, %v1871
      %1963 = vst.msk [vmem:[#allocation3 + $0x30] sm:$0xff] %vm1956, %v1873
      %1964 = vst.msk [vmem:[#allocation3 + $0x38] sm:$0xff] %vm1956, %v1875
      %1965 = vst.msk [vmem:[#allocation3 + $0x40] sm:$0xff] %vm1956, %v1877
      %1966 = vst.msk [vmem:[#allocation3 + $0x48] sm:$0xff] %vm1956, %v1879
      %1967 = vst.msk [vmem:[#allocation3 + $0x50] sm:$0xff] %vm1956, %v1881
      %1968 = vst.msk [vmem:[#allocation3 + $0x58] sm:$0xff] %vm1956, %v1883
      %1969 = vst.msk [vmem:[#allocation3 + $0x60] sm:$0xff] %vm1956, %v1885
      %1970 = vst.msk [vmem:[#allocation3 + $0x68] sm:$0xff] %vm1956, %v1887
      %1971 = vst.msk [vmem:[#allocation3 + $0x70] sm:$0xff] %vm1956, %v1889
      %1972 = vst.msk [vmem:[#allocation3 + $0x78] sm:$0xff] %vm1956, %v1891
      %1973 = vst.msk [vmem:[#allocation3 + $0x80] sm:$0xff] %vm1956, %v1893
      %1974 = vst.msk [vmem:[#allocation3 + $0x88] sm:$0xff] %vm1956, %v1895
      %1975 = vst.msk [vmem:[#allocation3 + $0x90] sm:$0xff] %vm1956, %v1897
      %1976 = vst.msk [vmem:[#allocation3 + $0x98] sm:$0xff] %vm1956, %v1899
      %1977 = vst.msk [vmem:[#allocation3 + $0xa0] sm:$0xff] %vm1956, %v1901
      %1978 = vst.msk [vmem:[#allocation3 + $0xa8] sm:$0xff] %vm1956, %v1903
      %1979 = vst.msk [vmem:[#allocation3 + $0xb0] sm:$0xff] %vm1956, %v1905
      %1980 = vst.msk [vmem:[#allocation3 + $0xb8] sm:$0xff] %vm1956, %v1907
      %1981 = vst.msk [vmem:[#allocation3 + $0xc0] sm:$0xff] %vm1956, %v1909
      %1982 = vst.msk [vmem:[#allocation3 + $0xc8] sm:$0xff] %vm1956, %v1911
      %1983 = vst.msk [vmem:[#allocation3 + $0xd0] sm:$0xff] %vm1956, %v1913
      %1984 = vst.msk [vmem:[#allocation3 + $0xd8] sm:$0xff] %vm1956, %v1915
      %1985 = vst.msk [vmem:[#allocation3 + $0xe0] sm:$0xff] %vm1956, %v1917
      %1986 = vst.msk [vmem:[#allocation3 + $0xe8] sm:$0xff] %vm1956, %v1919
      %1987 = vst.msk [vmem:[#allocation3 + $0xf0] sm:$0xff] %vm1956, %v1921
      %1988 = vst.msk [vmem:[#allocation3 + $0xf8] sm:$0xff] %vm1956, %v1923
      %s1989 = scalar_lea.vmem [#allocation2], 48
      %v1990 = vld [vmem:[%s1989] sm:$0xff]
      %v1991 = vld [vmem:[%s1989 + $0x8] sm:$0xff]
      %v1992 = vld [vmem:[%s1989 + $0x18] sm:$0xff]
      %v1993 = vld [vmem:[%s1989 + $0x20] sm:$0xff]
      %v1994 = vld [vmem:[%s1989 + $0x30] sm:$0xff]
      %v1995 = vld [vmem:[%s1989 + $0x38] sm:$0xff]
      %v1996 = vld [vmem:[%s1989 + $0x48] sm:$0xff]
      %v1997 = vld [vmem:[%s1989 + $0x50] sm:$0xff]
      %v1998 = vld [vmem:[%s1989 + $0x60] sm:$0xff]
      %v1999 = vld [vmem:[%s1989 + $0x68] sm:$0xff]
      %v2000 = vld [vmem:[%s1989 + $0x78] sm:$0xff]
      %v2001 = vld [vmem:[%s1989 + $0x80] sm:$0xff]
      %v2002 = vld [vmem:[%s1989 + $0x90] sm:$0xff]
      %v2003 = vld [vmem:[%s1989 + $0x98] sm:$0xff]
      %v2004 = vld [vmem:[%s1989 + $0xa8] sm:$0xff]
      %v2005 = vld [vmem:[%s1989 + $0xb0] sm:$0xff]
      %v2006 = vld [vmem:[%s1989 + $0xc0] sm:$0xff]
      %v2007 = vld [vmem:[%s1989 + $0xc8] sm:$0xff]
      %v2008 = vld [vmem:[%s1989 + $0xd8] sm:$0xff]
      %v2009 = vld [vmem:[%s1989 + $0xe0] sm:$0xff]
      %v2010 = vld [vmem:[%s1989 + $0xf0] sm:$0xff]
      %v2011 = vld [vmem:[%s1989 + $0xf8] sm:$0xff]
      %v2012 = vld [vmem:[%s1989 + $0x108] sm:$0xff]
      %v2013 = vld [vmem:[%s1989 + $0x110] sm:$0xff]
      %v2014 = vld [vmem:[%s1989 + $0x120] sm:$0xff]
      %v2015 = vld [vmem:[%s1989 + $0x128] sm:$0xff]
      %v2016 = vld [vmem:[%s1989 + $0x138] sm:$0xff]
      %v2017 = vld [vmem:[%s1989 + $0x140] sm:$0xff]
      %v2018 = vld [vmem:[%s1989 + $0x150] sm:$0xff]
      %v2019 = vld [vmem:[%s1989 + $0x158] sm:$0xff]
      %v2020 = vld [vmem:[%s1989 + $0x168] sm:$0xff]
      %v2021 = vld [vmem:[%s1989 + $0x170] sm:$0xff]
      %v2022 = vld [vmem:[%s1989 + $0x1b0] sm:$0xff]
      %v2023 = vld [vmem:[%s1989 + $0x1b8] sm:$0xff]
      %v2024 = vld [vmem:[%s1989 + $0x1c8] sm:$0xff]
      %v2025 = vld [vmem:[%s1989 + $0x1d0] sm:$0xff]
      %v2026 = vld [vmem:[%s1989 + $0x1e0] sm:$0xff]
      %v2027 = vld [vmem:[%s1989 + $0x1e8] sm:$0xff]
      %v2028 = vld [vmem:[%s1989 + $0x1f8] sm:$0xff]
      %v2029 = vld [vmem:[%s1989 + $0x200] sm:$0xff]
      %v2030 = vld [vmem:[%s1989 + $0x210] sm:$0xff]
      %v2031 = vld [vmem:[%s1989 + $0x218] sm:$0xff]
      %v2032 = vld [vmem:[%s1989 + $0x228] sm:$0xff]
      %v2033 = vld [vmem:[%s1989 + $0x230] sm:$0xff]
      %v2034 = vld [vmem:[%s1989 + $0x240] sm:$0xff]
      %v2035 = vld [vmem:[%s1989 + $0x248] sm:$0xff]
      %v2036 = vld [vmem:[%s1989 + $0x258] sm:$0xff]
      %v2037 = vld [vmem:[%s1989 + $0x260] sm:$0xff]
      %v2038 = vld [vmem:[%s1989 + $0x270] sm:$0xff]
      %v2039 = vld [vmem:[%s1989 + $0x278] sm:$0xff]
      %v2040 = vld [vmem:[%s1989 + $0x288] sm:$0xff]
      %v2041 = vld [vmem:[%s1989 + $0x290] sm:$0xff]
      %v2042 = vld [vmem:[%s1989 + $0x2a0] sm:$0xff]
      %v2043 = vld [vmem:[%s1989 + $0x2a8] sm:$0xff]
      %v2044 = vld [vmem:[%s1989 + $0x2b8] sm:$0xff]
      %v2045 = vld [vmem:[%s1989 + $0x2c0] sm:$0xff]
      %v2046 = vld [vmem:[%s1989 + $0x2d0] sm:$0xff]
      %v2047 = vld [vmem:[%s1989 + $0x2d8] sm:$0xff]
      %v2048 = vld [vmem:[%s1989 + $0x2e8] sm:$0xff]
      %v2049 = vld [vmem:[%s1989 + $0x2f0] sm:$0xff]
      %v2050 = vld [vmem:[%s1989 + $0x300] sm:$0xff]
      %v2051 = vld [vmem:[%s1989 + $0x308] sm:$0xff]
      %v2052 = vld [vmem:[%s1989 + $0x318] sm:$0xff]
      %v2053 = vld [vmem:[%s1989 + $0x320] sm:$0xff]
      %v2054 = vpack.c.bf16 %v1991, %v1990
      %v2055 = vpack.c.bf16 %v1993, %v1992
      %v2056 = vpack.c.bf16 %v1995, %v1994
      %v2057 = vpack.c.bf16 %v1997, %v1996
      %v2058 = vpack.c.bf16 %v1999, %v1998
      %v2059 = vpack.c.bf16 %v2001, %v2000
      %v2060 = vpack.c.bf16 %v2003, %v2002
      %v2061 = vpack.c.bf16 %v2005, %v2004
      %v2062 = vpack.c.bf16 %v2007, %v2006
      %v2063 = vpack.c.bf16 %v2009, %v2008
      %v2064 = vpack.c.bf16 %v2011, %v2010
      %v2065 = vpack.c.bf16 %v2013, %v2012
      %v2066 = vpack.c.bf16 %v2015, %v2014
      %v2067 = vpack.c.bf16 %v2017, %v2016
      %v2068 = vpack.c.bf16 %v2019, %v2018
      %v2069 = vpack.c.bf16 %v2021, %v2020
      %v2070 = vpack.c.bf16 %v2023, %v2022
      %v2071 = vpack.c.bf16 %v2025, %v2024
      %v2072 = vpack.c.bf16 %v2027, %v2026
      %v2073 = vpack.c.bf16 %v2029, %v2028
      %v2074 = vpack.c.bf16 %v2031, %v2030
      %v2075 = vpack.c.bf16 %v2033, %v2032
      %v2076 = vpack.c.bf16 %v2035, %v2034
      %v2077 = vpack.c.bf16 %v2037, %v2036
      %v2078 = vpack.c.bf16 %v2039, %v2038
      %v2079 = vpack.c.bf16 %v2041, %v2040
      %v2080 = vpack.c.bf16 %v2043, %v2042
      %v2081 = vpack.c.bf16 %v2045, %v2044
      %v2082 = vpack.c.bf16 %v2047, %v2046
      %v2083 = vpack.c.bf16 %v2049, %v2048
      %v2084 = vpack.c.bf16 %v2051, %v2050
      %v2085 = vpack.c.bf16 %v2053, %v2052
      %2118 = vrot.lane.b32.xlu0 %v2054, 48
      %v2119 = vpop.permute.xlu0 %2118
      %2120 = vrot.lane.b32.xlu0 %v2055, 48
      %v2121 = vpop.permute.xlu0 %2120
      %2122 = vrot.lane.b32.xlu0 %v2056, 48
      %v2123 = vpop.permute.xlu0 %2122
      %2124 = vrot.lane.b32.xlu0 %v2057, 48
      %v2125 = vpop.permute.xlu0 %2124
      %2126 = vrot.lane.b32.xlu0 %v2058, 48
      %v2127 = vpop.permute.xlu0 %2126
      %2128 = vrot.lane.b32.xlu0 %v2059, 48
      %v2129 = vpop.permute.xlu0 %2128
      %2130 = vrot.lane.b32.xlu0 %v2060, 48
      %v2131 = vpop.permute.xlu0 %2130
      %2132 = vrot.lane.b32.xlu0 %v2061, 48
      %v2133 = vpop.permute.xlu0 %2132
      %2134 = vrot.lane.b32.xlu0 %v2062, 48
      %v2135 = vpop.permute.xlu0 %2134
      %2136 = vrot.lane.b32.xlu0 %v2063, 48
      %v2137 = vpop.permute.xlu0 %2136
      %2138 = vrot.lane.b32.xlu0 %v2064, 48
      %v2139 = vpop.permute.xlu0 %2138
      %2140 = vrot.lane.b32.xlu0 %v2065, 48
      %v2141 = vpop.permute.xlu0 %2140
      %2142 = vrot.lane.b32.xlu0 %v2066, 48
      %v2143 = vpop.permute.xlu0 %2142
      %2144 = vrot.lane.b32.xlu0 %v2067, 48
      %v2145 = vpop.permute.xlu0 %2144
      %2146 = vrot.lane.b32.xlu0 %v2068, 48
      %v2147 = vpop.permute.xlu0 %2146
      %2148 = vrot.lane.b32.xlu0 %v2069, 48
      %v2149 = vpop.permute.xlu0 %2148
      %2150 = vrot.lane.b32.xlu0 %v2070, 48
      %v2151 = vpop.permute.xlu0 %2150
      %2152 = vrot.lane.b32.xlu0 %v2071, 48
      %v2153 = vpop.permute.xlu0 %2152
      %2154 = vrot.lane.b32.xlu0 %v2072, 48
      %v2155 = vpop.permute.xlu0 %2154
      %2156 = vrot.lane.b32.xlu0 %v2073, 48
      %v2157 = vpop.permute.xlu0 %2156
      %2158 = vrot.lane.b32.xlu0 %v2074, 48
      %v2159 = vpop.permute.xlu0 %2158
      %2160 = vrot.lane.b32.xlu0 %v2075, 48
      %v2161 = vpop.permute.xlu0 %2160
      %2162 = vrot.lane.b32.xlu0 %v2076, 48
      %v2163 = vpop.permute.xlu0 %2162
      %2164 = vrot.lane.b32.xlu0 %v2077, 48
      %v2165 = vpop.permute.xlu0 %2164
      %2166 = vrot.lane.b32.xlu0 %v2078, 48
      %v2167 = vpop.permute.xlu0 %2166
      %2168 = vrot.lane.b32.xlu0 %v2079, 48
      %v2169 = vpop.permute.xlu0 %2168
      %2170 = vrot.lane.b32.xlu0 %v2080, 48
      %v2171 = vpop.permute.xlu0 %2170
      %2172 = vrot.lane.b32.xlu0 %v2081, 48
      %v2173 = vpop.permute.xlu0 %2172
      %2174 = vrot.lane.b32.xlu0 %v2082, 48
      %v2175 = vpop.permute.xlu0 %2174
      %2176 = vrot.lane.b32.xlu0 %v2083, 48
      %v2177 = vpop.permute.xlu0 %2176
      %2178 = vrot.lane.b32.xlu0 %v2084, 48
      %v2179 = vpop.permute.xlu0 %2178
      %2180 = vrot.lane.b32.xlu0 %v2085, 48
      %v2181 = vpop.permute.xlu0 %2180
      %vm2214 = vcmask 458112
      %2215 = vst.msk [vmem:[#allocation3] sm:$0xff] %vm2214, %v2119
      %2216 = vst.msk [vmem:[#allocation3 + $0x8] sm:$0xff] %vm2214, %v2121
      %2217 = vst.msk [vmem:[#allocation3 + $0x10] sm:$0xff] %vm2214, %v2123
      %2218 = vst.msk [vmem:[#allocation3 + $0x18] sm:$0xff] %vm2214, %v2125
      %2219 = vst.msk [vmem:[#allocation3 + $0x20] sm:$0xff] %vm2214, %v2127
      %2220 = vst.msk [vmem:[#allocation3 + $0x28] sm:$0xff] %vm2214, %v2129
      %2221 = vst.msk [vmem:[#allocation3 + $0x30] sm:$0xff] %vm2214, %v2131
      %2222 = vst.msk [vmem:[#allocation3 + $0x38] sm:$0xff] %vm2214, %v2133
      %2223 = vst.msk [vmem:[#allocation3 + $0x40] sm:$0xff] %vm2214, %v2135
      %2224 = vst.msk [vmem:[#allocation3 + $0x48] sm:$0xff] %vm2214, %v2137
      %2225 = vst.msk [vmem:[#allocation3 + $0x50] sm:$0xff] %vm2214, %v2139
      %2226 = vst.msk [vmem:[#allocation3 + $0x58] sm:$0xff] %vm2214, %v2141
      %2227 = vst.msk [vmem:[#allocation3 + $0x60] sm:$0xff] %vm2214, %v2143
      %2228 = vst.msk [vmem:[#allocation3 + $0x68] sm:$0xff] %vm2214, %v2145
      %2229 = vst.msk [vmem:[#allocation3 + $0x70] sm:$0xff] %vm2214, %v2147
      %2230 = vst.msk [vmem:[#allocation3 + $0x78] sm:$0xff] %vm2214, %v2149
      %2231 = vst.msk [vmem:[#allocation3 + $0x80] sm:$0xff] %vm2214, %v2151
      %2232 = vst.msk [vmem:[#allocation3 + $0x88] sm:$0xff] %vm2214, %v2153
      %2233 = vst.msk [vmem:[#allocation3 + $0x90] sm:$0xff] %vm2214, %v2155
      %2234 = vst.msk [vmem:[#allocation3 + $0x98] sm:$0xff] %vm2214, %v2157
      %2235 = vst.msk [vmem:[#allocation3 + $0xa0] sm:$0xff] %vm2214, %v2159
      %2236 = vst.msk [vmem:[#allocation3 + $0xa8] sm:$0xff] %vm2214, %v2161
      %2237 = vst.msk [vmem:[#allocation3 + $0xb0] sm:$0xff] %vm2214, %v2163
      %2238 = vst.msk [vmem:[#allocation3 + $0xb8] sm:$0xff] %vm2214, %v2165
      %2239 = vst.msk [vmem:[#allocation3 + $0xc0] sm:$0xff] %vm2214, %v2167
      %2240 = vst.msk [vmem:[#allocation3 + $0xc8] sm:$0xff] %vm2214, %v2169
      %2241 = vst.msk [vmem:[#allocation3 + $0xd0] sm:$0xff] %vm2214, %v2171
      %2242 = vst.msk [vmem:[#allocation3 + $0xd8] sm:$0xff] %vm2214, %v2173
      %2243 = vst.msk [vmem:[#allocation3 + $0xe0] sm:$0xff] %vm2214, %v2175
      %2244 = vst.msk [vmem:[#allocation3 + $0xe8] sm:$0xff] %vm2214, %v2177
      %2245 = vst.msk [vmem:[#allocation3 + $0xf0] sm:$0xff] %vm2214, %v2179
      %2246 = vst.msk [vmem:[#allocation3 + $0xf8] sm:$0xff] %vm2214, %v2181
      %v2247 = vld [vmem:[%s1989 + $0x1] sm:$0xff]
      %v2248 = vld [vmem:[%s1989 + $0x9] sm:$0xff]
      %v2249 = vld [vmem:[%s1989 + $0x19] sm:$0xff]
      %v2250 = vld [vmem:[%s1989 + $0x21] sm:$0xff]
      %v2251 = vld [vmem:[%s1989 + $0x31] sm:$0xff]
      %v2252 = vld [vmem:[%s1989 + $0x39] sm:$0xff]
      %v2253 = vld [vmem:[%s1989 + $0x49] sm:$0xff]
      %v2254 = vld [vmem:[%s1989 + $0x51] sm:$0xff]
      %v2255 = vld [vmem:[%s1989 + $0x61] sm:$0xff]
      %v2256 = vld [vmem:[%s1989 + $0x69] sm:$0xff]
      %v2257 = vld [vmem:[%s1989 + $0x79] sm:$0xff]
      %v2258 = vld [vmem:[%s1989 + $0x81] sm:$0xff]
      %v2259 = vld [vmem:[%s1989 + $0x91] sm:$0xff]
      %v2260 = vld [vmem:[%s1989 + $0x99] sm:$0xff]
      %v2261 = vld [vmem:[%s1989 + $0xa9] sm:$0xff]
      %v2262 = vld [vmem:[%s1989 + $0xb1] sm:$0xff]
      %v2263 = vld [vmem:[%s1989 + $0xc1] sm:$0xff]
      %v2264 = vld [vmem:[%s1989 + $0xc9] sm:$0xff]
      %v2265 = vld [vmem:[%s1989 + $0xd9] sm:$0xff]
      %v2266 = vld [vmem:[%s1989 + $0xe1] sm:$0xff]
      %v2267 = vld [vmem:[%s1989 + $0xf1] sm:$0xff]
      %v2268 = vld [vmem:[%s1989 + $0xf9] sm:$0xff]
      %v2269 = vld [vmem:[%s1989 + $0x109] sm:$0xff]
      %v2270 = vld [vmem:[%s1989 + $0x111] sm:$0xff]
      %v2271 = vld [vmem:[%s1989 + $0x121] sm:$0xff]
      %v2272 = vld [vmem:[%s1989 + $0x129] sm:$0xff]
      %v2273 = vld [vmem:[%s1989 + $0x139] sm:$0xff]
      %v2274 = vld [vmem:[%s1989 + $0x141] sm:$0xff]
      %v2275 = vld [vmem:[%s1989 + $0x151] sm:$0xff]
      %v2276 = vld [vmem:[%s1989 + $0x159] sm:$0xff]
      %v2277 = vld [vmem:[%s1989 + $0x169] sm:$0xff]
      %v2278 = vld [vmem:[%s1989 + $0x171] sm:$0xff]
      %v2279 = vld [vmem:[%s1989 + $0x1b1] sm:$0xff]
      %v2280 = vld [vmem:[%s1989 + $0x1b9] sm:$0xff]
      %v2281 = vld [vmem:[%s1989 + $0x1c9] sm:$0xff]
      %v2282 = vld [vmem:[%s1989 + $0x1d1] sm:$0xff]
      %v2283 = vld [vmem:[%s1989 + $0x1e1] sm:$0xff]
      %v2284 = vld [vmem:[%s1989 + $0x1e9] sm:$0xff]
      %v2285 = vld [vmem:[%s1989 + $0x1f9] sm:$0xff]
      %v2286 = vld [vmem:[%s1989 + $0x201] sm:$0xff]
      %v2287 = vld [vmem:[%s1989 + $0x211] sm:$0xff]
      %v2288 = vld [vmem:[%s1989 + $0x219] sm:$0xff]
      %v2289 = vld [vmem:[%s1989 + $0x229] sm:$0xff]
      %v2290 = vld [vmem:[%s1989 + $0x231] sm:$0xff]
      %v2291 = vld [vmem:[%s1989 + $0x241] sm:$0xff]
      %v2292 = vld [vmem:[%s1989 + $0x249] sm:$0xff]
      %v2293 = vld [vmem:[%s1989 + $0x259] sm:$0xff]
      %v2294 = vld [vmem:[%s1989 + $0x261] sm:$0xff]
      %v2295 = vld [vmem:[%s1989 + $0x271] sm:$0xff]
      %v2296 = vld [vmem:[%s1989 + $0x279] sm:$0xff]
      %v2297 = vld [vmem:[%s1989 + $0x289] sm:$0xff]
      %v2298 = vld [vmem:[%s1989 + $0x291] sm:$0xff]
      %v2299 = vld [vmem:[%s1989 + $0x2a1] sm:$0xff]
      %v2300 = vld [vmem:[%s1989 + $0x2a9] sm:$0xff]
      %v2301 = vld [vmem:[%s1989 + $0x2b9] sm:$0xff]
      %v2302 = vld [vmem:[%s1989 + $0x2c1] sm:$0xff]
      %v2303 = vld [vmem:[%s1989 + $0x2d1] sm:$0xff]
      %v2304 = vld [vmem:[%s1989 + $0x2d9] sm:$0xff]
      %v2305 = vld [vmem:[%s1989 + $0x2e9] sm:$0xff]
      %v2306 = vld [vmem:[%s1989 + $0x2f1] sm:$0xff]
      %v2307 = vld [vmem:[%s1989 + $0x301] sm:$0xff]
      %v2308 = vld [vmem:[%s1989 + $0x309] sm:$0xff]
      %v2309 = vld [vmem:[%s1989 + $0x319] sm:$0xff]
      %v2310 = vld [vmem:[%s1989 + $0x321] sm:$0xff]
      %v2311 = vpack.c.bf16 %v2248, %v2247
      %v2312 = vpack.c.bf16 %v2250, %v2249
      %v2313 = vpack.c.bf16 %v2252, %v2251
      %v2314 = vpack.c.bf16 %v2254, %v2253
      %v2315 = vpack.c.bf16 %v2256, %v2255
      %v2316 = vpack.c.bf16 %v2258, %v2257
      %v2317 = vpack.c.bf16 %v2260, %v2259
      %v2318 = vpack.c.bf16 %v2262, %v2261
      %v2319 = vpack.c.bf16 %v2264, %v2263
      %v2320 = vpack.c.bf16 %v2266, %v2265
      %v2321 = vpack.c.bf16 %v2268, %v2267
      %v2322 = vpack.c.bf16 %v2270, %v2269
      %v2323 = vpack.c.bf16 %v2272, %v2271
      %v2324 = vpack.c.bf16 %v2274, %v2273
      %v2325 = vpack.c.bf16 %v2276, %v2275
      %v2326 = vpack.c.bf16 %v2278, %v2277
      %v2327 = vpack.c.bf16 %v2280, %v2279
      %v2328 = vpack.c.bf16 %v2282, %v2281
      %v2329 = vpack.c.bf16 %v2284, %v2283
      %v2330 = vpack.c.bf16 %v2286, %v2285
      %v2331 = vpack.c.bf16 %v2288, %v2287
      %v2332 = vpack.c.bf16 %v2290, %v2289
      %v2333 = vpack.c.bf16 %v2292, %v2291
      %v2334 = vpack.c.bf16 %v2294, %v2293
      %v2335 = vpack.c.bf16 %v2296, %v2295
      %v2336 = vpack.c.bf16 %v2298, %v2297
      %v2337 = vpack.c.bf16 %v2300, %v2299
      %v2338 = vpack.c.bf16 %v2302, %v2301
      %v2339 = vpack.c.bf16 %v2304, %v2303
      %v2340 = vpack.c.bf16 %v2306, %v2305
      %v2341 = vpack.c.bf16 %v2308, %v2307
      %v2342 = vpack.c.bf16 %v2310, %v2309
      %2375 = vrot.lane.b32.xlu0 %v2311, 56
      %v2376 = vpop.permute.xlu0 %2375
      %2377 = vrot.lane.b32.xlu0 %v2312, 56
      %v2378 = vpop.permute.xlu0 %2377
      %2379 = vrot.lane.b32.xlu0 %v2313, 56
      %v2380 = vpop.permute.xlu0 %2379
      %2381 = vrot.lane.b32.xlu0 %v2314, 56
      %v2382 = vpop.permute.xlu0 %2381
      %2383 = vrot.lane.b32.xlu0 %v2315, 56
      %v2384 = vpop.permute.xlu0 %2383
      %2385 = vrot.lane.b32.xlu0 %v2316, 56
      %v2386 = vpop.permute.xlu0 %2385
      %2387 = vrot.lane.b32.xlu0 %v2317, 56
      %v2388 = vpop.permute.xlu0 %2387
      %2389 = vrot.lane.b32.xlu0 %v2318, 56
      %v2390 = vpop.permute.xlu0 %2389
      %2391 = vrot.lane.b32.xlu0 %v2319, 56
      %v2392 = vpop.permute.xlu0 %2391
      %2393 = vrot.lane.b32.xlu0 %v2320, 56
      %v2394 = vpop.permute.xlu0 %2393
      %2395 = vrot.lane.b32.xlu0 %v2321, 56
      %v2396 = vpop.permute.xlu0 %2395
      %2397 = vrot.lane.b32.xlu0 %v2322, 56
      %v2398 = vpop.permute.xlu0 %2397
      %2399 = vrot.lane.b32.xlu0 %v2323, 56
      %v2400 = vpop.permute.xlu0 %2399
      %2401 = vrot.lane.b32.xlu0 %v2324, 56
      %v2402 = vpop.permute.xlu0 %2401
      %2403 = vrot.lane.b32.xlu0 %v2325, 56
      %v2404 = vpop.permute.xlu0 %2403
      %2405 = vrot.lane.b32.xlu0 %v2326, 56
      %v2406 = vpop.permute.xlu0 %2405
      %2407 = vrot.lane.b32.xlu0 %v2327, 56
      %v2408 = vpop.permute.xlu0 %2407
      %2409 = vrot.lane.b32.xlu0 %v2328, 56
      %v2410 = vpop.permute.xlu0 %2409
      %2411 = vrot.lane.b32.xlu0 %v2329, 56
      %v2412 = vpop.permute.xlu0 %2411
      %2413 = vrot.lane.b32.xlu0 %v2330, 56
      %v2414 = vpop.permute.xlu0 %2413
      %2415 = vrot.lane.b32.xlu0 %v2331, 56
      %v2416 = vpop.permute.xlu0 %2415
      %2417 = vrot.lane.b32.xlu0 %v2332, 56
      %v2418 = vpop.permute.xlu0 %2417
      %2419 = vrot.lane.b32.xlu0 %v2333, 56
      %v2420 = vpop.permute.xlu0 %2419
      %2421 = vrot.lane.b32.xlu0 %v2334, 56
      %v2422 = vpop.permute.xlu0 %2421
      %2423 = vrot.lane.b32.xlu0 %v2335, 56
      %v2424 = vpop.permute.xlu0 %2423
      %2425 = vrot.lane.b32.xlu0 %v2336, 56
      %v2426 = vpop.permute.xlu0 %2425
      %2427 = vrot.lane.b32.xlu0 %v2337, 56
      %v2428 = vpop.permute.xlu0 %2427
      %2429 = vrot.lane.b32.xlu0 %v2338, 56
      %v2430 = vpop.permute.xlu0 %2429
      %2431 = vrot.lane.b32.xlu0 %v2339, 56
      %v2432 = vpop.permute.xlu0 %2431
      %2433 = vrot.lane.b32.xlu0 %v2340, 56
      %v2434 = vpop.permute.xlu0 %2433
      %2435 = vrot.lane.b32.xlu0 %v2341, 56
      %v2436 = vpop.permute.xlu0 %2435
      %2437 = vrot.lane.b32.xlu0 %v2342, 56
      %v2438 = vpop.permute.xlu0 %2437
      %vm2471 = vcmask 523712
      %2472 = vst.msk [vmem:[#allocation3] sm:$0xff] %vm2471, %v2376
      %2473 = vst.msk [vmem:[#allocation3 + $0x8] sm:$0xff] %vm2471, %v2378
      %2474 = vst.msk [vmem:[#allocation3 + $0x10] sm:$0xff] %vm2471, %v2380
      %2475 = vst.msk [vmem:[#allocation3 + $0x18] sm:$0xff] %vm2471, %v2382
      %2476 = vst.msk [vmem:[#allocation3 + $0x20] sm:$0xff] %vm2471, %v2384
      %2477 = vst.msk [vmem:[#allocation3 + $0x28] sm:$0xff] %vm2471, %v2386
      %2478 = vst.msk [vmem:[#allocation3 + $0x30] sm:$0xff] %vm2471, %v2388
      %2479 = vst.msk [vmem:[#allocation3 + $0x38] sm:$0xff] %vm2471, %v2390
      %2480 = vst.msk [vmem:[#allocation3 + $0x40] sm:$0xff] %vm2471, %v2392
      %2481 = vst.msk [vmem:[#allocation3 + $0x48] sm:$0xff] %vm2471, %v2394
      %2482 = vst.msk [vmem:[#allocation3 + $0x50] sm:$0xff] %vm2471, %v2396
      %2483 = vst.msk [vmem:[#allocation3 + $0x58] sm:$0xff] %vm2471, %v2398
      %2484 = vst.msk [vmem:[#allocation3 + $0x60] sm:$0xff] %vm2471, %v2400
      %2485 = vst.msk [vmem:[#allocation3 + $0x68] sm:$0xff] %vm2471, %v2402
      %2486 = vst.msk [vmem:[#allocation3 + $0x70] sm:$0xff] %vm2471, %v2404
      %2487 = vst.msk [vmem:[#allocation3 + $0x78] sm:$0xff] %vm2471, %v2406
      %2488 = vst.msk [vmem:[#allocation3 + $0x80] sm:$0xff] %vm2471, %v2408
      %2489 = vst.msk [vmem:[#allocation3 + $0x88] sm:$0xff] %vm2471, %v2410
      %2490 = vst.msk [vmem:[#allocation3 + $0x90] sm:$0xff] %vm2471, %v2412
      %2491 = vst.msk [vmem:[#allocation3 + $0x98] sm:$0xff] %vm2471, %v2414
      %2492 = vst.msk [vmem:[#allocation3 + $0xa0] sm:$0xff] %vm2471, %v2416
      %2493 = vst.msk [vmem:[#allocation3 + $0xa8] sm:$0xff] %vm2471, %v2418
      %2494 = vst.msk [vmem:[#allocation3 + $0xb0] sm:$0xff] %vm2471, %v2420
      %2495 = vst.msk [vmem:[#allocation3 + $0xb8] sm:$0xff] %vm2471, %v2422
      %2496 = vst.msk [vmem:[#allocation3 + $0xc0] sm:$0xff] %vm2471, %v2424
      %2497 = vst.msk [vmem:[#allocation3 + $0xc8] sm:$0xff] %vm2471, %v2426
      %2498 = vst.msk [vmem:[#allocation3 + $0xd0] sm:$0xff] %vm2471, %v2428
      %2499 = vst.msk [vmem:[#allocation3 + $0xd8] sm:$0xff] %vm2471, %v2430
      %2500 = vst.msk [vmem:[#allocation3 + $0xe0] sm:$0xff] %vm2471, %v2432
      %2501 = vst.msk [vmem:[#allocation3 + $0xe8] sm:$0xff] %vm2471, %v2434
      %2502 = vst.msk [vmem:[#allocation3 + $0xf0] sm:$0xff] %vm2471, %v2436
      %2503 = vst.msk [vmem:[#allocation3 + $0xf8] sm:$0xff] %vm2471, %v2438
      %v2504 = vld [vmem:[%s1989 + $0x2] sm:$0xff]
      %v2505 = vld [vmem:[%s1989 + $0xa] sm:$0xff]
      %v2506 = vld [vmem:[%s1989 + $0x1a] sm:$0xff]
      %v2507 = vld [vmem:[%s1989 + $0x22] sm:$0xff]
      %v2508 = vld [vmem:[%s1989 + $0x32] sm:$0xff]
      %v2509 = vld [vmem:[%s1989 + $0x3a] sm:$0xff]
      %v2510 = vld [vmem:[%s1989 + $0x4a] sm:$0xff]
      %v2511 = vld [vmem:[%s1989 + $0x52] sm:$0xff]
      %v2512 = vld [vmem:[%s1989 + $0x62] sm:$0xff]
      %v2513 = vld [vmem:[%s1989 + $0x6a] sm:$0xff]
      %v2514 = vld [vmem:[%s1989 + $0x7a] sm:$0xff]
      %v2515 = vld [vmem:[%s1989 + $0x82] sm:$0xff]
      %v2516 = vld [vmem:[%s1989 + $0x92] sm:$0xff]
      %v2517 = vld [vmem:[%s1989 + $0x9a] sm:$0xff]
      %v2518 = vld [vmem:[%s1989 + $0xaa] sm:$0xff]
      %v2519 = vld [vmem:[%s1989 + $0xb2] sm:$0xff]
      %v2520 = vld [vmem:[%s1989 + $0xc2] sm:$0xff]
      %v2521 = vld [vmem:[%s1989 + $0xca] sm:$0xff]
      %v2522 = vld [vmem:[%s1989 + $0xda] sm:$0xff]
      %v2523 = vld [vmem:[%s1989 + $0xe2] sm:$0xff]
      %v2524 = vld [vmem:[%s1989 + $0xf2] sm:$0xff]
      %v2525 = vld [vmem:[%s1989 + $0xfa] sm:$0xff]
      %v2526 = vld [vmem:[%s1989 + $0x10a] sm:$0xff]
      %v2527 = vld [vmem:[%s1989 + $0x112] sm:$0xff]
      %v2528 = vld [vmem:[%s1989 + $0x122] sm:$0xff]
      %v2529 = vld [vmem:[%s1989 + $0x12a] sm:$0xff]
      %v2530 = vld [vmem:[%s1989 + $0x13a] sm:$0xff]
      %v2531 = vld [vmem:[%s1989 + $0x142] sm:$0xff]
      %v2532 = vld [vmem:[%s1989 + $0x152] sm:$0xff]
      %v2533 = vld [vmem:[%s1989 + $0x15a] sm:$0xff]
      %v2534 = vld [vmem:[%s1989 + $0x16a] sm:$0xff]
      %v2535 = vld [vmem:[%s1989 + $0x172] sm:$0xff]
      %v2536 = vld [vmem:[%s1989 + $0x1b2] sm:$0xff]
      %v2537 = vld [vmem:[%s1989 + $0x1ba] sm:$0xff]
      %v2538 = vld [vmem:[%s1989 + $0x1ca] sm:$0xff]
      %v2539 = vld [vmem:[%s1989 + $0x1d2] sm:$0xff]
      %v2540 = vld [vmem:[%s1989 + $0x1e2] sm:$0xff]
      %v2541 = vld [vmem:[%s1989 + $0x1ea] sm:$0xff]
      %v2542 = vld [vmem:[%s1989 + $0x1fa] sm:$0xff]
      %v2543 = vld [vmem:[%s1989 + $0x202] sm:$0xff]
      %v2544 = vld [vmem:[%s1989 + $0x212] sm:$0xff]
      %v2545 = vld [vmem:[%s1989 + $0x21a] sm:$0xff]
      %v2546 = vld [vmem:[%s1989 + $0x22a] sm:$0xff]
      %v2547 = vld [vmem:[%s1989 + $0x232] sm:$0xff]
      %v2548 = vld [vmem:[%s1989 + $0x242] sm:$0xff]
      %v2549 = vld [vmem:[%s1989 + $0x24a] sm:$0xff]
      %v2550 = vld [vmem:[%s1989 + $0x25a] sm:$0xff]
      %v2551 = vld [vmem:[%s1989 + $0x262] sm:$0xff]
      %v2552 = vld [vmem:[%s1989 + $0x272] sm:$0xff]
      %v2553 = vld [vmem:[%s1989 + $0x27a] sm:$0xff]
      %v2554 = vld [vmem:[%s1989 + $0x28a] sm:$0xff]
      %v2555 = vld [vmem:[%s1989 + $0x292] sm:$0xff]
      %v2556 = vld [vmem:[%s1989 + $0x2a2] sm:$0xff]
      %v2557 = vld [vmem:[%s1989 + $0x2aa] sm:$0xff]
      %v2558 = vld [vmem:[%s1989 + $0x2ba] sm:$0xff]
      %v2559 = vld [vmem:[%s1989 + $0x2c2] sm:$0xff]
      %v2560 = vld [vmem:[%s1989 + $0x2d2] sm:$0xff]
      %v2561 = vld [vmem:[%s1989 + $0x2da] sm:$0xff]
      %v2562 = vld [vmem:[%s1989 + $0x2ea] sm:$0xff]
      %v2563 = vld [vmem:[%s1989 + $0x2f2] sm:$0xff]
      %v2564 = vld [vmem:[%s1989 + $0x302] sm:$0xff]
      %v2565 = vld [vmem:[%s1989 + $0x30a] sm:$0xff]
      %v2566 = vld [vmem:[%s1989 + $0x31a] sm:$0xff]
      %v2567 = vld [vmem:[%s1989 + $0x322] sm:$0xff]
      %v2568 = vpack.c.bf16 %v2505, %v2504
      %v2569 = vpack.c.bf16 %v2507, %v2506
      %v2570 = vpack.c.bf16 %v2509, %v2508
      %v2571 = vpack.c.bf16 %v2511, %v2510
      %v2572 = vpack.c.bf16 %v2513, %v2512
      %v2573 = vpack.c.bf16 %v2515, %v2514
      %v2574 = vpack.c.bf16 %v2517, %v2516
      %v2575 = vpack.c.bf16 %v2519, %v2518
      %v2576 = vpack.c.bf16 %v2521, %v2520
      %v2577 = vpack.c.bf16 %v2523, %v2522
      %v2578 = vpack.c.bf16 %v2525, %v2524
      %v2579 = vpack.c.bf16 %v2527, %v2526
      %v2580 = vpack.c.bf16 %v2529, %v2528
      %v2581 = vpack.c.bf16 %v2531, %v2530
      %v2582 = vpack.c.bf16 %v2533, %v2532
      %v2583 = vpack.c.bf16 %v2535, %v2534
      %v2584 = vpack.c.bf16 %v2537, %v2536
      %v2585 = vpack.c.bf16 %v2539, %v2538
      %v2586 = vpack.c.bf16 %v2541, %v2540
      %v2587 = vpack.c.bf16 %v2543, %v2542
      %v2588 = vpack.c.bf16 %v2545, %v2544
      %v2589 = vpack.c.bf16 %v2547, %v2546
      %v2590 = vpack.c.bf16 %v2549, %v2548
      %v2591 = vpack.c.bf16 %v2551, %v2550
      %v2592 = vpack.c.bf16 %v2553, %v2552
      %v2593 = vpack.c.bf16 %v2555, %v2554
      %v2594 = vpack.c.bf16 %v2557, %v2556
      %v2595 = vpack.c.bf16 %v2559, %v2558
      %v2596 = vpack.c.bf16 %v2561, %v2560
      %v2597 = vpack.c.bf16 %v2563, %v2562
      %v2598 = vpack.c.bf16 %v2565, %v2564
      %v2599 = vpack.c.bf16 %v2567, %v2566
      %2632 = vrot.lane.b32.xlu0 %v2568, 64
      %v2633 = vpop.permute.xlu0 %2632
      %2634 = vrot.lane.b32.xlu0 %v2569, 64
      %v2635 = vpop.permute.xlu0 %2634
      %2636 = vrot.lane.b32.xlu0 %v2570, 64
      %v2637 = vpop.permute.xlu0 %2636
      %2638 = vrot.lane.b32.xlu0 %v2571, 64
      %v2639 = vpop.permute.xlu0 %2638
      %2640 = vrot.lane.b32.xlu0 %v2572, 64
      %v2641 = vpop.permute.xlu0 %2640
      %2642 = vrot.lane.b32.xlu0 %v2573, 64
      %v2643 = vpop.permute.xlu0 %2642
      %2644 = vrot.lane.b32.xlu0 %v2574, 64
      %v2645 = vpop.permute.xlu0 %2644
      %2646 = vrot.lane.b32.xlu0 %v2575, 64
      %v2647 = vpop.permute.xlu0 %2646
      %2648 = vrot.lane.b32.xlu0 %v2576, 64
      %v2649 = vpop.permute.xlu0 %2648
      %2650 = vrot.lane.b32.xlu0 %v2577, 64
      %v2651 = vpop.permute.xlu0 %2650
      %2652 = vrot.lane.b32.xlu0 %v2578, 64
      %v2653 = vpop.permute.xlu0 %2652
      %2654 = vrot.lane.b32.xlu0 %v2579, 64
      %v2655 = vpop.permute.xlu0 %2654
      %2656 = vrot.lane.b32.xlu0 %v2580, 64
      %v2657 = vpop.permute.xlu0 %2656
      %2658 = vrot.lane.b32.xlu0 %v2581, 64
      %v2659 = vpop.permute.xlu0 %2658
      %2660 = vrot.lane.b32.xlu0 %v2582, 64
      %v2661 = vpop.permute.xlu0 %2660
      %2662 = vrot.lane.b32.xlu0 %v2583, 64
      %v2663 = vpop.permute.xlu0 %2662
      %2664 = vrot.lane.b32.xlu0 %v2584, 64
      %v2665 = vpop.permute.xlu0 %2664
      %2666 = vrot.lane.b32.xlu0 %v2585, 64
      %v2667 = vpop.permute.xlu0 %2666
      %2668 = vrot.lane.b32.xlu0 %v2586, 64
      %v2669 = vpop.permute.xlu0 %2668
      %2670 = vrot.lane.b32.xlu0 %v2587, 64
      %v2671 = vpop.permute.xlu0 %2670
      %2672 = vrot.lane.b32.xlu0 %v2588, 64
      %v2673 = vpop.permute.xlu0 %2672
      %2674 = vrot.lane.b32.xlu0 %v2589, 64
      %v2675 = vpop.permute.xlu0 %2674
      %2676 = vrot.lane.b32.xlu0 %v2590, 64
      %v2677 = vpop.permute.xlu0 %2676
      %2678 = vrot.lane.b32.xlu0 %v2591, 64
      %v2679 = vpop.permute.xlu0 %2678
      %2680 = vrot.lane.b32.xlu0 %v2592, 64
      %v2681 = vpop.permute.xlu0 %2680
      %2682 = vrot.lane.b32.xlu0 %v2593, 64
      %v2683 = vpop.permute.xlu0 %2682
      %2684 = vrot.lane.b32.xlu0 %v2594, 64
      %v2685 = vpop.permute.xlu0 %2684
      %2686 = vrot.lane.b32.xlu0 %v2595, 64
      %v2687 = vpop.permute.xlu0 %2686
      %2688 = vrot.lane.b32.xlu0 %v2596, 64
      %v2689 = vpop.permute.xlu0 %2688
      %2690 = vrot.lane.b32.xlu0 %v2597, 64
      %v2691 = vpop.permute.xlu0 %2690
      %2692 = vrot.lane.b32.xlu0 %v2598, 64
      %v2693 = vpop.permute.xlu0 %2692
      %2694 = vrot.lane.b32.xlu0 %v2599, 64
      %v2695 = vpop.permute.xlu0 %2694
      %vm2728 = vcmask 589312
      %2729 = vst.msk [vmem:[#allocation3] sm:$0xff] %vm2728, %v2633
      %2730 = vst.msk [vmem:[#allocation3 + $0x8] sm:$0xff] %vm2728, %v2635
      %2731 = vst.msk [vmem:[#allocation3 + $0x10] sm:$0xff] %vm2728, %v2637
      %2732 = vst.msk [vmem:[#allocation3 + $0x18] sm:$0xff] %vm2728, %v2639
      %2733 = vst.msk [vmem:[#allocation3 + $0x20] sm:$0xff] %vm2728, %v2641
      %2734 = vst.msk [vmem:[#allocation3 + $0x28] sm:$0xff] %vm2728, %v2643
      %2735 = vst.msk [vmem:[#allocation3 + $0x30] sm:$0xff] %vm2728, %v2645
      %2736 = vst.msk [vmem:[#allocation3 + $0x38] sm:$0xff] %vm2728, %v2647
      %2737 = vst.msk [vmem:[#allocation3 + $0x40] sm:$0xff] %vm2728, %v2649
      %2738 = vst.msk [vmem:[#allocation3 + $0x48] sm:$0xff] %vm2728, %v2651
      %2739 = vst.msk [vmem:[#allocation3 + $0x50] sm:$0xff] %vm2728, %v2653
      %2740 = vst.msk [vmem:[#allocation3 + $0x58] sm:$0xff] %vm2728, %v2655
      %2741 = vst.msk [vmem:[#allocation3 + $0x60] sm:$0xff] %vm2728, %v2657
      %2742 = vst.msk [vmem:[#allocation3 + $0x68] sm:$0xff] %vm2728, %v2659
      %2743 = vst.msk [vmem:[#allocation3 + $0x70] sm:$0xff] %vm2728, %v2661
      %2744 = vst.msk [vmem:[#allocation3 + $0x78] sm:$0xff] %vm2728, %v2663
      %2745 = vst.msk [vmem:[#allocation3 + $0x80] sm:$0xff] %vm2728, %v2665
      %2746 = vst.msk [vmem:[#allocation3 + $0x88] sm:$0xff] %vm2728, %v2667
      %2747 = vst.msk [vmem:[#allocation3 + $0x90] sm:$0xff] %vm2728, %v2669
      %2748 = vst.msk [vmem:[#allocation3 + $0x98] sm:$0xff] %vm2728, %v2671
      %2749 = vst.msk [vmem:[#allocation3 + $0xa0] sm:$0xff] %vm2728, %v2673
      %2750 = vst.msk [vmem:[#allocation3 + $0xa8] sm:$0xff] %vm2728, %v2675
      %2751 = vst.msk [vmem:[#allocation3 + $0xb0] sm:$0xff] %vm2728, %v2677
      %2752 = vst.msk [vmem:[#allocation3 + $0xb8] sm:$0xff] %vm2728, %v2679
      %2753 = vst.msk [vmem:[#allocation3 + $0xc0] sm:$0xff] %vm2728, %v2681
      %2754 = vst.msk [vmem:[#allocation3 + $0xc8] sm:$0xff] %vm2728, %v2683
      %2755 = vst.msk [vmem:[#allocation3 + $0xd0] sm:$0xff] %vm2728, %v2685
      %2756 = vst.msk [vmem:[#allocation3 + $0xd8] sm:$0xff] %vm2728, %v2687
      %2757 = vst.msk [vmem:[#allocation3 + $0xe0] sm:$0xff] %vm2728, %v2689
      %2758 = vst.msk [vmem:[#allocation3 + $0xe8] sm:$0xff] %vm2728, %v2691
      %2759 = vst.msk [vmem:[#allocation3 + $0xf0] sm:$0xff] %vm2728, %v2693
      %2760 = vst.msk [vmem:[#allocation3 + $0xf8] sm:$0xff] %vm2728, %v2695
      %v2761 = vld [vmem:[#allocation3] sm:$0xff]
      %v2762 = vld [vmem:[#allocation3 + $0x8] sm:$0xff]
      %v2763 = vld [vmem:[#allocation3 + $0x10] sm:$0xff]
      %v2764 = vld [vmem:[#allocation3 + $0x18] sm:$0xff]
      %v2765 = vld [vmem:[#allocation3 + $0x20] sm:$0xff]
      %v2766 = vld [vmem:[#allocation3 + $0x28] sm:$0xff]
      %v2767 = vld [vmem:[#allocation3 + $0x30] sm:$0xff]
      %v2768 = vld [vmem:[#allocation3 + $0x38] sm:$0xff]
      %v2769 = vld [vmem:[#allocation3 + $0x40] sm:$0xff]
      %v2770 = vld [vmem:[#allocation3 + $0x48] sm:$0xff]
      %v2771 = vld [vmem:[#allocation3 + $0x50] sm:$0xff]
      %v2772 = vld [vmem:[#allocation3 + $0x58] sm:$0xff]
      %v2773 = vld [vmem:[#allocation3 + $0x60] sm:$0xff]
      %v2774 = vld [vmem:[#allocation3 + $0x68] sm:$0xff]
      %v2775 = vld [vmem:[#allocation3 + $0x70] sm:$0xff]
      %v2776 = vld [vmem:[#allocation3 + $0x78] sm:$0xff]
      %v2777 = vld [vmem:[#allocation3 + $0x80] sm:$0xff]
      %v2778 = vld [vmem:[#allocation3 + $0x88] sm:$0xff]
      %v2779 = vld [vmem:[#allocation3 + $0x90] sm:$0xff]
      %v2780 = vld [vmem:[#allocation3 + $0x98] sm:$0xff]
      %v2781 = vld [vmem:[#allocation3 + $0xa0] sm:$0xff]
      %v2782 = vld [vmem:[#allocation3 + $0xa8] sm:$0xff]
      %v2783 = vld [vmem:[#allocation3 + $0xb0] sm:$0xff]
      %v2784 = vld [vmem:[#allocation3 + $0xb8] sm:$0xff]
      %v2785 = vld [vmem:[#allocation3 + $0xc0] sm:$0xff]
      %v2786 = vld [vmem:[#allocation3 + $0xc8] sm:$0xff]
      %v2787 = vld [vmem:[#allocation3 + $0xd0] sm:$0xff]
      %v2788 = vld [vmem:[#allocation3 + $0xd8] sm:$0xff]
      %v2789 = vld [vmem:[#allocation3 + $0xe0] sm:$0xff]
      %v2790 = vld [vmem:[#allocation3 + $0xe8] sm:$0xff]
      %v2791 = vld [vmem:[#allocation3 + $0xf0] sm:$0xff]
      %v2792 = vld [vmem:[#allocation3 + $0xf8] sm:$0xff]
      %v2793 = vld [vmem:[%s1] sm:$0xf]
      %v2794 = vld [vmem:[%s1 + $0x4] sm:$0xf]
      %v2795 = vld [vmem:[%s1 + $0x8] sm:$0xf]
      %v2796 = vld [vmem:[%s1 + $0xc] sm:$0xf]
      %v2797 = vld [vmem:[%s1 + $0x10] sm:$0xf]
      %v2798 = vld [vmem:[%s1 + $0x14] sm:$0xf]
      %v2799 = vld [vmem:[%s1 + $0x18] sm:$0xf]
      %v2800 = vld [vmem:[%s1 + $0x1c] sm:$0xf]
      %v2801 = vld [vmem:[%s1 + $0x20] sm:$0xf]
      %v2802 = vld [vmem:[%s2] sm:$0x1]
      %v2804 = vlaneseq
      %v2805 = vshrl.u32 %v2804, 7
      %v2806 = vsub.s32 0, %v2805
      %v2807 = vrot.slane %v2802, %v2806
      %v2818 = vunpack.c.l.b16 %v2793
      %v2819 = vunpack.c.l.b16 %v2794
      %v2820 = vunpack.c.l.b16 %v2795
      %v2821 = vunpack.c.l.b16 %v2796
      %v2822 = vunpack.c.l.b16 %v2797
      %v2823 = vunpack.c.l.b16 %v2798
      %v2824 = vunpack.c.l.b16 %v2799
      %v2825 = vunpack.c.l.b16 %v2800
      %v2826 = vunpack.c.l.b16 %v2801
      %v2827 = vpack.c.b16 %v2819, %v2818
      %v2828 = vpack.c.b16 %v2821, %v2820
      %v2829 = vpack.c.b16 %v2823, %v2822
      %v2830 = vpack.c.b16 %v2825, %v2824
      %v2831 = vpack.c.b16 %v2826, %v2826
      %vm2836 = vcmask 588800
      %v2838 = vsel %vm2836, %v2761, 0
      %v2841 = vsel %vm2836, %v2762, 0
      %v2844 = vsel %vm2836, %v2763, 0
      %v2847 = vsel %vm2836, %v2764, 0
      %v2850 = vsel %vm2836, %v2765, 0
      %v2853 = vsel %vm2836, %v2766, 0
      %v2856 = vsel %vm2836, %v2767, 0
      %v2859 = vsel %vm2836, %v2768, 0
      %v2862 = vsel %vm2836, %v2769, 0
      %v2865 = vsel %vm2836, %v2770, 0
      %v2868 = vsel %vm2836, %v2771, 0
      %v2871 = vsel %vm2836, %v2772, 0
      %v2874 = vsel %vm2836, %v2773, 0
      %v2877 = vsel %vm2836, %v2774, 0
      %v2880 = vsel %vm2836, %v2775, 0
      %v2883 = vsel %vm2836, %v2776, 0
      %v2886 = vsel %vm2836, %v2777, 0
      %v2889 = vsel %vm2836, %v2778, 0
      %v2892 = vsel %vm2836, %v2779, 0
      %v2895 = vsel %vm2836, %v2780, 0
      %v2898 = vsel %vm2836, %v2781, 0
      %v2901 = vsel %vm2836, %v2782, 0
      %v2904 = vsel %vm2836, %v2783, 0
      %v2907 = vsel %vm2836, %v2784, 0
      %v2910 = vsel %vm2836, %v2785, 0
      %v2913 = vsel %vm2836, %v2786, 0
      %v2916 = vsel %vm2836, %v2787, 0
      %v2919 = vsel %vm2836, %v2788, 0
      %v2922 = vsel %vm2836, %v2789, 0
      %v2925 = vsel %vm2836, %v2790, 0
      %v2928 = vsel %vm2836, %v2791, 0
      %v2931 = vsel %vm2836, %v2792, 0
      %vm2933 = vcmask 1043456
      %v2935 = vsel %vm2933, %v2831, 0
      %2937 = vmatprep.subr.bf16.mxu0 0
      %2938 = vmatpush1.bf16.msra.mxu0 %v2827
      %2939 = vmatprep.subr.bf16.mxu0 0
      %2940 = vmatpush1.bf16.msra.mxu0 %v2828
      %2941 = vmatprep.subr.bf16.mxu0 0
      %2942 = vmatpush1.bf16.msra.mxu0 %v2829
      %2943 = vmatprep.subr.bf16.mxu0 0
      %2944 = vmatpush1.bf16.msra.mxu0 %v2830
      %2945 = vmatprep.subr.bf16.mxu0 0
      %2946 = vmatpush1.bf16.msra.mxu0 %v2935
      %2947 = vmatprep.subr.bf16.mxu0 0
      %2948 = vmatpush1.bf16.msra.mxu0 0
      %2949 = vmatprep.subr.bf16.mxu0 0
      %2950 = vmatpush1.bf16.msra.mxu0 0
      %2951 = vmatprep.subr.bf16.mxu0 0
      %2952 = vmatpush1.bf16.msra.mxu0 0
      %2953 = vmatprep.subr.bf16.mxu0 0
      %2954 = vmatpush1.bf16.msra.mxu0 0
      %2955 = vmatprep.subr.bf16.mxu0 0
      %2956 = vmatpush1.bf16.msra.mxu0 0
      %2957 = vmatprep.subr.bf16.mxu0 0
      %2958 = vmatpush1.bf16.msra.mxu0 0
      %2959 = vmatprep.subr.bf16.mxu0 0
      %2960 = vmatpush1.bf16.msra.mxu0 0
      %2961 = vmatprep.subr.bf16.mxu0 0
      %2962 = vmatpush1.bf16.msra.mxu0 0
      %2963 = vmatprep.subr.bf16.mxu0 0
      %2964 = vmatpush1.bf16.msra.mxu0 0
      %2965 = vmatprep.subr.bf16.mxu0 0
      %2966 = vmatpush1.bf16.msra.mxu0 0
      %2967 = vmatprep.subr.bf16.mxu0 0
      %2968 = vmatpush1.bf16.msra.mxu0 0
      %2969 = vmatprep.mubr.bf16.mxu0 0
      %2970 = vmatmul.mubr.bf16.gmra.mrb[0].mxu0 %v2838
      %v2971 = vpop.f32.mrb[0].mxu0
      %v2972 = vadd.f32 %v2807, %v2971
      %v2973 = vpop.f32.mrb[0].mxu0
      %v2974 = vpop.f32.mrb[0].mxu0
      %v2975 = vadd.f32 %v2807, %v2974
      %v2976 = vpop.f32.mrb[0].mxu0
      %2977 = vmatprep.mubr.bf16.mxu0 0
      %2978 = vmatmul.mubr.bf16.gmra.mrb[0].mxu0 %v2841
      %v2979 = vpop.f32.mrb[0].mxu0
      %v2980 = vadd.f32 %v2807, %v2979
      %v2981 = vpop.f32.mrb[0].mxu0
      %v2982 = vpop.f32.mrb[0].mxu0
      %v2983 = vadd.f32 %v2807, %v2982
      %v2984 = vpop.f32.mrb[0].mxu0
      %2985 = vmatprep.mubr.bf16.mxu0 0
      %2986 = vmatmul.mubr.bf16.gmra.mrb[0].mxu0 %v2844
      %v2987 = vpop.f32.mrb[0].mxu0
      %v2988 = vadd.f32 %v2807, %v2987
      %v2989 = vpop.f32.mrb[0].mxu0
      %v2990 = vpop.f32.mrb[0].mxu0
      %v2991 = vadd.f32 %v2807, %v2990
      %v2992 = vpop.f32.mrb[0].mxu0
      %2993 = vmatprep.mubr.bf16.mxu0 0
      %2994 = vmatmul.mubr.bf16.gmra.mrb[0].mxu0 %v2847
      %v2995 = vpop.f32.mrb[0].mxu0
      %v2996 = vadd.f32 %v2807, %v2995
      %v2997 = vpop.f32.mrb[0].mxu0
      %v2998 = vpop.f32.mrb[0].mxu0
      %v2999 = vadd.f32 %v2807, %v2998
      %v3000 = vpop.f32.mrb[0].mxu0
      %3001 = vmatprep.mubr.bf16.mxu0 0
      %3002 = vmatmul.mubr.bf16.gmra.mrb[0].mxu0 %v2850
      %v3003 = vpop.f32.mrb[0].mxu0
      %v3004 = vadd.f32 %v2807, %v3003
      %v3005 = vpop.f32.mrb[0].mxu0
      %v3006 = vpop.f32.mrb[0].mxu0
      %v3007 = vadd.f32 %v2807, %v3006
      %v3008 = vpop.f32.mrb[0].mxu0
      %3009 = vmatprep.mubr.bf16.mxu0 0
      %3010 = vmatmul.mubr.bf16.gmra.mrb[0].mxu0 %v2853
      %v3011 = vpop.f32.mrb[0].mxu0
      %v3012 = vadd.f32 %v2807, %v3011
      %v3013 = vpop.f32.mrb[0].mxu0
      %v3014 = vpop.f32.mrb[0].mxu0
      %v3015 = vadd.f32 %v2807, %v3014
      %v3016 = vpop.f32.mrb[0].mxu0
      %3017 = vmatprep.mubr.bf16.mxu0 0
      %3018 = vmatmul.mubr.bf16.gmra.mrb[0].mxu0 %v2856
      %v3019 = vpop.f32.mrb[0].mxu0
      %v3020 = vadd.f32 %v2807, %v3019
      %v3021 = vpop.f32.mrb[0].mxu0
      %v3022 = vpop.f32.mrb[0].mxu0
      %v3023 = vadd.f32 %v2807, %v3022
      %v3024 = vpop.f32.mrb[0].mxu0
      %3025 = vmatprep.mubr.bf16.mxu0 0
      %3026 = vmatmul.mubr.bf16.gmra.mrb[0].mxu0 %v2859
      %v3027 = vpop.f32.mrb[0].mxu0
      %v3028 = vadd.f32 %v2807, %v3027
      %v3029 = vpop.f32.mrb[0].mxu0
      %v3030 = vpop.f32.mrb[0].mxu0
      %v3031 = vadd.f32 %v2807, %v3030
      %v3032 = vpop.f32.mrb[0].mxu0
      %3033 = vmatprep.mubr.bf16.mxu0 0
      %3034 = vmatmul.mubr.bf16.gmra.mrb[0].mxu0 %v2862
      %v3035 = vpop.f32.mrb[0].mxu0
      %v3036 = vadd.f32 %v2807, %v3035
      %v3037 = vpop.f32.mrb[0].mxu0
      %v3038 = vpop.f32.mrb[0].mxu0
      %v3039 = vadd.f32 %v2807, %v3038
      %v3040 = vpop.f32.mrb[0].mxu0
      %3041 = vmatprep.mubr.bf16.mxu0 0
      %3042 = vmatmul.mubr.bf16.gmra.mrb[0].mxu0 %v2865
      %v3043 = vpop.f32.mrb[0].mxu0
      %v3044 = vadd.f32 %v2807, %v3043
      %v3045 = vpop.f32.mrb[0].mxu0
      %v3046 = vpop.f32.mrb[0].mxu0
      %v3047 = vadd.f32 %v2807, %v3046
      %v3048 = vpop.f32.mrb[0].mxu0
      %3049 = vmatprep.mubr.bf16.mxu0 0
      %3050 = vmatmul.mubr.bf16.gmra.mrb[0].mxu0 %v2868
      %v3051 = vpop.f32.mrb[0].mxu0
      %v3052 = vadd.f32 %v2807, %v3051
      %v3053 = vpop.f32.mrb[0].mxu0
      %v3054 = vpop.f32.mrb[0].mxu0
      %v3055 = vadd.f32 %v2807, %v3054
      %v3056 = vpop.f32.mrb[0].mxu0
      %3057 = vmatprep.mubr.bf16.mxu0 0
      %3058 = vmatmul.mubr.bf16.gmra.mrb[0].mxu0 %v2871
      %v3059 = vpop.f32.mrb[0].mxu0
      %v3060 = vadd.f32 %v2807, %v3059
      %v3061 = vpop.f32.mrb[0].mxu0
      %v3062 = vpop.f32.mrb[0].mxu0
      %v3063 = vadd.f32 %v2807, %v3062
      %v3064 = vpop.f32.mrb[0].mxu0
      %3065 = vmatprep.mubr.bf16.mxu0 0
      %3066 = vmatmul.mubr.bf16.gmra.mrb[0].mxu0 %v2874
      %v3067 = vpop.f32.mrb[0].mxu0
      %v3068 = vadd.f32 %v2807, %v3067
      %v3069 = vpop.f32.mrb[0].mxu0
      %v3070 = vpop.f32.mrb[0].mxu0
      %v3071 = vadd.f32 %v2807, %v3070
      %v3072 = vpop.f32.mrb[0].mxu0
      %3073 = vmatprep.mubr.bf16.mxu0 0
      %3074 = vmatmul.mubr.bf16.gmra.mrb[0].mxu0 %v2877
      %v3075 = vpop.f32.mrb[0].mxu0
      %v3076 = vadd.f32 %v2807, %v3075
      %v3077 = vpop.f32.mrb[0].mxu0
      %v3078 = vpop.f32.mrb[0].mxu0
      %v3079 = vadd.f32 %v2807, %v3078
      %v3080 = vpop.f32.mrb[0].mxu0
      %3081 = vmatprep.mubr.bf16.mxu0 0
      %3082 = vmatmul.mubr.bf16.gmra.mrb[0].mxu0 %v2880
      %v3083 = vpop.f32.mrb[0].mxu0
      %v3084 = vadd.f32 %v2807, %v3083
      %v3085 = vpop.f32.mrb[0].mxu0
      %v3086 = vpop.f32.mrb[0].mxu0
      %v3087 = vadd.f32 %v2807, %v3086
      %v3088 = vpop.f32.mrb[0].mxu0
      %3089 = vmatprep.mubr.bf16.mxu0 0
      %3090 = vmatmul.mubr.bf16.gmra.mrb[0].mxu0 %v2883
      %v3091 = vpop.f32.mrb[0].mxu0
      %v3092 = vadd.f32 %v2807, %v3091
      %v3093 = vpop.f32.mrb[0].mxu0
      %v3094 = vpop.f32.mrb[0].mxu0
      %v3095 = vadd.f32 %v2807, %v3094
      %v3096 = vpop.f32.mrb[0].mxu0
      %3097 = vmatprep.mubr.bf16.mxu0 0
      %3098 = vmatmul.mubr.bf16.gmra.mrb[0].mxu0 %v2886
      %v3099 = vpop.f32.mrb[0].mxu0
      %v3100 = vadd.f32 %v2807, %v3099
      %v3101 = vpop.f32.mrb[0].mxu0
      %v3102 = vpop.f32.mrb[0].mxu0
      %v3103 = vadd.f32 %v2807, %v3102
      %v3104 = vpop.f32.mrb[0].mxu0
      %3105 = vmatprep.mubr.bf16.mxu0 0
      %3106 = vmatmul.mubr.bf16.gmra.mrb[0].mxu0 %v2889
      %v3107 = vpop.f32.mrb[0].mxu0
      %v3108 = vadd.f32 %v2807, %v3107
      %v3109 = vpop.f32.mrb[0].mxu0
      %v3110 = vpop.f32.mrb[0].mxu0
      %v3111 = vadd.f32 %v2807, %v3110
      %v3112 = vpop.f32.mrb[0].mxu0
      %3113 = vmatprep.mubr.bf16.mxu0 0
      %3114 = vmatmul.mubr.bf16.gmra.mrb[0].mxu0 %v2892
      %v3115 = vpop.f32.mrb[0].mxu0
      %v3116 = vadd.f32 %v2807, %v3115
      %v3117 = vpop.f32.mrb[0].mxu0
      %v3118 = vpop.f32.mrb[0].mxu0
      %v3119 = vadd.f32 %v2807, %v3118
      %v3120 = vpop.f32.mrb[0].mxu0
      %3121 = vmatprep.mubr.bf16.mxu0 0
      %3122 = vmatmul.mubr.bf16.gmra.mrb[0].mxu0 %v2895
      %v3123 = vpop.f32.mrb[0].mxu0
      %v3124 = vadd.f32 %v2807, %v3123
      %v3125 = vpop.f32.mrb[0].mxu0
      %v3126 = vpop.f32.mrb[0].mxu0
      %v3127 = vadd.f32 %v2807, %v3126
      %v3128 = vpop.f32.mrb[0].mxu0
      %3129 = vmatprep.mubr.bf16.mxu0 0
      %3130 = vmatmul.mubr.bf16.gmra.mrb[0].mxu0 %v2898
      %v3131 = vpop.f32.mrb[0].mxu0
      %v3132 = vadd.f32 %v2807, %v3131
      %v3133 = vpop.f32.mrb[0].mxu0
      %v3134 = vpop.f32.mrb[0].mxu0
      %v3135 = vadd.f32 %v2807, %v3134
      %v3136 = vpop.f32.mrb[0].mxu0
      %3137 = vmatprep.mubr.bf16.mxu0 0
      %3138 = vmatmul.mubr.bf16.gmra.mrb[0].mxu0 %v2901
      %v3139 = vpop.f32.mrb[0].mxu0
      %v3140 = vadd.f32 %v2807, %v3139
      %v3141 = vpop.f32.mrb[0].mxu0
      %v3142 = vpop.f32.mrb[0].mxu0
      %v3143 = vadd.f32 %v2807, %v3142
      %v3144 = vpop.f32.mrb[0].mxu0
      %3145 = vmatprep.mubr.bf16.mxu0 0
      %3146 = vmatmul.mubr.bf16.gmra.mrb[0].mxu0 %v2904
      %v3147 = vpop.f32.mrb[0].mxu0
      %v3148 = vadd.f32 %v2807, %v3147
      %v3149 = vpop.f32.mrb[0].mxu0
      %v3150 = vpop.f32.mrb[0].mxu0
      %v3151 = vadd.f32 %v2807, %v3150
      %v3152 = vpop.f32.mrb[0].mxu0
      %3153 = vmatprep.mubr.bf16.mxu0 0
      %3154 = vmatmul.mubr.bf16.gmra.mrb[0].mxu0 %v2907
      %v3155 = vpop.f32.mrb[0].mxu0
      %v3156 = vadd.f32 %v2807, %v3155
      %v3157 = vpop.f32.mrb[0].mxu0
      %v3158 = vpop.f32.mrb[0].mxu0
      %v3159 = vadd.f32 %v2807, %v3158
      %v3160 = vpop.f32.mrb[0].mxu0
      %3161 = vmatprep.mubr.bf16.mxu0 0
      %3162 = vmatmul.mubr.bf16.gmra.mrb[0].mxu0 %v2910
      %v3163 = vpop.f32.mrb[0].mxu0
      %v3164 = vadd.f32 %v2807, %v3163
      %v3165 = vpop.f32.mrb[0].mxu0
      %v3166 = vpop.f32.mrb[0].mxu0
      %v3167 = vadd.f32 %v2807, %v3166
      %v3168 = vpop.f32.mrb[0].mxu0
      %3169 = vmatprep.mubr.bf16.mxu0 0
      %3170 = vmatmul.mubr.bf16.gmra.mrb[0].mxu0 %v2913
      %v3171 = vpop.f32.mrb[0].mxu0
      %v3172 = vadd.f32 %v2807, %v3171
      %v3173 = vpop.f32.mrb[0].mxu0
      %v3174 = vpop.f32.mrb[0].mxu0
      %v3175 = vadd.f32 %v2807, %v3174
      %v3176 = vpop.f32.mrb[0].mxu0
      %3177 = vmatprep.mubr.bf16.mxu0 0
      %3178 = vmatmul.mubr.bf16.gmra.mrb[0].mxu0 %v2916
      %v3179 = vpop.f32.mrb[0].mxu0
      %v3180 = vadd.f32 %v2807, %v3179
      %v3181 = vpop.f32.mrb[0].mxu0
      %v3182 = vpop.f32.mrb[0].mxu0
      %v3183 = vadd.f32 %v2807, %v3182
      %v3184 = vpop.f32.mrb[0].mxu0
      %3185 = vmatprep.mubr.bf16.mxu0 0
      %3186 = vmatmul.mubr.bf16.gmra.mrb[0].mxu0 %v2919
      %v3187 = vpop.f32.mrb[0].mxu0
      %v3188 = vadd.f32 %v2807, %v3187
      %v3189 = vpop.f32.mrb[0].mxu0
      %v3190 = vpop.f32.mrb[0].mxu0
      %v3191 = vadd.f32 %v2807, %v3190
      %v3192 = vpop.f32.mrb[0].mxu0
      %3193 = vmatprep.mubr.bf16.mxu0 0
      %3194 = vmatmul.mubr.bf16.gmra.mrb[0].mxu0 %v2922
      %v3195 = vpop.f32.mrb[0].mxu0
      %v3196 = vadd.f32 %v2807, %v3195
      %v3197 = vpop.f32.mrb[0].mxu0
      %v3198 = vpop.f32.mrb[0].mxu0
      %v3199 = vadd.f32 %v2807, %v3198
      %v3200 = vpop.f32.mrb[0].mxu0
      %3201 = vmatprep.mubr.bf16.mxu0 0
      %3202 = vmatmul.mubr.bf16.gmra.mrb[0].mxu0 %v2925
      %v3203 = vpop.f32.mrb[0].mxu0
      %v3204 = vadd.f32 %v2807, %v3203
      %v3205 = vpop.f32.mrb[0].mxu0
      %v3206 = vpop.f32.mrb[0].mxu0
      %v3207 = vadd.f32 %v2807, %v3206
      %v3208 = vpop.f32.mrb[0].mxu0
      %3209 = vmatprep.mubr.bf16.mxu0 0
      %3210 = vmatmul.mubr.bf16.gmra.mrb[0].mxu0 %v2928
      %v3211 = vpop.f32.mrb[0].mxu0
      %v3212 = vadd.f32 %v2807, %v3211
      %v3213 = vpop.f32.mrb[0].mxu0
      %v3214 = vpop.f32.mrb[0].mxu0
      %v3215 = vadd.f32 %v2807, %v3214
      %v3216 = vpop.f32.mrb[0].mxu0
      %3217 = vmatprep.mubr.bf16.mxu0 0
      %3218 = vmatmul.mubr.bf16.gmra.mrb[0].mxu0 %v2931
      %v3219 = vpop.f32.mrb[0].mxu0
      %v3220 = vadd.f32 %v2807, %v3219
      %v3221 = vpop.f32.mrb[0].mxu0
      %v3222 = vpop.f32.mrb[0].mxu0
      %v3223 = vadd.f32 %v2807, %v3222
      %v3224 = vpop.f32.mrb[0].mxu0
      %3225 = vdwg.mxu0
      %v3226 = vmax.f32 %v2972, 0.0
      %v3227 = vmax.f32 %v2975, 0.0
      %v3228 = vmax.f32 %v2980, 0.0
      %v3229 = vmax.f32 %v2983, 0.0
      %v3230 = vmax.f32 %v2988, 0.0
      %v3231 = vmax.f32 %v2991, 0.0
      %v3232 = vmax.f32 %v2996, 0.0
      %v3233 = vmax.f32 %v2999, 0.0
      %v3234 = vmax.f32 %v3004, 0.0
      %v3235 = vmax.f32 %v3007, 0.0
      %v3236 = vmax.f32 %v3012, 0.0
      %v3237 = vmax.f32 %v3015, 0.0
      %v3238 = vmax.f32 %v3020, 0.0
      %v3239 = vmax.f32 %v3023, 0.0
      %v3240 = vmax.f32 %v3028, 0.0
      %v3241 = vmax.f32 %v3031, 0.0
      %v3242 = vmax.f32 %v3036, 0.0
      %v3243 = vmax.f32 %v3039, 0.0
      %v3244 = vmax.f32 %v3044, 0.0
      %v3245 = vmax.f32 %v3047, 0.0
      %v3246 = vmax.f32 %v3052, 0.0
      %v3247 = vmax.f32 %v3055, 0.0
      %v3248 = vmax.f32 %v3060, 0.0
      %v3249 = vmax.f32 %v3063, 0.0
      %v3250 = vmax.f32 %v3068, 0.0
      %v3251 = vmax.f32 %v3071, 0.0
      %v3252 = vmax.f32 %v3076, 0.0
      %v3253 = vmax.f32 %v3079, 0.0
      %v3254 = vmax.f32 %v3084, 0.0
      %v3255 = vmax.f32 %v3087, 0.0
      %v3256 = vmax.f32 %v3092, 0.0
      %v3257 = vmax.f32 %v3095, 0.0
      %v3258 = vmax.f32 %v3100, 0.0
      %v3259 = vmax.f32 %v3103, 0.0
      %v3260 = vmax.f32 %v3108, 0.0
      %v3261 = vmax.f32 %v3111, 0.0
      %v3262 = vmax.f32 %v3116, 0.0
      %v3263 = vmax.f32 %v3119, 0.0
      %v3264 = vmax.f32 %v3124, 0.0
      %v3265 = vmax.f32 %v3127, 0.0
      %v3266 = vmax.f32 %v3132, 0.0
      %v3267 = vmax.f32 %v3135, 0.0
      %v3268 = vmax.f32 %v3140, 0.0
      %v3269 = vmax.f32 %v3143, 0.0
      %v3270 = vmax.f32 %v3148, 0.0
      %v3271 = vmax.f32 %v3151, 0.0
      %v3272 = vmax.f32 %v3156, 0.0
      %v3273 = vmax.f32 %v3159, 0.0
      %v3274 = vmax.f32 %v3164, 0.0
      %v3275 = vmax.f32 %v3167, 0.0
      %v3276 = vmax.f32 %v3172, 0.0
      %v3277 = vmax.f32 %v3175, 0.0
      %v3278 = vmax.f32 %v3180, 0.0
      %v3279 = vmax.f32 %v3183, 0.0
      %v3280 = vmax.f32 %v3188, 0.0
      %v3281 = vmax.f32 %v3191, 0.0
      %v3282 = vmax.f32 %v3196, 0.0
      %v3283 = vmax.f32 %v3199, 0.0
      %v3284 = vmax.f32 %v3204, 0.0
      %v3285 = vmax.f32 %v3207, 0.0
      %v3286 = vmax.f32 %v3212, 0.0
      %v3287 = vmax.f32 %v3215, 0.0
      %v3288 = vmax.f32 %v3220, 0.0
      %v3289 = vmax.f32 %v3223, 0.0
      %3290 = vst.msk [vmem:[%s511 + $0x1] sm:$0xff] %vm337, %v3226
      %3291 = vst.msk [vmem:[%s511 + $0x9] sm:$0xff] %vm337, %v3227
      %3292 = vst.msk [vmem:[%s511 + $0x19] sm:$0xff] %vm337, %v3228
      %3293 = vst.msk [vmem:[%s511 + $0x21] sm:$0xff] %vm337, %v3229
      %3294 = vst.msk [vmem:[%s511 + $0x31] sm:$0xff] %vm337, %v3230
      %3295 = vst.msk [vmem:[%s511 + $0x39] sm:$0xff] %vm337, %v3231
      %3296 = vst.msk [vmem:[%s511 + $0x49] sm:$0xff] %vm337, %v3232
      %3297 = vst.msk [vmem:[%s511 + $0x51] sm:$0xff] %vm337, %v3233
      %3298 = vst.msk [vmem:[%s511 + $0x61] sm:$0xff] %vm337, %v3234
      %3299 = vst.msk [vmem:[%s511 + $0x69] sm:$0xff] %vm337, %v3235
      %3300 = vst.msk [vmem:[%s511 + $0x79] sm:$0xff] %vm337, %v3236
      %3301 = vst.msk [vmem:[%s511 + $0x81] sm:$0xff] %vm337, %v3237
      %3302 = vst.msk [vmem:[%s511 + $0x91] sm:$0xff] %vm337, %v3238
      %3303 = vst.msk [vmem:[%s511 + $0x99] sm:$0xff] %vm337, %v3239
      %3304 = vst.msk [vmem:[%s511 + $0xa9] sm:$0xff] %vm337, %v3240
      %3305 = vst.msk [vmem:[%s511 + $0xb1] sm:$0xff] %vm337, %v3241
      %3306 = vst.msk [vmem:[%s511 + $0xc1] sm:$0xff] %vm337, %v3242
      %3307 = vst.msk [vmem:[%s511 + $0xc9] sm:$0xff] %vm337, %v3243
      %3308 = vst.msk [vmem:[%s511 + $0xd9] sm:$0xff] %vm337, %v3244
      %3309 = vst.msk [vmem:[%s511 + $0xe1] sm:$0xff] %vm337, %v3245
      %3310 = vst.msk [vmem:[%s511 + $0xf1] sm:$0xff] %vm337, %v3246
      %3311 = vst.msk [vmem:[%s511 + $0xf9] sm:$0xff] %vm337, %v3247
      %3312 = vst.msk [vmem:[%s511 + $0x109] sm:$0xff] %vm337, %v3248
      %3313 = vst.msk [vmem:[%s511 + $0x111] sm:$0xff] %vm337, %v3249
      %3314 = vst.msk [vmem:[%s511 + $0x121] sm:$0xff] %vm337, %v3250
      %3315 = vst.msk [vmem:[%s511 + $0x129] sm:$0xff] %vm337, %v3251
      %3316 = vst.msk [vmem:[%s511 + $0x139] sm:$0xff] %vm337, %v3252
      %3317 = vst.msk [vmem:[%s511 + $0x141] sm:$0xff] %vm337, %v3253
      %3318 = vst.msk [vmem:[%s511 + $0x151] sm:$0xff] %vm337, %v3254
      %3319 = vst.msk [vmem:[%s511 + $0x159] sm:$0xff] %vm337, %v3255
      %3320 = vst.msk [vmem:[%s511 + $0x169] sm:$0xff] %vm337, %v3256
      %3321 = vst.msk [vmem:[%s511 + $0x171] sm:$0xff] %vm337, %v3257
      %3322 = vst.msk [vmem:[%s511 + $0x1b1] sm:$0xff] %vm337, %v3258
      %3323 = vst.msk [vmem:[%s511 + $0x1b9] sm:$0xff] %vm337, %v3259
      %3324 = vst.msk [vmem:[%s511 + $0x1c9] sm:$0xff] %vm337, %v3260
      %3325 = vst.msk [vmem:[%s511 + $0x1d1] sm:$0xff] %vm337, %v3261
      %3326 = vst.msk [vmem:[%s511 + $0x1e1] sm:$0xff] %vm337, %v3262
      %3327 = vst.msk [vmem:[%s511 + $0x1e9] sm:$0xff] %vm337, %v3263
      %3328 = vst.msk [vmem:[%s511 + $0x1f9] sm:$0xff] %vm337, %v3264
      %3329 = vst.msk [vmem:[%s511 + $0x201] sm:$0xff] %vm337, %v3265
      %3330 = vst.msk [vmem:[%s511 + $0x211] sm:$0xff] %vm337, %v3266
      %3331 = vst.msk [vmem:[%s511 + $0x219] sm:$0xff] %vm337, %v3267
      %3332 = vst.msk [vmem:[%s511 + $0x229] sm:$0xff] %vm337, %v3268
      %3333 = vst.msk [vmem:[%s511 + $0x231] sm:$0xff] %vm337, %v3269
      %3334 = vst.msk [vmem:[%s511 + $0x241] sm:$0xff] %vm337, %v3270
      %3335 = vst.msk [vmem:[%s511 + $0x249] sm:$0xff] %vm337, %v3271
      %3336 = vst.msk [vmem:[%s511 + $0x259] sm:$0xff] %vm337, %v3272
      %3337 = vst.msk [vmem:[%s511 + $0x261] sm:$0xff] %vm337, %v3273
      %3338 = vst.msk [vmem:[%s511 + $0x271] sm:$0xff] %vm337, %v3274
      %3339 = vst.msk [vmem:[%s511 + $0x279] sm:$0xff] %vm337, %v3275
      %3340 = vst.msk [vmem:[%s511 + $0x289] sm:$0xff] %vm337, %v3276
      %3341 = vst.msk [vmem:[%s511 + $0x291] sm:$0xff] %vm337, %v3277
      %3342 = vst.msk [vmem:[%s511 + $0x2a1] sm:$0xff] %vm337, %v3278
      %3343 = vst.msk [vmem:[%s511 + $0x2a9] sm:$0xff] %vm337, %v3279
      %3344 = vst.msk [vmem:[%s511 + $0x2b9] sm:$0xff] %vm337, %v3280
      %3345 = vst.msk [vmem:[%s511 + $0x2c1] sm:$0xff] %vm337, %v3281
      %3346 = vst.msk [vmem:[%s511 + $0x2d1] sm:$0xff] %vm337, %v3282
      %3347 = vst.msk [vmem:[%s511 + $0x2d9] sm:$0xff] %vm337, %v3283
      %3348 = vst.msk [vmem:[%s511 + $0x2e9] sm:$0xff] %vm337, %v3284
      %3349 = vst.msk [vmem:[%s511 + $0x2f1] sm:$0xff] %vm337, %v3285
      %3350 = vst.msk [vmem:[%s511 + $0x301] sm:$0xff] %vm337, %v3286
      %3351 = vst.msk [vmem:[%s511 + $0x309] sm:$0xff] %vm337, %v3287
      %3352 = vst.msk [vmem:[%s511 + $0x319] sm:$0xff] %vm337, %v3288
      %3353 = vst.msk [vmem:[%s511 + $0x321] sm:$0xff] %vm337, %v3289
      %v3354 = vld [vmem:[#allocation2] sm:$0xff]
      %v3355 = vld [vmem:[#allocation2 + $0x8] sm:$0xff]
      %v3356 = vld [vmem:[#allocation2 + $0x18] sm:$0xff]
      %v3357 = vld [vmem:[#allocation2 + $0x20] sm:$0xff]
      %v3358 = vld [vmem:[#allocation2 + $0x30] sm:$0xff]
      %v3359 = vld [vmem:[#allocation2 + $0x38] sm:$0xff]
      %v3360 = vld [vmem:[#allocation2 + $0x48] sm:$0xff]
      %v3361 = vld [vmem:[#allocation2 + $0x50] sm:$0xff]
      %v3362 = vld [vmem:[#allocation2 + $0x60] sm:$0xff]
      %v3363 = vld [vmem:[#allocation2 + $0x68] sm:$0xff]
      %v3364 = vld [vmem:[#allocation2 + $0x78] sm:$0xff]
      %v3365 = vld [vmem:[#allocation2 + $0x80] sm:$0xff]
      %v3366 = vld [vmem:[#allocation2 + $0x90] sm:$0xff]
      %v3367 = vld [vmem:[#allocation2 + $0x98] sm:$0xff]
      %v3368 = vld [vmem:[#allocation2 + $0xa8] sm:$0xff]
      %v3369 = vld [vmem:[#allocation2 + $0xb0] sm:$0xff]
      %v3370 = vld [vmem:[#allocation2 + $0xc0] sm:$0xff]
      %v3371 = vld [vmem:[#allocation2 + $0xc8] sm:$0xff]
      %v3372 = vld [vmem:[#allocation2 + $0xd8] sm:$0xff]
      %v3373 = vld [vmem:[#allocation2 + $0xe0] sm:$0xff]
      %v3374 = vld [vmem:[#allocation2 + $0xf0] sm:$0xff]
      %v3375 = vld [vmem:[#allocation2 + $0xf8] sm:$0xff]
      %v3376 = vld [vmem:[#allocation2 + $0x108] sm:$0xff]
      %v3377 = vld [vmem:[#allocation2 + $0x110] sm:$0xff]
      %v3378 = vld [vmem:[#allocation2 + $0x120] sm:$0xff]
      %v3379 = vld [vmem:[#allocation2 + $0x128] sm:$0xff]
      %v3380 = vld [vmem:[#allocation2 + $0x138] sm:$0xff]
      %v3381 = vld [vmem:[#allocation2 + $0x140] sm:$0xff]
      %v3382 = vld [vmem:[#allocation2 + $0x150] sm:$0xff]
      %v3383 = vld [vmem:[#allocation2 + $0x158] sm:$0xff]
      %v3384 = vld [vmem:[#allocation2 + $0x168] sm:$0xff]
      %v3385 = vld [vmem:[#allocation2 + $0x170] sm:$0xff]
      %v3386 = vld [vmem:[#allocation2 + $0x1b0] sm:$0xff]
      %v3387 = vld [vmem:[#allocation2 + $0x1b8] sm:$0xff]
      %v3388 = vld [vmem:[#allocation2 + $0x1c8] sm:$0xff]
      %v3389 = vld [vmem:[#allocation2 + $0x1d0] sm:$0xff]
      %v3390 = vld [vmem:[#allocation2 + $0x1e0] sm:$0xff]
      %v3391 = vld [vmem:[#allocation2 + $0x1e8] sm:$0xff]
      %v3392 = vld [vmem:[#allocation2 + $0x1f8] sm:$0xff]
      %v3393 = vld [vmem:[#allocation2 + $0x200] sm:$0xff]
      %v3394 = vld [vmem:[#allocation2 + $0x210] sm:$0xff]
      %v3395 = vld [vmem:[#allocation2 + $0x218] sm:$0xff]
      %v3396 = vld [vmem:[#allocation2 + $0x228] sm:$0xff]
      %v3397 = vld [vmem:[#allocation2 + $0x230] sm:$0xff]
      %v3398 = vld [vmem:[#allocation2 + $0x240] sm:$0xff]
      %v3399 = vld [vmem:[#allocation2 + $0x248] sm:$0xff]
      %v3400 = vld [vmem:[#allocation2 + $0x258] sm:$0xff]
      %v3401 = vld [vmem:[#allocation2 + $0x260] sm:$0xff]
      %v3402 = vld [vmem:[#allocation2 + $0x270] sm:$0xff]
      %v3403 = vld [vmem:[#allocation2 + $0x278] sm:$0xff]
      %v3404 = vld [vmem:[#allocation2 + $0x288] sm:$0xff]
      %v3405 = vld [vmem:[#allocation2 + $0x290] sm:$0xff]
      %v3406 = vld [vmem:[#allocation2 + $0x2a0] sm:$0xff]
      %v3407 = vld [vmem:[#allocation2 + $0x2a8] sm:$0xff]
      %v3408 = vld [vmem:[#allocation2 + $0x2b8] sm:$0xff]
      %v3409 = vld [vmem:[#allocation2 + $0x2c0] sm:$0xff]
      %v3410 = vld [vmem:[#allocation2 + $0x2d0] sm:$0xff]
      %v3411 = vld [vmem:[#allocation2 + $0x2d8] sm:$0xff]
      %v3412 = vld [vmem:[#allocation2 + $0x2e8] sm:$0xff]
      %v3413 = vld [vmem:[#allocation2 + $0x2f0] sm:$0xff]
      %v3414 = vld [vmem:[#allocation2 + $0x300] sm:$0xff]
      %v3415 = vld [vmem:[#allocation2 + $0x308] sm:$0xff]
      %v3416 = vld [vmem:[#allocation2 + $0x318] sm:$0xff]
      %v3417 = vld [vmem:[#allocation2 + $0x320] sm:$0xff]
      %v3418 = vpack.c.bf16 %v3355, %v3354
      %v3419 = vpack.c.bf16 %v3357, %v3356
      %v3420 = vpack.c.bf16 %v3359, %v3358
      %v3421 = vpack.c.bf16 %v3361, %v3360
      %v3422 = vpack.c.bf16 %v3363, %v3362
      %v3423 = vpack.c.bf16 %v3365, %v3364
      %v3424 = vpack.c.bf16 %v3367, %v3366
      %v3425 = vpack.c.bf16 %v3369, %v3368
      %v3426 = vpack.c.bf16 %v3371, %v3370
      %v3427 = vpack.c.bf16 %v3373, %v3372
      %v3428 = vpack.c.bf16 %v3375, %v3374
      %v3429 = vpack.c.bf16 %v3377, %v3376
      %v3430 = vpack.c.bf16 %v3379, %v3378
      %v3431 = vpack.c.bf16 %v3381, %v3380
      %v3432 = vpack.c.bf16 %v3383, %v3382
      %v3433 = vpack.c.bf16 %v3385, %v3384
      %v3434 = vpack.c.bf16 %v3387, %v3386
      %v3435 = vpack.c.bf16 %v3389, %v3388
      %v3436 = vpack.c.bf16 %v3391, %v3390
      %v3437 = vpack.c.bf16 %v3393, %v3392
      %v3438 = vpack.c.bf16 %v3395, %v3394
      %v3439 = vpack.c.bf16 %v3397, %v3396
      %v3440 = vpack.c.bf16 %v3399, %v3398
      %v3441 = vpack.c.bf16 %v3401, %v3400
      %v3442 = vpack.c.bf16 %v3403, %v3402
      %v3443 = vpack.c.bf16 %v3405, %v3404
      %v3444 = vpack.c.bf16 %v3407, %v3406
      %v3445 = vpack.c.bf16 %v3409, %v3408
      %v3446 = vpack.c.bf16 %v3411, %v3410
      %v3447 = vpack.c.bf16 %v3413, %v3412
      %v3448 = vpack.c.bf16 %v3415, %v3414
      %v3449 = vpack.c.bf16 %v3417, %v3416
      %3450 = vst.msk [vmem:[#allocation3] sm:$0xff] %vm337, %v3418
      %3451 = vst.msk [vmem:[#allocation3 + $0x8] sm:$0xff] %vm337, %v3419
      %3452 = vst.msk [vmem:[#allocation3 + $0x10] sm:$0xff] %vm337, %v3420
      %3453 = vst.msk [vmem:[#allocation3 + $0x18] sm:$0xff] %vm337, %v3421
      %3454 = vst.msk [vmem:[#allocation3 + $0x20] sm:$0xff] %vm337, %v3422
      %3455 = vst.msk [vmem:[#allocation3 + $0x28] sm:$0xff] %vm337, %v3423
      %3456 = vst.msk [vmem:[#allocation3 + $0x30] sm:$0xff] %vm337, %v3424
      %3457 = vst.msk [vmem:[#allocation3 + $0x38] sm:$0xff] %vm337, %v3425
      %3458 = vst.msk [vmem:[#allocation3 + $0x40] sm:$0xff] %vm337, %v3426
      %3459 = vst.msk [vmem:[#allocation3 + $0x48] sm:$0xff] %vm337, %v3427
      %3460 = vst.msk [vmem:[#allocation3 + $0x50] sm:$0xff] %vm337, %v3428
      %3461 = vst.msk [vmem:[#allocation3 + $0x58] sm:$0xff] %vm337, %v3429
      %3462 = vst.msk [vmem:[#allocation3 + $0x60] sm:$0xff] %vm337, %v3430
      %3463 = vst.msk [vmem:[#allocation3 + $0x68] sm:$0xff] %vm337, %v3431
      %3464 = vst.msk [vmem:[#allocation3 + $0x70] sm:$0xff] %vm337, %v3432
      %3465 = vst.msk [vmem:[#allocation3 + $0x78] sm:$0xff] %vm337, %v3433
      %3466 = vst.msk [vmem:[#allocation3 + $0x80] sm:$0xff] %vm337, %v3434
      %3467 = vst.msk [vmem:[#allocation3 + $0x88] sm:$0xff] %vm337, %v3435
      %3468 = vst.msk [vmem:[#allocation3 + $0x90] sm:$0xff] %vm337, %v3436
      %3469 = vst.msk [vmem:[#allocation3 + $0x98] sm:$0xff] %vm337, %v3437
      %3470 = vst.msk [vmem:[#allocation3 + $0xa0] sm:$0xff] %vm337, %v3438
      %3471 = vst.msk [vmem:[#allocation3 + $0xa8] sm:$0xff] %vm337, %v3439
      %3472 = vst.msk [vmem:[#allocation3 + $0xb0] sm:$0xff] %vm337, %v3440
      %3473 = vst.msk [vmem:[#allocation3 + $0xb8] sm:$0xff] %vm337, %v3441
      %3474 = vst.msk [vmem:[#allocation3 + $0xc0] sm:$0xff] %vm337, %v3442
      %3475 = vst.msk [vmem:[#allocation3 + $0xc8] sm:$0xff] %vm337, %v3443
      %3476 = vst.msk [vmem:[#allocation3 + $0xd0] sm:$0xff] %vm337, %v3444
      %3477 = vst.msk [vmem:[#allocation3 + $0xd8] sm:$0xff] %vm337, %v3445
      %3478 = vst.msk [vmem:[#allocation3 + $0xe0] sm:$0xff] %vm337, %v3446
      %3479 = vst.msk [vmem:[#allocation3 + $0xe8] sm:$0xff] %vm337, %v3447
      %3480 = vst.msk [vmem:[#allocation3 + $0xf0] sm:$0xff] %vm337, %v3448
      %3481 = vst.msk [vmem:[#allocation3 + $0xf8] sm:$0xff] %vm337, %v3449
      %v3482 = vld [vmem:[#allocation2 + $0x1] sm:$0xff]
      %v3483 = vld [vmem:[#allocation2 + $0x9] sm:$0xff]
      %v3484 = vld [vmem:[#allocation2 + $0x19] sm:$0xff]
      %v3485 = vld [vmem:[#allocation2 + $0x21] sm:$0xff]
      %v3486 = vld [vmem:[#allocation2 + $0x31] sm:$0xff]
      %v3487 = vld [vmem:[#allocation2 + $0x39] sm:$0xff]
      %v3488 = vld [vmem:[#allocation2 + $0x49] sm:$0xff]
      %v3489 = vld [vmem:[#allocation2 + $0x51] sm:$0xff]
      %v3490 = vld [vmem:[#allocation2 + $0x61] sm:$0xff]
      %v3491 = vld [vmem:[#allocation2 + $0x69] sm:$0xff]
      %v3492 = vld [vmem:[#allocation2 + $0x79] sm:$0xff]
      %v3493 = vld [vmem:[#allocation2 + $0x81] sm:$0xff]
      %v3494 = vld [vmem:[#allocation2 + $0x91] sm:$0xff]
      %v3495 = vld [vmem:[#allocation2 + $0x99] sm:$0xff]
      %v3496 = vld [vmem:[#allocation2 + $0xa9] sm:$0xff]
      %v3497 = vld [vmem:[#allocation2 + $0xb1] sm:$0xff]
      %v3498 = vld [vmem:[#allocation2 + $0xc1] sm:$0xff]
      %v3499 = vld [vmem:[#allocation2 + $0xc9] sm:$0xff]
      %v3500 = vld [vmem:[#allocation2 + $0xd9] sm:$0xff]
      %v3501 = vld [vmem:[#allocation2 + $0xe1] sm:$0xff]
      %v3502 = vld [vmem:[#allocation2 + $0xf1] sm:$0xff]
      %v3503 = vld [vmem:[#allocation2 + $0xf9] sm:$0xff]
      %v3504 = vld [vmem:[#allocation2 + $0x109] sm:$0xff]
      %v3505 = vld [vmem:[#allocation2 + $0x111] sm:$0xff]
      %v3506 = vld [vmem:[#allocation2 + $0x121] sm:$0xff]
      %v3507 = vld [vmem:[#allocation2 + $0x129] sm:$0xff]
      %v3508 = vld [vmem:[#allocation2 + $0x139] sm:$0xff]
      %v3509 = vld [vmem:[#allocation2 + $0x141] sm:$0xff]
      %v3510 = vld [vmem:[#allocation2 + $0x151] sm:$0xff]
      %v3511 = vld [vmem:[#allocation2 + $0x159] sm:$0xff]
      %v3512 = vld [vmem:[#allocation2 + $0x169] sm:$0xff]
      %v3513 = vld [vmem:[#allocation2 + $0x171] sm:$0xff]
      %v3514 = vld [vmem:[#allocation2 + $0x1b1] sm:$0xff]
      %v3515 = vld [vmem:[#allocation2 + $0x1b9] sm:$0xff]
      %v3516 = vld [vmem:[#allocation2 + $0x1c9] sm:$0xff]
      %v3517 = vld [vmem:[#allocation2 + $0x1d1] sm:$0xff]
      %v3518 = vld [vmem:[#allocation2 + $0x1e1] sm:$0xff]
      %v3519 = vld [vmem:[#allocation2 + $0x1e9] sm:$0xff]
      %v3520 = vld [vmem:[#allocation2 + $0x1f9] sm:$0xff]
      %v3521 = vld [vmem:[#allocation2 + $0x201] sm:$0xff]
      %v3522 = vld [vmem:[#allocation2 + $0x211] sm:$0xff]
      %v3523 = vld [vmem:[#allocation2 + $0x219] sm:$0xff]
      %v3524 = vld [vmem:[#allocation2 + $0x229] sm:$0xff]
      %v3525 = vld [vmem:[#allocation2 + $0x231] sm:$0xff]
      %v3526 = vld [vmem:[#allocation2 + $0x241] sm:$0xff]
      %v3527 = vld [vmem:[#allocation2 + $0x249] sm:$0xff]
      %v3528 = vld [vmem:[#allocation2 + $0x259] sm:$0xff]
      %v3529 = vld [vmem:[#allocation2 + $0x261] sm:$0xff]
      %v3530 = vld [vmem:[#allocation2 + $0x271] sm:$0xff]
      %v3531 = vld [vmem:[#allocation2 + $0x279] sm:$0xff]
      %v3532 = vld [vmem:[#allocation2 + $0x289] sm:$0xff]
      %v3533 = vld [vmem:[#allocation2 + $0x291] sm:$0xff]
      %v3534 = vld [vmem:[#allocation2 + $0x2a1] sm:$0xff]
      %v3535 = vld [vmem:[#allocation2 + $0x2a9] sm:$0xff]
      %v3536 = vld [vmem:[#allocation2 + $0x2b9] sm:$0xff]
      %v3537 = vld [vmem:[#allocation2 + $0x2c1] sm:$0xff]
      %v3538 = vld [vmem:[#allocation2 + $0x2d1] sm:$0xff]
      %v3539 = vld [vmem:[#allocation2 + $0x2d9] sm:$0xff]
      %v3540 = vld [vmem:[#allocation2 + $0x2e9] sm:$0xff]
      %v3541 = vld [vmem:[#allocation2 + $0x2f1] sm:$0xff]
      %v3542 = vld [vmem:[#allocation2 + $0x301] sm:$0xff]
      %v3543 = vld [vmem:[#allocation2 + $0x309] sm:$0xff]
      %v3544 = vld [vmem:[#allocation2 + $0x319] sm:$0xff]
      %v3545 = vld [vmem:[#allocation2 + $0x321] sm:$0xff]
      %v3546 = vpack.c.bf16 %v3483, %v3482
      %v3547 = vpack.c.bf16 %v3485, %v3484
      %v3548 = vpack.c.bf16 %v3487, %v3486
      %v3549 = vpack.c.bf16 %v3489, %v3488
      %v3550 = vpack.c.bf16 %v3491, %v3490
      %v3551 = vpack.c.bf16 %v3493, %v3492
      %v3552 = vpack.c.bf16 %v3495, %v3494
      %v3553 = vpack.c.bf16 %v3497, %v3496
      %v3554 = vpack.c.bf16 %v3499, %v3498
      %v3555 = vpack.c.bf16 %v3501, %v3500
      %v3556 = vpack.c.bf16 %v3503, %v3502
      %v3557 = vpack.c.bf16 %v3505, %v3504
      %v3558 = vpack.c.bf16 %v3507, %v3506
      %v3559 = vpack.c.bf16 %v3509, %v3508
      %v3560 = vpack.c.bf16 %v3511, %v3510
      %v3561 = vpack.c.bf16 %v3513, %v3512
      %v3562 = vpack.c.bf16 %v3515, %v3514
      %v3563 = vpack.c.bf16 %v3517, %v3516
      %v3564 = vpack.c.bf16 %v3519, %v3518
      %v3565 = vpack.c.bf16 %v3521, %v3520
      %v3566 = vpack.c.bf16 %v3523, %v3522
      %v3567 = vpack.c.bf16 %v3525, %v3524
      %v3568 = vpack.c.bf16 %v3527, %v3526
      %v3569 = vpack.c.bf16 %v3529, %v3528
      %v3570 = vpack.c.bf16 %v3531, %v3530
      %v3571 = vpack.c.bf16 %v3533, %v3532
      %v3572 = vpack.c.bf16 %v3535, %v3534
      %v3573 = vpack.c.bf16 %v3537, %v3536
      %v3574 = vpack.c.bf16 %v3539, %v3538
      %v3575 = vpack.c.bf16 %v3541, %v3540
      %v3576 = vpack.c.bf16 %v3543, %v3542
      %v3577 = vpack.c.bf16 %v3545, %v3544
      %3610 = vrot.lane.b32.xlu0 %v3546, 8
      %v3611 = vpop.permute.xlu0 %3610
      %3612 = vrot.lane.b32.xlu0 %v3547, 8
      %v3613 = vpop.permute.xlu0 %3612
      %3614 = vrot.lane.b32.xlu0 %v3548, 8
      %v3615 = vpop.permute.xlu0 %3614
      %3616 = vrot.lane.b32.xlu0 %v3549, 8
      %v3617 = vpop.permute.xlu0 %3616
      %3618 = vrot.lane.b32.xlu0 %v3550, 8
      %v3619 = vpop.permute.xlu0 %3618
      %3620 = vrot.lane.b32.xlu0 %v3551, 8
      %v3621 = vpop.permute.xlu0 %3620
      %3622 = vrot.lane.b32.xlu0 %v3552, 8
      %v3623 = vpop.permute.xlu0 %3622
      %3624 = vrot.lane.b32.xlu0 %v3553, 8
      %v3625 = vpop.permute.xlu0 %3624
      %3626 = vrot.lane.b32.xlu0 %v3554, 8
      %v3627 = vpop.permute.xlu0 %3626
      %3628 = vrot.lane.b32.xlu0 %v3555, 8
      %v3629 = vpop.permute.xlu0 %3628
      %3630 = vrot.lane.b32.xlu0 %v3556, 8
      %v3631 = vpop.permute.xlu0 %3630
      %3632 = vrot.lane.b32.xlu0 %v3557, 8
      %v3633 = vpop.permute.xlu0 %3632
      %3634 = vrot.lane.b32.xlu0 %v3558, 8
      %v3635 = vpop.permute.xlu0 %3634
      %3636 = vrot.lane.b32.xlu0 %v3559, 8
      %v3637 = vpop.permute.xlu0 %3636
      %3638 = vrot.lane.b32.xlu0 %v3560, 8
      %v3639 = vpop.permute.xlu0 %3638
      %3640 = vrot.lane.b32.xlu0 %v3561, 8
      %v3641 = vpop.permute.xlu0 %3640
      %3642 = vrot.lane.b32.xlu0 %v3562, 8
      %v3643 = vpop.permute.xlu0 %3642
      %3644 = vrot.lane.b32.xlu0 %v3563, 8
      %v3645 = vpop.permute.xlu0 %3644
      %3646 = vrot.lane.b32.xlu0 %v3564, 8
      %v3647 = vpop.permute.xlu0 %3646
      %3648 = vrot.lane.b32.xlu0 %v3565, 8
      %v3649 = vpop.permute.xlu0 %3648
      %3650 = vrot.lane.b32.xlu0 %v3566, 8
      %v3651 = vpop.permute.xlu0 %3650
      %3652 = vrot.lane.b32.xlu0 %v3567, 8
      %v3653 = vpop.permute.xlu0 %3652
      %3654 = vrot.lane.b32.xlu0 %v3568, 8
      %v3655 = vpop.permute.xlu0 %3654
      %3656 = vrot.lane.b32.xlu0 %v3569, 8
      %v3657 = vpop.permute.xlu0 %3656
      %3658 = vrot.lane.b32.xlu0 %v3570, 8
      %v3659 = vpop.permute.xlu0 %3658
      %3660 = vrot.lane.b32.xlu0 %v3571, 8
      %v3661 = vpop.permute.xlu0 %3660
      %3662 = vrot.lane.b32.xlu0 %v3572, 8
      %v3663 = vpop.permute.xlu0 %3662
      %3664 = vrot.lane.b32.xlu0 %v3573, 8
      %v3665 = vpop.permute.xlu0 %3664
      %3666 = vrot.lane.b32.xlu0 %v3574, 8
      %v3667 = vpop.permute.xlu0 %3666
      %3668 = vrot.lane.b32.xlu0 %v3575, 8
      %v3669 = vpop.permute.xlu0 %3668
      %3670 = vrot.lane.b32.xlu0 %v3576, 8
      %v3671 = vpop.permute.xlu0 %3670
      %3672 = vrot.lane.b32.xlu0 %v3577, 8
      %v3673 = vpop.permute.xlu0 %3672
      %3706 = vst.msk [vmem:[#allocation3] sm:$0xff] %vm928, %v3611
      %3707 = vst.msk [vmem:[#allocation3 + $0x8] sm:$0xff] %vm928, %v3613
      %3708 = vst.msk [vmem:[#allocation3 + $0x10] sm:$0xff] %vm928, %v3615
      %3709 = vst.msk [vmem:[#allocation3 + $0x18] sm:$0xff] %vm928, %v3617
      %3710 = vst.msk [vmem:[#allocation3 + $0x20] sm:$0xff] %vm928, %v3619
      %3711 = vst.msk [vmem:[#allocation3 + $0x28] sm:$0xff] %vm928, %v3621
      %3712 = vst.msk [vmem:[#allocation3 + $0x30] sm:$0xff] %vm928, %v3623
      %3713 = vst.msk [vmem:[#allocation3 + $0x38] sm:$0xff] %vm928, %v3625
      %3714 = vst.msk [vmem:[#allocation3 + $0x40] sm:$0xff] %vm928, %v3627
      %3715 = vst.msk [vmem:[#allocation3 + $0x48] sm:$0xff] %vm928, %v3629
      %3716 = vst.msk [vmem:[#allocation3 + $0x50] sm:$0xff] %vm928, %v3631
      %3717 = vst.msk [vmem:[#allocation3 + $0x58] sm:$0xff] %vm928, %v3633
      %3718 = vst.msk [vmem:[#allocation3 + $0x60] sm:$0xff] %vm928, %v3635
      %3719 = vst.msk [vmem:[#allocation3 + $0x68] sm:$0xff] %vm928, %v3637
      %3720 = vst.msk [vmem:[#allocation3 + $0x70] sm:$0xff] %vm928, %v3639
      %3721 = vst.msk [vmem:[#allocation3 + $0x78] sm:$0xff] %vm928, %v3641
      %3722 = vst.msk [vmem:[#allocation3 + $0x80] sm:$0xff] %vm928, %v3643
      %3723 = vst.msk [vmem:[#allocation3 + $0x88] sm:$0xff] %vm928, %v3645
      %3724 = vst.msk [vmem:[#allocation3 + $0x90] sm:$0xff] %vm928, %v3647
      %3725 = vst.msk [vmem:[#allocation3 + $0x98] sm:$0xff] %vm928, %v3649
      %3726 = vst.msk [vmem:[#allocation3 + $0xa0] sm:$0xff] %vm928, %v3651
      %3727 = vst.msk [vmem:[#allocation3 + $0xa8] sm:$0xff] %vm928, %v3653
      %3728 = vst.msk [vmem:[#allocation3 + $0xb0] sm:$0xff] %vm928, %v3655
      %3729 = vst.msk [vmem:[#allocation3 + $0xb8] sm:$0xff] %vm928, %v3657
      %3730 = vst.msk [vmem:[#allocation3 + $0xc0] sm:$0xff] %vm928, %v3659
      %3731 = vst.msk [vmem:[#allocation3 + $0xc8] sm:$0xff] %vm928, %v3661
      %3732 = vst.msk [vmem:[#allocation3 + $0xd0] sm:$0xff] %vm928, %v3663
      %3733 = vst.msk [vmem:[#allocation3 + $0xd8] sm:$0xff] %vm928, %v3665
      %3734 = vst.msk [vmem:[#allocation3 + $0xe0] sm:$0xff] %vm928, %v3667
      %3735 = vst.msk [vmem:[#allocation3 + $0xe8] sm:$0xff] %vm928, %v3669
      %3736 = vst.msk [vmem:[#allocation3 + $0xf0] sm:$0xff] %vm928, %v3671
      %3737 = vst.msk [vmem:[#allocation3 + $0xf8] sm:$0xff] %vm928, %v3673
      %v3738 = vld [vmem:[#allocation2 + $0x2] sm:$0xff]
      %v3739 = vld [vmem:[#allocation2 + $0xa] sm:$0xff]
      %v3740 = vld [vmem:[#allocation2 + $0x1a] sm:$0xff]
      %v3741 = vld [vmem:[#allocation2 + $0x22] sm:$0xff]
      %v3742 = vld [vmem:[#allocation2 + $0x32] sm:$0xff]
      %v3743 = vld [vmem:[#allocation2 + $0x3a] sm:$0xff]
      %v3744 = vld [vmem:[#allocation2 + $0x4a] sm:$0xff]
      %v3745 = vld [vmem:[#allocation2 + $0x52] sm:$0xff]
      %v3746 = vld [vmem:[#allocation2 + $0x62] sm:$0xff]
      %v3747 = vld [vmem:[#allocation2 + $0x6a] sm:$0xff]
      %v3748 = vld [vmem:[#allocation2 + $0x7a] sm:$0xff]
      %v3749 = vld [vmem:[#allocation2 + $0x82] sm:$0xff]
      %v3750 = vld [vmem:[#allocation2 + $0x92] sm:$0xff]
      %v3751 = vld [vmem:[#allocation2 + $0x9a] sm:$0xff]
      %v3752 = vld [vmem:[#allocation2 + $0xaa] sm:$0xff]
      %v3753 = vld [vmem:[#allocation2 + $0xb2] sm:$0xff]
      %v3754 = vld [vmem:[#allocation2 + $0xc2] sm:$0xff]
      %v3755 = vld [vmem:[#allocation2 + $0xca] sm:$0xff]
      %v3756 = vld [vmem:[#allocation2 + $0xda] sm:$0xff]
      %v3757 = vld [vmem:[#allocation2 + $0xe2] sm:$0xff]
      %v3758 = vld [vmem:[#allocation2 + $0xf2] sm:$0xff]
      %v3759 = vld [vmem:[#allocation2 + $0xfa] sm:$0xff]
      %v3760 = vld [vmem:[#allocation2 + $0x10a] sm:$0xff]
      %v3761 = vld [vmem:[#allocation2 + $0x112] sm:$0xff]
      %v3762 = vld [vmem:[#allocation2 + $0x122] sm:$0xff]
      %v3763 = vld [vmem:[#allocation2 + $0x12a] sm:$0xff]
      %v3764 = vld [vmem:[#allocation2 + $0x13a] sm:$0xff]
      %v3765 = vld [vmem:[#allocation2 + $0x142] sm:$0xff]
      %v3766 = vld [vmem:[#allocation2 + $0x152] sm:$0xff]
      %v3767 = vld [vmem:[#allocation2 + $0x15a] sm:$0xff]
      %v3768 = vld [vmem:[#allocation2 + $0x16a] sm:$0xff]
      %v3769 = vld [vmem:[#allocation2 + $0x172] sm:$0xff]
      %v3770 = vld [vmem:[#allocation2 + $0x1b2] sm:$0xff]
      %v3771 = vld [vmem:[#allocation2 + $0x1ba] sm:$0xff]
      %v3772 = vld [vmem:[#allocation2 + $0x1ca] sm:$0xff]
      %v3773 = vld [vmem:[#allocation2 + $0x1d2] sm:$0xff]
      %v3774 = vld [vmem:[#allocation2 + $0x1e2] sm:$0xff]
      %v3775 = vld [vmem:[#allocation2 + $0x1ea] sm:$0xff]
      %v3776 = vld [vmem:[#allocation2 + $0x1fa] sm:$0xff]
      %v3777 = vld [vmem:[#allocation2 + $0x202] sm:$0xff]
      %v3778 = vld [vmem:[#allocation2 + $0x212] sm:$0xff]
      %v3779 = vld [vmem:[#allocation2 + $0x21a] sm:$0xff]
      %v3780 = vld [vmem:[#allocation2 + $0x22a] sm:$0xff]
      %v3781 = vld [vmem:[#allocation2 + $0x232] sm:$0xff]
      %v3782 = vld [vmem:[#allocation2 + $0x242] sm:$0xff]
      %v3783 = vld [vmem:[#allocation2 + $0x24a] sm:$0xff]
      %v3784 = vld [vmem:[#allocation2 + $0x25a] sm:$0xff]
      %v3785 = vld [vmem:[#allocation2 + $0x262] sm:$0xff]
      %v3786 = vld [vmem:[#allocation2 + $0x272] sm:$0xff]
      %v3787 = vld [vmem:[#allocation2 + $0x27a] sm:$0xff]
      %v3788 = vld [vmem:[#allocation2 + $0x28a] sm:$0xff]
      %v3789 = vld [vmem:[#allocation2 + $0x292] sm:$0xff]
      %v3790 = vld [vmem:[#allocation2 + $0x2a2] sm:$0xff]
      %v3791 = vld [vmem:[#allocation2 + $0x2aa] sm:$0xff]
      %v3792 = vld [vmem:[#allocation2 + $0x2ba] sm:$0xff]
      %v3793 = vld [vmem:[#allocation2 + $0x2c2] sm:$0xff]
      %v3794 = vld [vmem:[#allocation2 + $0x2d2] sm:$0xff]
      %v3795 = vld [vmem:[#allocation2 + $0x2da] sm:$0xff]
      %v3796 = vld [vmem:[#allocation2 + $0x2ea] sm:$0xff]
      %v3797 = vld [vmem:[#allocation2 + $0x2f2] sm:$0xff]
      %v3798 = vld [vmem:[#allocation2 + $0x302] sm:$0xff]
      %v3799 = vld [vmem:[#allocation2 + $0x30a] sm:$0xff]
      %v3800 = vld [vmem:[#allocation2 + $0x31a] sm:$0xff]
      %v3801 = vld [vmem:[#allocation2 + $0x322] sm:$0xff]
      %v3802 = vpack.c.bf16 %v3739, %v3738
      %v3803 = vpack.c.bf16 %v3741, %v3740
      %v3804 = vpack.c.bf16 %v3743, %v3742
      %v3805 = vpack.c.bf16 %v3745, %v3744
      %v3806 = vpack.c.bf16 %v3747, %v3746
      %v3807 = vpack.c.bf16 %v3749, %v3748
      %v3808 = vpack.c.bf16 %v3751, %v3750
      %v3809 = vpack.c.bf16 %v3753, %v3752
      %v3810 = vpack.c.bf16 %v3755, %v3754
      %v3811 = vpack.c.bf16 %v3757, %v3756
      %v3812 = vpack.c.bf16 %v3759, %v3758
      %v3813 = vpack.c.bf16 %v3761, %v3760
      %v3814 = vpack.c.bf16 %v3763, %v3762
      %v3815 = vpack.c.bf16 %v3765, %v3764
      %v3816 = vpack.c.bf16 %v3767, %v3766
      %v3817 = vpack.c.bf16 %v3769, %v3768
      %v3818 = vpack.c.bf16 %v3771, %v3770
      %v3819 = vpack.c.bf16 %v3773, %v3772
      %v3820 = vpack.c.bf16 %v3775, %v3774
      %v3821 = vpack.c.bf16 %v3777, %v3776
      %v3822 = vpack.c.bf16 %v3779, %v3778
      %v3823 = vpack.c.bf16 %v3781, %v3780
      %v3824 = vpack.c.bf16 %v3783, %v3782
      %v3825 = vpack.c.bf16 %v3785, %v3784
      %v3826 = vpack.c.bf16 %v3787, %v3786
      %v3827 = vpack.c.bf16 %v3789, %v3788
      %v3828 = vpack.c.bf16 %v3791, %v3790
      %v3829 = vpack.c.bf16 %v3793, %v3792
      %v3830 = vpack.c.bf16 %v3795, %v3794
      %v3831 = vpack.c.bf16 %v3797, %v3796
      %v3832 = vpack.c.bf16 %v3799, %v3798
      %v3833 = vpack.c.bf16 %v3801, %v3800
      %3866 = vrot.lane.b32.xlu0 %v3802, 16
      %v3867 = vpop.permute.xlu0 %3866
      %3868 = vrot.lane.b32.xlu0 %v3803, 16
      %v3869 = vpop.permute.xlu0 %3868
      %3870 = vrot.lane.b32.xlu0 %v3804, 16
      %v3871 = vpop.permute.xlu0 %3870
      %3872 = vrot.lane.b32.xlu0 %v3805, 16
      %v3873 = vpop.permute.xlu0 %3872
      %3874 = vrot.lane.b32.xlu0 %v3806, 16
      %v3875 = vpop.permute.xlu0 %3874
      %3876 = vrot.lane.b32.xlu0 %v3807, 16
      %v3877 = vpop.permute.xlu0 %3876
      %3878 = vrot.lane.b32.xlu0 %v3808, 16
      %v3879 = vpop.permute.xlu0 %3878
      %3880 = vrot.lane.b32.xlu0 %v3809, 16
      %v3881 = vpop.permute.xlu0 %3880
      %3882 = vrot.lane.b32.xlu0 %v3810, 16
      %v3883 = vpop.permute.xlu0 %3882
      %3884 = vrot.lane.b32.xlu0 %v3811, 16
      %v3885 = vpop.permute.xlu0 %3884
      %3886 = vrot.lane.b32.xlu0 %v3812, 16
      %v3887 = vpop.permute.xlu0 %3886
      %3888 = vrot.lane.b32.xlu0 %v3813, 16
      %v3889 = vpop.permute.xlu0 %3888
      %3890 = vrot.lane.b32.xlu0 %v3814, 16
      %v3891 = vpop.permute.xlu0 %3890
      %3892 = vrot.lane.b32.xlu0 %v3815, 16
      %v3893 = vpop.permute.xlu0 %3892
      %3894 = vrot.lane.b32.xlu0 %v3816, 16
      %v3895 = vpop.permute.xlu0 %3894
      %3896 = vrot.lane.b32.xlu0 %v3817, 16
      %v3897 = vpop.permute.xlu0 %3896
      %3898 = vrot.lane.b32.xlu0 %v3818, 16
      %v3899 = vpop.permute.xlu0 %3898
      %3900 = vrot.lane.b32.xlu0 %v3819, 16
      %v3901 = vpop.permute.xlu0 %3900
      %3902 = vrot.lane.b32.xlu0 %v3820, 16
      %v3903 = vpop.permute.xlu0 %3902
      %3904 = vrot.lane.b32.xlu0 %v3821, 16
      %v3905 = vpop.permute.xlu0 %3904
      %3906 = vrot.lane.b32.xlu0 %v3822, 16
      %v3907 = vpop.permute.xlu0 %3906
      %3908 = vrot.lane.b32.xlu0 %v3823, 16
      %v3909 = vpop.permute.xlu0 %3908
      %3910 = vrot.lane.b32.xlu0 %v3824, 16
      %v3911 = vpop.permute.xlu0 %3910
      %3912 = vrot.lane.b32.xlu0 %v3825, 16
      %v3913 = vpop.permute.xlu0 %3912
      %3914 = vrot.lane.b32.xlu0 %v3826, 16
      %v3915 = vpop.permute.xlu0 %3914
      %3916 = vrot.lane.b32.xlu0 %v3827, 16
      %v3917 = vpop.permute.xlu0 %3916
      %3918 = vrot.lane.b32.xlu0 %v3828, 16
      %v3919 = vpop.permute.xlu0 %3918
      %3920 = vrot.lane.b32.xlu0 %v3829, 16
      %v3921 = vpop.permute.xlu0 %3920
      %3922 = vrot.lane.b32.xlu0 %v3830, 16
      %v3923 = vpop.permute.xlu0 %3922
      %3924 = vrot.lane.b32.xlu0 %v3831, 16
      %v3925 = vpop.permute.xlu0 %3924
      %3926 = vrot.lane.b32.xlu0 %v3832, 16
      %v3927 = vpop.permute.xlu0 %3926
      %3928 = vrot.lane.b32.xlu0 %v3833, 16
      %v3929 = vpop.permute.xlu0 %3928
      %3962 = vst.msk [vmem:[#allocation3] sm:$0xff] %vm1185, %v3867
      %3963 = vst.msk [vmem:[#allocation3 + $0x8] sm:$0xff] %vm1185, %v3869
      %3964 = vst.msk [vmem:[#allocation3 + $0x10] sm:$0xff] %vm1185, %v3871
      %3965 = vst.msk [vmem:[#allocation3 + $0x18] sm:$0xff] %vm1185, %v3873
      %3966 = vst.msk [vmem:[#allocation3 + $0x20] sm:$0xff] %vm1185, %v3875
      %3967 = vst.msk [vmem:[#allocation3 + $0x28] sm:$0xff] %vm1185, %v3877
      %3968 = vst.msk [vmem:[#allocation3 + $0x30] sm:$0xff] %vm1185, %v3879
      %3969 = vst.msk [vmem:[#allocation3 + $0x38] sm:$0xff] %vm1185, %v3881
      %3970 = vst.msk [vmem:[#allocation3 + $0x40] sm:$0xff] %vm1185, %v3883
      %3971 = vst.msk [vmem:[#allocation3 + $0x48] sm:$0xff] %vm1185, %v3885
      %3972 = vst.msk [vmem:[#allocation3 + $0x50] sm:$0xff] %vm1185, %v3887
      %3973 = vst.msk [vmem:[#allocation3 + $0x58] sm:$0xff] %vm1185, %v3889
      %3974 = vst.msk [vmem:[#allocation3 + $0x60] sm:$0xff] %vm1185, %v3891
      %3975 = vst.msk [vmem:[#allocation3 + $0x68] sm:$0xff] %vm1185, %v3893
      %3976 = vst.msk [vmem:[#allocation3 + $0x70] sm:$0xff] %vm1185, %v3895
      %3977 = vst.msk [vmem:[#allocation3 + $0x78] sm:$0xff] %vm1185, %v3897
      %3978 = vst.msk [vmem:[#allocation3 + $0x80] sm:$0xff] %vm1185, %v3899
      %3979 = vst.msk [vmem:[#allocation3 + $0x88] sm:$0xff] %vm1185, %v3901
      %3980 = vst.msk [vmem:[#allocation3 + $0x90] sm:$0xff] %vm1185, %v3903
      %3981 = vst.msk [vmem:[#allocation3 + $0x98] sm:$0xff] %vm1185, %v3905
      %3982 = vst.msk [vmem:[#allocation3 + $0xa0] sm:$0xff] %vm1185, %v3907
      %3983 = vst.msk [vmem:[#allocation3 + $0xa8] sm:$0xff] %vm1185, %v3909
      %3984 = vst.msk [vmem:[#allocation3 + $0xb0] sm:$0xff] %vm1185, %v3911
      %3985 = vst.msk [vmem:[#allocation3 + $0xb8] sm:$0xff] %vm1185, %v3913
      %3986 = vst.msk [vmem:[#allocation3 + $0xc0] sm:$0xff] %vm1185, %v3915
      %3987 = vst.msk [vmem:[#allocation3 + $0xc8] sm:$0xff] %vm1185, %v3917
      %3988 = vst.msk [vmem:[#allocation3 + $0xd0] sm:$0xff] %vm1185, %v3919
      %3989 = vst.msk [vmem:[#allocation3 + $0xd8] sm:$0xff] %vm1185, %v3921
      %3990 = vst.msk [vmem:[#allocation3 + $0xe0] sm:$0xff] %vm1185, %v3923
      %3991 = vst.msk [vmem:[#allocation3 + $0xe8] sm:$0xff] %vm1185, %v3925
      %3992 = vst.msk [vmem:[#allocation3 + $0xf0] sm:$0xff] %vm1185, %v3927
      %3993 = vst.msk [vmem:[#allocation3 + $0xf8] sm:$0xff] %vm1185, %v3929
      %v3994 = vld [vmem:[%s511] sm:$0xff]
      %v3995 = vld [vmem:[%s511 + $0x8] sm:$0xff]
      %v3996 = vld [vmem:[%s511 + $0x18] sm:$0xff]
      %v3997 = vld [vmem:[%s511 + $0x20] sm:$0xff]
      %v3998 = vld [vmem:[%s511 + $0x30] sm:$0xff]
      %v3999 = vld [vmem:[%s511 + $0x38] sm:$0xff]
      %v4000 = vld [vmem:[%s511 + $0x48] sm:$0xff]
      %v4001 = vld [vmem:[%s511 + $0x50] sm:$0xff]
      %v4002 = vld [vmem:[%s511 + $0x60] sm:$0xff]
      %v4003 = vld [vmem:[%s511 + $0x68] sm:$0xff]
      %v4004 = vld [vmem:[%s511 + $0x78] sm:$0xff]
      %v4005 = vld [vmem:[%s511 + $0x80] sm:$0xff]
      %v4006 = vld [vmem:[%s511 + $0x90] sm:$0xff]
      %v4007 = vld [vmem:[%s511 + $0x98] sm:$0xff]
      %v4008 = vld [vmem:[%s511 + $0xa8] sm:$0xff]
      %v4009 = vld [vmem:[%s511 + $0xb0] sm:$0xff]
      %v4010 = vld [vmem:[%s511 + $0xc0] sm:$0xff]
      %v4011 = vld [vmem:[%s511 + $0xc8] sm:$0xff]
      %v4012 = vld [vmem:[%s511 + $0xd8] sm:$0xff]
      %v4013 = vld [vmem:[%s511 + $0xe0] sm:$0xff]
      %v4014 = vld [vmem:[%s511 + $0xf0] sm:$0xff]
      %v4015 = vld [vmem:[%s511 + $0xf8] sm:$0xff]
      %v4016 = vld [vmem:[%s511 + $0x108] sm:$0xff]
      %v4017 = vld [vmem:[%s511 + $0x110] sm:$0xff]
      %v4018 = vld [vmem:[%s511 + $0x120] sm:$0xff]
      %v4019 = vld [vmem:[%s511 + $0x128] sm:$0xff]
      %v4020 = vld [vmem:[%s511 + $0x138] sm:$0xff]
      %v4021 = vld [vmem:[%s511 + $0x140] sm:$0xff]
      %v4022 = vld [vmem:[%s511 + $0x150] sm:$0xff]
      %v4023 = vld [vmem:[%s511 + $0x158] sm:$0xff]
      %v4024 = vld [vmem:[%s511 + $0x168] sm:$0xff]
      %v4025 = vld [vmem:[%s511 + $0x170] sm:$0xff]
      %v4026 = vld [vmem:[%s511 + $0x1b0] sm:$0xff]
      %v4027 = vld [vmem:[%s511 + $0x1b8] sm:$0xff]
      %v4028 = vld [vmem:[%s511 + $0x1c8] sm:$0xff]
      %v4029 = vld [vmem:[%s511 + $0x1d0] sm:$0xff]
      %v4030 = vld [vmem:[%s511 + $0x1e0] sm:$0xff]
      %v4031 = vld [vmem:[%s511 + $0x1e8] sm:$0xff]
      %v4032 = vld [vmem:[%s511 + $0x1f8] sm:$0xff]
      %v4033 = vld [vmem:[%s511 + $0x200] sm:$0xff]
      %v4034 = vld [vmem:[%s511 + $0x210] sm:$0xff]
      %v4035 = vld [vmem:[%s511 + $0x218] sm:$0xff]
      %v4036 = vld [vmem:[%s511 + $0x228] sm:$0xff]
      %v4037 = vld [vmem:[%s511 + $0x230] sm:$0xff]
      %v4038 = vld [vmem:[%s511 + $0x240] sm:$0xff]
      %v4039 = vld [vmem:[%s511 + $0x248] sm:$0xff]
      %v4040 = vld [vmem:[%s511 + $0x258] sm:$0xff]
      %v4041 = vld [vmem:[%s511 + $0x260] sm:$0xff]
      %v4042 = vld [vmem:[%s511 + $0x270] sm:$0xff]
      %v4043 = vld [vmem:[%s511 + $0x278] sm:$0xff]
      %v4044 = vld [vmem:[%s511 + $0x288] sm:$0xff]
      %v4045 = vld [vmem:[%s511 + $0x290] sm:$0xff]
      %v4046 = vld [vmem:[%s511 + $0x2a0] sm:$0xff]
      %v4047 = vld [vmem:[%s511 + $0x2a8] sm:$0xff]
      %v4048 = vld [vmem:[%s511 + $0x2b8] sm:$0xff]
      %v4049 = vld [vmem:[%s511 + $0x2c0] sm:$0xff]
      %v4050 = vld [vmem:[%s511 + $0x2d0] sm:$0xff]
      %v4051 = vld [vmem:[%s511 + $0x2d8] sm:$0xff]
      %v4052 = vld [vmem:[%s511 + $0x2e8] sm:$0xff]
      %v4053 = vld [vmem:[%s511 + $0x2f0] sm:$0xff]
      %v4054 = vld [vmem:[%s511 + $0x300] sm:$0xff]
      %v4055 = vld [vmem:[%s511 + $0x308] sm:$0xff]
      %v4056 = vld [vmem:[%s511 + $0x318] sm:$0xff]
      %v4057 = vld [vmem:[%s511 + $0x320] sm:$0xff]
      %v4058 = vpack.c.bf16 %v3995, %v3994
      %v4059 = vpack.c.bf16 %v3997, %v3996
      %v4060 = vpack.c.bf16 %v3999, %v3998
      %v4061 = vpack.c.bf16 %v4001, %v4000
      %v4062 = vpack.c.bf16 %v4003, %v4002
      %v4063 = vpack.c.bf16 %v4005, %v4004
      %v4064 = vpack.c.bf16 %v4007, %v4006
      %v4065 = vpack.c.bf16 %v4009, %v4008
      %v4066 = vpack.c.bf16 %v4011, %v4010
      %v4067 = vpack.c.bf16 %v4013, %v4012
      %v4068 = vpack.c.bf16 %v4015, %v4014
      %v4069 = vpack.c.bf16 %v4017, %v4016
      %v4070 = vpack.c.bf16 %v4019, %v4018
      %v4071 = vpack.c.bf16 %v4021, %v4020
      %v4072 = vpack.c.bf16 %v4023, %v4022
      %v4073 = vpack.c.bf16 %v4025, %v4024
      %v4074 = vpack.c.bf16 %v4027, %v4026
      %v4075 = vpack.c.bf16 %v4029, %v4028
      %v4076 = vpack.c.bf16 %v4031, %v4030
      %v4077 = vpack.c.bf16 %v4033, %v4032
      %v4078 = vpack.c.bf16 %v4035, %v4034
      %v4079 = vpack.c.bf16 %v4037, %v4036
      %v4080 = vpack.c.bf16 %v4039, %v4038
      %v4081 = vpack.c.bf16 %v4041, %v4040
      %v4082 = vpack.c.bf16 %v4043, %v4042
      %v4083 = vpack.c.bf16 %v4045, %v4044
      %v4084 = vpack.c.bf16 %v4047, %v4046
      %v4085 = vpack.c.bf16 %v4049, %v4048
      %v4086 = vpack.c.bf16 %v4051, %v4050
      %v4087 = vpack.c.bf16 %v4053, %v4052
      %v4088 = vpack.c.bf16 %v4055, %v4054
      %v4089 = vpack.c.bf16 %v4057, %v4056
      %4122 = vrot.lane.b32.xlu0 %v4058, 24
      %v4123 = vpop.permute.xlu0 %4122
      %4124 = vrot.lane.b32.xlu0 %v4059, 24
      %v4125 = vpop.permute.xlu0 %4124
      %4126 = vrot.lane.b32.xlu0 %v4060, 24
      %v4127 = vpop.permute.xlu0 %4126
      %4128 = vrot.lane.b32.xlu0 %v4061, 24
      %v4129 = vpop.permute.xlu0 %4128
      %4130 = vrot.lane.b32.xlu0 %v4062, 24
      %v4131 = vpop.permute.xlu0 %4130
      %4132 = vrot.lane.b32.xlu0 %v4063, 24
      %v4133 = vpop.permute.xlu0 %4132
      %4134 = vrot.lane.b32.xlu0 %v4064, 24
      %v4135 = vpop.permute.xlu0 %4134
      %4136 = vrot.lane.b32.xlu0 %v4065, 24
      %v4137 = vpop.permute.xlu0 %4136
      %4138 = vrot.lane.b32.xlu0 %v4066, 24
      %v4139 = vpop.permute.xlu0 %4138
      %4140 = vrot.lane.b32.xlu0 %v4067, 24
      %v4141 = vpop.permute.xlu0 %4140
      %4142 = vrot.lane.b32.xlu0 %v4068, 24
      %v4143 = vpop.permute.xlu0 %4142
      %4144 = vrot.lane.b32.xlu0 %v4069, 24
      %v4145 = vpop.permute.xlu0 %4144
      %4146 = vrot.lane.b32.xlu0 %v4070, 24
      %v4147 = vpop.permute.xlu0 %4146
      %4148 = vrot.lane.b32.xlu0 %v4071, 24
      %v4149 = vpop.permute.xlu0 %4148
      %4150 = vrot.lane.b32.xlu0 %v4072, 24
      %v4151 = vpop.permute.xlu0 %4150
      %4152 = vrot.lane.b32.xlu0 %v4073, 24
      %v4153 = vpop.permute.xlu0 %4152
      %4154 = vrot.lane.b32.xlu0 %v4074, 24
      %v4155 = vpop.permute.xlu0 %4154
      %4156 = vrot.lane.b32.xlu0 %v4075, 24
      %v4157 = vpop.permute.xlu0 %4156
      %4158 = vrot.lane.b32.xlu0 %v4076, 24
      %v4159 = vpop.permute.xlu0 %4158
      %4160 = vrot.lane.b32.xlu0 %v4077, 24
      %v4161 = vpop.permute.xlu0 %4160
      %4162 = vrot.lane.b32.xlu0 %v4078, 24
      %v4163 = vpop.permute.xlu0 %4162
      %4164 = vrot.lane.b32.xlu0 %v4079, 24
      %v4165 = vpop.permute.xlu0 %4164
      %4166 = vrot.lane.b32.xlu0 %v4080, 24
      %v4167 = vpop.permute.xlu0 %4166
      %4168 = vrot.lane.b32.xlu0 %v4081, 24
      %v4169 = vpop.permute.xlu0 %4168
      %4170 = vrot.lane.b32.xlu0 %v4082, 24
      %v4171 = vpop.permute.xlu0 %4170
      %4172 = vrot.lane.b32.xlu0 %v4083, 24
      %v4173 = vpop.permute.xlu0 %4172
      %4174 = vrot.lane.b32.xlu0 %v4084, 24
      %v4175 = vpop.permute.xlu0 %4174
      %4176 = vrot.lane.b32.xlu0 %v4085, 24
      %v4177 = vpop.permute.xlu0 %4176
      %4178 = vrot.lane.b32.xlu0 %v4086, 24
      %v4179 = vpop.permute.xlu0 %4178
      %4180 = vrot.lane.b32.xlu0 %v4087, 24
      %v4181 = vpop.permute.xlu0 %4180
      %4182 = vrot.lane.b32.xlu0 %v4088, 24
      %v4183 = vpop.permute.xlu0 %4182
      %4184 = vrot.lane.b32.xlu0 %v4089, 24
      %v4185 = vpop.permute.xlu0 %4184
      %4218 = vst.msk [vmem:[#allocation3] sm:$0xff] %vm1442, %v4123
      %4219 = vst.msk [vmem:[#allocation3 + $0x8] sm:$0xff] %vm1442, %v4125
      %4220 = vst.msk [vmem:[#allocation3 + $0x10] sm:$0xff] %vm1442, %v4127
      %4221 = vst.msk [vmem:[#allocation3 + $0x18] sm:$0xff] %vm1442, %v4129
      %4222 = vst.msk [vmem:[#allocation3 + $0x20] sm:$0xff] %vm1442, %v4131
      %4223 = vst.msk [vmem:[#allocation3 + $0x28] sm:$0xff] %vm1442, %v4133
      %4224 = vst.msk [vmem:[#allocation3 + $0x30] sm:$0xff] %vm1442, %v4135
      %4225 = vst.msk [vmem:[#allocation3 + $0x38] sm:$0xff] %vm1442, %v4137
      %4226 = vst.msk [vmem:[#allocation3 + $0x40] sm:$0xff] %vm1442, %v4139
      %4227 = vst.msk [vmem:[#allocation3 + $0x48] sm:$0xff] %vm1442, %v4141
      %4228 = vst.msk [vmem:[#allocation3 + $0x50] sm:$0xff] %vm1442, %v4143
      %4229 = vst.msk [vmem:[#allocation3 + $0x58] sm:$0xff] %vm1442, %v4145
      %4230 = vst.msk [vmem:[#allocation3 + $0x60] sm:$0xff] %vm1442, %v4147
      %4231 = vst.msk [vmem:[#allocation3 + $0x68] sm:$0xff] %vm1442, %v4149
      %4232 = vst.msk [vmem:[#allocation3 + $0x70] sm:$0xff] %vm1442, %v4151
      %4233 = vst.msk [vmem:[#allocation3 + $0x78] sm:$0xff] %vm1442, %v4153
      %4234 = vst.msk [vmem:[#allocation3 + $0x80] sm:$0xff] %vm1442, %v4155
      %4235 = vst.msk [vmem:[#allocation3 + $0x88] sm:$0xff] %vm1442, %v4157
      %4236 = vst.msk [vmem:[#allocation3 + $0x90] sm:$0xff] %vm1442, %v4159
      %4237 = vst.msk [vmem:[#allocation3 + $0x98] sm:$0xff] %vm1442, %v4161
      %4238 = vst.msk [vmem:[#allocation3 + $0xa0] sm:$0xff] %vm1442, %v4163
      %4239 = vst.msk [vmem:[#allocation3 + $0xa8] sm:$0xff] %vm1442, %v4165
      %4240 = vst.msk [vmem:[#allocation3 + $0xb0] sm:$0xff] %vm1442, %v4167
      %4241 = vst.msk [vmem:[#allocation3 + $0xb8] sm:$0xff] %vm1442, %v4169
      %4242 = vst.msk [vmem:[#allocation3 + $0xc0] sm:$0xff] %vm1442, %v4171
      %4243 = vst.msk [vmem:[#allocation3 + $0xc8] sm:$0xff] %vm1442, %v4173
      %4244 = vst.msk [vmem:[#allocation3 + $0xd0] sm:$0xff] %vm1442, %v4175
      %4245 = vst.msk [vmem:[#allocation3 + $0xd8] sm:$0xff] %vm1442, %v4177
      %4246 = vst.msk [vmem:[#allocation3 + $0xe0] sm:$0xff] %vm1442, %v4179
      %4247 = vst.msk [vmem:[#allocation3 + $0xe8] sm:$0xff] %vm1442, %v4181
      %4248 = vst.msk [vmem:[#allocation3 + $0xf0] sm:$0xff] %vm1442, %v4183
      %4249 = vst.msk [vmem:[#allocation3 + $0xf8] sm:$0xff] %vm1442, %v4185
      %v4250 = vld [vmem:[%s511 + $0x1] sm:$0xff]
      %v4251 = vld [vmem:[%s511 + $0x9] sm:$0xff]
      %v4252 = vld [vmem:[%s511 + $0x19] sm:$0xff]
      %v4253 = vld [vmem:[%s511 + $0x21] sm:$0xff]
      %v4254 = vld [vmem:[%s511 + $0x31] sm:$0xff]
      %v4255 = vld [vmem:[%s511 + $0x39] sm:$0xff]
      %v4256 = vld [vmem:[%s511 + $0x49] sm:$0xff]
      %v4257 = vld [vmem:[%s511 + $0x51] sm:$0xff]
      %v4258 = vld [vmem:[%s511 + $0x61] sm:$0xff]
      %v4259 = vld [vmem:[%s511 + $0x69] sm:$0xff]
      %v4260 = vld [vmem:[%s511 + $0x79] sm:$0xff]
      %v4261 = vld [vmem:[%s511 + $0x81] sm:$0xff]
      %v4262 = vld [vmem:[%s511 + $0x91] sm:$0xff]
      %v4263 = vld [vmem:[%s511 + $0x99] sm:$0xff]
      %v4264 = vld [vmem:[%s511 + $0xa9] sm:$0xff]
      %v4265 = vld [vmem:[%s511 + $0xb1] sm:$0xff]
      %v4266 = vld [vmem:[%s511 + $0xc1] sm:$0xff]
      %v4267 = vld [vmem:[%s511 + $0xc9] sm:$0xff]
      %v4268 = vld [vmem:[%s511 + $0xd9] sm:$0xff]
      %v4269 = vld [vmem:[%s511 + $0xe1] sm:$0xff]
      %v4270 = vld [vmem:[%s511 + $0xf1] sm:$0xff]
      %v4271 = vld [vmem:[%s511 + $0xf9] sm:$0xff]
      %v4272 = vld [vmem:[%s511 + $0x109] sm:$0xff]
      %v4273 = vld [vmem:[%s511 + $0x111] sm:$0xff]
      %v4274 = vld [vmem:[%s511 + $0x121] sm:$0xff]
      %v4275 = vld [vmem:[%s511 + $0x129] sm:$0xff]
      %v4276 = vld [vmem:[%s511 + $0x139] sm:$0xff]
      %v4277 = vld [vmem:[%s511 + $0x141] sm:$0xff]
      %v4278 = vld [vmem:[%s511 + $0x151] sm:$0xff]
      %v4279 = vld [vmem:[%s511 + $0x159] sm:$0xff]
      %v4280 = vld [vmem:[%s511 + $0x169] sm:$0xff]
      %v4281 = vld [vmem:[%s511 + $0x171] sm:$0xff]
      %v4282 = vld [vmem:[%s511 + $0x1b1] sm:$0xff]
      %v4283 = vld [vmem:[%s511 + $0x1b9] sm:$0xff]
      %v4284 = vld [vmem:[%s511 + $0x1c9] sm:$0xff]
      %v4285 = vld [vmem:[%s511 + $0x1d1] sm:$0xff]
      %v4286 = vld [vmem:[%s511 + $0x1e1] sm:$0xff]
      %v4287 = vld [vmem:[%s511 + $0x1e9] sm:$0xff]
      %v4288 = vld [vmem:[%s511 + $0x1f9] sm:$0xff]
      %v4289 = vld [vmem:[%s511 + $0x201] sm:$0xff]
      %v4290 = vld [vmem:[%s511 + $0x211] sm:$0xff]
      %v4291 = vld [vmem:[%s511 + $0x219] sm:$0xff]
      %v4292 = vld [vmem:[%s511 + $0x229] sm:$0xff]
      %v4293 = vld [vmem:[%s511 + $0x231] sm:$0xff]
      %v4294 = vld [vmem:[%s511 + $0x241] sm:$0xff]
      %v4295 = vld [vmem:[%s511 + $0x249] sm:$0xff]
      %v4296 = vld [vmem:[%s511 + $0x259] sm:$0xff]
      %v4297 = vld [vmem:[%s511 + $0x261] sm:$0xff]
      %v4298 = vld [vmem:[%s511 + $0x271] sm:$0xff]
      %v4299 = vld [vmem:[%s511 + $0x279] sm:$0xff]
      %v4300 = vld [vmem:[%s511 + $0x289] sm:$0xff]
      %v4301 = vld [vmem:[%s511 + $0x291] sm:$0xff]
      %v4302 = vld [vmem:[%s511 + $0x2a1] sm:$0xff]
      %v4303 = vld [vmem:[%s511 + $0x2a9] sm:$0xff]
      %v4304 = vld [vmem:[%s511 + $0x2b9] sm:$0xff]
      %v4305 = vld [vmem:[%s511 + $0x2c1] sm:$0xff]
      %v4306 = vld [vmem:[%s511 + $0x2d1] sm:$0xff]
      %v4307 = vld [vmem:[%s511 + $0x2d9] sm:$0xff]
      %v4308 = vld [vmem:[%s511 + $0x2e9] sm:$0xff]
      %v4309 = vld [vmem:[%s511 + $0x2f1] sm:$0xff]
      %v4310 = vld [vmem:[%s511 + $0x301] sm:$0xff]
      %v4311 = vld [vmem:[%s511 + $0x309] sm:$0xff]
      %v4312 = vld [vmem:[%s511 + $0x319] sm:$0xff]
      %v4313 = vld [vmem:[%s511 + $0x321] sm:$0xff]
      %v4314 = vpack.c.bf16 %v4251, %v4250
      %v4315 = vpack.c.bf16 %v4253, %v4252
      %v4316 = vpack.c.bf16 %v4255, %v4254
      %v4317 = vpack.c.bf16 %v4257, %v4256
      %v4318 = vpack.c.bf16 %v4259, %v4258
      %v4319 = vpack.c.bf16 %v4261, %v4260
      %v4320 = vpack.c.bf16 %v4263, %v4262
      %v4321 = vpack.c.bf16 %v4265, %v4264
      %v4322 = vpack.c.bf16 %v4267, %v4266
      %v4323 = vpack.c.bf16 %v4269, %v4268
      %v4324 = vpack.c.bf16 %v4271, %v4270
      %v4325 = vpack.c.bf16 %v4273, %v4272
      %v4326 = vpack.c.bf16 %v4275, %v4274
      %v4327 = vpack.c.bf16 %v4277, %v4276
      %v4328 = vpack.c.bf16 %v4279, %v4278
      %v4329 = vpack.c.bf16 %v4281, %v4280
      %v4330 = vpack.c.bf16 %v4283, %v4282
      %v4331 = vpack.c.bf16 %v4285, %v4284
      %v4332 = vpack.c.bf16 %v4287, %v4286
      %v4333 = vpack.c.bf16 %v4289, %v4288
      %v4334 = vpack.c.bf16 %v4291, %v4290
      %v4335 = vpack.c.bf16 %v4293, %v4292
      %v4336 = vpack.c.bf16 %v4295, %v4294
      %v4337 = vpack.c.bf16 %v4297, %v4296
      %v4338 = vpack.c.bf16 %v4299, %v4298
      %v4339 = vpack.c.bf16 %v4301, %v4300
      %v4340 = vpack.c.bf16 %v4303, %v4302
      %v4341 = vpack.c.bf16 %v4305, %v4304
      %v4342 = vpack.c.bf16 %v4307, %v4306
      %v4343 = vpack.c.bf16 %v4309, %v4308
      %v4344 = vpack.c.bf16 %v4311, %v4310
      %v4345 = vpack.c.bf16 %v4313, %v4312
      %4378 = vrot.lane.b32.xlu0 %v4314, 32
      %v4379 = vpop.permute.xlu0 %4378
      %4380 = vrot.lane.b32.xlu0 %v4315, 32
      %v4381 = vpop.permute.xlu0 %4380
      %4382 = vrot.lane.b32.xlu0 %v4316, 32
      %v4383 = vpop.permute.xlu0 %4382
      %4384 = vrot.lane.b32.xlu0 %v4317, 32
      %v4385 = vpop.permute.xlu0 %4384
      %4386 = vrot.lane.b32.xlu0 %v4318, 32
      %v4387 = vpop.permute.xlu0 %4386
      %4388 = vrot.lane.b32.xlu0 %v4319, 32
      %v4389 = vpop.permute.xlu0 %4388
      %4390 = vrot.lane.b32.xlu0 %v4320, 32
      %v4391 = vpop.permute.xlu0 %4390
      %4392 = vrot.lane.b32.xlu0 %v4321, 32
      %v4393 = vpop.permute.xlu0 %4392
      %4394 = vrot.lane.b32.xlu0 %v4322, 32
      %v4395 = vpop.permute.xlu0 %4394
      %4396 = vrot.lane.b32.xlu0 %v4323, 32
      %v4397 = vpop.permute.xlu0 %4396
      %4398 = vrot.lane.b32.xlu0 %v4324, 32
      %v4399 = vpop.permute.xlu0 %4398
      %4400 = vrot.lane.b32.xlu0 %v4325, 32
      %v4401 = vpop.permute.xlu0 %4400
      %4402 = vrot.lane.b32.xlu0 %v4326, 32
      %v4403 = vpop.permute.xlu0 %4402
      %4404 = vrot.lane.b32.xlu0 %v4327, 32
      %v4405 = vpop.permute.xlu0 %4404
      %4406 = vrot.lane.b32.xlu0 %v4328, 32
      %v4407 = vpop.permute.xlu0 %4406
      %4408 = vrot.lane.b32.xlu0 %v4329, 32
      %v4409 = vpop.permute.xlu0 %4408
      %4410 = vrot.lane.b32.xlu0 %v4330, 32
      %v4411 = vpop.permute.xlu0 %4410
      %4412 = vrot.lane.b32.xlu0 %v4331, 32
      %v4413 = vpop.permute.xlu0 %4412
      %4414 = vrot.lane.b32.xlu0 %v4332, 32
      %v4415 = vpop.permute.xlu0 %4414
      %4416 = vrot.lane.b32.xlu0 %v4333, 32
      %v4417 = vpop.permute.xlu0 %4416
      %4418 = vrot.lane.b32.xlu0 %v4334, 32
      %v4419 = vpop.permute.xlu0 %4418
      %4420 = vrot.lane.b32.xlu0 %v4335, 32
      %v4421 = vpop.permute.xlu0 %4420
      %4422 = vrot.lane.b32.xlu0 %v4336, 32
      %v4423 = vpop.permute.xlu0 %4422
      %4424 = vrot.lane.b32.xlu0 %v4337, 32
      %v4425 = vpop.permute.xlu0 %4424
      %4426 = vrot.lane.b32.xlu0 %v4338, 32
      %v4427 = vpop.permute.xlu0 %4426
      %4428 = vrot.lane.b32.xlu0 %v4339, 32
      %v4429 = vpop.permute.xlu0 %4428
      %4430 = vrot.lane.b32.xlu0 %v4340, 32
      %v4431 = vpop.permute.xlu0 %4430
      %4432 = vrot.lane.b32.xlu0 %v4341, 32
      %v4433 = vpop.permute.xlu0 %4432
      %4434 = vrot.lane.b32.xlu0 %v4342, 32
      %v4435 = vpop.permute.xlu0 %4434
      %4436 = vrot.lane.b32.xlu0 %v4343, 32
      %v4437 = vpop.permute.xlu0 %4436
      %4438 = vrot.lane.b32.xlu0 %v4344, 32
      %v4439 = vpop.permute.xlu0 %4438
      %4440 = vrot.lane.b32.xlu0 %v4345, 32
      %v4441 = vpop.permute.xlu0 %4440
      %4474 = vst.msk [vmem:[#allocation3] sm:$0xff] %vm1699, %v4379
      %4475 = vst.msk [vmem:[#allocation3 + $0x8] sm:$0xff] %vm1699, %v4381
      %4476 = vst.msk [vmem:[#allocation3 + $0x10] sm:$0xff] %vm1699, %v4383
      %4477 = vst.msk [vmem:[#allocation3 + $0x18] sm:$0xff] %vm1699, %v4385
      %4478 = vst.msk [vmem:[#allocation3 + $0x20] sm:$0xff] %vm1699, %v4387
      %4479 = vst.msk [vmem:[#allocation3 + $0x28] sm:$0xff] %vm1699, %v4389
      %4480 = vst.msk [vmem:[#allocation3 + $0x30] sm:$0xff] %vm1699, %v4391
      %4481 = vst.msk [vmem:[#allocation3 + $0x38] sm:$0xff] %vm1699, %v4393
      %4482 = vst.msk [vmem:[#allocation3 + $0x40] sm:$0xff] %vm1699, %v4395
      %4483 = vst.msk [vmem:[#allocation3 + $0x48] sm:$0xff] %vm1699, %v4397
      %4484 = vst.msk [vmem:[#allocation3 + $0x50] sm:$0xff] %vm1699, %v4399
      %4485 = vst.msk [vmem:[#allocation3 + $0x58] sm:$0xff] %vm1699, %v4401
      %4486 = vst.msk [vmem:[#allocation3 + $0x60] sm:$0xff] %vm1699, %v4403
      %4487 = vst.msk [vmem:[#allocation3 + $0x68] sm:$0xff] %vm1699, %v4405
      %4488 = vst.msk [vmem:[#allocation3 + $0x70] sm:$0xff] %vm1699, %v4407
      %4489 = vst.msk [vmem:[#allocation3 + $0x78] sm:$0xff] %vm1699, %v4409
      %4490 = vst.msk [vmem:[#allocation3 + $0x80] sm:$0xff] %vm1699, %v4411
      %4491 = vst.msk [vmem:[#allocation3 + $0x88] sm:$0xff] %vm1699, %v4413
      %4492 = vst.msk [vmem:[#allocation3 + $0x90] sm:$0xff] %vm1699, %v4415
      %4493 = vst.msk [vmem:[#allocation3 + $0x98] sm:$0xff] %vm1699, %v4417
      %4494 = vst.msk [vmem:[#allocation3 + $0xa0] sm:$0xff] %vm1699, %v4419
      %4495 = vst.msk [vmem:[#allocation3 + $0xa8] sm:$0xff] %vm1699, %v4421
      %4496 = vst.msk [vmem:[#allocation3 + $0xb0] sm:$0xff] %vm1699, %v4423
      %4497 = vst.msk [vmem:[#allocation3 + $0xb8] sm:$0xff] %vm1699, %v4425
      %4498 = vst.msk [vmem:[#allocation3 + $0xc0] sm:$0xff] %vm1699, %v4427
      %4499 = vst.msk [vmem:[#allocation3 + $0xc8] sm:$0xff] %vm1699, %v4429
      %4500 = vst.msk [vmem:[#allocation3 + $0xd0] sm:$0xff] %vm1699, %v4431
      %4501 = vst.msk [vmem:[#allocation3 + $0xd8] sm:$0xff] %vm1699, %v4433
      %4502 = vst.msk [vmem:[#allocation3 + $0xe0] sm:$0xff] %vm1699, %v4435
      %4503 = vst.msk [vmem:[#allocation3 + $0xe8] sm:$0xff] %vm1699, %v4437
      %4504 = vst.msk [vmem:[#allocation3 + $0xf0] sm:$0xff] %vm1699, %v4439
      %4505 = vst.msk [vmem:[#allocation3 + $0xf8] sm:$0xff] %vm1699, %v4441
      %v4506 = vld [vmem:[%s511 + $0x2] sm:$0xff]
      %v4507 = vld [vmem:[%s511 + $0xa] sm:$0xff]
      %v4508 = vld [vmem:[%s511 + $0x1a] sm:$0xff]
      %v4509 = vld [vmem:[%s511 + $0x22] sm:$0xff]
      %v4510 = vld [vmem:[%s511 + $0x32] sm:$0xff]
      %v4511 = vld [vmem:[%s511 + $0x3a] sm:$0xff]
      %v4512 = vld [vmem:[%s511 + $0x4a] sm:$0xff]
      %v4513 = vld [vmem:[%s511 + $0x52] sm:$0xff]
      %v4514 = vld [vmem:[%s511 + $0x62] sm:$0xff]
      %v4515 = vld [vmem:[%s511 + $0x6a] sm:$0xff]
      %v4516 = vld [vmem:[%s511 + $0x7a] sm:$0xff]
      %v4517 = vld [vmem:[%s511 + $0x82] sm:$0xff]
      %v4518 = vld [vmem:[%s511 + $0x92] sm:$0xff]
      %v4519 = vld [vmem:[%s511 + $0x9a] sm:$0xff]
      %v4520 = vld [vmem:[%s511 + $0xaa] sm:$0xff]
      %v4521 = vld [vmem:[%s511 + $0xb2] sm:$0xff]
      %v4522 = vld [vmem:[%s511 + $0xc2] sm:$0xff]
      %v4523 = vld [vmem:[%s511 + $0xca] sm:$0xff]
      %v4524 = vld [vmem:[%s511 + $0xda] sm:$0xff]
      %v4525 = vld [vmem:[%s511 + $0xe2] sm:$0xff]
      %v4526 = vld [vmem:[%s511 + $0xf2] sm:$0xff]
      %v4527 = vld [vmem:[%s511 + $0xfa] sm:$0xff]
      %v4528 = vld [vmem:[%s511 + $0x10a] sm:$0xff]
      %v4529 = vld [vmem:[%s511 + $0x112] sm:$0xff]
      %v4530 = vld [vmem:[%s511 + $0x122] sm:$0xff]
      %v4531 = vld [vmem:[%s511 + $0x12a] sm:$0xff]
      %v4532 = vld [vmem:[%s511 + $0x13a] sm:$0xff]
      %v4533 = vld [vmem:[%s511 + $0x142] sm:$0xff]
      %v4534 = vld [vmem:[%s511 + $0x152] sm:$0xff]
      %v4535 = vld [vmem:[%s511 + $0x15a] sm:$0xff]
      %v4536 = vld [vmem:[%s511 + $0x16a] sm:$0xff]
      %v4537 = vld [vmem:[%s511 + $0x172] sm:$0xff]
      %v4538 = vld [vmem:[%s511 + $0x1b2] sm:$0xff]
      %v4539 = vld [vmem:[%s511 + $0x1ba] sm:$0xff]
      %v4540 = vld [vmem:[%s511 + $0x1ca] sm:$0xff]
      %v4541 = vld [vmem:[%s511 + $0x1d2] sm:$0xff]
      %v4542 = vld [vmem:[%s511 + $0x1e2] sm:$0xff]
      %v4543 = vld [vmem:[%s511 + $0x1ea] sm:$0xff]
      %v4544 = vld [vmem:[%s511 + $0x1fa] sm:$0xff]
      %v4545 = vld [vmem:[%s511 + $0x202] sm:$0xff]
      %v4546 = vld [vmem:[%s511 + $0x212] sm:$0xff]
      %v4547 = vld [vmem:[%s511 + $0x21a] sm:$0xff]
      %v4548 = vld [vmem:[%s511 + $0x22a] sm:$0xff]
      %v4549 = vld [vmem:[%s511 + $0x232] sm:$0xff]
      %v4550 = vld [vmem:[%s511 + $0x242] sm:$0xff]
      %v4551 = vld [vmem:[%s511 + $0x24a] sm:$0xff]
      %v4552 = vld [vmem:[%s511 + $0x25a] sm:$0xff]
      %v4553 = vld [vmem:[%s511 + $0x262] sm:$0xff]
      %v4554 = vld [vmem:[%s511 + $0x272] sm:$0xff]
      %v4555 = vld [vmem:[%s511 + $0x27a] sm:$0xff]
      %v4556 = vld [vmem:[%s511 + $0x28a] sm:$0xff]
      %v4557 = vld [vmem:[%s511 + $0x292] sm:$0xff]
      %v4558 = vld [vmem:[%s511 + $0x2a2] sm:$0xff]
      %v4559 = vld [vmem:[%s511 + $0x2aa] sm:$0xff]
      %v4560 = vld [vmem:[%s511 + $0x2ba] sm:$0xff]
      %v4561 = vld [vmem:[%s511 + $0x2c2] sm:$0xff]
      %v4562 = vld [vmem:[%s511 + $0x2d2] sm:$0xff]
      %v4563 = vld [vmem:[%s511 + $0x2da] sm:$0xff]
      %v4564 = vld [vmem:[%s511 + $0x2ea] sm:$0xff]
      %v4565 = vld [vmem:[%s511 + $0x2f2] sm:$0xff]
      %v4566 = vld [vmem:[%s511 + $0x302] sm:$0xff]
      %v4567 = vld [vmem:[%s511 + $0x30a] sm:$0xff]
      %v4568 = vld [vmem:[%s511 + $0x31a] sm:$0xff]
      %v4569 = vld [vmem:[%s511 + $0x322] sm:$0xff]
      %v4570 = vpack.c.bf16 %v4507, %v4506
      %v4571 = vpack.c.bf16 %v4509, %v4508
      %v4572 = vpack.c.bf16 %v4511, %v4510
      %v4573 = vpack.c.bf16 %v4513, %v4512
      %v4574 = vpack.c.bf16 %v4515, %v4514
      %v4575 = vpack.c.bf16 %v4517, %v4516
      %v4576 = vpack.c.bf16 %v4519, %v4518
      %v4577 = vpack.c.bf16 %v4521, %v4520
      %v4578 = vpack.c.bf16 %v4523, %v4522
      %v4579 = vpack.c.bf16 %v4525, %v4524
      %v4580 = vpack.c.bf16 %v4527, %v4526
      %v4581 = vpack.c.bf16 %v4529, %v4528
      %v4582 = vpack.c.bf16 %v4531, %v4530
      %v4583 = vpack.c.bf16 %v4533, %v4532
      %v4584 = vpack.c.bf16 %v4535, %v4534
      %v4585 = vpack.c.bf16 %v4537, %v4536
      %v4586 = vpack.c.bf16 %v4539, %v4538
      %v4587 = vpack.c.bf16 %v4541, %v4540
      %v4588 = vpack.c.bf16 %v4543, %v4542
      %v4589 = vpack.c.bf16 %v4545, %v4544
      %v4590 = vpack.c.bf16 %v4547, %v4546
      %v4591 = vpack.c.bf16 %v4549, %v4548
      %v4592 = vpack.c.bf16 %v4551, %v4550
      %v4593 = vpack.c.bf16 %v4553, %v4552
      %v4594 = vpack.c.bf16 %v4555, %v4554
      %v4595 = vpack.c.bf16 %v4557, %v4556
      %v4596 = vpack.c.bf16 %v4559, %v4558
      %v4597 = vpack.c.bf16 %v4561, %v4560
      %v4598 = vpack.c.bf16 %v4563, %v4562
      %v4599 = vpack.c.bf16 %v4565, %v4564
      %v4600 = vpack.c.bf16 %v4567, %v4566
      %v4601 = vpack.c.bf16 %v4569, %v4568
      %4634 = vrot.lane.b32.xlu0 %v4570, 40
      %v4635 = vpop.permute.xlu0 %4634
      %4636 = vrot.lane.b32.xlu0 %v4571, 40
      %v4637 = vpop.permute.xlu0 %4636
      %4638 = vrot.lane.b32.xlu0 %v4572, 40
      %v4639 = vpop.permute.xlu0 %4638
      %4640 = vrot.lane.b32.xlu0 %v4573, 40
      %v4641 = vpop.permute.xlu0 %4640
      %4642 = vrot.lane.b32.xlu0 %v4574, 40
      %v4643 = vpop.permute.xlu0 %4642
      %4644 = vrot.lane.b32.xlu0 %v4575, 40
      %v4645 = vpop.permute.xlu0 %4644
      %4646 = vrot.lane.b32.xlu0 %v4576, 40
      %v4647 = vpop.permute.xlu0 %4646
      %4648 = vrot.lane.b32.xlu0 %v4577, 40
      %v4649 = vpop.permute.xlu0 %4648
      %4650 = vrot.lane.b32.xlu0 %v4578, 40
      %v4651 = vpop.permute.xlu0 %4650
      %4652 = vrot.lane.b32.xlu0 %v4579, 40
      %v4653 = vpop.permute.xlu0 %4652
      %4654 = vrot.lane.b32.xlu0 %v4580, 40
      %v4655 = vpop.permute.xlu0 %4654
      %4656 = vrot.lane.b32.xlu0 %v4581, 40
      %v4657 = vpop.permute.xlu0 %4656
      %4658 = vrot.lane.b32.xlu0 %v4582, 40
      %v4659 = vpop.permute.xlu0 %4658
      %4660 = vrot.lane.b32.xlu0 %v4583, 40
      %v4661 = vpop.permute.xlu0 %4660
      %4662 = vrot.lane.b32.xlu0 %v4584, 40
      %v4663 = vpop.permute.xlu0 %4662
      %4664 = vrot.lane.b32.xlu0 %v4585, 40
      %v4665 = vpop.permute.xlu0 %4664
      %4666 = vrot.lane.b32.xlu0 %v4586, 40
      %v4667 = vpop.permute.xlu0 %4666
      %4668 = vrot.lane.b32.xlu0 %v4587, 40
      %v4669 = vpop.permute.xlu0 %4668
      %4670 = vrot.lane.b32.xlu0 %v4588, 40
      %v4671 = vpop.permute.xlu0 %4670
      %4672 = vrot.lane.b32.xlu0 %v4589, 40
      %v4673 = vpop.permute.xlu0 %4672
      %4674 = vrot.lane.b32.xlu0 %v4590, 40
      %v4675 = vpop.permute.xlu0 %4674
      %4676 = vrot.lane.b32.xlu0 %v4591, 40
      %v4677 = vpop.permute.xlu0 %4676
      %4678 = vrot.lane.b32.xlu0 %v4592, 40
      %v4679 = vpop.permute.xlu0 %4678
      %4680 = vrot.lane.b32.xlu0 %v4593, 40
      %v4681 = vpop.permute.xlu0 %4680
      %4682 = vrot.lane.b32.xlu0 %v4594, 40
      %v4683 = vpop.permute.xlu0 %4682
      %4684 = vrot.lane.b32.xlu0 %v4595, 40
      %v4685 = vpop.permute.xlu0 %4684
      %4686 = vrot.lane.b32.xlu0 %v4596, 40
      %v4687 = vpop.permute.xlu0 %4686
      %4688 = vrot.lane.b32.xlu0 %v4597, 40
      %v4689 = vpop.permute.xlu0 %4688
      %4690 = vrot.lane.b32.xlu0 %v4598, 40
      %v4691 = vpop.permute.xlu0 %4690
      %4692 = vrot.lane.b32.xlu0 %v4599, 40
      %v4693 = vpop.permute.xlu0 %4692
      %4694 = vrot.lane.b32.xlu0 %v4600, 40
      %v4695 = vpop.permute.xlu0 %4694
      %4696 = vrot.lane.b32.xlu0 %v4601, 40
      %v4697 = vpop.permute.xlu0 %4696
      %4730 = vst.msk [vmem:[#allocation3] sm:$0xff] %vm1956, %v4635
      %4731 = vst.msk [vmem:[#allocation3 + $0x8] sm:$0xff] %vm1956, %v4637
      %4732 = vst.msk [vmem:[#allocation3 + $0x10] sm:$0xff] %vm1956, %v4639
      %4733 = vst.msk [vmem:[#allocation3 + $0x18] sm:$0xff] %vm1956, %v4641
      %4734 = vst.msk [vmem:[#allocation3 + $0x20] sm:$0xff] %vm1956, %v4643
      %4735 = vst.msk [vmem:[#allocation3 + $0x28] sm:$0xff] %vm1956, %v4645
      %4736 = vst.msk [vmem:[#allocation3 + $0x30] sm:$0xff] %vm1956, %v4647
      %4737 = vst.msk [vmem:[#allocation3 + $0x38] sm:$0xff] %vm1956, %v4649
      %4738 = vst.msk [vmem:[#allocation3 + $0x40] sm:$0xff] %vm1956, %v4651
      %4739 = vst.msk [vmem:[#allocation3 + $0x48] sm:$0xff] %vm1956, %v4653
      %4740 = vst.msk [vmem:[#allocation3 + $0x50] sm:$0xff] %vm1956, %v4655
      %4741 = vst.msk [vmem:[#allocation3 + $0x58] sm:$0xff] %vm1956, %v4657
      %4742 = vst.msk [vmem:[#allocation3 + $0x60] sm:$0xff] %vm1956, %v4659
      %4743 = vst.msk [vmem:[#allocation3 + $0x68] sm:$0xff] %vm1956, %v4661
      %4744 = vst.msk [vmem:[#allocation3 + $0x70] sm:$0xff] %vm1956, %v4663
      %4745 = vst.msk [vmem:[#allocation3 + $0x78] sm:$0xff] %vm1956, %v4665
      %4746 = vst.msk [vmem:[#allocation3 + $0x80] sm:$0xff] %vm1956, %v4667
      %4747 = vst.msk [vmem:[#allocation3 + $0x88] sm:$0xff] %vm1956, %v4669
      %4748 = vst.msk [vmem:[#allocation3 + $0x90] sm:$0xff] %vm1956, %v4671
      %4749 = vst.msk [vmem:[#allocation3 + $0x98] sm:$0xff] %vm1956, %v4673
      %4750 = vst.msk [vmem:[#allocation3 + $0xa0] sm:$0xff] %vm1956, %v4675
      %4751 = vst.msk [vmem:[#allocation3 + $0xa8] sm:$0xff] %vm1956, %v4677
      %4752 = vst.msk [vmem:[#allocation3 + $0xb0] sm:$0xff] %vm1956, %v4679
      %4753 = vst.msk [vmem:[#allocation3 + $0xb8] sm:$0xff] %vm1956, %v4681
      %4754 = vst.msk [vmem:[#allocation3 + $0xc0] sm:$0xff] %vm1956, %v4683
      %4755 = vst.msk [vmem:[#allocation3 + $0xc8] sm:$0xff] %vm1956, %v4685
      %4756 = vst.msk [vmem:[#allocation3 + $0xd0] sm:$0xff] %vm1956, %v4687
      %4757 = vst.msk [vmem:[#allocation3 + $0xd8] sm:$0xff] %vm1956, %v4689
      %4758 = vst.msk [vmem:[#allocation3 + $0xe0] sm:$0xff] %vm1956, %v4691
      %4759 = vst.msk [vmem:[#allocation3 + $0xe8] sm:$0xff] %vm1956, %v4693
      %4760 = vst.msk [vmem:[#allocation3 + $0xf0] sm:$0xff] %vm1956, %v4695
      %4761 = vst.msk [vmem:[#allocation3 + $0xf8] sm:$0xff] %vm1956, %v4697
      %v4762 = vld [vmem:[%s1989] sm:$0xff]
      %v4763 = vld [vmem:[%s1989 + $0x8] sm:$0xff]
      %v4764 = vld [vmem:[%s1989 + $0x18] sm:$0xff]
      %v4765 = vld [vmem:[%s1989 + $0x20] sm:$0xff]
      %v4766 = vld [vmem:[%s1989 + $0x30] sm:$0xff]
      %v4767 = vld [vmem:[%s1989 + $0x38] sm:$0xff]
      %v4768 = vld [vmem:[%s1989 + $0x48] sm:$0xff]
      %v4769 = vld [vmem:[%s1989 + $0x50] sm:$0xff]
      %v4770 = vld [vmem:[%s1989 + $0x60] sm:$0xff]
      %v4771 = vld [vmem:[%s1989 + $0x68] sm:$0xff]
      %v4772 = vld [vmem:[%s1989 + $0x78] sm:$0xff]
      %v4773 = vld [vmem:[%s1989 + $0x80] sm:$0xff]
      %v4774 = vld [vmem:[%s1989 + $0x90] sm:$0xff]
      %v4775 = vld [vmem:[%s1989 + $0x98] sm:$0xff]
      %v4776 = vld [vmem:[%s1989 + $0xa8] sm:$0xff]
      %v4777 = vld [vmem:[%s1989 + $0xb0] sm:$0xff]
      %v4778 = vld [vmem:[%s1989 + $0xc0] sm:$0xff]
      %v4779 = vld [vmem:[%s1989 + $0xc8] sm:$0xff]
      %v4780 = vld [vmem:[%s1989 + $0xd8] sm:$0xff]
      %v4781 = vld [vmem:[%s1989 + $0xe0] sm:$0xff]
      %v4782 = vld [vmem:[%s1989 + $0xf0] sm:$0xff]
      %v4783 = vld [vmem:[%s1989 + $0xf8] sm:$0xff]
      %v4784 = vld [vmem:[%s1989 + $0x108] sm:$0xff]
      %v4785 = vld [vmem:[%s1989 + $0x110] sm:$0xff]
      %v4786 = vld [vmem:[%s1989 + $0x120] sm:$0xff]
      %v4787 = vld [vmem:[%s1989 + $0x128] sm:$0xff]
      %v4788 = vld [vmem:[%s1989 + $0x138] sm:$0xff]
      %v4789 = vld [vmem:[%s1989 + $0x140] sm:$0xff]
      %v4790 = vld [vmem:[%s1989 + $0x150] sm:$0xff]
      %v4791 = vld [vmem:[%s1989 + $0x158] sm:$0xff]
      %v4792 = vld [vmem:[%s1989 + $0x168] sm:$0xff]
      %v4793 = vld [vmem:[%s1989 + $0x170] sm:$0xff]
      %v4794 = vld [vmem:[%s1989 + $0x1b0] sm:$0xff]
      %v4795 = vld [vmem:[%s1989 + $0x1b8] sm:$0xff]
      %v4796 = vld [vmem:[%s1989 + $0x1c8] sm:$0xff]
      %v4797 = vld [vmem:[%s1989 + $0x1d0] sm:$0xff]
      %v4798 = vld [vmem:[%s1989 + $0x1e0] sm:$0xff]
      %v4799 = vld [vmem:[%s1989 + $0x1e8] sm:$0xff]
      %v4800 = vld [vmem:[%s1989 + $0x1f8] sm:$0xff]
      %v4801 = vld [vmem:[%s1989 + $0x200] sm:$0xff]
      %v4802 = vld [vmem:[%s1989 + $0x210] sm:$0xff]
      %v4803 = vld [vmem:[%s1989 + $0x218] sm:$0xff]
      %v4804 = vld [vmem:[%s1989 + $0x228] sm:$0xff]
      %v4805 = vld [vmem:[%s1989 + $0x230] sm:$0xff]
      %v4806 = vld [vmem:[%s1989 + $0x240] sm:$0xff]
      %v4807 = vld [vmem:[%s1989 + $0x248] sm:$0xff]
      %v4808 = vld [vmem:[%s1989 + $0x258] sm:$0xff]
      %v4809 = vld [vmem:[%s1989 + $0x260] sm:$0xff]
      %v4810 = vld [vmem:[%s1989 + $0x270] sm:$0xff]
      %v4811 = vld [vmem:[%s1989 + $0x278] sm:$0xff]
      %v4812 = vld [vmem:[%s1989 + $0x288] sm:$0xff]
      %v4813 = vld [vmem:[%s1989 + $0x290] sm:$0xff]
      %v4814 = vld [vmem:[%s1989 + $0x2a0] sm:$0xff]
      %v4815 = vld [vmem:[%s1989 + $0x2a8] sm:$0xff]
      %v4816 = vld [vmem:[%s1989 + $0x2b8] sm:$0xff]
      %v4817 = vld [vmem:[%s1989 + $0x2c0] sm:$0xff]
      %v4818 = vld [vmem:[%s1989 + $0x2d0] sm:$0xff]
      %v4819 = vld [vmem:[%s1989 + $0x2d8] sm:$0xff]
      %v4820 = vld [vmem:[%s1989 + $0x2e8] sm:$0xff]
      %v4821 = vld [vmem:[%s1989 + $0x2f0] sm:$0xff]
      %v4822 = vld [vmem:[%s1989 + $0x300] sm:$0xff]
      %v4823 = vld [vmem:[%s1989 + $0x308] sm:$0xff]
      %v4824 = vld [vmem:[%s1989 + $0x318] sm:$0xff]
      %v4825 = vld [vmem:[%s1989 + $0x320] sm:$0xff]
      %v4826 = vpack.c.bf16 %v4763, %v4762
      %v4827 = vpack.c.bf16 %v4765, %v4764
      %v4828 = vpack.c.bf16 %v4767, %v4766
      %v4829 = vpack.c.bf16 %v4769, %v4768
      %v4830 = vpack.c.bf16 %v4771, %v4770
      %v4831 = vpack.c.bf16 %v4773, %v4772
      %v4832 = vpack.c.bf16 %v4775, %v4774
      %v4833 = vpack.c.bf16 %v4777, %v4776
      %v4834 = vpack.c.bf16 %v4779, %v4778
      %v4835 = vpack.c.bf16 %v4781, %v4780
      %v4836 = vpack.c.bf16 %v4783, %v4782
      %v4837 = vpack.c.bf16 %v4785, %v4784
      %v4838 = vpack.c.bf16 %v4787, %v4786
      %v4839 = vpack.c.bf16 %v4789, %v4788
      %v4840 = vpack.c.bf16 %v4791, %v4790
      %v4841 = vpack.c.bf16 %v4793, %v4792
      %v4842 = vpack.c.bf16 %v4795, %v4794
      %v4843 = vpack.c.bf16 %v4797, %v4796
      %v4844 = vpack.c.bf16 %v4799, %v4798
      %v4845 = vpack.c.bf16 %v4801, %v4800
      %v4846 = vpack.c.bf16 %v4803, %v4802
      %v4847 = vpack.c.bf16 %v4805, %v4804
      %v4848 = vpack.c.bf16 %v4807, %v4806
      %v4849 = vpack.c.bf16 %v4809, %v4808
      %v4850 = vpack.c.bf16 %v4811, %v4810
      %v4851 = vpack.c.bf16 %v4813, %v4812
      %v4852 = vpack.c.bf16 %v4815, %v4814
      %v4853 = vpack.c.bf16 %v4817, %v4816
      %v4854 = vpack.c.bf16 %v4819, %v4818
      %v4855 = vpack.c.bf16 %v4821, %v4820
      %v4856 = vpack.c.bf16 %v4823, %v4822
      %v4857 = vpack.c.bf16 %v4825, %v4824
      %4890 = vrot.lane.b32.xlu0 %v4826, 48
      %v4891 = vpop.permute.xlu0 %4890
      %4892 = vrot.lane.b32.xlu0 %v4827, 48
      %v4893 = vpop.permute.xlu0 %4892
      %4894 = vrot.lane.b32.xlu0 %v4828, 48
      %v4895 = vpop.permute.xlu0 %4894
      %4896 = vrot.lane.b32.xlu0 %v4829, 48
      %v4897 = vpop.permute.xlu0 %4896
      %4898 = vrot.lane.b32.xlu0 %v4830, 48
      %v4899 = vpop.permute.xlu0 %4898
      %4900 = vrot.lane.b32.xlu0 %v4831, 48
      %v4901 = vpop.permute.xlu0 %4900
      %4902 = vrot.lane.b32.xlu0 %v4832, 48
      %v4903 = vpop.permute.xlu0 %4902
      %4904 = vrot.lane.b32.xlu0 %v4833, 48
      %v4905 = vpop.permute.xlu0 %4904
      %4906 = vrot.lane.b32.xlu0 %v4834, 48
      %v4907 = vpop.permute.xlu0 %4906
      %4908 = vrot.lane.b32.xlu0 %v4835, 48
      %v4909 = vpop.permute.xlu0 %4908
      %4910 = vrot.lane.b32.xlu0 %v4836, 48
      %v4911 = vpop.permute.xlu0 %4910
      %4912 = vrot.lane.b32.xlu0 %v4837, 48
      %v4913 = vpop.permute.xlu0 %4912
      %4914 = vrot.lane.b32.xlu0 %v4838, 48
      %v4915 = vpop.permute.xlu0 %4914
      %4916 = vrot.lane.b32.xlu0 %v4839, 48
      %v4917 = vpop.permute.xlu0 %4916
      %4918 = vrot.lane.b32.xlu0 %v4840, 48
      %v4919 = vpop.permute.xlu0 %4918
      %4920 = vrot.lane.b32.xlu0 %v4841, 48
      %v4921 = vpop.permute.xlu0 %4920
      %4922 = vrot.lane.b32.xlu0 %v4842, 48
      %v4923 = vpop.permute.xlu0 %4922
      %4924 = vrot.lane.b32.xlu0 %v4843, 48
      %v4925 = vpop.permute.xlu0 %4924
      %4926 = vrot.lane.b32.xlu0 %v4844, 48
      %v4927 = vpop.permute.xlu0 %4926
      %4928 = vrot.lane.b32.xlu0 %v4845, 48
      %v4929 = vpop.permute.xlu0 %4928
      %4930 = vrot.lane.b32.xlu0 %v4846, 48
      %v4931 = vpop.permute.xlu0 %4930
      %4932 = vrot.lane.b32.xlu0 %v4847, 48
      %v4933 = vpop.permute.xlu0 %4932
      %4934 = vrot.lane.b32.xlu0 %v4848, 48
      %v4935 = vpop.permute.xlu0 %4934
      %4936 = vrot.lane.b32.xlu0 %v4849, 48
      %v4937 = vpop.permute.xlu0 %4936
      %4938 = vrot.lane.b32.xlu0 %v4850, 48
      %v4939 = vpop.permute.xlu0 %4938
      %4940 = vrot.lane.b32.xlu0 %v4851, 48
      %v4941 = vpop.permute.xlu0 %4940
      %4942 = vrot.lane.b32.xlu0 %v4852, 48
      %v4943 = vpop.permute.xlu0 %4942
      %4944 = vrot.lane.b32.xlu0 %v4853, 48
      %v4945 = vpop.permute.xlu0 %4944
      %4946 = vrot.lane.b32.xlu0 %v4854, 48
      %v4947 = vpop.permute.xlu0 %4946
      %4948 = vrot.lane.b32.xlu0 %v4855, 48
      %v4949 = vpop.permute.xlu0 %4948
      %4950 = vrot.lane.b32.xlu0 %v4856, 48
      %v4951 = vpop.permute.xlu0 %4950
      %4952 = vrot.lane.b32.xlu0 %v4857, 48
      %v4953 = vpop.permute.xlu0 %4952
      %4986 = vst.msk [vmem:[#allocation3] sm:$0xff] %vm2214, %v4891
      %4987 = vst.msk [vmem:[#allocation3 + $0x8] sm:$0xff] %vm2214, %v4893
      %4988 = vst.msk [vmem:[#allocation3 + $0x10] sm:$0xff] %vm2214, %v4895
      %4989 = vst.msk [vmem:[#allocation3 + $0x18] sm:$0xff] %vm2214, %v4897
      %4990 = vst.msk [vmem:[#allocation3 + $0x20] sm:$0xff] %vm2214, %v4899
      %4991 = vst.msk [vmem:[#allocation3 + $0x28] sm:$0xff] %vm2214, %v4901
      %4992 = vst.msk [vmem:[#allocation3 + $0x30] sm:$0xff] %vm2214, %v4903
      %4993 = vst.msk [vmem:[#allocation3 + $0x38] sm:$0xff] %vm2214, %v4905
      %4994 = vst.msk [vmem:[#allocation3 + $0x40] sm:$0xff] %vm2214, %v4907
      %4995 = vst.msk [vmem:[#allocation3 + $0x48] sm:$0xff] %vm2214, %v4909
      %4996 = vst.msk [vmem:[#allocation3 + $0x50] sm:$0xff] %vm2214, %v4911
      %4997 = vst.msk [vmem:[#allocation3 + $0x58] sm:$0xff] %vm2214, %v4913
      %4998 = vst.msk [vmem:[#allocation3 + $0x60] sm:$0xff] %vm2214, %v4915
      %4999 = vst.msk [vmem:[#allocation3 + $0x68] sm:$0xff] %vm2214, %v4917
      %5000 = vst.msk [vmem:[#allocation3 + $0x70] sm:$0xff] %vm2214, %v4919
      %5001 = vst.msk [vmem:[#allocation3 + $0x78] sm:$0xff] %vm2214, %v4921
      %5002 = vst.msk [vmem:[#allocation3 + $0x80] sm:$0xff] %vm2214, %v4923
      %5003 = vst.msk [vmem:[#allocation3 + $0x88] sm:$0xff] %vm2214, %v4925
      %5004 = vst.msk [vmem:[#allocation3 + $0x90] sm:$0xff] %vm2214, %v4927
      %5005 = vst.msk [vmem:[#allocation3 + $0x98] sm:$0xff] %vm2214, %v4929
      %5006 = vst.msk [vmem:[#allocation3 + $0xa0] sm:$0xff] %vm2214, %v4931
      %5007 = vst.msk [vmem:[#allocation3 + $0xa8] sm:$0xff] %vm2214, %v4933
      %5008 = vst.msk [vmem:[#allocation3 + $0xb0] sm:$0xff] %vm2214, %v4935
      %5009 = vst.msk [vmem:[#allocation3 + $0xb8] sm:$0xff] %vm2214, %v4937
      %5010 = vst.msk [vmem:[#allocation3 + $0xc0] sm:$0xff] %vm2214, %v4939
      %5011 = vst.msk [vmem:[#allocation3 + $0xc8] sm:$0xff] %vm2214, %v4941
      %5012 = vst.msk [vmem:[#allocation3 + $0xd0] sm:$0xff] %vm2214, %v4943
      %5013 = vst.msk [vmem:[#allocation3 + $0xd8] sm:$0xff] %vm2214, %v4945
      %5014 = vst.msk [vmem:[#allocation3 + $0xe0] sm:$0xff] %vm2214, %v4947
      %5015 = vst.msk [vmem:[#allocation3 + $0xe8] sm:$0xff] %vm2214, %v4949
      %5016 = vst.msk [vmem:[#allocation3 + $0xf0] sm:$0xff] %vm2214, %v4951
      %5017 = vst.msk [vmem:[#allocation3 + $0xf8] sm:$0xff] %vm2214, %v4953
      %v5018 = vld [vmem:[%s1989 + $0x1] sm:$0xff]
      %v5019 = vld [vmem:[%s1989 + $0x9] sm:$0xff]
      %v5020 = vld [vmem:[%s1989 + $0x19] sm:$0xff]
      %v5021 = vld [vmem:[%s1989 + $0x21] sm:$0xff]
      %v5022 = vld [vmem:[%s1989 + $0x31] sm:$0xff]
      %v5023 = vld [vmem:[%s1989 + $0x39] sm:$0xff]
      %v5024 = vld [vmem:[%s1989 + $0x49] sm:$0xff]
      %v5025 = vld [vmem:[%s1989 + $0x51] sm:$0xff]
      %v5026 = vld [vmem:[%s1989 + $0x61] sm:$0xff]
      %v5027 = vld [vmem:[%s1989 + $0x69] sm:$0xff]
      %v5028 = vld [vmem:[%s1989 + $0x79] sm:$0xff]
      %v5029 = vld [vmem:[%s1989 + $0x81] sm:$0xff]
      %v5030 = vld [vmem:[%s1989 + $0x91] sm:$0xff]
      %v5031 = vld [vmem:[%s1989 + $0x99] sm:$0xff]
      %v5032 = vld [vmem:[%s1989 + $0xa9] sm:$0xff]
      %v5033 = vld [vmem:[%s1989 + $0xb1] sm:$0xff]
      %v5034 = vld [vmem:[%s1989 + $0xc1] sm:$0xff]
      %v5035 = vld [vmem:[%s1989 + $0xc9] sm:$0xff]
      %v5036 = vld [vmem:[%s1989 + $0xd9] sm:$0xff]
      %v5037 = vld [vmem:[%s1989 + $0xe1] sm:$0xff]
      %v5038 = vld [vmem:[%s1989 + $0xf1] sm:$0xff]
      %v5039 = vld [vmem:[%s1989 + $0xf9] sm:$0xff]
      %v5040 = vld [vmem:[%s1989 + $0x109] sm:$0xff]
      %v5041 = vld [vmem:[%s1989 + $0x111] sm:$0xff]
      %v5042 = vld [vmem:[%s1989 + $0x121] sm:$0xff]
      %v5043 = vld [vmem:[%s1989 + $0x129] sm:$0xff]
      %v5044 = vld [vmem:[%s1989 + $0x139] sm:$0xff]
      %v5045 = vld [vmem:[%s1989 + $0x141] sm:$0xff]
      %v5046 = vld [vmem:[%s1989 + $0x151] sm:$0xff]
      %v5047 = vld [vmem:[%s1989 + $0x159] sm:$0xff]
      %v5048 = vld [vmem:[%s1989 + $0x169] sm:$0xff]
      %v5049 = vld [vmem:[%s1989 + $0x171] sm:$0xff]
      %v5050 = vld [vmem:[%s1989 + $0x1b1] sm:$0xff]
      %v5051 = vld [vmem:[%s1989 + $0x1b9] sm:$0xff]
      %v5052 = vld [vmem:[%s1989 + $0x1c9] sm:$0xff]
      %v5053 = vld [vmem:[%s1989 + $0x1d1] sm:$0xff]
      %v5054 = vld [vmem:[%s1989 + $0x1e1] sm:$0xff]
      %v5055 = vld [vmem:[%s1989 + $0x1e9] sm:$0xff]
      %v5056 = vld [vmem:[%s1989 + $0x1f9] sm:$0xff]
      %v5057 = vld [vmem:[%s1989 + $0x201] sm:$0xff]
      %v5058 = vld [vmem:[%s1989 + $0x211] sm:$0xff]
      %v5059 = vld [vmem:[%s1989 + $0x219] sm:$0xff]
      %v5060 = vld [vmem:[%s1989 + $0x229] sm:$0xff]
      %v5061 = vld [vmem:[%s1989 + $0x231] sm:$0xff]
      %v5062 = vld [vmem:[%s1989 + $0x241] sm:$0xff]
      %v5063 = vld [vmem:[%s1989 + $0x249] sm:$0xff]
      %v5064 = vld [vmem:[%s1989 + $0x259] sm:$0xff]
      %v5065 = vld [vmem:[%s1989 + $0x261] sm:$0xff]
      %v5066 = vld [vmem:[%s1989 + $0x271] sm:$0xff]
      %v5067 = vld [vmem:[%s1989 + $0x279] sm:$0xff]
      %v5068 = vld [vmem:[%s1989 + $0x289] sm:$0xff]
      %v5069 = vld [vmem:[%s1989 + $0x291] sm:$0xff]
      %v5070 = vld [vmem:[%s1989 + $0x2a1] sm:$0xff]
      %v5071 = vld [vmem:[%s1989 + $0x2a9] sm:$0xff]
      %v5072 = vld [vmem:[%s1989 + $0x2b9] sm:$0xff]
      %v5073 = vld [vmem:[%s1989 + $0x2c1] sm:$0xff]
      %v5074 = vld [vmem:[%s1989 + $0x2d1] sm:$0xff]
      %v5075 = vld [vmem:[%s1989 + $0x2d9] sm:$0xff]
      %v5076 = vld [vmem:[%s1989 + $0x2e9] sm:$0xff]
      %v5077 = vld [vmem:[%s1989 + $0x2f1] sm:$0xff]
      %v5078 = vld [vmem:[%s1989 + $0x301] sm:$0xff]
      %v5079 = vld [vmem:[%s1989 + $0x309] sm:$0xff]
      %v5080 = vld [vmem:[%s1989 + $0x319] sm:$0xff]
      %v5081 = vld [vmem:[%s1989 + $0x321] sm:$0xff]
      %v5082 = vpack.c.bf16 %v5019, %v5018
      %v5083 = vpack.c.bf16 %v5021, %v5020
      %v5084 = vpack.c.bf16 %v5023, %v5022
      %v5085 = vpack.c.bf16 %v5025, %v5024
      %v5086 = vpack.c.bf16 %v5027, %v5026
      %v5087 = vpack.c.bf16 %v5029, %v5028
      %v5088 = vpack.c.bf16 %v5031, %v5030
      %v5089 = vpack.c.bf16 %v5033, %v5032
      %v5090 = vpack.c.bf16 %v5035, %v5034
      %v5091 = vpack.c.bf16 %v5037, %v5036
      %v5092 = vpack.c.bf16 %v5039, %v5038
      %v5093 = vpack.c.bf16 %v5041, %v5040
      %v5094 = vpack.c.bf16 %v5043, %v5042
      %v5095 = vpack.c.bf16 %v5045, %v5044
      %v5096 = vpack.c.bf16 %v5047, %v5046
      %v5097 = vpack.c.bf16 %v5049, %v5048
      %v5098 = vpack.c.bf16 %v5051, %v5050
      %v5099 = vpack.c.bf16 %v5053, %v5052
      %v5100 = vpack.c.bf16 %v5055, %v5054
      %v5101 = vpack.c.bf16 %v5057, %v5056
      %v5102 = vpack.c.bf16 %v5059, %v5058
      %v5103 = vpack.c.bf16 %v5061, %v5060
      %v5104 = vpack.c.bf16 %v5063, %v5062
      %v5105 = vpack.c.bf16 %v5065, %v5064
      %v5106 = vpack.c.bf16 %v5067, %v5066
      %v5107 = vpack.c.bf16 %v5069, %v5068
      %v5108 = vpack.c.bf16 %v5071, %v5070
      %v5109 = vpack.c.bf16 %v5073, %v5072
      %v5110 = vpack.c.bf16 %v5075, %v5074
      %v5111 = vpack.c.bf16 %v5077, %v5076
      %v5112 = vpack.c.bf16 %v5079, %v5078
      %v5113 = vpack.c.bf16 %v5081, %v5080
      %5146 = vrot.lane.b32.xlu0 %v5082, 56
      %v5147 = vpop.permute.xlu0 %5146
      %5148 = vrot.lane.b32.xlu0 %v5083, 56
      %v5149 = vpop.permute.xlu0 %5148
      %5150 = vrot.lane.b32.xlu0 %v5084, 56
      %v5151 = vpop.permute.xlu0 %5150
      %5152 = vrot.lane.b32.xlu0 %v5085, 56
      %v5153 = vpop.permute.xlu0 %5152
      %5154 = vrot.lane.b32.xlu0 %v5086, 56
      %v5155 = vpop.permute.xlu0 %5154
      %5156 = vrot.lane.b32.xlu0 %v5087, 56
      %v5157 = vpop.permute.xlu0 %5156
      %5158 = vrot.lane.b32.xlu0 %v5088, 56
      %v5159 = vpop.permute.xlu0 %5158
      %5160 = vrot.lane.b32.xlu0 %v5089, 56
      %v5161 = vpop.permute.xlu0 %5160
      %5162 = vrot.lane.b32.xlu0 %v5090, 56
      %v5163 = vpop.permute.xlu0 %5162
      %5164 = vrot.lane.b32.xlu0 %v5091, 56
      %v5165 = vpop.permute.xlu0 %5164
      %5166 = vrot.lane.b32.xlu0 %v5092, 56
      %v5167 = vpop.permute.xlu0 %5166
      %5168 = vrot.lane.b32.xlu0 %v5093, 56
      %v5169 = vpop.permute.xlu0 %5168
      %5170 = vrot.lane.b32.xlu0 %v5094, 56
      %v5171 = vpop.permute.xlu0 %5170
      %5172 = vrot.lane.b32.xlu0 %v5095, 56
      %v5173 = vpop.permute.xlu0 %5172
      %5174 = vrot.lane.b32.xlu0 %v5096, 56
      %v5175 = vpop.permute.xlu0 %5174
      %5176 = vrot.lane.b32.xlu0 %v5097, 56
      %v5177 = vpop.permute.xlu0 %5176
      %5178 = vrot.lane.b32.xlu0 %v5098, 56
      %v5179 = vpop.permute.xlu0 %5178
      %5180 = vrot.lane.b32.xlu0 %v5099, 56
      %v5181 = vpop.permute.xlu0 %5180
      %5182 = vrot.lane.b32.xlu0 %v5100, 56
      %v5183 = vpop.permute.xlu0 %5182
      %5184 = vrot.lane.b32.xlu0 %v5101, 56
      %v5185 = vpop.permute.xlu0 %5184
      %5186 = vrot.lane.b32.xlu0 %v5102, 56
      %v5187 = vpop.permute.xlu0 %5186
      %5188 = vrot.lane.b32.xlu0 %v5103, 56
      %v5189 = vpop.permute.xlu0 %5188
      %5190 = vrot.lane.b32.xlu0 %v5104, 56
      %v5191 = vpop.permute.xlu0 %5190
      %5192 = vrot.lane.b32.xlu0 %v5105, 56
      %v5193 = vpop.permute.xlu0 %5192
      %5194 = vrot.lane.b32.xlu0 %v5106, 56
      %v5195 = vpop.permute.xlu0 %5194
      %5196 = vrot.lane.b32.xlu0 %v5107, 56
      %v5197 = vpop.permute.xlu0 %5196
      %5198 = vrot.lane.b32.xlu0 %v5108, 56
      %v5199 = vpop.permute.xlu0 %5198
      %5200 = vrot.lane.b32.xlu0 %v5109, 56
      %v5201 = vpop.permute.xlu0 %5200
      %5202 = vrot.lane.b32.xlu0 %v5110, 56
      %v5203 = vpop.permute.xlu0 %5202
      %5204 = vrot.lane.b32.xlu0 %v5111, 56
      %v5205 = vpop.permute.xlu0 %5204
      %5206 = vrot.lane.b32.xlu0 %v5112, 56
      %v5207 = vpop.permute.xlu0 %5206
      %5208 = vrot.lane.b32.xlu0 %v5113, 56
      %v5209 = vpop.permute.xlu0 %5208
      %5242 = vst.msk [vmem:[#allocation3] sm:$0xff] %vm2471, %v5147
      %5243 = vst.msk [vmem:[#allocation3 + $0x8] sm:$0xff] %vm2471, %v5149
      %5244 = vst.msk [vmem:[#allocation3 + $0x10] sm:$0xff] %vm2471, %v5151
      %5245 = vst.msk [vmem:[#allocation3 + $0x18] sm:$0xff] %vm2471, %v5153
      %5246 = vst.msk [vmem:[#allocation3 + $0x20] sm:$0xff] %vm2471, %v5155
      %5247 = vst.msk [vmem:[#allocation3 + $0x28] sm:$0xff] %vm2471, %v5157
      %5248 = vst.msk [vmem:[#allocation3 + $0x30] sm:$0xff] %vm2471, %v5159
      %5249 = vst.msk [vmem:[#allocation3 + $0x38] sm:$0xff] %vm2471, %v5161
      %5250 = vst.msk [vmem:[#allocation3 + $0x40] sm:$0xff] %vm2471, %v5163
      %5251 = vst.msk [vmem:[#allocation3 + $0x48] sm:$0xff] %vm2471, %v5165
      %5252 = vst.msk [vmem:[#allocation3 + $0x50] sm:$0xff] %vm2471, %v5167
      %5253 = vst.msk [vmem:[#allocation3 + $0x58] sm:$0xff] %vm2471, %v5169
      %5254 = vst.msk [vmem:[#allocation3 + $0x60] sm:$0xff] %vm2471, %v5171
      %5255 = vst.msk [vmem:[#allocation3 + $0x68] sm:$0xff] %vm2471, %v5173
      %5256 = vst.msk [vmem:[#allocation3 + $0x70] sm:$0xff] %vm2471, %v5175
      %5257 = vst.msk [vmem:[#allocation3 + $0x78] sm:$0xff] %vm2471, %v5177
      %5258 = vst.msk [vmem:[#allocation3 + $0x80] sm:$0xff] %vm2471, %v5179
      %5259 = vst.msk [vmem:[#allocation3 + $0x88] sm:$0xff] %vm2471, %v5181
      %5260 = vst.msk [vmem:[#allocation3 + $0x90] sm:$0xff] %vm2471, %v5183
      %5261 = vst.msk [vmem:[#allocation3 + $0x98] sm:$0xff] %vm2471, %v5185
      %5262 = vst.msk [vmem:[#allocation3 + $0xa0] sm:$0xff] %vm2471, %v5187
      %5263 = vst.msk [vmem:[#allocation3 + $0xa8] sm:$0xff] %vm2471, %v5189
      %5264 = vst.msk [vmem:[#allocation3 + $0xb0] sm:$0xff] %vm2471, %v5191
      %5265 = vst.msk [vmem:[#allocation3 + $0xb8] sm:$0xff] %vm2471, %v5193
      %5266 = vst.msk [vmem:[#allocation3 + $0xc0] sm:$0xff] %vm2471, %v5195
      %5267 = vst.msk [vmem:[#allocation3 + $0xc8] sm:$0xff] %vm2471, %v5197
      %5268 = vst.msk [vmem:[#allocation3 + $0xd0] sm:$0xff] %vm2471, %v5199
      %5269 = vst.msk [vmem:[#allocation3 + $0xd8] sm:$0xff] %vm2471, %v5201
      %5270 = vst.msk [vmem:[#allocation3 + $0xe0] sm:$0xff] %vm2471, %v5203
      %5271 = vst.msk [vmem:[#allocation3 + $0xe8] sm:$0xff] %vm2471, %v5205
      %5272 = vst.msk [vmem:[#allocation3 + $0xf0] sm:$0xff] %vm2471, %v5207
      %5273 = vst.msk [vmem:[#allocation3 + $0xf8] sm:$0xff] %vm2471, %v5209
      %v5274 = vld [vmem:[%s1989 + $0x2] sm:$0xff]
      %v5275 = vld [vmem:[%s1989 + $0xa] sm:$0xff]
      %v5276 = vld [vmem:[%s1989 + $0x1a] sm:$0xff]
      %v5277 = vld [vmem:[%s1989 + $0x22] sm:$0xff]
      %v5278 = vld [vmem:[%s1989 + $0x32] sm:$0xff]
      %v5279 = vld [vmem:[%s1989 + $0x3a] sm:$0xff]
      %v5280 = vld [vmem:[%s1989 + $0x4a] sm:$0xff]
      %v5281 = vld [vmem:[%s1989 + $0x52] sm:$0xff]
      %v5282 = vld [vmem:[%s1989 + $0x62] sm:$0xff]
      %v5283 = vld [vmem:[%s1989 + $0x6a] sm:$0xff]
      %v5284 = vld [vmem:[%s1989 + $0x7a] sm:$0xff]
      %v5285 = vld [vmem:[%s1989 + $0x82] sm:$0xff]
      %v5286 = vld [vmem:[%s1989 + $0x92] sm:$0xff]
      %v5287 = vld [vmem:[%s1989 + $0x9a] sm:$0xff]
      %v5288 = vld [vmem:[%s1989 + $0xaa] sm:$0xff]
      %v5289 = vld [vmem:[%s1989 + $0xb2] sm:$0xff]
      %v5290 = vld [vmem:[%s1989 + $0xc2] sm:$0xff]
      %v5291 = vld [vmem:[%s1989 + $0xca] sm:$0xff]
      %v5292 = vld [vmem:[%s1989 + $0xda] sm:$0xff]
      %v5293 = vld [vmem:[%s1989 + $0xe2] sm:$0xff]
      %v5294 = vld [vmem:[%s1989 + $0xf2] sm:$0xff]
      %v5295 = vld [vmem:[%s1989 + $0xfa] sm:$0xff]
      %v5296 = vld [vmem:[%s1989 + $0x10a] sm:$0xff]
      %v5297 = vld [vmem:[%s1989 + $0x112] sm:$0xff]
      %v5298 = vld [vmem:[%s1989 + $0x122] sm:$0xff]
      %v5299 = vld [vmem:[%s1989 + $0x12a] sm:$0xff]
      %v5300 = vld [vmem:[%s1989 + $0x13a] sm:$0xff]
      %v5301 = vld [vmem:[%s1989 + $0x142] sm:$0xff]
      %v5302 = vld [vmem:[%s1989 + $0x152] sm:$0xff]
      %v5303 = vld [vmem:[%s1989 + $0x15a] sm:$0xff]
      %v5304 = vld [vmem:[%s1989 + $0x16a] sm:$0xff]
      %v5305 = vld [vmem:[%s1989 + $0x172] sm:$0xff]
      %v5306 = vld [vmem:[%s1989 + $0x1b2] sm:$0xff]
      %v5307 = vld [vmem:[%s1989 + $0x1ba] sm:$0xff]
      %v5308 = vld [vmem:[%s1989 + $0x1ca] sm:$0xff]
      %v5309 = vld [vmem:[%s1989 + $0x1d2] sm:$0xff]
      %v5310 = vld [vmem:[%s1989 + $0x1e2] sm:$0xff]
      %v5311 = vld [vmem:[%s1989 + $0x1ea] sm:$0xff]
      %v5312 = vld [vmem:[%s1989 + $0x1fa] sm:$0xff]
      %v5313 = vld [vmem:[%s1989 + $0x202] sm:$0xff]
      %v5314 = vld [vmem:[%s1989 + $0x212] sm:$0xff]
      %v5315 = vld [vmem:[%s1989 + $0x21a] sm:$0xff]
      %v5316 = vld [vmem:[%s1989 + $0x22a] sm:$0xff]
      %v5317 = vld [vmem:[%s1989 + $0x232] sm:$0xff]
      %v5318 = vld [vmem:[%s1989 + $0x242] sm:$0xff]
      %v5319 = vld [vmem:[%s1989 + $0x24a] sm:$0xff]
      %v5320 = vld [vmem:[%s1989 + $0x25a] sm:$0xff]
      %v5321 = vld [vmem:[%s1989 + $0x262] sm:$0xff]
      %v5322 = vld [vmem:[%s1989 + $0x272] sm:$0xff]
      %v5323 = vld [vmem:[%s1989 + $0x27a] sm:$0xff]
      %v5324 = vld [vmem:[%s1989 + $0x28a] sm:$0xff]
      %v5325 = vld [vmem:[%s1989 + $0x292] sm:$0xff]
      %v5326 = vld [vmem:[%s1989 + $0x2a2] sm:$0xff]
      %v5327 = vld [vmem:[%s1989 + $0x2aa] sm:$0xff]
      %v5328 = vld [vmem:[%s1989 + $0x2ba] sm:$0xff]
      %v5329 = vld [vmem:[%s1989 + $0x2c2] sm:$0xff]
      %v5330 = vld [vmem:[%s1989 + $0x2d2] sm:$0xff]
      %v5331 = vld [vmem:[%s1989 + $0x2da] sm:$0xff]
      %v5332 = vld [vmem:[%s1989 + $0x2ea] sm:$0xff]
      %v5333 = vld [vmem:[%s1989 + $0x2f2] sm:$0xff]
      %v5334 = vld [vmem:[%s1989 + $0x302] sm:$0xff]
      %v5335 = vld [vmem:[%s1989 + $0x30a] sm:$0xff]
      %v5336 = vld [vmem:[%s1989 + $0x31a] sm:$0xff]
      %v5337 = vld [vmem:[%s1989 + $0x322] sm:$0xff]
      %v5338 = vpack.c.bf16 %v5275, %v5274
      %v5339 = vpack.c.bf16 %v5277, %v5276
      %v5340 = vpack.c.bf16 %v5279, %v5278
      %v5341 = vpack.c.bf16 %v5281, %v5280
      %v5342 = vpack.c.bf16 %v5283, %v5282
      %v5343 = vpack.c.bf16 %v5285, %v5284
      %v5344 = vpack.c.bf16 %v5287, %v5286
      %v5345 = vpack.c.bf16 %v5289, %v5288
      %v5346 = vpack.c.bf16 %v5291, %v5290
      %v5347 = vpack.c.bf16 %v5293, %v5292
      %v5348 = vpack.c.bf16 %v5295, %v5294
      %v5349 = vpack.c.bf16 %v5297, %v5296
      %v5350 = vpack.c.bf16 %v5299, %v5298
      %v5351 = vpack.c.bf16 %v5301, %v5300
      %v5352 = vpack.c.bf16 %v5303, %v5302
      %v5353 = vpack.c.bf16 %v5305, %v5304
      %v5354 = vpack.c.bf16 %v5307, %v5306
      %v5355 = vpack.c.bf16 %v5309, %v5308
      %v5356 = vpack.c.bf16 %v5311, %v5310
      %v5357 = vpack.c.bf16 %v5313, %v5312
      %v5358 = vpack.c.bf16 %v5315, %v5314
      %v5359 = vpack.c.bf16 %v5317, %v5316
      %v5360 = vpack.c.bf16 %v5319, %v5318
      %v5361 = vpack.c.bf16 %v5321, %v5320
      %v5362 = vpack.c.bf16 %v5323, %v5322
      %v5363 = vpack.c.bf16 %v5325, %v5324
      %v5364 = vpack.c.bf16 %v5327, %v5326
      %v5365 = vpack.c.bf16 %v5329, %v5328
      %v5366 = vpack.c.bf16 %v5331, %v5330
      %v5367 = vpack.c.bf16 %v5333, %v5332
      %v5368 = vpack.c.bf16 %v5335, %v5334
      %v5369 = vpack.c.bf16 %v5337, %v5336
      %5402 = vrot.lane.b32.xlu0 %v5338, 64
      %v5403 = vpop.permute.xlu0 %5402
      %5404 = vrot.lane.b32.xlu0 %v5339, 64
      %v5405 = vpop.permute.xlu0 %5404
      %5406 = vrot.lane.b32.xlu0 %v5340, 64
      %v5407 = vpop.permute.xlu0 %5406
      %5408 = vrot.lane.b32.xlu0 %v5341, 64
      %v5409 = vpop.permute.xlu0 %5408
      %5410 = vrot.lane.b32.xlu0 %v5342, 64
      %v5411 = vpop.permute.xlu0 %5410
      %5412 = vrot.lane.b32.xlu0 %v5343, 64
      %v5413 = vpop.permute.xlu0 %5412
      %5414 = vrot.lane.b32.xlu0 %v5344, 64
      %v5415 = vpop.permute.xlu0 %5414
      %5416 = vrot.lane.b32.xlu0 %v5345, 64
      %v5417 = vpop.permute.xlu0 %5416
      %5418 = vrot.lane.b32.xlu0 %v5346, 64
      %v5419 = vpop.permute.xlu0 %5418
      %5420 = vrot.lane.b32.xlu0 %v5347, 64
      %v5421 = vpop.permute.xlu0 %5420
      %5422 = vrot.lane.b32.xlu0 %v5348, 64
      %v5423 = vpop.permute.xlu0 %5422
      %5424 = vrot.lane.b32.xlu0 %v5349, 64
      %v5425 = vpop.permute.xlu0 %5424
      %5426 = vrot.lane.b32.xlu0 %v5350, 64
      %v5427 = vpop.permute.xlu0 %5426
      %5428 = vrot.lane.b32.xlu0 %v5351, 64
      %v5429 = vpop.permute.xlu0 %5428
      %5430 = vrot.lane.b32.xlu0 %v5352, 64
      %v5431 = vpop.permute.xlu0 %5430
      %5432 = vrot.lane.b32.xlu0 %v5353, 64
      %v5433 = vpop.permute.xlu0 %5432
      %5434 = vrot.lane.b32.xlu0 %v5354, 64
      %v5435 = vpop.permute.xlu0 %5434
      %5436 = vrot.lane.b32.xlu0 %v5355, 64
      %v5437 = vpop.permute.xlu0 %5436
      %5438 = vrot.lane.b32.xlu0 %v5356, 64
      %v5439 = vpop.permute.xlu0 %5438
      %5440 = vrot.lane.b32.xlu0 %v5357, 64
      %v5441 = vpop.permute.xlu0 %5440
      %5442 = vrot.lane.b32.xlu0 %v5358, 64
      %v5443 = vpop.permute.xlu0 %5442
      %5444 = vrot.lane.b32.xlu0 %v5359, 64
      %v5445 = vpop.permute.xlu0 %5444
      %5446 = vrot.lane.b32.xlu0 %v5360, 64
      %v5447 = vpop.permute.xlu0 %5446
      %5448 = vrot.lane.b32.xlu0 %v5361, 64
      %v5449 = vpop.permute.xlu0 %5448
      %5450 = vrot.lane.b32.xlu0 %v5362, 64
      %v5451 = vpop.permute.xlu0 %5450
      %5452 = vrot.lane.b32.xlu0 %v5363, 64
      %v5453 = vpop.permute.xlu0 %5452
      %5454 = vrot.lane.b32.xlu0 %v5364, 64
      %v5455 = vpop.permute.xlu0 %5454
      %5456 = vrot.lane.b32.xlu0 %v5365, 64
      %v5457 = vpop.permute.xlu0 %5456
      %5458 = vrot.lane.b32.xlu0 %v5366, 64
      %v5459 = vpop.permute.xlu0 %5458
      %5460 = vrot.lane.b32.xlu0 %v5367, 64
      %v5461 = vpop.permute.xlu0 %5460
      %5462 = vrot.lane.b32.xlu0 %v5368, 64
      %v5463 = vpop.permute.xlu0 %5462
      %5464 = vrot.lane.b32.xlu0 %v5369, 64
      %v5465 = vpop.permute.xlu0 %5464
      %5498 = vst.msk [vmem:[#allocation3] sm:$0xff] %vm2728, %v5403
      %5499 = vst.msk [vmem:[#allocation3 + $0x8] sm:$0xff] %vm2728, %v5405
      %5500 = vst.msk [vmem:[#allocation3 + $0x10] sm:$0xff] %vm2728, %v5407
      %5501 = vst.msk [vmem:[#allocation3 + $0x18] sm:$0xff] %vm2728, %v5409
      %5502 = vst.msk [vmem:[#allocation3 + $0x20] sm:$0xff] %vm2728, %v5411
      %5503 = vst.msk [vmem:[#allocation3 + $0x28] sm:$0xff] %vm2728, %v5413
      %5504 = vst.msk [vmem:[#allocation3 + $0x30] sm:$0xff] %vm2728, %v5415
      %5505 = vst.msk [vmem:[#allocation3 + $0x38] sm:$0xff] %vm2728, %v5417
      %5506 = vst.msk [vmem:[#allocation3 + $0x40] sm:$0xff] %vm2728, %v5419
      %5507 = vst.msk [vmem:[#allocation3 + $0x48] sm:$0xff] %vm2728, %v5421
      %5508 = vst.msk [vmem:[#allocation3 + $0x50] sm:$0xff] %vm2728, %v5423
      %5509 = vst.msk [vmem:[#allocation3 + $0x58] sm:$0xff] %vm2728, %v5425
      %5510 = vst.msk [vmem:[#allocation3 + $0x60] sm:$0xff] %vm2728, %v5427
      %5511 = vst.msk [vmem:[#allocation3 + $0x68] sm:$0xff] %vm2728, %v5429
      %5512 = vst.msk [vmem:[#allocation3 + $0x70] sm:$0xff] %vm2728, %v5431
      %5513 = vst.msk [vmem:[#allocation3 + $0x78] sm:$0xff] %vm2728, %v5433
      %5514 = vst.msk [vmem:[#allocation3 + $0x80] sm:$0xff] %vm2728, %v5435
      %5515 = vst.msk [vmem:[#allocation3 + $0x88] sm:$0xff] %vm2728, %v5437
      %5516 = vst.msk [vmem:[#allocation3 + $0x90] sm:$0xff] %vm2728, %v5439
      %5517 = vst.msk [vmem:[#allocation3 + $0x98] sm:$0xff] %vm2728, %v5441
      %5518 = vst.msk [vmem:[#allocation3 + $0xa0] sm:$0xff] %vm2728, %v5443
      %5519 = vst.msk [vmem:[#allocation3 + $0xa8] sm:$0xff] %vm2728, %v5445
      %5520 = vst.msk [vmem:[#allocation3 + $0xb0] sm:$0xff] %vm2728, %v5447
      %5521 = vst.msk [vmem:[#allocation3 + $0xb8] sm:$0xff] %vm2728, %v5449
      %5522 = vst.msk [vmem:[#allocation3 + $0xc0] sm:$0xff] %vm2728, %v5451
      %5523 = vst.msk [vmem:[#allocation3 + $0xc8] sm:$0xff] %vm2728, %v5453
      %5524 = vst.msk [vmem:[#allocation3 + $0xd0] sm:$0xff] %vm2728, %v5455
      %5525 = vst.msk [vmem:[#allocation3 + $0xd8] sm:$0xff] %vm2728, %v5457
      %5526 = vst.msk [vmem:[#allocation3 + $0xe0] sm:$0xff] %vm2728, %v5459
      %5527 = vst.msk [vmem:[#allocation3 + $0xe8] sm:$0xff] %vm2728, %v5461
      %5528 = vst.msk [vmem:[#allocation3 + $0xf0] sm:$0xff] %vm2728, %v5463
      %5529 = vst.msk [vmem:[#allocation3 + $0xf8] sm:$0xff] %vm2728, %v5465
      %v5530 = vld [vmem:[#allocation3] sm:$0xff]
      %v5531 = vld [vmem:[#allocation3 + $0x8] sm:$0xff]
      %v5532 = vld [vmem:[#allocation3 + $0x10] sm:$0xff]
      %v5533 = vld [vmem:[#allocation3 + $0x18] sm:$0xff]
      %v5534 = vld [vmem:[#allocation3 + $0x20] sm:$0xff]
      %v5535 = vld [vmem:[#allocation3 + $0x28] sm:$0xff]
      %v5536 = vld [vmem:[#allocation3 + $0x30] sm:$0xff]
      %v5537 = vld [vmem:[#allocation3 + $0x38] sm:$0xff]
      %v5538 = vld [vmem:[#allocation3 + $0x40] sm:$0xff]
      %v5539 = vld [vmem:[#allocation3 + $0x48] sm:$0xff]
      %v5540 = vld [vmem:[#allocation3 + $0x50] sm:$0xff]
      %v5541 = vld [vmem:[#allocation3 + $0x58] sm:$0xff]
      %v5542 = vld [vmem:[#allocation3 + $0x60] sm:$0xff]
      %v5543 = vld [vmem:[#allocation3 + $0x68] sm:$0xff]
      %v5544 = vld [vmem:[#allocation3 + $0x70] sm:$0xff]
      %v5545 = vld [vmem:[#allocation3 + $0x78] sm:$0xff]
      %v5546 = vld [vmem:[#allocation3 + $0x80] sm:$0xff]
      %v5547 = vld [vmem:[#allocation3 + $0x88] sm:$0xff]
      %v5548 = vld [vmem:[#allocation3 + $0x90] sm:$0xff]
      %v5549 = vld [vmem:[#allocation3 + $0x98] sm:$0xff]
      %v5550 = vld [vmem:[#allocation3 + $0xa0] sm:$0xff]
      %v5551 = vld [vmem:[#allocation3 + $0xa8] sm:$0xff]
      %v5552 = vld [vmem:[#allocation3 + $0xb0] sm:$0xff]
      %v5553 = vld [vmem:[#allocation3 + $0xb8] sm:$0xff]
      %v5554 = vld [vmem:[#allocation3 + $0xc0] sm:$0xff]
      %v5555 = vld [vmem:[#allocation3 + $0xc8] sm:$0xff]
      %v5556 = vld [vmem:[#allocation3 + $0xd0] sm:$0xff]
      %v5557 = vld [vmem:[#allocation3 + $0xd8] sm:$0xff]
      %v5558 = vld [vmem:[#allocation3 + $0xe0] sm:$0xff]
      %v5559 = vld [vmem:[#allocation3 + $0xe8] sm:$0xff]
      %v5560 = vld [vmem:[#allocation3 + $0xf0] sm:$0xff]
      %v5561 = vld [vmem:[#allocation3 + $0xf8] sm:$0xff]
      %v5562 = vld [vmem:[%s3] sm:$0xf]
      %v5563 = vld [vmem:[%s3 + $0x4] sm:$0xf]
      %v5564 = vld [vmem:[%s3 + $0x8] sm:$0xf]
      %v5565 = vld [vmem:[%s3 + $0xc] sm:$0xf]
      %v5566 = vld [vmem:[%s3 + $0x10] sm:$0xf]
      %v5567 = vld [vmem:[%s3 + $0x14] sm:$0xf]
      %v5568 = vld [vmem:[%s3 + $0x18] sm:$0xf]
      %v5569 = vld [vmem:[%s3 + $0x1c] sm:$0xf]
      %v5570 = vld [vmem:[%s3 + $0x20] sm:$0xf]
      %v5571 = vld [vmem:[%s4] sm:$0x1]
      %v5573 = vlaneseq
      %v5574 = vshrl.u32 %v5573, 7
      %v5575 = vsub.s32 0, %v5574
      %v5576 = vrot.slane %v5571, %v5575
      %v5587 = vunpack.c.l.b16 %v5562
      %v5588 = vunpack.c.l.b16 %v5563
      %v5589 = vunpack.c.l.b16 %v5564
      %v5590 = vunpack.c.l.b16 %v5565
      %v5591 = vunpack.c.l.b16 %v5566
      %v5592 = vunpack.c.l.b16 %v5567
      %v5593 = vunpack.c.l.b16 %v5568
      %v5594 = vunpack.c.l.b16 %v5569
      %v5595 = vunpack.c.l.b16 %v5570
      %v5596 = vpack.c.b16 %v5588, %v5587
      %v5597 = vpack.c.b16 %v5590, %v5589
      %v5598 = vpack.c.b16 %v5592, %v5591
      %v5599 = vpack.c.b16 %v5594, %v5593
      %v5600 = vpack.c.b16 %v5595, %v5595
      %v5606 = vsel %vm2836, %v5530, 0
      %v5609 = vsel %vm2836, %v5531, 0
      %v5612 = vsel %vm2836, %v5532, 0
      %v5615 = vsel %vm2836, %v5533, 0
      %v5618 = vsel %vm2836, %v5534, 0
      %v5621 = vsel %vm2836, %v5535, 0
      %v5624 = vsel %vm2836, %v5536, 0
      %v5627 = vsel %vm2836, %v5537, 0
      %v5630 = vsel %vm2836, %v5538, 0
      %v5633 = vsel %vm2836, %v5539, 0
      %v5636 = vsel %vm2836, %v5540, 0
      %v5639 = vsel %vm2836, %v5541, 0
      %v5642 = vsel %vm2836, %v5542, 0
      %v5645 = vsel %vm2836, %v5543, 0
      %v5648 = vsel %vm2836, %v5544, 0
      %v5651 = vsel %vm2836, %v5545, 0
      %v5654 = vsel %vm2836, %v5546, 0
      %v5657 = vsel %vm2836, %v5547, 0
      %v5660 = vsel %vm2836, %v5548, 0
      %v5663 = vsel %vm2836, %v5549, 0
      %v5666 = vsel %vm2836, %v5550, 0
      %v5669 = vsel %vm2836, %v5551, 0
      %v5672 = vsel %vm2836, %v5552, 0
      %v5675 = vsel %vm2836, %v5553, 0
      %v5678 = vsel %vm2836, %v5554, 0
      %v5681 = vsel %vm2836, %v5555, 0
      %v5684 = vsel %vm2836, %v5556, 0
      %v5687 = vsel %vm2836, %v5557, 0
      %v5690 = vsel %vm2836, %v5558, 0
      %v5693 = vsel %vm2836, %v5559, 0
      %v5696 = vsel %vm2836, %v5560, 0
      %v5699 = vsel %vm2836, %v5561, 0
      %v5702 = vsel %vm2933, %v5600, 0
      %5704 = vmatprep.subr.bf16.mxu0 0
      %5705 = vmatpush1.bf16.msra.mxu0 %v5596
      %5706 = vmatprep.subr.bf16.mxu0 0
      %5707 = vmatpush1.bf16.msra.mxu0 %v5597
      %5708 = vmatprep.subr.bf16.mxu0 0
      %5709 = vmatpush1.bf16.msra.mxu0 %v5598
      %5710 = vmatprep.subr.bf16.mxu0 0
      %5711 = vmatpush1.bf16.msra.mxu0 %v5599
      %5712 = vmatprep.subr.bf16.mxu0 0
      %5713 = vmatpush1.bf16.msra.mxu0 %v5702
      %5714 = vmatprep.subr.bf16.mxu0 0
      %5715 = vmatpush1.bf16.msra.mxu0 0
      %5716 = vmatprep.subr.bf16.mxu0 0
      %5717 = vmatpush1.bf16.msra.mxu0 0
      %5718 = vmatprep.subr.bf16.mxu0 0
      %5719 = vmatpush1.bf16.msra.mxu0 0
      %5720 = vmatprep.subr.bf16.mxu0 0
      %5721 = vmatpush1.bf16.msra.mxu0 0
      %5722 = vmatprep.subr.bf16.mxu0 0
      %5723 = vmatpush1.bf16.msra.mxu0 0
      %5724 = vmatprep.subr.bf16.mxu0 0
      %5725 = vmatpush1.bf16.msra.mxu0 0
      %5726 = vmatprep.subr.bf16.mxu0 0
      %5727 = vmatpush1.bf16.msra.mxu0 0
      %5728 = vmatprep.subr.bf16.mxu0 0
      %5729 = vmatpush1.bf16.msra.mxu0 0
      %5730 = vmatprep.subr.bf16.mxu0 0
      %5731 = vmatpush1.bf16.msra.mxu0 0
      %5732 = vmatprep.subr.bf16.mxu0 0
      %5733 = vmatpush1.bf16.msra.mxu0 0
      %5734 = vmatprep.subr.bf16.mxu0 0
      %5735 = vmatpush1.bf16.msra.mxu0 0
      %5736 = vmatprep.mubr.bf16.mxu0 0
      %5737 = vmatmul.mubr.bf16.gmra.mrb[0].mxu0 %v5606
      %v5738 = vpop.f32.mrb[0].mxu0
      %v5739 = vadd.f32 %v5576, %v5738
      %v5740 = vpop.f32.mrb[0].mxu0
      %v5741 = vpop.f32.mrb[0].mxu0
      %v5742 = vadd.f32 %v5576, %v5741
      %v5743 = vpop.f32.mrb[0].mxu0
      %5744 = vmatprep.mubr.bf16.mxu0 0
      %5745 = vmatmul.mubr.bf16.gmra.mrb[0].mxu0 %v5609
      %v5746 = vpop.f32.mrb[0].mxu0
      %v5747 = vadd.f32 %v5576, %v5746
      %v5748 = vpop.f32.mrb[0].mxu0
      %v5749 = vpop.f32.mrb[0].mxu0
      %v5750 = vadd.f32 %v5576, %v5749
      %v5751 = vpop.f32.mrb[0].mxu0
      %5752 = vmatprep.mubr.bf16.mxu0 0
      %5753 = vmatmul.mubr.bf16.gmra.mrb[0].mxu0 %v5612
      %v5754 = vpop.f32.mrb[0].mxu0
      %v5755 = vadd.f32 %v5576, %v5754
      %v5756 = vpop.f32.mrb[0].mxu0
      %v5757 = vpop.f32.mrb[0].mxu0
      %v5758 = vadd.f32 %v5576, %v5757
      %v5759 = vpop.f32.mrb[0].mxu0
      %5760 = vmatprep.mubr.bf16.mxu0 0
      %5761 = vmatmul.mubr.bf16.gmra.mrb[0].mxu0 %v5615
      %v5762 = vpop.f32.mrb[0].mxu0
      %v5763 = vadd.f32 %v5576, %v5762
      %v5764 = vpop.f32.mrb[0].mxu0
      %v5765 = vpop.f32.mrb[0].mxu0
      %v5766 = vadd.f32 %v5576, %v5765
      %v5767 = vpop.f32.mrb[0].mxu0
      %5768 = vmatprep.mubr.bf16.mxu0 0
      %5769 = vmatmul.mubr.bf16.gmra.mrb[0].mxu0 %v5618
      %v5770 = vpop.f32.mrb[0].mxu0
      %v5771 = vadd.f32 %v5576, %v5770
      %v5772 = vpop.f32.mrb[0].mxu0
      %v5773 = vpop.f32.mrb[0].mxu0
      %v5774 = vadd.f32 %v5576, %v5773
      %v5775 = vpop.f32.mrb[0].mxu0
      %5776 = vmatprep.mubr.bf16.mxu0 0
      %5777 = vmatmul.mubr.bf16.gmra.mrb[0].mxu0 %v5621
      %v5778 = vpop.f32.mrb[0].mxu0
      %v5779 = vadd.f32 %v5576, %v5778
      %v5780 = vpop.f32.mrb[0].mxu0
      %v5781 = vpop.f32.mrb[0].mxu0
      %v5782 = vadd.f32 %v5576, %v5781
      %v5783 = vpop.f32.mrb[0].mxu0
      %5784 = vmatprep.mubr.bf16.mxu0 0
      %5785 = vmatmul.mubr.bf16.gmra.mrb[0].mxu0 %v5624
      %v5786 = vpop.f32.mrb[0].mxu0
      %v5787 = vadd.f32 %v5576, %v5786
      %v5788 = vpop.f32.mrb[0].mxu0
      %v5789 = vpop.f32.mrb[0].mxu0
      %v5790 = vadd.f32 %v5576, %v5789
      %v5791 = vpop.f32.mrb[0].mxu0
      %5792 = vmatprep.mubr.bf16.mxu0 0
      %5793 = vmatmul.mubr.bf16.gmra.mrb[0].mxu0 %v5627
      %v5794 = vpop.f32.mrb[0].mxu0
      %v5795 = vadd.f32 %v5576, %v5794
      %v5796 = vpop.f32.mrb[0].mxu0
      %v5797 = vpop.f32.mrb[0].mxu0
      %v5798 = vadd.f32 %v5576, %v5797
      %v5799 = vpop.f32.mrb[0].mxu0
      %5800 = vmatprep.mubr.bf16.mxu0 0
      %5801 = vmatmul.mubr.bf16.gmra.mrb[0].mxu0 %v5630
      %v5802 = vpop.f32.mrb[0].mxu0
      %v5803 = vadd.f32 %v5576, %v5802
      %v5804 = vpop.f32.mrb[0].mxu0
      %v5805 = vpop.f32.mrb[0].mxu0
      %v5806 = vadd.f32 %v5576, %v5805
      %v5807 = vpop.f32.mrb[0].mxu0
      %5808 = vmatprep.mubr.bf16.mxu0 0
      %5809 = vmatmul.mubr.bf16.gmra.mrb[0].mxu0 %v5633
      %v5810 = vpop.f32.mrb[0].mxu0
      %v5811 = vadd.f32 %v5576, %v5810
      %v5812 = vpop.f32.mrb[0].mxu0
      %v5813 = vpop.f32.mrb[0].mxu0
      %v5814 = vadd.f32 %v5576, %v5813
      %v5815 = vpop.f32.mrb[0].mxu0
      %5816 = vmatprep.mubr.bf16.mxu0 0
      %5817 = vmatmul.mubr.bf16.gmra.mrb[0].mxu0 %v5636
      %v5818 = vpop.f32.mrb[0].mxu0
      %v5819 = vadd.f32 %v5576, %v5818
      %v5820 = vpop.f32.mrb[0].mxu0
      %v5821 = vpop.f32.mrb[0].mxu0
      %v5822 = vadd.f32 %v5576, %v5821
      %v5823 = vpop.f32.mrb[0].mxu0
      %5824 = vmatprep.mubr.bf16.mxu0 0
      %5825 = vmatmul.mubr.bf16.gmra.mrb[0].mxu0 %v5639
      %v5826 = vpop.f32.mrb[0].mxu0
      %v5827 = vadd.f32 %v5576, %v5826
      %v5828 = vpop.f32.mrb[0].mxu0
      %v5829 = vpop.f32.mrb[0].mxu0
      %v5830 = vadd.f32 %v5576, %v5829
      %v5831 = vpop.f32.mrb[0].mxu0
      %5832 = vmatprep.mubr.bf16.mxu0 0
      %5833 = vmatmul.mubr.bf16.gmra.mrb[0].mxu0 %v5642
      %v5834 = vpop.f32.mrb[0].mxu0
      %v5835 = vadd.f32 %v5576, %v5834
      %v5836 = vpop.f32.mrb[0].mxu0
      %v5837 = vpop.f32.mrb[0].mxu0
      %v5838 = vadd.f32 %v5576, %v5837
      %v5839 = vpop.f32.mrb[0].mxu0
      %5840 = vmatprep.mubr.bf16.mxu0 0
      %5841 = vmatmul.mubr.bf16.gmra.mrb[0].mxu0 %v5645
      %v5842 = vpop.f32.mrb[0].mxu0
      %v5843 = vadd.f32 %v5576, %v5842
      %v5844 = vpop.f32.mrb[0].mxu0
      %v5845 = vpop.f32.mrb[0].mxu0
      %v5846 = vadd.f32 %v5576, %v5845
      %v5847 = vpop.f32.mrb[0].mxu0
      %5848 = vmatprep.mubr.bf16.mxu0 0
      %5849 = vmatmul.mubr.bf16.gmra.mrb[0].mxu0 %v5648
      %v5850 = vpop.f32.mrb[0].mxu0
      %v5851 = vadd.f32 %v5576, %v5850
      %v5852 = vpop.f32.mrb[0].mxu0
      %v5853 = vpop.f32.mrb[0].mxu0
      %v5854 = vadd.f32 %v5576, %v5853
      %v5855 = vpop.f32.mrb[0].mxu0
      %5856 = vmatprep.mubr.bf16.mxu0 0
      %5857 = vmatmul.mubr.bf16.gmra.mrb[0].mxu0 %v5651
      %v5858 = vpop.f32.mrb[0].mxu0
      %v5859 = vadd.f32 %v5576, %v5858
      %v5860 = vpop.f32.mrb[0].mxu0
      %v5861 = vpop.f32.mrb[0].mxu0
      %v5862 = vadd.f32 %v5576, %v5861
      %v5863 = vpop.f32.mrb[0].mxu0
      %5864 = vmatprep.mubr.bf16.mxu0 0
      %5865 = vmatmul.mubr.bf16.gmra.mrb[0].mxu0 %v5654
      %v5866 = vpop.f32.mrb[0].mxu0
      %v5867 = vadd.f32 %v5576, %v5866
      %v5868 = vpop.f32.mrb[0].mxu0
      %v5869 = vpop.f32.mrb[0].mxu0
      %v5870 = vadd.f32 %v5576, %v5869
      %v5871 = vpop.f32.mrb[0].mxu0
      %5872 = vmatprep.mubr.bf16.mxu0 0
      %5873 = vmatmul.mubr.bf16.gmra.mrb[0].mxu0 %v5657
      %v5874 = vpop.f32.mrb[0].mxu0
      %v5875 = vadd.f32 %v5576, %v5874
      %v5876 = vpop.f32.mrb[0].mxu0
      %v5877 = vpop.f32.mrb[0].mxu0
      %v5878 = vadd.f32 %v5576, %v5877
      %v5879 = vpop.f32.mrb[0].mxu0
      %5880 = vmatprep.mubr.bf16.mxu0 0
      %5881 = vmatmul.mubr.bf16.gmra.mrb[0].mxu0 %v5660
      %v5882 = vpop.f32.mrb[0].mxu0
      %v5883 = vadd.f32 %v5576, %v5882
      %v5884 = vpop.f32.mrb[0].mxu0
      %v5885 = vpop.f32.mrb[0].mxu0
      %v5886 = vadd.f32 %v5576, %v5885
      %v5887 = vpop.f32.mrb[0].mxu0
      %5888 = vmatprep.mubr.bf16.mxu0 0
      %5889 = vmatmul.mubr.bf16.gmra.mrb[0].mxu0 %v5663
      %v5890 = vpop.f32.mrb[0].mxu0
      %v5891 = vadd.f32 %v5576, %v5890
      %v5892 = vpop.f32.mrb[0].mxu0
      %v5893 = vpop.f32.mrb[0].mxu0
      %v5894 = vadd.f32 %v5576, %v5893
      %v5895 = vpop.f32.mrb[0].mxu0
      %5896 = vmatprep.mubr.bf16.mxu0 0
      %5897 = vmatmul.mubr.bf16.gmra.mrb[0].mxu0 %v5666
      %v5898 = vpop.f32.mrb[0].mxu0
      %v5899 = vadd.f32 %v5576, %v5898
      %v5900 = vpop.f32.mrb[0].mxu0
      %v5901 = vpop.f32.mrb[0].mxu0
      %v5902 = vadd.f32 %v5576, %v5901
      %v5903 = vpop.f32.mrb[0].mxu0
      %5904 = vmatprep.mubr.bf16.mxu0 0
      %5905 = vmatmul.mubr.bf16.gmra.mrb[0].mxu0 %v5669
      %v5906 = vpop.f32.mrb[0].mxu0
      %v5907 = vadd.f32 %v5576, %v5906
      %v5908 = vpop.f32.mrb[0].mxu0
      %v5909 = vpop.f32.mrb[0].mxu0
      %v5910 = vadd.f32 %v5576, %v5909
      %v5911 = vpop.f32.mrb[0].mxu0
      %5912 = vmatprep.mubr.bf16.mxu0 0
      %5913 = vmatmul.mubr.bf16.gmra.mrb[0].mxu0 %v5672
      %v5914 = vpop.f32.mrb[0].mxu0
      %v5915 = vadd.f32 %v5576, %v5914
      %v5916 = vpop.f32.mrb[0].mxu0
      %v5917 = vpop.f32.mrb[0].mxu0
      %v5918 = vadd.f32 %v5576, %v5917
      %v5919 = vpop.f32.mrb[0].mxu0
      %5920 = vmatprep.mubr.bf16.mxu0 0
      %5921 = vmatmul.mubr.bf16.gmra.mrb[0].mxu0 %v5675
      %v5922 = vpop.f32.mrb[0].mxu0
      %v5923 = vadd.f32 %v5576, %v5922
      %v5924 = vpop.f32.mrb[0].mxu0
      %v5925 = vpop.f32.mrb[0].mxu0
      %v5926 = vadd.f32 %v5576, %v5925
      %v5927 = vpop.f32.mrb[0].mxu0
      %5928 = vmatprep.mubr.bf16.mxu0 0
      %5929 = vmatmul.mubr.bf16.gmra.mrb[0].mxu0 %v5678
      %v5930 = vpop.f32.mrb[0].mxu0
      %v5931 = vadd.f32 %v5576, %v5930
      %v5932 = vpop.f32.mrb[0].mxu0
      %v5933 = vpop.f32.mrb[0].mxu0
      %v5934 = vadd.f32 %v5576, %v5933
      %v5935 = vpop.f32.mrb[0].mxu0
      %5936 = vmatprep.mubr.bf16.mxu0 0
      %5937 = vmatmul.mubr.bf16.gmra.mrb[0].mxu0 %v5681
      %v5938 = vpop.f32.mrb[0].mxu0
      %v5939 = vadd.f32 %v5576, %v5938
      %v5940 = vpop.f32.mrb[0].mxu0
      %v5941 = vpop.f32.mrb[0].mxu0
      %v5942 = vadd.f32 %v5576, %v5941
      %v5943 = vpop.f32.mrb[0].mxu0
      %5944 = vmatprep.mubr.bf16.mxu0 0
      %5945 = vmatmul.mubr.bf16.gmra.mrb[0].mxu0 %v5684
      %v5946 = vpop.f32.mrb[0].mxu0
      %v5947 = vadd.f32 %v5576, %v5946
      %v5948 = vpop.f32.mrb[0].mxu0
      %v5949 = vpop.f32.mrb[0].mxu0
      %v5950 = vadd.f32 %v5576, %v5949
      %v5951 = vpop.f32.mrb[0].mxu0
      %5952 = vmatprep.mubr.bf16.mxu0 0
      %5953 = vmatmul.mubr.bf16.gmra.mrb[0].mxu0 %v5687
      %v5954 = vpop.f32.mrb[0].mxu0
      %v5955 = vadd.f32 %v5576, %v5954
      %v5956 = vpop.f32.mrb[0].mxu0
      %v5957 = vpop.f32.mrb[0].mxu0
      %v5958 = vadd.f32 %v5576, %v5957
      %v5959 = vpop.f32.mrb[0].mxu0
      %5960 = vmatprep.mubr.bf16.mxu0 0
      %5961 = vmatmul.mubr.bf16.gmra.mrb[0].mxu0 %v5690
      %v5962 = vpop.f32.mrb[0].mxu0
      %v5963 = vadd.f32 %v5576, %v5962
      %v5964 = vpop.f32.mrb[0].mxu0
      %v5965 = vpop.f32.mrb[0].mxu0
      %v5966 = vadd.f32 %v5576, %v5965
      %v5967 = vpop.f32.mrb[0].mxu0
      %5968 = vmatprep.mubr.bf16.mxu0 0
      %5969 = vmatmul.mubr.bf16.gmra.mrb[0].mxu0 %v5693
      %v5970 = vpop.f32.mrb[0].mxu0
      %v5971 = vadd.f32 %v5576, %v5970
      %v5972 = vpop.f32.mrb[0].mxu0
      %v5973 = vpop.f32.mrb[0].mxu0
      %v5974 = vadd.f32 %v5576, %v5973
      %v5975 = vpop.f32.mrb[0].mxu0
      %5976 = vmatprep.mubr.bf16.mxu0 0
      %5977 = vmatmul.mubr.bf16.gmra.mrb[0].mxu0 %v5696
      %v5978 = vpop.f32.mrb[0].mxu0
      %v5979 = vadd.f32 %v5576, %v5978
      %v5980 = vpop.f32.mrb[0].mxu0
      %v5981 = vpop.f32.mrb[0].mxu0
      %v5982 = vadd.f32 %v5576, %v5981
      %v5983 = vpop.f32.mrb[0].mxu0
      %5984 = vmatprep.mubr.bf16.mxu0 0
      %5985 = vmatmul.mubr.bf16.gmra.mrb[0].mxu0 %v5699
      %v5986 = vpop.f32.mrb[0].mxu0
      %v5987 = vadd.f32 %v5576, %v5986
      %v5988 = vpop.f32.mrb[0].mxu0
      %v5989 = vpop.f32.mrb[0].mxu0
      %v5990 = vadd.f32 %v5576, %v5989
      %v5991 = vpop.f32.mrb[0].mxu0
      %5992 = vdwg.mxu0
      %v5993 = vmax.f32 %v5739, 0.0
      %v5994 = vmax.f32 %v5742, 0.0
      %v5995 = vmax.f32 %v5747, 0.0
      %v5996 = vmax.f32 %v5750, 0.0
      %v5997 = vmax.f32 %v5755, 0.0
      %v5998 = vmax.f32 %v5758, 0.0
      %v5999 = vmax.f32 %v5763, 0.0
      %v6000 = vmax.f32 %v5766, 0.0
      %v6001 = vmax.f32 %v5771, 0.0
      %v6002 = vmax.f32 %v5774, 0.0
      %v6003 = vmax.f32 %v5779, 0.0
      %v6004 = vmax.f32 %v5782, 0.0
      %v6005 = vmax.f32 %v5787, 0.0
      %v6006 = vmax.f32 %v5790, 0.0
      %v6007 = vmax.f32 %v5795, 0.0
      %v6008 = vmax.f32 %v5798, 0.0
      %v6009 = vmax.f32 %v5803, 0.0
      %v6010 = vmax.f32 %v5806, 0.0
      %v6011 = vmax.f32 %v5811, 0.0
      %v6012 = vmax.f32 %v5814, 0.0
      %v6013 = vmax.f32 %v5819, 0.0
      %v6014 = vmax.f32 %v5822, 0.0
      %v6015 = vmax.f32 %v5827, 0.0
      %v6016 = vmax.f32 %v5830, 0.0
      %v6017 = vmax.f32 %v5835, 0.0
      %v6018 = vmax.f32 %v5838, 0.0
      %v6019 = vmax.f32 %v5843, 0.0
      %v6020 = vmax.f32 %v5846, 0.0
      %v6021 = vmax.f32 %v5851, 0.0
      %v6022 = vmax.f32 %v5854, 0.0
      %v6023 = vmax.f32 %v5859, 0.0
      %v6024 = vmax.f32 %v5862, 0.0
      %v6025 = vmax.f32 %v5867, 0.0
      %v6026 = vmax.f32 %v5870, 0.0
      %v6027 = vmax.f32 %v5875, 0.0
      %v6028 = vmax.f32 %v5878, 0.0
      %v6029 = vmax.f32 %v5883, 0.0
      %v6030 = vmax.f32 %v5886, 0.0
      %v6031 = vmax.f32 %v5891, 0.0
      %v6032 = vmax.f32 %v5894, 0.0
      %v6033 = vmax.f32 %v5899, 0.0
      %v6034 = vmax.f32 %v5902, 0.0
      %v6035 = vmax.f32 %v5907, 0.0
      %v6036 = vmax.f32 %v5910, 0.0
      %v6037 = vmax.f32 %v5915, 0.0
      %v6038 = vmax.f32 %v5918, 0.0
      %v6039 = vmax.f32 %v5923, 0.0
      %v6040 = vmax.f32 %v5926, 0.0
      %v6041 = vmax.f32 %v5931, 0.0
      %v6042 = vmax.f32 %v5934, 0.0
      %v6043 = vmax.f32 %v5939, 0.0
      %v6044 = vmax.f32 %v5942, 0.0
      %v6045 = vmax.f32 %v5947, 0.0
      %v6046 = vmax.f32 %v5950, 0.0
      %v6047 = vmax.f32 %v5955, 0.0
      %v6048 = vmax.f32 %v5958, 0.0
      %v6049 = vmax.f32 %v5963, 0.0
      %v6050 = vmax.f32 %v5966, 0.0
      %v6051 = vmax.f32 %v5971, 0.0
      %v6052 = vmax.f32 %v5974, 0.0
      %v6053 = vmax.f32 %v5979, 0.0
      %v6054 = vmax.f32 %v5982, 0.0
      %v6055 = vmax.f32 %v5987, 0.0
      %v6056 = vmax.f32 %v5990, 0.0
      %6057 = vst.msk [vmem:[%s511 + $0x1] sm:$0xff] %vm337, %v5993
      %6058 = vst.msk [vmem:[%s511 + $0x9] sm:$0xff] %vm337, %v5994
      %6059 = vst.msk [vmem:[%s511 + $0x19] sm:$0xff] %vm337, %v5995
      %6060 = vst.msk [vmem:[%s511 + $0x21] sm:$0xff] %vm337, %v5996
      %6061 = vst.msk [vmem:[%s511 + $0x31] sm:$0xff] %vm337, %v5997
      %6062 = vst.msk [vmem:[%s511 + $0x39] sm:$0xff] %vm337, %v5998
      %6063 = vst.msk [vmem:[%s511 + $0x49] sm:$0xff] %vm337, %v5999
      %6064 = vst.msk [vmem:[%s511 + $0x51] sm:$0xff] %vm337, %v6000
      %6065 = vst.msk [vmem:[%s511 + $0x61] sm:$0xff] %vm337, %v6001
      %6066 = vst.msk [vmem:[%s511 + $0x69] sm:$0xff] %vm337, %v6002
      %6067 = vst.msk [vmem:[%s511 + $0x79] sm:$0xff] %vm337, %v6003
      %6068 = vst.msk [vmem:[%s511 + $0x81] sm:$0xff] %vm337, %v6004
      %6069 = vst.msk [vmem:[%s511 + $0x91] sm:$0xff] %vm337, %v6005
      %6070 = vst.msk [vmem:[%s511 + $0x99] sm:$0xff] %vm337, %v6006
      %6071 = vst.msk [vmem:[%s511 + $0xa9] sm:$0xff] %vm337, %v6007
      %6072 = vst.msk [vmem:[%s511 + $0xb1] sm:$0xff] %vm337, %v6008
      %6073 = vst.msk [vmem:[%s511 + $0xc1] sm:$0xff] %vm337, %v6009
      %6074 = vst.msk [vmem:[%s511 + $0xc9] sm:$0xff] %vm337, %v6010
      %6075 = vst.msk [vmem:[%s511 + $0xd9] sm:$0xff] %vm337, %v6011
      %6076 = vst.msk [vmem:[%s511 + $0xe1] sm:$0xff] %vm337, %v6012
      %6077 = vst.msk [vmem:[%s511 + $0xf1] sm:$0xff] %vm337, %v6013
      %6078 = vst.msk [vmem:[%s511 + $0xf9] sm:$0xff] %vm337, %v6014
      %6079 = vst.msk [vmem:[%s511 + $0x109] sm:$0xff] %vm337, %v6015
      %6080 = vst.msk [vmem:[%s511 + $0x111] sm:$0xff] %vm337, %v6016
      %6081 = vst.msk [vmem:[%s511 + $0x121] sm:$0xff] %vm337, %v6017
      %6082 = vst.msk [vmem:[%s511 + $0x129] sm:$0xff] %vm337, %v6018
      %6083 = vst.msk [vmem:[%s511 + $0x139] sm:$0xff] %vm337, %v6019
      %6084 = vst.msk [vmem:[%s511 + $0x141] sm:$0xff] %vm337, %v6020
      %6085 = vst.msk [vmem:[%s511 + $0x151] sm:$0xff] %vm337, %v6021
      %6086 = vst.msk [vmem:[%s511 + $0x159] sm:$0xff] %vm337, %v6022
      %6087 = vst.msk [vmem:[%s511 + $0x169] sm:$0xff] %vm337, %v6023
      %6088 = vst.msk [vmem:[%s511 + $0x171] sm:$0xff] %vm337, %v6024
      %6089 = vst.msk [vmem:[%s511 + $0x1b1] sm:$0xff] %vm337, %v6025
      %6090 = vst.msk [vmem:[%s511 + $0x1b9] sm:$0xff] %vm337, %v6026
      %6091 = vst.msk [vmem:[%s511 + $0x1c9] sm:$0xff] %vm337, %v6027
      %6092 = vst.msk [vmem:[%s511 + $0x1d1] sm:$0xff] %vm337, %v6028
      %6093 = vst.msk [vmem:[%s511 + $0x1e1] sm:$0xff] %vm337, %v6029
      %6094 = vst.msk [vmem:[%s511 + $0x1e9] sm:$0xff] %vm337, %v6030
      %6095 = vst.msk [vmem:[%s511 + $0x1f9] sm:$0xff] %vm337, %v6031
      %6096 = vst.msk [vmem:[%s511 + $0x201] sm:$0xff] %vm337, %v6032
      %6097 = vst.msk [vmem:[%s511 + $0x211] sm:$0xff] %vm337, %v6033
      %6098 = vst.msk [vmem:[%s511 + $0x219] sm:$0xff] %vm337, %v6034
      %6099 = vst.msk [vmem:[%s511 + $0x229] sm:$0xff] %vm337, %v6035
      %6100 = vst.msk [vmem:[%s511 + $0x231] sm:$0xff] %vm337, %v6036
      %6101 = vst.msk [vmem:[%s511 + $0x241] sm:$0xff] %vm337, %v6037
      %6102 = vst.msk [vmem:[%s511 + $0x249] sm:$0xff] %vm337, %v6038
      %6103 = vst.msk [vmem:[%s511 + $0x259] sm:$0xff] %vm337, %v6039
      %6104 = vst.msk [vmem:[%s511 + $0x261] sm:$0xff] %vm337, %v6040
      %6105 = vst.msk [vmem:[%s511 + $0x271] sm:$0xff] %vm337, %v6041
      %6106 = vst.msk [vmem:[%s511 + $0x279] sm:$0xff] %vm337, %v6042
      %6107 = vst.msk [vmem:[%s511 + $0x289] sm:$0xff] %vm337, %v6043
      %6108 = vst.msk [vmem:[%s511 + $0x291] sm:$0xff] %vm337, %v6044
      %6109 = vst.msk [vmem:[%s511 + $0x2a1] sm:$0xff] %vm337, %v6045
      %6110 = vst.msk [vmem:[%s511 + $0x2a9] sm:$0xff] %vm337, %v6046
      %6111 = vst.msk [vmem:[%s511 + $0x2b9] sm:$0xff] %vm337, %v6047
      %6112 = vst.msk [vmem:[%s511 + $0x2c1] sm:$0xff] %vm337, %v6048
      %6113 = vst.msk [vmem:[%s511 + $0x2d1] sm:$0xff] %vm337, %v6049
      %6114 = vst.msk [vmem:[%s511 + $0x2d9] sm:$0xff] %vm337, %v6050
      %6115 = vst.msk [vmem:[%s511 + $0x2e9] sm:$0xff] %vm337, %v6051
      %6116 = vst.msk [vmem:[%s511 + $0x2f1] sm:$0xff] %vm337, %v6052
      %6117 = vst.msk [vmem:[%s511 + $0x301] sm:$0xff] %vm337, %v6053
      %6118 = vst.msk [vmem:[%s511 + $0x309] sm:$0xff] %vm337, %v6054
      %6119 = vst.msk [vmem:[%s511 + $0x319] sm:$0xff] %vm337, %v6055
      %6120 = vst.msk [vmem:[%s511 + $0x321] sm:$0xff] %vm337, %v6056
      %v6121 = vld [vmem:[#allocation2] sm:$0xff]
      %v6122 = vld [vmem:[#allocation2 + $0x8] sm:$0xff]
      %v6123 = vld [vmem:[#allocation2 + $0x18] sm:$0xff]
      %v6124 = vld [vmem:[#allocation2 + $0x20] sm:$0xff]
      %v6125 = vld [vmem:[#allocation2 + $0x30] sm:$0xff]
      %v6126 = vld [vmem:[#allocation2 + $0x38] sm:$0xff]
      %v6127 = vld [vmem:[#allocation2 + $0x48] sm:$0xff]
      %v6128 = vld [vmem:[#allocation2 + $0x50] sm:$0xff]
      %v6129 = vld [vmem:[#allocation2 + $0x60] sm:$0xff]
      %v6130 = vld [vmem:[#allocation2 + $0x68] sm:$0xff]
      %v6131 = vld [vmem:[#allocation2 + $0x78] sm:$0xff]
      %v6132 = vld [vmem:[#allocation2 + $0x80] sm:$0xff]
      %v6133 = vld [vmem:[#allocation2 + $0x90] sm:$0xff]
      %v6134 = vld [vmem:[#allocation2 + $0x98] sm:$0xff]
      %v6135 = vld [vmem:[#allocation2 + $0xa8] sm:$0xff]
      %v6136 = vld [vmem:[#allocation2 + $0xb0] sm:$0xff]
      %v6137 = vld [vmem:[#allocation2 + $0xc0] sm:$0xff]
      %v6138 = vld [vmem:[#allocation2 + $0xc8] sm:$0xff]
      %v6139 = vld [vmem:[#allocation2 + $0xd8] sm:$0xff]
      %v6140 = vld [vmem:[#allocation2 + $0xe0] sm:$0xff]
      %v6141 = vld [vmem:[#allocation2 + $0xf0] sm:$0xff]
      %v6142 = vld [vmem:[#allocation2 + $0xf8] sm:$0xff]
      %v6143 = vld [vmem:[#allocation2 + $0x108] sm:$0xff]
      %v6144 = vld [vmem:[#allocation2 + $0x110] sm:$0xff]
      %v6145 = vld [vmem:[#allocation2 + $0x120] sm:$0xff]
      %v6146 = vld [vmem:[#allocation2 + $0x128] sm:$0xff]
      %v6147 = vld [vmem:[#allocation2 + $0x138] sm:$0xff]
      %v6148 = vld [vmem:[#allocation2 + $0x140] sm:$0xff]
      %v6149 = vld [vmem:[#allocation2 + $0x150] sm:$0xff]
      %v6150 = vld [vmem:[#allocation2 + $0x158] sm:$0xff]
      %v6151 = vld [vmem:[#allocation2 + $0x168] sm:$0xff]
      %v6152 = vld [vmem:[#allocation2 + $0x170] sm:$0xff]
      %v6153 = vld [vmem:[#allocation2 + $0x1b0] sm:$0xff]
      %v6154 = vld [vmem:[#allocation2 + $0x1b8] sm:$0xff]
      %v6155 = vld [vmem:[#allocation2 + $0x1c8] sm:$0xff]
      %v6156 = vld [vmem:[#allocation2 + $0x1d0] sm:$0xff]
      %v6157 = vld [vmem:[#allocation2 + $0x1e0] sm:$0xff]
      %v6158 = vld [vmem:[#allocation2 + $0x1e8] sm:$0xff]
      %v6159 = vld [vmem:[#allocation2 + $0x1f8] sm:$0xff]
      %v6160 = vld [vmem:[#allocation2 + $0x200] sm:$0xff]
      %v6161 = vld [vmem:[#allocation2 + $0x210] sm:$0xff]
      %v6162 = vld [vmem:[#allocation2 + $0x218] sm:$0xff]
      %v6163 = vld [vmem:[#allocation2 + $0x228] sm:$0xff]
      %v6164 = vld [vmem:[#allocation2 + $0x230] sm:$0xff]
      %v6165 = vld [vmem:[#allocation2 + $0x240] sm:$0xff]
      %v6166 = vld [vmem:[#allocation2 + $0x248] sm:$0xff]
      %v6167 = vld [vmem:[#allocation2 + $0x258] sm:$0xff]
      %v6168 = vld [vmem:[#allocation2 + $0x260] sm:$0xff]
      %v6169 = vld [vmem:[#allocation2 + $0x270] sm:$0xff]
      %v6170 = vld [vmem:[#allocation2 + $0x278] sm:$0xff]
      %v6171 = vld [vmem:[#allocation2 + $0x288] sm:$0xff]
      %v6172 = vld [vmem:[#allocation2 + $0x290] sm:$0xff]
      %v6173 = vld [vmem:[#allocation2 + $0x2a0] sm:$0xff]
      %v6174 = vld [vmem:[#allocation2 + $0x2a8] sm:$0xff]
      %v6175 = vld [vmem:[#allocation2 + $0x2b8] sm:$0xff]
      %v6176 = vld [vmem:[#allocation2 + $0x2c0] sm:$0xff]
      %v6177 = vld [vmem:[#allocation2 + $0x2d0] sm:$0xff]
      %v6178 = vld [vmem:[#allocation2 + $0x2d8] sm:$0xff]
      %v6179 = vld [vmem:[#allocation2 + $0x2e8] sm:$0xff]
      %v6180 = vld [vmem:[#allocation2 + $0x2f0] sm:$0xff]
      %v6181 = vld [vmem:[#allocation2 + $0x300] sm:$0xff]
      %v6182 = vld [vmem:[#allocation2 + $0x308] sm:$0xff]
      %v6183 = vld [vmem:[#allocation2 + $0x318] sm:$0xff]
      %v6184 = vld [vmem:[#allocation2 + $0x320] sm:$0xff]
      %v6185 = vpack.c.bf16 %v6122, %v6121
      %v6186 = vpack.c.bf16 %v6124, %v6123
      %v6187 = vpack.c.bf16 %v6126, %v6125
      %v6188 = vpack.c.bf16 %v6128, %v6127
      %v6189 = vpack.c.bf16 %v6130, %v6129
      %v6190 = vpack.c.bf16 %v6132, %v6131
      %v6191 = vpack.c.bf16 %v6134, %v6133
      %v6192 = vpack.c.bf16 %v6136, %v6135
      %v6193 = vpack.c.bf16 %v6138, %v6137
      %v6194 = vpack.c.bf16 %v6140, %v6139
      %v6195 = vpack.c.bf16 %v6142, %v6141
      %v6196 = vpack.c.bf16 %v6144, %v6143
      %v6197 = vpack.c.bf16 %v6146, %v6145
      %v6198 = vpack.c.bf16 %v6148, %v6147
      %v6199 = vpack.c.bf16 %v6150, %v6149
      %v6200 = vpack.c.bf16 %v6152, %v6151
      %v6201 = vpack.c.bf16 %v6154, %v6153
      %v6202 = vpack.c.bf16 %v6156, %v6155
      %v6203 = vpack.c.bf16 %v6158, %v6157
      %v6204 = vpack.c.bf16 %v6160, %v6159
      %v6205 = vpack.c.bf16 %v6162, %v6161
      %v6206 = vpack.c.bf16 %v6164, %v6163
      %v6207 = vpack.c.bf16 %v6166, %v6165
      %v6208 = vpack.c.bf16 %v6168, %v6167
      %v6209 = vpack.c.bf16 %v6170, %v6169
      %v6210 = vpack.c.bf16 %v6172, %v6171
      %v6211 = vpack.c.bf16 %v6174, %v6173
      %v6212 = vpack.c.bf16 %v6176, %v6175
      %v6213 = vpack.c.bf16 %v6178, %v6177
      %v6214 = vpack.c.bf16 %v6180, %v6179
      %v6215 = vpack.c.bf16 %v6182, %v6181
      %v6216 = vpack.c.bf16 %v6184, %v6183
      %6217 = vst.msk [vmem:[#allocation3] sm:$0xff] %vm337, %v6185
      %6218 = vst.msk [vmem:[#allocation3 + $0x8] sm:$0xff] %vm337, %v6186
      %6219 = vst.msk [vmem:[#allocation3 + $0x10] sm:$0xff] %vm337, %v6187
      %6220 = vst.msk [vmem:[#allocation3 + $0x18] sm:$0xff] %vm337, %v6188
      %6221 = vst.msk [vmem:[#allocation3 + $0x20] sm:$0xff] %vm337, %v6189
      %6222 = vst.msk [vmem:[#allocation3 + $0x28] sm:$0xff] %vm337, %v6190
      %6223 = vst.msk [vmem:[#allocation3 + $0x30] sm:$0xff] %vm337, %v6191
      %6224 = vst.msk [vmem:[#allocation3 + $0x38] sm:$0xff] %vm337, %v6192
      %6225 = vst.msk [vmem:[#allocation3 + $0x40] sm:$0xff] %vm337, %v6193
      %6226 = vst.msk [vmem:[#allocation3 + $0x48] sm:$0xff] %vm337, %v6194
      %6227 = vst.msk [vmem:[#allocation3 + $0x50] sm:$0xff] %vm337, %v6195
      %6228 = vst.msk [vmem:[#allocation3 + $0x58] sm:$0xff] %vm337, %v6196
      %6229 = vst.msk [vmem:[#allocation3 + $0x60] sm:$0xff] %vm337, %v6197
      %6230 = vst.msk [vmem:[#allocation3 + $0x68] sm:$0xff] %vm337, %v6198
      %6231 = vst.msk [vmem:[#allocation3 + $0x70] sm:$0xff] %vm337, %v6199
      %6232 = vst.msk [vmem:[#allocation3 + $0x78] sm:$0xff] %vm337, %v6200
      %6233 = vst.msk [vmem:[#allocation3 + $0x80] sm:$0xff] %vm337, %v6201
      %6234 = vst.msk [vmem:[#allocation3 + $0x88] sm:$0xff] %vm337, %v6202
      %6235 = vst.msk [vmem:[#allocation3 + $0x90] sm:$0xff] %vm337, %v6203
      %6236 = vst.msk [vmem:[#allocation3 + $0x98] sm:$0xff] %vm337, %v6204
      %6237 = vst.msk [vmem:[#allocation3 + $0xa0] sm:$0xff] %vm337, %v6205
      %6238 = vst.msk [vmem:[#allocation3 + $0xa8] sm:$0xff] %vm337, %v6206
      %6239 = vst.msk [vmem:[#allocation3 + $0xb0] sm:$0xff] %vm337, %v6207
      %6240 = vst.msk [vmem:[#allocation3 + $0xb8] sm:$0xff] %vm337, %v6208
      %6241 = vst.msk [vmem:[#allocation3 + $0xc0] sm:$0xff] %vm337, %v6209
      %6242 = vst.msk [vmem:[#allocation3 + $0xc8] sm:$0xff] %vm337, %v6210
      %6243 = vst.msk [vmem:[#allocation3 + $0xd0] sm:$0xff] %vm337, %v6211
      %6244 = vst.msk [vmem:[#allocation3 + $0xd8] sm:$0xff] %vm337, %v6212
      %6245 = vst.msk [vmem:[#allocation3 + $0xe0] sm:$0xff] %vm337, %v6213
      %6246 = vst.msk [vmem:[#allocation3 + $0xe8] sm:$0xff] %vm337, %v6214
      %6247 = vst.msk [vmem:[#allocation3 + $0xf0] sm:$0xff] %vm337, %v6215
      %6248 = vst.msk [vmem:[#allocation3 + $0xf8] sm:$0xff] %vm337, %v6216
      %v6249 = vld [vmem:[#allocation2 + $0x1] sm:$0xff]
      %v6250 = vld [vmem:[#allocation2 + $0x9] sm:$0xff]
      %v6251 = vld [vmem:[#allocation2 + $0x19] sm:$0xff]
      %v6252 = vld [vmem:[#allocation2 + $0x21] sm:$0xff]
      %v6253 = vld [vmem:[#allocation2 + $0x31] sm:$0xff]
      %v6254 = vld [vmem:[#allocation2 + $0x39] sm:$0xff]
      %v6255 = vld [vmem:[#allocation2 + $0x49] sm:$0xff]
      %v6256 = vld [vmem:[#allocation2 + $0x51] sm:$0xff]
      %v6257 = vld [vmem:[#allocation2 + $0x61] sm:$0xff]
      %v6258 = vld [vmem:[#allocation2 + $0x69] sm:$0xff]
      %v6259 = vld [vmem:[#allocation2 + $0x79] sm:$0xff]
      %v6260 = vld [vmem:[#allocation2 + $0x81] sm:$0xff]
      %v6261 = vld [vmem:[#allocation2 + $0x91] sm:$0xff]
      %v6262 = vld [vmem:[#allocation2 + $0x99] sm:$0xff]
      %v6263 = vld [vmem:[#allocation2 + $0xa9] sm:$0xff]
      %v6264 = vld [vmem:[#allocation2 + $0xb1] sm:$0xff]
      %v6265 = vld [vmem:[#allocation2 + $0xc1] sm:$0xff]
      %v6266 = vld [vmem:[#allocation2 + $0xc9] sm:$0xff]
      %v6267 = vld [vmem:[#allocation2 + $0xd9] sm:$0xff]
      %v6268 = vld [vmem:[#allocation2 + $0xe1] sm:$0xff]
      %v6269 = vld [vmem:[#allocation2 + $0xf1] sm:$0xff]
      %v6270 = vld [vmem:[#allocation2 + $0xf9] sm:$0xff]
      %v6271 = vld [vmem:[#allocation2 + $0x109] sm:$0xff]
      %v6272 = vld [vmem:[#allocation2 + $0x111] sm:$0xff]
      %v6273 = vld [vmem:[#allocation2 + $0x121] sm:$0xff]
      %v6274 = vld [vmem:[#allocation2 + $0x129] sm:$0xff]
      %v6275 = vld [vmem:[#allocation2 + $0x139] sm:$0xff]
      %v6276 = vld [vmem:[#allocation2 + $0x141] sm:$0xff]
      %v6277 = vld [vmem:[#allocation2 + $0x151] sm:$0xff]
      %v6278 = vld [vmem:[#allocation2 + $0x159] sm:$0xff]
      %v6279 = vld [vmem:[#allocation2 + $0x169] sm:$0xff]
      %v6280 = vld [vmem:[#allocation2 + $0x171] sm:$0xff]
      %v6281 = vld [vmem:[#allocation2 + $0x1b1] sm:$0xff]
      %v6282 = vld [vmem:[#allocation2 + $0x1b9] sm:$0xff]
      %v6283 = vld [vmem:[#allocation2 + $0x1c9] sm:$0xff]
      %v6284 = vld [vmem:[#allocation2 + $0x1d1] sm:$0xff]
      %v6285 = vld [vmem:[#allocation2 + $0x1e1] sm:$0xff]
      %v6286 = vld [vmem:[#allocation2 + $0x1e9] sm:$0xff]
      %v6287 = vld [vmem:[#allocation2 + $0x1f9] sm:$0xff]
      %v6288 = vld [vmem:[#allocation2 + $0x201] sm:$0xff]
      %v6289 = vld [vmem:[#allocation2 + $0x211] sm:$0xff]
      %v6290 = vld [vmem:[#allocation2 + $0x219] sm:$0xff]
      %v6291 = vld [vmem:[#allocation2 + $0x229] sm:$0xff]
      %v6292 = vld [vmem:[#allocation2 + $0x231] sm:$0xff]
      %v6293 = vld [vmem:[#allocation2 + $0x241] sm:$0xff]
      %v6294 = vld [vmem:[#allocation2 + $0x249] sm:$0xff]
      %v6295 = vld [vmem:[#allocation2 + $0x259] sm:$0xff]
      %v6296 = vld [vmem:[#allocation2 + $0x261] sm:$0xff]
      %v6297 = vld [vmem:[#allocation2 + $0x271] sm:$0xff]
      %v6298 = vld [vmem:[#allocation2 + $0x279] sm:$0xff]
      %v6299 = vld [vmem:[#allocation2 + $0x289] sm:$0xff]
      %v6300 = vld [vmem:[#allocation2 + $0x291] sm:$0xff]
      %v6301 = vld [vmem:[#allocation2 + $0x2a1] sm:$0xff]
      %v6302 = vld [vmem:[#allocation2 + $0x2a9] sm:$0xff]
      %v6303 = vld [vmem:[#allocation2 + $0x2b9] sm:$0xff]
      %v6304 = vld [vmem:[#allocation2 + $0x2c1] sm:$0xff]
      %v6305 = vld [vmem:[#allocation2 + $0x2d1] sm:$0xff]
      %v6306 = vld [vmem:[#allocation2 + $0x2d9] sm:$0xff]
      %v6307 = vld [vmem:[#allocation2 + $0x2e9] sm:$0xff]
      %v6308 = vld [vmem:[#allocation2 + $0x2f1] sm:$0xff]
      %v6309 = vld [vmem:[#allocation2 + $0x301] sm:$0xff]
      %v6310 = vld [vmem:[#allocation2 + $0x309] sm:$0xff]
      %v6311 = vld [vmem:[#allocation2 + $0x319] sm:$0xff]
      %v6312 = vld [vmem:[#allocation2 + $0x321] sm:$0xff]
      %v6313 = vpack.c.bf16 %v6250, %v6249
      %v6314 = vpack.c.bf16 %v6252, %v6251
      %v6315 = vpack.c.bf16 %v6254, %v6253
      %v6316 = vpack.c.bf16 %v6256, %v6255
      %v6317 = vpack.c.bf16 %v6258, %v6257
      %v6318 = vpack.c.bf16 %v6260, %v6259
      %v6319 = vpack.c.bf16 %v6262, %v6261
      %v6320 = vpack.c.bf16 %v6264, %v6263
      %v6321 = vpack.c.bf16 %v6266, %v6265
      %v6322 = vpack.c.bf16 %v6268, %v6267
      %v6323 = vpack.c.bf16 %v6270, %v6269
      %v6324 = vpack.c.bf16 %v6272, %v6271
      %v6325 = vpack.c.bf16 %v6274, %v6273
      %v6326 = vpack.c.bf16 %v6276, %v6275
      %v6327 = vpack.c.bf16 %v6278, %v6277
      %v6328 = vpack.c.bf16 %v6280, %v6279
      %v6329 = vpack.c.bf16 %v6282, %v6281
      %v6330 = vpack.c.bf16 %v6284, %v6283
      %v6331 = vpack.c.bf16 %v6286, %v6285
      %v6332 = vpack.c.bf16 %v6288, %v6287
      %v6333 = vpack.c.bf16 %v6290, %v6289
      %v6334 = vpack.c.bf16 %v6292, %v6291
      %v6335 = vpack.c.bf16 %v6294, %v6293
      %v6336 = vpack.c.bf16 %v6296, %v6295
      %v6337 = vpack.c.bf16 %v6298, %v6297
      %v6338 = vpack.c.bf16 %v6300, %v6299
      %v6339 = vpack.c.bf16 %v6302, %v6301
      %v6340 = vpack.c.bf16 %v6304, %v6303
      %v6341 = vpack.c.bf16 %v6306, %v6305
      %v6342 = vpack.c.bf16 %v6308, %v6307
      %v6343 = vpack.c.bf16 %v6310, %v6309
      %v6344 = vpack.c.bf16 %v6312, %v6311
      %6377 = vrot.lane.b32.xlu0 %v6313, 8
      %v6378 = vpop.permute.xlu0 %6377
      %6379 = vrot.lane.b32.xlu0 %v6314, 8
      %v6380 = vpop.permute.xlu0 %6379
      %6381 = vrot.lane.b32.xlu0 %v6315, 8
      %v6382 = vpop.permute.xlu0 %6381
      %6383 = vrot.lane.b32.xlu0 %v6316, 8
      %v6384 = vpop.permute.xlu0 %6383
      %6385 = vrot.lane.b32.xlu0 %v6317, 8
      %v6386 = vpop.permute.xlu0 %6385
      %6387 = vrot.lane.b32.xlu0 %v6318, 8
      %v6388 = vpop.permute.xlu0 %6387
      %6389 = vrot.lane.b32.xlu0 %v6319, 8
      %v6390 = vpop.permute.xlu0 %6389
      %6391 = vrot.lane.b32.xlu0 %v6320, 8
      %v6392 = vpop.permute.xlu0 %6391
      %6393 = vrot.lane.b32.xlu0 %v6321, 8
      %v6394 = vpop.permute.xlu0 %6393
      %6395 = vrot.lane.b32.xlu0 %v6322, 8
      %v6396 = vpop.permute.xlu0 %6395
      %6397 = vrot.lane.b32.xlu0 %v6323, 8
      %v6398 = vpop.permute.xlu0 %6397
      %6399 = vrot.lane.b32.xlu0 %v6324, 8
      %v6400 = vpop.permute.xlu0 %6399
      %6401 = vrot.lane.b32.xlu0 %v6325, 8
      %v6402 = vpop.permute.xlu0 %6401
      %6403 = vrot.lane.b32.xlu0 %v6326, 8
      %v6404 = vpop.permute.xlu0 %6403
      %6405 = vrot.lane.b32.xlu0 %v6327, 8
      %v6406 = vpop.permute.xlu0 %6405
      %6407 = vrot.lane.b32.xlu0 %v6328, 8
      %v6408 = vpop.permute.xlu0 %6407
      %6409 = vrot.lane.b32.xlu0 %v6329, 8
      %v6410 = vpop.permute.xlu0 %6409
      %6411 = vrot.lane.b32.xlu0 %v6330, 8
      %v6412 = vpop.permute.xlu0 %6411
      %6413 = vrot.lane.b32.xlu0 %v6331, 8
      %v6414 = vpop.permute.xlu0 %6413
      %6415 = vrot.lane.b32.xlu0 %v6332, 8
      %v6416 = vpop.permute.xlu0 %6415
      %6417 = vrot.lane.b32.xlu0 %v6333, 8
      %v6418 = vpop.permute.xlu0 %6417
      %6419 = vrot.lane.b32.xlu0 %v6334, 8
      %v6420 = vpop.permute.xlu0 %6419
      %6421 = vrot.lane.b32.xlu0 %v6335, 8
      %v6422 = vpop.permute.xlu0 %6421
      %6423 = vrot.lane.b32.xlu0 %v6336, 8
      %v6424 = vpop.permute.xlu0 %6423
      %6425 = vrot.lane.b32.xlu0 %v6337, 8
      %v6426 = vpop.permute.xlu0 %6425
      %6427 = vrot.lane.b32.xlu0 %v6338, 8
      %v6428 = vpop.permute.xlu0 %6427
      %6429 = vrot.lane.b32.xlu0 %v6339, 8
      %v6430 = vpop.permute.xlu0 %6429
      %6431 = vrot.lane.b32.xlu0 %v6340, 8
      %v6432 = vpop.permute.xlu0 %6431
      %6433 = vrot.lane.b32.xlu0 %v6341, 8
      %v6434 = vpop.permute.xlu0 %6433
      %6435 = vrot.lane.b32.xlu0 %v6342, 8
      %v6436 = vpop.permute.xlu0 %6435
      %6437 = vrot.lane.b32.xlu0 %v6343, 8
      %v6438 = vpop.permute.xlu0 %6437
      %6439 = vrot.lane.b32.xlu0 %v6344, 8
      %v6440 = vpop.permute.xlu0 %6439
      %6473 = vst.msk [vmem:[#allocation3] sm:$0xff] %vm928, %v6378
      %6474 = vst.msk [vmem:[#allocation3 + $0x8] sm:$0xff] %vm928, %v6380
      %6475 = vst.msk [vmem:[#allocation3 + $0x10] sm:$0xff] %vm928, %v6382
      %6476 = vst.msk [vmem:[#allocation3 + $0x18] sm:$0xff] %vm928, %v6384
      %6477 = vst.msk [vmem:[#allocation3 + $0x20] sm:$0xff] %vm928, %v6386
      %6478 = vst.msk [vmem:[#allocation3 + $0x28] sm:$0xff] %vm928, %v6388
      %6479 = vst.msk [vmem:[#allocation3 + $0x30] sm:$0xff] %vm928, %v6390
      %6480 = vst.msk [vmem:[#allocation3 + $0x38] sm:$0xff] %vm928, %v6392
      %6481 = vst.msk [vmem:[#allocation3 + $0x40] sm:$0xff] %vm928, %v6394
      %6482 = vst.msk [vmem:[#allocation3 + $0x48] sm:$0xff] %vm928, %v6396
      %6483 = vst.msk [vmem:[#allocation3 + $0x50] sm:$0xff] %vm928, %v6398
      %6484 = vst.msk [vmem:[#allocation3 + $0x58] sm:$0xff] %vm928, %v6400
      %6485 = vst.msk [vmem:[#allocation3 + $0x60] sm:$0xff] %vm928, %v6402
      %6486 = vst.msk [vmem:[#allocation3 + $0x68] sm:$0xff] %vm928, %v6404
      %6487 = vst.msk [vmem:[#allocation3 + $0x70] sm:$0xff] %vm928, %v6406
      %6488 = vst.msk [vmem:[#allocation3 + $0x78] sm:$0xff] %vm928, %v6408
      %6489 = vst.msk [vmem:[#allocation3 + $0x80] sm:$0xff] %vm928, %v6410
      %6490 = vst.msk [vmem:[#allocation3 + $0x88] sm:$0xff] %vm928, %v6412
      %6491 = vst.msk [vmem:[#allocation3 + $0x90] sm:$0xff] %vm928, %v6414
      %6492 = vst.msk [vmem:[#allocation3 + $0x98] sm:$0xff] %vm928, %v6416
      %6493 = vst.msk [vmem:[#allocation3 + $0xa0] sm:$0xff] %vm928, %v6418
      %6494 = vst.msk [vmem:[#allocation3 + $0xa8] sm:$0xff] %vm928, %v6420
      %6495 = vst.msk [vmem:[#allocation3 + $0xb0] sm:$0xff] %vm928, %v6422
      %6496 = vst.msk [vmem:[#allocation3 + $0xb8] sm:$0xff] %vm928, %v6424
      %6497 = vst.msk [vmem:[#allocation3 + $0xc0] sm:$0xff] %vm928, %v6426
      %6498 = vst.msk [vmem:[#allocation3 + $0xc8] sm:$0xff] %vm928, %v6428
      %6499 = vst.msk [vmem:[#allocation3 + $0xd0] sm:$0xff] %vm928, %v6430
      %6500 = vst.msk [vmem:[#allocation3 + $0xd8] sm:$0xff] %vm928, %v6432
      %6501 = vst.msk [vmem:[#allocation3 + $0xe0] sm:$0xff] %vm928, %v6434
      %6502 = vst.msk [vmem:[#allocation3 + $0xe8] sm:$0xff] %vm928, %v6436
      %6503 = vst.msk [vmem:[#allocation3 + $0xf0] sm:$0xff] %vm928, %v6438
      %6504 = vst.msk [vmem:[#allocation3 + $0xf8] sm:$0xff] %vm928, %v6440
      %v6505 = vld [vmem:[#allocation2 + $0x2] sm:$0xff]
      %v6506 = vld [vmem:[#allocation2 + $0xa] sm:$0xff]
      %v6507 = vld [vmem:[#allocation2 + $0x1a] sm:$0xff]
      %v6508 = vld [vmem:[#allocation2 + $0x22] sm:$0xff]
      %v6509 = vld [vmem:[#allocation2 + $0x32] sm:$0xff]
      %v6510 = vld [vmem:[#allocation2 + $0x3a] sm:$0xff]
      %v6511 = vld [vmem:[#allocation2 + $0x4a] sm:$0xff]
      %v6512 = vld [vmem:[#allocation2 + $0x52] sm:$0xff]
      %v6513 = vld [vmem:[#allocation2 + $0x62] sm:$0xff]
      %v6514 = vld [vmem:[#allocation2 + $0x6a] sm:$0xff]
      %v6515 = vld [vmem:[#allocation2 + $0x7a] sm:$0xff]
      %v6516 = vld [vmem:[#allocation2 + $0x82] sm:$0xff]
      %v6517 = vld [vmem:[#allocation2 + $0x92] sm:$0xff]
      %v6518 = vld [vmem:[#allocation2 + $0x9a] sm:$0xff]
      %v6519 = vld [vmem:[#allocation2 + $0xaa] sm:$0xff]
      %v6520 = vld [vmem:[#allocation2 + $0xb2] sm:$0xff]
      %v6521 = vld [vmem:[#allocation2 + $0xc2] sm:$0xff]
      %v6522 = vld [vmem:[#allocation2 + $0xca] sm:$0xff]
      %v6523 = vld [vmem:[#allocation2 + $0xda] sm:$0xff]
      %v6524 = vld [vmem:[#allocation2 + $0xe2] sm:$0xff]
      %v6525 = vld [vmem:[#allocation2 + $0xf2] sm:$0xff]
      %v6526 = vld [vmem:[#allocation2 + $0xfa] sm:$0xff]
      %v6527 = vld [vmem:[#allocation2 + $0x10a] sm:$0xff]
      %v6528 = vld [vmem:[#allocation2 + $0x112] sm:$0xff]
      %v6529 = vld [vmem:[#allocation2 + $0x122] sm:$0xff]
      %v6530 = vld [vmem:[#allocation2 + $0x12a] sm:$0xff]
      %v6531 = vld [vmem:[#allocation2 + $0x13a] sm:$0xff]
      %v6532 = vld [vmem:[#allocation2 + $0x142] sm:$0xff]
      %v6533 = vld [vmem:[#allocation2 + $0x152] sm:$0xff]
      %v6534 = vld [vmem:[#allocation2 + $0x15a] sm:$0xff]
      %v6535 = vld [vmem:[#allocation2 + $0x16a] sm:$0xff]
      %v6536 = vld [vmem:[#allocation2 + $0x172] sm:$0xff]
      %v6537 = vld [vmem:[#allocation2 + $0x1b2] sm:$0xff]
      %v6538 = vld [vmem:[#allocation2 + $0x1ba] sm:$0xff]
      %v6539 = vld [vmem:[#allocation2 + $0x1ca] sm:$0xff]
      %v6540 = vld [vmem:[#allocation2 + $0x1d2] sm:$0xff]
      %v6541 = vld [vmem:[#allocation2 + $0x1e2] sm:$0xff]
      %v6542 = vld [vmem:[#allocation2 + $0x1ea] sm:$0xff]
      %v6543 = vld [vmem:[#allocation2 + $0x1fa] sm:$0xff]
      %v6544 = vld [vmem:[#allocation2 + $0x202] sm:$0xff]
      %v6545 = vld [vmem:[#allocation2 + $0x212] sm:$0xff]
      %v6546 = vld [vmem:[#allocation2 + $0x21a] sm:$0xff]
      %v6547 = vld [vmem:[#allocation2 + $0x22a] sm:$0xff]
      %v6548 = vld [vmem:[#allocation2 + $0x232] sm:$0xff]
      %v6549 = vld [vmem:[#allocation2 + $0x242] sm:$0xff]
      %v6550 = vld [vmem:[#allocation2 + $0x24a] sm:$0xff]
      %v6551 = vld [vmem:[#allocation2 + $0x25a] sm:$0xff]
      %v6552 = vld [vmem:[#allocation2 + $0x262] sm:$0xff]
      %v6553 = vld [vmem:[#allocation2 + $0x272] sm:$0xff]
      %v6554 = vld [vmem:[#allocation2 + $0x27a] sm:$0xff]
      %v6555 = vld [vmem:[#allocation2 + $0x28a] sm:$0xff]
      %v6556 = vld [vmem:[#allocation2 + $0x292] sm:$0xff]
      %v6557 = vld [vmem:[#allocation2 + $0x2a2] sm:$0xff]
      %v6558 = vld [vmem:[#allocation2 + $0x2aa] sm:$0xff]
      %v6559 = vld [vmem:[#allocation2 + $0x2ba] sm:$0xff]
      %v6560 = vld [vmem:[#allocation2 + $0x2c2] sm:$0xff]
      %v6561 = vld [vmem:[#allocation2 + $0x2d2] sm:$0xff]
      %v6562 = vld [vmem:[#allocation2 + $0x2da] sm:$0xff]
      %v6563 = vld [vmem:[#allocation2 + $0x2ea] sm:$0xff]
      %v6564 = vld [vmem:[#allocation2 + $0x2f2] sm:$0xff]
      %v6565 = vld [vmem:[#allocation2 + $0x302] sm:$0xff]
      %v6566 = vld [vmem:[#allocation2 + $0x30a] sm:$0xff]
      %v6567 = vld [vmem:[#allocation2 + $0x31a] sm:$0xff]
      %v6568 = vld [vmem:[#allocation2 + $0x322] sm:$0xff]
      %v6569 = vpack.c.bf16 %v6506, %v6505
      %v6570 = vpack.c.bf16 %v6508, %v6507
      %v6571 = vpack.c.bf16 %v6510, %v6509
      %v6572 = vpack.c.bf16 %v6512, %v6511
      %v6573 = vpack.c.bf16 %v6514, %v6513
      %v6574 = vpack.c.bf16 %v6516, %v6515
      %v6575 = vpack.c.bf16 %v6518, %v6517
      %v6576 = vpack.c.bf16 %v6520, %v6519
      %v6577 = vpack.c.bf16 %v6522, %v6521
      %v6578 = vpack.c.bf16 %v6524, %v6523
      %v6579 = vpack.c.bf16 %v6526, %v6525
      %v6580 = vpack.c.bf16 %v6528, %v6527
      %v6581 = vpack.c.bf16 %v6530, %v6529
      %v6582 = vpack.c.bf16 %v6532, %v6531
      %v6583 = vpack.c.bf16 %v6534, %v6533
      %v6584 = vpack.c.bf16 %v6536, %v6535
      %v6585 = vpack.c.bf16 %v6538, %v6537
      %v6586 = vpack.c.bf16 %v6540, %v6539
      %v6587 = vpack.c.bf16 %v6542, %v6541
      %v6588 = vpack.c.bf16 %v6544, %v6543
      %v6589 = vpack.c.bf16 %v6546, %v6545
      %v6590 = vpack.c.bf16 %v6548, %v6547
      %v6591 = vpack.c.bf16 %v6550, %v6549
      %v6592 = vpack.c.bf16 %v6552, %v6551
      %v6593 = vpack.c.bf16 %v6554, %v6553
      %v6594 = vpack.c.bf16 %v6556, %v6555
      %v6595 = vpack.c.bf16 %v6558, %v6557
      %v6596 = vpack.c.bf16 %v6560, %v6559
      %v6597 = vpack.c.bf16 %v6562, %v6561
      %v6598 = vpack.c.bf16 %v6564, %v6563
      %v6599 = vpack.c.bf16 %v6566, %v6565
      %v6600 = vpack.c.bf16 %v6568, %v6567
      %6633 = vrot.lane.b32.xlu0 %v6569, 16
      %v6634 = vpop.permute.xlu0 %6633
      %6635 = vrot.lane.b32.xlu0 %v6570, 16
      %v6636 = vpop.permute.xlu0 %6635
      %6637 = vrot.lane.b32.xlu0 %v6571, 16
      %v6638 = vpop.permute.xlu0 %6637
      %6639 = vrot.lane.b32.xlu0 %v6572, 16
      %v6640 = vpop.permute.xlu0 %6639
      %6641 = vrot.lane.b32.xlu0 %v6573, 16
      %v6642 = vpop.permute.xlu0 %6641
      %6643 = vrot.lane.b32.xlu0 %v6574, 16
      %v6644 = vpop.permute.xlu0 %6643
      %6645 = vrot.lane.b32.xlu0 %v6575, 16
      %v6646 = vpop.permute.xlu0 %6645
      %6647 = vrot.lane.b32.xlu0 %v6576, 16
      %v6648 = vpop.permute.xlu0 %6647
      %6649 = vrot.lane.b32.xlu0 %v6577, 16
      %v6650 = vpop.permute.xlu0 %6649
      %6651 = vrot.lane.b32.xlu0 %v6578, 16
      %v6652 = vpop.permute.xlu0 %6651
      %6653 = vrot.lane.b32.xlu0 %v6579, 16
      %v6654 = vpop.permute.xlu0 %6653
      %6655 = vrot.lane.b32.xlu0 %v6580, 16
      %v6656 = vpop.permute.xlu0 %6655
      %6657 = vrot.lane.b32.xlu0 %v6581, 16
      %v6658 = vpop.permute.xlu0 %6657
      %6659 = vrot.lane.b32.xlu0 %v6582, 16
      %v6660 = vpop.permute.xlu0 %6659
      %6661 = vrot.lane.b32.xlu0 %v6583, 16
      %v6662 = vpop.permute.xlu0 %6661
      %6663 = vrot.lane.b32.xlu0 %v6584, 16
      %v6664 = vpop.permute.xlu0 %6663
      %6665 = vrot.lane.b32.xlu0 %v6585, 16
      %v6666 = vpop.permute.xlu0 %6665
      %6667 = vrot.lane.b32.xlu0 %v6586, 16
      %v6668 = vpop.permute.xlu0 %6667
      %6669 = vrot.lane.b32.xlu0 %v6587, 16
      %v6670 = vpop.permute.xlu0 %6669
      %6671 = vrot.lane.b32.xlu0 %v6588, 16
      %v6672 = vpop.permute.xlu0 %6671
      %6673 = vrot.lane.b32.xlu0 %v6589, 16
      %v6674 = vpop.permute.xlu0 %6673
      %6675 = vrot.lane.b32.xlu0 %v6590, 16
      %v6676 = vpop.permute.xlu0 %6675
      %6677 = vrot.lane.b32.xlu0 %v6591, 16
      %v6678 = vpop.permute.xlu0 %6677
      %6679 = vrot.lane.b32.xlu0 %v6592, 16
      %v6680 = vpop.permute.xlu0 %6679
      %6681 = vrot.lane.b32.xlu0 %v6593, 16
      %v6682 = vpop.permute.xlu0 %6681
      %6683 = vrot.lane.b32.xlu0 %v6594, 16
      %v6684 = vpop.permute.xlu0 %6683
      %6685 = vrot.lane.b32.xlu0 %v6595, 16
      %v6686 = vpop.permute.xlu0 %6685
      %6687 = vrot.lane.b32.xlu0 %v6596, 16
      %v6688 = vpop.permute.xlu0 %6687
      %6689 = vrot.lane.b32.xlu0 %v6597, 16
      %v6690 = vpop.permute.xlu0 %6689
      %6691 = vrot.lane.b32.xlu0 %v6598, 16
      %v6692 = vpop.permute.xlu0 %6691
      %6693 = vrot.lane.b32.xlu0 %v6599, 16
      %v6694 = vpop.permute.xlu0 %6693
      %6695 = vrot.lane.b32.xlu0 %v6600, 16
      %v6696 = vpop.permute.xlu0 %6695
      %6729 = vst.msk [vmem:[#allocation3] sm:$0xff] %vm1185, %v6634
      %6730 = vst.msk [vmem:[#allocation3 + $0x8] sm:$0xff] %vm1185, %v6636
      %6731 = vst.msk [vmem:[#allocation3 + $0x10] sm:$0xff] %vm1185, %v6638
      %6732 = vst.msk [vmem:[#allocation3 + $0x18] sm:$0xff] %vm1185, %v6640
      %6733 = vst.msk [vmem:[#allocation3 + $0x20] sm:$0xff] %vm1185, %v6642
      %6734 = vst.msk [vmem:[#allocation3 + $0x28] sm:$0xff] %vm1185, %v6644
      %6735 = vst.msk [vmem:[#allocation3 + $0x30] sm:$0xff] %vm1185, %v6646
      %6736 = vst.msk [vmem:[#allocation3 + $0x38] sm:$0xff] %vm1185, %v6648
      %6737 = vst.msk [vmem:[#allocation3 + $0x40] sm:$0xff] %vm1185, %v6650
      %6738 = vst.msk [vmem:[#allocation3 + $0x48] sm:$0xff] %vm1185, %v6652
      %6739 = vst.msk [vmem:[#allocation3 + $0x50] sm:$0xff] %vm1185, %v6654
      %6740 = vst.msk [vmem:[#allocation3 + $0x58] sm:$0xff] %vm1185, %v6656
      %6741 = vst.msk [vmem:[#allocation3 + $0x60] sm:$0xff] %vm1185, %v6658
      %6742 = vst.msk [vmem:[#allocation3 + $0x68] sm:$0xff] %vm1185, %v6660
      %6743 = vst.msk [vmem:[#allocation3 + $0x70] sm:$0xff] %vm1185, %v6662
      %6744 = vst.msk [vmem:[#allocation3 + $0x78] sm:$0xff] %vm1185, %v6664
      %6745 = vst.msk [vmem:[#allocation3 + $0x80] sm:$0xff] %vm1185, %v6666
      %6746 = vst.msk [vmem:[#allocation3 + $0x88] sm:$0xff] %vm1185, %v6668
      %6747 = vst.msk [vmem:[#allocation3 + $0x90] sm:$0xff] %vm1185, %v6670
      %6748 = vst.msk [vmem:[#allocation3 + $0x98] sm:$0xff] %vm1185, %v6672
      %6749 = vst.msk [vmem:[#allocation3 + $0xa0] sm:$0xff] %vm1185, %v6674
      %6750 = vst.msk [vmem:[#allocation3 + $0xa8] sm:$0xff] %vm1185, %v6676
      %6751 = vst.msk [vmem:[#allocation3 + $0xb0] sm:$0xff] %vm1185, %v6678
      %6752 = vst.msk [vmem:[#allocation3 + $0xb8] sm:$0xff] %vm1185, %v6680
      %6753 = vst.msk [vmem:[#allocation3 + $0xc0] sm:$0xff] %vm1185, %v6682
      %6754 = vst.msk [vmem:[#allocation3 + $0xc8] sm:$0xff] %vm1185, %v6684
      %6755 = vst.msk [vmem:[#allocation3 + $0xd0] sm:$0xff] %vm1185, %v6686
      %6756 = vst.msk [vmem:[#allocation3 + $0xd8] sm:$0xff] %vm1185, %v6688
      %6757 = vst.msk [vmem:[#allocation3 + $0xe0] sm:$0xff] %vm1185, %v6690
      %6758 = vst.msk [vmem:[#allocation3 + $0xe8] sm:$0xff] %vm1185, %v6692
      %6759 = vst.msk [vmem:[#allocation3 + $0xf0] sm:$0xff] %vm1185, %v6694
      %6760 = vst.msk [vmem:[#allocation3 + $0xf8] sm:$0xff] %vm1185, %v6696
      %v6761 = vld [vmem:[%s511] sm:$0xff]
      %v6762 = vld [vmem:[%s511 + $0x8] sm:$0xff]
      %v6763 = vld [vmem:[%s511 + $0x18] sm:$0xff]
      %v6764 = vld [vmem:[%s511 + $0x20] sm:$0xff]
      %v6765 = vld [vmem:[%s511 + $0x30] sm:$0xff]
      %v6766 = vld [vmem:[%s511 + $0x38] sm:$0xff]
      %v6767 = vld [vmem:[%s511 + $0x48] sm:$0xff]
      %v6768 = vld [vmem:[%s511 + $0x50] sm:$0xff]
      %v6769 = vld [vmem:[%s511 + $0x60] sm:$0xff]
      %v6770 = vld [vmem:[%s511 + $0x68] sm:$0xff]
      %v6771 = vld [vmem:[%s511 + $0x78] sm:$0xff]
      %v6772 = vld [vmem:[%s511 + $0x80] sm:$0xff]
      %v6773 = vld [vmem:[%s511 + $0x90] sm:$0xff]
      %v6774 = vld [vmem:[%s511 + $0x98] sm:$0xff]
      %v6775 = vld [vmem:[%s511 + $0xa8] sm:$0xff]
      %v6776 = vld [vmem:[%s511 + $0xb0] sm:$0xff]
      %v6777 = vld [vmem:[%s511 + $0xc0] sm:$0xff]
      %v6778 = vld [vmem:[%s511 + $0xc8] sm:$0xff]
      %v6779 = vld [vmem:[%s511 + $0xd8] sm:$0xff]
      %v6780 = vld [vmem:[%s511 + $0xe0] sm:$0xff]
      %v6781 = vld [vmem:[%s511 + $0xf0] sm:$0xff]
      %v6782 = vld [vmem:[%s511 + $0xf8] sm:$0xff]
      %v6783 = vld [vmem:[%s511 + $0x108] sm:$0xff]
      %v6784 = vld [vmem:[%s511 + $0x110] sm:$0xff]
      %v6785 = vld [vmem:[%s511 + $0x120] sm:$0xff]
      %v6786 = vld [vmem:[%s511 + $0x128] sm:$0xff]
      %v6787 = vld [vmem:[%s511 + $0x138] sm:$0xff]
      %v6788 = vld [vmem:[%s511 + $0x140] sm:$0xff]
      %v6789 = vld [vmem:[%s511 + $0x150] sm:$0xff]
      %v6790 = vld [vmem:[%s511 + $0x158] sm:$0xff]
      %v6791 = vld [vmem:[%s511 + $0x168] sm:$0xff]
      %v6792 = vld [vmem:[%s511 + $0x170] sm:$0xff]
      %v6793 = vld [vmem:[%s511 + $0x1b0] sm:$0xff]
      %v6794 = vld [vmem:[%s511 + $0x1b8] sm:$0xff]
      %v6795 = vld [vmem:[%s511 + $0x1c8] sm:$0xff]
      %v6796 = vld [vmem:[%s511 + $0x1d0] sm:$0xff]
      %v6797 = vld [vmem:[%s511 + $0x1e0] sm:$0xff]
      %v6798 = vld [vmem:[%s511 + $0x1e8] sm:$0xff]
      %v6799 = vld [vmem:[%s511 + $0x1f8] sm:$0xff]
      %v6800 = vld [vmem:[%s511 + $0x200] sm:$0xff]
      %v6801 = vld [vmem:[%s511 + $0x210] sm:$0xff]
      %v6802 = vld [vmem:[%s511 + $0x218] sm:$0xff]
      %v6803 = vld [vmem:[%s511 + $0x228] sm:$0xff]
      %v6804 = vld [vmem:[%s511 + $0x230] sm:$0xff]
      %v6805 = vld [vmem:[%s511 + $0x240] sm:$0xff]
      %v6806 = vld [vmem:[%s511 + $0x248] sm:$0xff]
      %v6807 = vld [vmem:[%s511 + $0x258] sm:$0xff]
      %v6808 = vld [vmem:[%s511 + $0x260] sm:$0xff]
      %v6809 = vld [vmem:[%s511 + $0x270] sm:$0xff]
      %v6810 = vld [vmem:[%s511 + $0x278] sm:$0xff]
      %v6811 = vld [vmem:[%s511 + $0x288] sm:$0xff]
      %v6812 = vld [vmem:[%s511 + $0x290] sm:$0xff]
      %v6813 = vld [vmem:[%s511 + $0x2a0] sm:$0xff]
      %v6814 = vld [vmem:[%s511 + $0x2a8] sm:$0xff]
      %v6815 = vld [vmem:[%s511 + $0x2b8] sm:$0xff]
      %v6816 = vld [vmem:[%s511 + $0x2c0] sm:$0xff]
      %v6817 = vld [vmem:[%s511 + $0x2d0] sm:$0xff]
      %v6818 = vld [vmem:[%s511 + $0x2d8] sm:$0xff]
      %v6819 = vld [vmem:[%s511 + $0x2e8] sm:$0xff]
      %v6820 = vld [vmem:[%s511 + $0x2f0] sm:$0xff]
      %v6821 = vld [vmem:[%s511 + $0x300] sm:$0xff]
      %v6822 = vld [vmem:[%s511 + $0x308] sm:$0xff]
      %v6823 = vld [vmem:[%s511 + $0x318] sm:$0xff]
      %v6824 = vld [vmem:[%s511 + $0x320] sm:$0xff]
      %v6825 = vpack.c.bf16 %v6762, %v6761
      %v6826 = vpack.c.bf16 %v6764, %v6763
      %v6827 = vpack.c.bf16 %v6766, %v6765
      %v6828 = vpack.c.bf16 %v6768, %v6767
      %v6829 = vpack.c.bf16 %v6770, %v6769
      %v6830 = vpack.c.bf16 %v6772, %v6771
      %v6831 = vpack.c.bf16 %v6774, %v6773
      %v6832 = vpack.c.bf16 %v6776, %v6775
      %v6833 = vpack.c.bf16 %v6778, %v6777
      %v6834 = vpack.c.bf16 %v6780, %v6779
      %v6835 = vpack.c.bf16 %v6782, %v6781
      %v6836 = vpack.c.bf16 %v6784, %v6783
      %v6837 = vpack.c.bf16 %v6786, %v6785
      %v6838 = vpack.c.bf16 %v6788, %v6787
      %v6839 = vpack.c.bf16 %v6790, %v6789
      %v6840 = vpack.c.bf16 %v6792, %v6791
      %v6841 = vpack.c.bf16 %v6794, %v6793
      %v6842 = vpack.c.bf16 %v6796, %v6795
      %v6843 = vpack.c.bf16 %v6798, %v6797
      %v6844 = vpack.c.bf16 %v6800, %v6799
      %v6845 = vpack.c.bf16 %v6802, %v6801
      %v6846 = vpack.c.bf16 %v6804, %v6803
      %v6847 = vpack.c.bf16 %v6806, %v6805
      %v6848 = vpack.c.bf16 %v6808, %v6807
      %v6849 = vpack.c.bf16 %v6810, %v6809
      %v6850 = vpack.c.bf16 %v6812, %v6811
      %v6851 = vpack.c.bf16 %v6814, %v6813
      %v6852 = vpack.c.bf16 %v6816, %v6815
      %v6853 = vpack.c.bf16 %v6818, %v6817
      %v6854 = vpack.c.bf16 %v6820, %v6819
      %v6855 = vpack.c.bf16 %v6822, %v6821
      %v6856 = vpack.c.bf16 %v6824, %v6823
      %6889 = vrot.lane.b32.xlu0 %v6825, 24
      %v6890 = vpop.permute.xlu0 %6889
      %6891 = vrot.lane.b32.xlu0 %v6826, 24
      %v6892 = vpop.permute.xlu0 %6891
      %6893 = vrot.lane.b32.xlu0 %v6827, 24
      %v6894 = vpop.permute.xlu0 %6893
      %6895 = vrot.lane.b32.xlu0 %v6828, 24
      %v6896 = vpop.permute.xlu0 %6895
      %6897 = vrot.lane.b32.xlu0 %v6829, 24
      %v6898 = vpop.permute.xlu0 %6897
      %6899 = vrot.lane.b32.xlu0 %v6830, 24
      %v6900 = vpop.permute.xlu0 %6899
      %6901 = vrot.lane.b32.xlu0 %v6831, 24
      %v6902 = vpop.permute.xlu0 %6901
      %6903 = vrot.lane.b32.xlu0 %v6832, 24
      %v6904 = vpop.permute.xlu0 %6903
      %6905 = vrot.lane.b32.xlu0 %v6833, 24
      %v6906 = vpop.permute.xlu0 %6905
      %6907 = vrot.lane.b32.xlu0 %v6834, 24
      %v6908 = vpop.permute.xlu0 %6907
      %6909 = vrot.lane.b32.xlu0 %v6835, 24
      %v6910 = vpop.permute.xlu0 %6909
      %6911 = vrot.lane.b32.xlu0 %v6836, 24
      %v6912 = vpop.permute.xlu0 %6911
      %6913 = vrot.lane.b32.xlu0 %v6837, 24
      %v6914 = vpop.permute.xlu0 %6913
      %6915 = vrot.lane.b32.xlu0 %v6838, 24
      %v6916 = vpop.permute.xlu0 %6915
      %6917 = vrot.lane.b32.xlu0 %v6839, 24
      %v6918 = vpop.permute.xlu0 %6917
      %6919 = vrot.lane.b32.xlu0 %v6840, 24
      %v6920 = vpop.permute.xlu0 %6919
      %6921 = vrot.lane.b32.xlu0 %v6841, 24
      %v6922 = vpop.permute.xlu0 %6921
      %6923 = vrot.lane.b32.xlu0 %v6842, 24
      %v6924 = vpop.permute.xlu0 %6923
      %6925 = vrot.lane.b32.xlu0 %v6843, 24
      %v6926 = vpop.permute.xlu0 %6925
      %6927 = vrot.lane.b32.xlu0 %v6844, 24
      %v6928 = vpop.permute.xlu0 %6927
      %6929 = vrot.lane.b32.xlu0 %v6845, 24
      %v6930 = vpop.permute.xlu0 %6929
      %6931 = vrot.lane.b32.xlu0 %v6846, 24
      %v6932 = vpop.permute.xlu0 %6931
      %6933 = vrot.lane.b32.xlu0 %v6847, 24
      %v6934 = vpop.permute.xlu0 %6933
      %6935 = vrot.lane.b32.xlu0 %v6848, 24
      %v6936 = vpop.permute.xlu0 %6935
      %6937 = vrot.lane.b32.xlu0 %v6849, 24
      %v6938 = vpop.permute.xlu0 %6937
      %6939 = vrot.lane.b32.xlu0 %v6850, 24
      %v6940 = vpop.permute.xlu0 %6939
      %6941 = vrot.lane.b32.xlu0 %v6851, 24
      %v6942 = vpop.permute.xlu0 %6941
      %6943 = vrot.lane.b32.xlu0 %v6852, 24
      %v6944 = vpop.permute.xlu0 %6943
      %6945 = vrot.lane.b32.xlu0 %v6853, 24
      %v6946 = vpop.permute.xlu0 %6945
      %6947 = vrot.lane.b32.xlu0 %v6854, 24
      %v6948 = vpop.permute.xlu0 %6947
      %6949 = vrot.lane.b32.xlu0 %v6855, 24
      %v6950 = vpop.permute.xlu0 %6949
      %6951 = vrot.lane.b32.xlu0 %v6856, 24
      %v6952 = vpop.permute.xlu0 %6951
      %6985 = vst.msk [vmem:[#allocation3] sm:$0xff] %vm1442, %v6890
      %6986 = vst.msk [vmem:[#allocation3 + $0x8] sm:$0xff] %vm1442, %v6892
      %6987 = vst.msk [vmem:[#allocation3 + $0x10] sm:$0xff] %vm1442, %v6894
      %6988 = vst.msk [vmem:[#allocation3 + $0x18] sm:$0xff] %vm1442, %v6896
      %6989 = vst.msk [vmem:[#allocation3 + $0x20] sm:$0xff] %vm1442, %v6898
      %6990 = vst.msk [vmem:[#allocation3 + $0x28] sm:$0xff] %vm1442, %v6900
      %6991 = vst.msk [vmem:[#allocation3 + $0x30] sm:$0xff] %vm1442, %v6902
      %6992 = vst.msk [vmem:[#allocation3 + $0x38] sm:$0xff] %vm1442, %v6904
      %6993 = vst.msk [vmem:[#allocation3 + $0x40] sm:$0xff] %vm1442, %v6906
      %6994 = vst.msk [vmem:[#allocation3 + $0x48] sm:$0xff] %vm1442, %v6908
      %6995 = vst.msk [vmem:[#allocation3 + $0x50] sm:$0xff] %vm1442, %v6910
      %6996 = vst.msk [vmem:[#allocation3 + $0x58] sm:$0xff] %vm1442, %v6912
      %6997 = vst.msk [vmem:[#allocation3 + $0x60] sm:$0xff] %vm1442, %v6914
      %6998 = vst.msk [vmem:[#allocation3 + $0x68] sm:$0xff] %vm1442, %v6916
      %6999 = vst.msk [vmem:[#allocation3 + $0x70] sm:$0xff] %vm1442, %v6918
      %7000 = vst.msk [vmem:[#allocation3 + $0x78] sm:$0xff] %vm1442, %v6920
      %7001 = vst.msk [vmem:[#allocation3 + $0x80] sm:$0xff] %vm1442, %v6922
      %7002 = vst.msk [vmem:[#allocation3 + $0x88] sm:$0xff] %vm1442, %v6924
      %7003 = vst.msk [vmem:[#allocation3 + $0x90] sm:$0xff] %vm1442, %v6926
      %7004 = vst.msk [vmem:[#allocation3 + $0x98] sm:$0xff] %vm1442, %v6928
      %7005 = vst.msk [vmem:[#allocation3 + $0xa0] sm:$0xff] %vm1442, %v6930
      %7006 = vst.msk [vmem:[#allocation3 + $0xa8] sm:$0xff] %vm1442, %v6932
      %7007 = vst.msk [vmem:[#allocation3 + $0xb0] sm:$0xff] %vm1442, %v6934
      %7008 = vst.msk [vmem:[#allocation3 + $0xb8] sm:$0xff] %vm1442, %v6936
      %7009 = vst.msk [vmem:[#allocation3 + $0xc0] sm:$0xff] %vm1442, %v6938
      %7010 = vst.msk [vmem:[#allocation3 + $0xc8] sm:$0xff] %vm1442, %v6940
      %7011 = vst.msk [vmem:[#allocation3 + $0xd0] sm:$0xff] %vm1442, %v6942
      %7012 = vst.msk [vmem:[#allocation3 + $0xd8] sm:$0xff] %vm1442, %v6944
      %7013 = vst.msk [vmem:[#allocation3 + $0xe0] sm:$0xff] %vm1442, %v6946
      %7014 = vst.msk [vmem:[#allocation3 + $0xe8] sm:$0xff] %vm1442, %v6948
      %7015 = vst.msk [vmem:[#allocation3 + $0xf0] sm:$0xff] %vm1442, %v6950
      %7016 = vst.msk [vmem:[#allocation3 + $0xf8] sm:$0xff] %vm1442, %v6952
      %v7017 = vld [vmem:[%s511 + $0x1] sm:$0xff]
      %v7018 = vld [vmem:[%s511 + $0x9] sm:$0xff]
      %v7019 = vld [vmem:[%s511 + $0x19] sm:$0xff]
      %v7020 = vld [vmem:[%s511 + $0x21] sm:$0xff]
      %v7021 = vld [vmem:[%s511 + $0x31] sm:$0xff]
      %v7022 = vld [vmem:[%s511 + $0x39] sm:$0xff]
      %v7023 = vld [vmem:[%s511 + $0x49] sm:$0xff]
      %v7024 = vld [vmem:[%s511 + $0x51] sm:$0xff]
      %v7025 = vld [vmem:[%s511 + $0x61] sm:$0xff]
      %v7026 = vld [vmem:[%s511 + $0x69] sm:$0xff]
      %v7027 = vld [vmem:[%s511 + $0x79] sm:$0xff]
      %v7028 = vld [vmem:[%s511 + $0x81] sm:$0xff]
      %v7029 = vld [vmem:[%s511 + $0x91] sm:$0xff]
      %v7030 = vld [vmem:[%s511 + $0x99] sm:$0xff]
      %v7031 = vld [vmem:[%s511 + $0xa9] sm:$0xff]
      %v7032 = vld [vmem:[%s511 + $0xb1] sm:$0xff]
      %v7033 = vld [vmem:[%s511 + $0xc1] sm:$0xff]
      %v7034 = vld [vmem:[%s511 + $0xc9] sm:$0xff]
      %v7035 = vld [vmem:[%s511 + $0xd9] sm:$0xff]
      %v7036 = vld [vmem:[%s511 + $0xe1] sm:$0xff]
      %v7037 = vld [vmem:[%s511 + $0xf1] sm:$0xff]
      %v7038 = vld [vmem:[%s511 + $0xf9] sm:$0xff]
      %v7039 = vld [vmem:[%s511 + $0x109] sm:$0xff]
      %v7040 = vld [vmem:[%s511 + $0x111] sm:$0xff]
      %v7041 = vld [vmem:[%s511 + $0x121] sm:$0xff]
      %v7042 = vld [vmem:[%s511 + $0x129] sm:$0xff]
      %v7043 = vld [vmem:[%s511 + $0x139] sm:$0xff]
      %v7044 = vld [vmem:[%s511 + $0x141] sm:$0xff]
      %v7045 = vld [vmem:[%s511 + $0x151] sm:$0xff]
      %v7046 = vld [vmem:[%s511 + $0x159] sm:$0xff]
      %v7047 = vld [vmem:[%s511 + $0x169] sm:$0xff]
      %v7048 = vld [vmem:[%s511 + $0x171] sm:$0xff]
      %v7049 = vld [vmem:[%s511 + $0x1b1] sm:$0xff]
      %v7050 = vld [vmem:[%s511 + $0x1b9] sm:$0xff]
      %v7051 = vld [vmem:[%s511 + $0x1c9] sm:$0xff]
      %v7052 = vld [vmem:[%s511 + $0x1d1] sm:$0xff]
      %v7053 = vld [vmem:[%s511 + $0x1e1] sm:$0xff]
      %v7054 = vld [vmem:[%s511 + $0x1e9] sm:$0xff]
      %v7055 = vld [vmem:[%s511 + $0x1f9] sm:$0xff]
      %v7056 = vld [vmem:[%s511 + $0x201] sm:$0xff]
      %v7057 = vld [vmem:[%s511 + $0x211] sm:$0xff]
      %v7058 = vld [vmem:[%s511 + $0x219] sm:$0xff]
      %v7059 = vld [vmem:[%s511 + $0x229] sm:$0xff]
      %v7060 = vld [vmem:[%s511 + $0x231] sm:$0xff]
      %v7061 = vld [vmem:[%s511 + $0x241] sm:$0xff]
      %v7062 = vld [vmem:[%s511 + $0x249] sm:$0xff]
      %v7063 = vld [vmem:[%s511 + $0x259] sm:$0xff]
      %v7064 = vld [vmem:[%s511 + $0x261] sm:$0xff]
      %v7065 = vld [vmem:[%s511 + $0x271] sm:$0xff]
      %v7066 = vld [vmem:[%s511 + $0x279] sm:$0xff]
      %v7067 = vld [vmem:[%s511 + $0x289] sm:$0xff]
      %v7068 = vld [vmem:[%s511 + $0x291] sm:$0xff]
      %v7069 = vld [vmem:[%s511 + $0x2a1] sm:$0xff]
      %v7070 = vld [vmem:[%s511 + $0x2a9] sm:$0xff]
      %v7071 = vld [vmem:[%s511 + $0x2b9] sm:$0xff]
      %v7072 = vld [vmem:[%s511 + $0x2c1] sm:$0xff]
      %v7073 = vld [vmem:[%s511 + $0x2d1] sm:$0xff]
      %v7074 = vld [vmem:[%s511 + $0x2d9] sm:$0xff]
      %v7075 = vld [vmem:[%s511 + $0x2e9] sm:$0xff]
      %v7076 = vld [vmem:[%s511 + $0x2f1] sm:$0xff]
      %v7077 = vld [vmem:[%s511 + $0x301] sm:$0xff]
      %v7078 = vld [vmem:[%s511 + $0x309] sm:$0xff]
      %v7079 = vld [vmem:[%s511 + $0x319] sm:$0xff]
      %v7080 = vld [vmem:[%s511 + $0x321] sm:$0xff]
      %v7081 = vpack.c.bf16 %v7018, %v7017
      %v7082 = vpack.c.bf16 %v7020, %v7019
      %v7083 = vpack.c.bf16 %v7022, %v7021
      %v7084 = vpack.c.bf16 %v7024, %v7023
      %v7085 = vpack.c.bf16 %v7026, %v7025
      %v7086 = vpack.c.bf16 %v7028, %v7027
      %v7087 = vpack.c.bf16 %v7030, %v7029
      %v7088 = vpack.c.bf16 %v7032, %v7031
      %v7089 = vpack.c.bf16 %v7034, %v7033
      %v7090 = vpack.c.bf16 %v7036, %v7035
      %v7091 = vpack.c.bf16 %v7038, %v7037
      %v7092 = vpack.c.bf16 %v7040, %v7039
      %v7093 = vpack.c.bf16 %v7042, %v7041
      %v7094 = vpack.c.bf16 %v7044, %v7043
      %v7095 = vpack.c.bf16 %v7046, %v7045
      %v7096 = vpack.c.bf16 %v7048, %v7047
      %v7097 = vpack.c.bf16 %v7050, %v7049
      %v7098 = vpack.c.bf16 %v7052, %v7051
      %v7099 = vpack.c.bf16 %v7054, %v7053
      %v7100 = vpack.c.bf16 %v7056, %v7055
      %v7101 = vpack.c.bf16 %v7058, %v7057
      %v7102 = vpack.c.bf16 %v7060, %v7059
      %v7103 = vpack.c.bf16 %v7062, %v7061
      %v7104 = vpack.c.bf16 %v7064, %v7063
      %v7105 = vpack.c.bf16 %v7066, %v7065
      %v7106 = vpack.c.bf16 %v7068, %v7067
      %v7107 = vpack.c.bf16 %v7070, %v7069
      %v7108 = vpack.c.bf16 %v7072, %v7071
      %v7109 = vpack.c.bf16 %v7074, %v7073
      %v7110 = vpack.c.bf16 %v7076, %v7075
      %v7111 = vpack.c.bf16 %v7078, %v7077
      %v7112 = vpack.c.bf16 %v7080, %v7079
      %7145 = vrot.lane.b32.xlu0 %v7081, 32
      %v7146 = vpop.permute.xlu0 %7145
      %7147 = vrot.lane.b32.xlu0 %v7082, 32
      %v7148 = vpop.permute.xlu0 %7147
      %7149 = vrot.lane.b32.xlu0 %v7083, 32
      %v7150 = vpop.permute.xlu0 %7149
      %7151 = vrot.lane.b32.xlu0 %v7084, 32
      %v7152 = vpop.permute.xlu0 %7151
      %7153 = vrot.lane.b32.xlu0 %v7085, 32
      %v7154 = vpop.permute.xlu0 %7153
      %7155 = vrot.lane.b32.xlu0 %v7086, 32
      %v7156 = vpop.permute.xlu0 %7155
      %7157 = vrot.lane.b32.xlu0 %v7087, 32
      %v7158 = vpop.permute.xlu0 %7157
      %7159 = vrot.lane.b32.xlu0 %v7088, 32
      %v7160 = vpop.permute.xlu0 %7159
      %7161 = vrot.lane.b32.xlu0 %v7089, 32
      %v7162 = vpop.permute.xlu0 %7161
      %7163 = vrot.lane.b32.xlu0 %v7090, 32
      %v7164 = vpop.permute.xlu0 %7163
      %7165 = vrot.lane.b32.xlu0 %v7091, 32
      %v7166 = vpop.permute.xlu0 %7165
      %7167 = vrot.lane.b32.xlu0 %v7092, 32
      %v7168 = vpop.permute.xlu0 %7167
      %7169 = vrot.lane.b32.xlu0 %v7093, 32
      %v7170 = vpop.permute.xlu0 %7169
      %7171 = vrot.lane.b32.xlu0 %v7094, 32
      %v7172 = vpop.permute.xlu0 %7171
      %7173 = vrot.lane.b32.xlu0 %v7095, 32
      %v7174 = vpop.permute.xlu0 %7173
      %7175 = vrot.lane.b32.xlu0 %v7096, 32
      %v7176 = vpop.permute.xlu0 %7175
      %7177 = vrot.lane.b32.xlu0 %v7097, 32
      %v7178 = vpop.permute.xlu0 %7177
      %7179 = vrot.lane.b32.xlu0 %v7098, 32
      %v7180 = vpop.permute.xlu0 %7179
      %7181 = vrot.lane.b32.xlu0 %v7099, 32
      %v7182 = vpop.permute.xlu0 %7181
      %7183 = vrot.lane.b32.xlu0 %v7100, 32
      %v7184 = vpop.permute.xlu0 %7183
      %7185 = vrot.lane.b32.xlu0 %v7101, 32
      %v7186 = vpop.permute.xlu0 %7185
      %7187 = vrot.lane.b32.xlu0 %v7102, 32
      %v7188 = vpop.permute.xlu0 %7187
      %7189 = vrot.lane.b32.xlu0 %v7103, 32
      %v7190 = vpop.permute.xlu0 %7189
      %7191 = vrot.lane.b32.xlu0 %v7104, 32
      %v7192 = vpop.permute.xlu0 %7191
      %7193 = vrot.lane.b32.xlu0 %v7105, 32
      %v7194 = vpop.permute.xlu0 %7193
      %7195 = vrot.lane.b32.xlu0 %v7106, 32
      %v7196 = vpop.permute.xlu0 %7195
      %7197 = vrot.lane.b32.xlu0 %v7107, 32
      %v7198 = vpop.permute.xlu0 %7197
      %7199 = vrot.lane.b32.xlu0 %v7108, 32
      %v7200 = vpop.permute.xlu0 %7199
      %7201 = vrot.lane.b32.xlu0 %v7109, 32
      %v7202 = vpop.permute.xlu0 %7201
      %7203 = vrot.lane.b32.xlu0 %v7110, 32
      %v7204 = vpop.permute.xlu0 %7203
      %7205 = vrot.lane.b32.xlu0 %v7111, 32
      %v7206 = vpop.permute.xlu0 %7205
      %7207 = vrot.lane.b32.xlu0 %v7112, 32
      %v7208 = vpop.permute.xlu0 %7207
      %7241 = vst.msk [vmem:[#allocation3] sm:$0xff] %vm1699, %v7146
      %7242 = vst.msk [vmem:[#allocation3 + $0x8] sm:$0xff] %vm1699, %v7148
      %7243 = vst.msk [vmem:[#allocation3 + $0x10] sm:$0xff] %vm1699, %v7150
      %7244 = vst.msk [vmem:[#allocation3 + $0x18] sm:$0xff] %vm1699, %v7152
      %7245 = vst.msk [vmem:[#allocation3 + $0x20] sm:$0xff] %vm1699, %v7154
      %7246 = vst.msk [vmem:[#allocation3 + $0x28] sm:$0xff] %vm1699, %v7156
      %7247 = vst.msk [vmem:[#allocation3 + $0x30] sm:$0xff] %vm1699, %v7158
      %7248 = vst.msk [vmem:[#allocation3 + $0x38] sm:$0xff] %vm1699, %v7160
      %7249 = vst.msk [vmem:[#allocation3 + $0x40] sm:$0xff] %vm1699, %v7162
      %7250 = vst.msk [vmem:[#allocation3 + $0x48] sm:$0xff] %vm1699, %v7164
      %7251 = vst.msk [vmem:[#allocation3 + $0x50] sm:$0xff] %vm1699, %v7166
      %7252 = vst.msk [vmem:[#allocation3 + $0x58] sm:$0xff] %vm1699, %v7168
      %7253 = vst.msk [vmem:[#allocation3 + $0x60] sm:$0xff] %vm1699, %v7170
      %7254 = vst.msk [vmem:[#allocation3 + $0x68] sm:$0xff] %vm1699, %v7172
      %7255 = vst.msk [vmem:[#allocation3 + $0x70] sm:$0xff] %vm1699, %v7174
      %7256 = vst.msk [vmem:[#allocation3 + $0x78] sm:$0xff] %vm1699, %v7176
      %7257 = vst.msk [vmem:[#allocation3 + $0x80] sm:$0xff] %vm1699, %v7178
      %7258 = vst.msk [vmem:[#allocation3 + $0x88] sm:$0xff] %vm1699, %v7180
      %7259 = vst.msk [vmem:[#allocation3 + $0x90] sm:$0xff] %vm1699, %v7182
      %7260 = vst.msk [vmem:[#allocation3 + $0x98] sm:$0xff] %vm1699, %v7184
      %7261 = vst.msk [vmem:[#allocation3 + $0xa0] sm:$0xff] %vm1699, %v7186
      %7262 = vst.msk [vmem:[#allocation3 + $0xa8] sm:$0xff] %vm1699, %v7188
      %7263 = vst.msk [vmem:[#allocation3 + $0xb0] sm:$0xff] %vm1699, %v7190
      %7264 = vst.msk [vmem:[#allocation3 + $0xb8] sm:$0xff] %vm1699, %v7192
      %7265 = vst.msk [vmem:[#allocation3 + $0xc0] sm:$0xff] %vm1699, %v7194
      %7266 = vst.msk [vmem:[#allocation3 + $0xc8] sm:$0xff] %vm1699, %v7196
      %7267 = vst.msk [vmem:[#allocation3 + $0xd0] sm:$0xff] %vm1699, %v7198
      %7268 = vst.msk [vmem:[#allocation3 + $0xd8] sm:$0xff] %vm1699, %v7200
      %7269 = vst.msk [vmem:[#allocation3 + $0xe0] sm:$0xff] %vm1699, %v7202
      %7270 = vst.msk [vmem:[#allocation3 + $0xe8] sm:$0xff] %vm1699, %v7204
      %7271 = vst.msk [vmem:[#allocation3 + $0xf0] sm:$0xff] %vm1699, %v7206
      %7272 = vst.msk [vmem:[#allocation3 + $0xf8] sm:$0xff] %vm1699, %v7208
      %v7273 = vld [vmem:[%s511 + $0x2] sm:$0xff]
      %v7274 = vld [vmem:[%s511 + $0xa] sm:$0xff]
      %v7275 = vld [vmem:[%s511 + $0x1a] sm:$0xff]
      %v7276 = vld [vmem:[%s511 + $0x22] sm:$0xff]
      %v7277 = vld [vmem:[%s511 + $0x32] sm:$0xff]
      %v7278 = vld [vmem:[%s511 + $0x3a] sm:$0xff]
      %v7279 = vld [vmem:[%s511 + $0x4a] sm:$0xff]
      %v7280 = vld [vmem:[%s511 + $0x52] sm:$0xff]
      %v7281 = vld [vmem:[%s511 + $0x62] sm:$0xff]
      %v7282 = vld [vmem:[%s511 + $0x6a] sm:$0xff]
      %v7283 = vld [vmem:[%s511 + $0x7a] sm:$0xff]
      %v7284 = vld [vmem:[%s511 + $0x82] sm:$0xff]
      %v7285 = vld [vmem:[%s511 + $0x92] sm:$0xff]
      %v7286 = vld [vmem:[%s511 + $0x9a] sm:$0xff]
      %v7287 = vld [vmem:[%s511 + $0xaa] sm:$0xff]
      %v7288 = vld [vmem:[%s511 + $0xb2] sm:$0xff]
      %v7289 = vld [vmem:[%s511 + $0xc2] sm:$0xff]
      %v7290 = vld [vmem:[%s511 + $0xca] sm:$0xff]
      %v7291 = vld [vmem:[%s511 + $0xda] sm:$0xff]
      %v7292 = vld [vmem:[%s511 + $0xe2] sm:$0xff]
      %v7293 = vld [vmem:[%s511 + $0xf2] sm:$0xff]
      %v7294 = vld [vmem:[%s511 + $0xfa] sm:$0xff]
      %v7295 = vld [vmem:[%s511 + $0x10a] sm:$0xff]
      %v7296 = vld [vmem:[%s511 + $0x112] sm:$0xff]
      %v7297 = vld [vmem:[%s511 + $0x122] sm:$0xff]
      %v7298 = vld [vmem:[%s511 + $0x12a] sm:$0xff]
      %v7299 = vld [vmem:[%s511 + $0x13a] sm:$0xff]
      %v7300 = vld [vmem:[%s511 + $0x142] sm:$0xff]
      %v7301 = vld [vmem:[%s511 + $0x152] sm:$0xff]
      %v7302 = vld [vmem:[%s511 + $0x15a] sm:$0xff]
      %v7303 = vld [vmem:[%s511 + $0x16a] sm:$0xff]
      %v7304 = vld [vmem:[%s511 + $0x172] sm:$0xff]
      %v7305 = vld [vmem:[%s511 + $0x1b2] sm:$0xff]
      %v7306 = vld [vmem:[%s511 + $0x1ba] sm:$0xff]
      %v7307 = vld [vmem:[%s511 + $0x1ca] sm:$0xff]
      %v7308 = vld [vmem:[%s511 + $0x1d2] sm:$0xff]
      %v7309 = vld [vmem:[%s511 + $0x1e2] sm:$0xff]
      %v7310 = vld [vmem:[%s511 + $0x1ea] sm:$0xff]
      %v7311 = vld [vmem:[%s511 + $0x1fa] sm:$0xff]
      %v7312 = vld [vmem:[%s511 + $0x202] sm:$0xff]
      %v7313 = vld [vmem:[%s511 + $0x212] sm:$0xff]
      %v7314 = vld [vmem:[%s511 + $0x21a] sm:$0xff]
      %v7315 = vld [vmem:[%s511 + $0x22a] sm:$0xff]
      %v7316 = vld [vmem:[%s511 + $0x232] sm:$0xff]
      %v7317 = vld [vmem:[%s511 + $0x242] sm:$0xff]
      %v7318 = vld [vmem:[%s511 + $0x24a] sm:$0xff]
      %v7319 = vld [vmem:[%s511 + $0x25a] sm:$0xff]
      %v7320 = vld [vmem:[%s511 + $0x262] sm:$0xff]
      %v7321 = vld [vmem:[%s511 + $0x272] sm:$0xff]
      %v7322 = vld [vmem:[%s511 + $0x27a] sm:$0xff]
      %v7323 = vld [vmem:[%s511 + $0x28a] sm:$0xff]
      %v7324 = vld [vmem:[%s511 + $0x292] sm:$0xff]
      %v7325 = vld [vmem:[%s511 + $0x2a2] sm:$0xff]
      %v7326 = vld [vmem:[%s511 + $0x2aa] sm:$0xff]
      %v7327 = vld [vmem:[%s511 + $0x2ba] sm:$0xff]
      %v7328 = vld [vmem:[%s511 + $0x2c2] sm:$0xff]
      %v7329 = vld [vmem:[%s511 + $0x2d2] sm:$0xff]
      %v7330 = vld [vmem:[%s511 + $0x2da] sm:$0xff]
      %v7331 = vld [vmem:[%s511 + $0x2ea] sm:$0xff]
      %v7332 = vld [vmem:[%s511 + $0x2f2] sm:$0xff]
      %v7333 = vld [vmem:[%s511 + $0x302] sm:$0xff]
      %v7334 = vld [vmem:[%s511 + $0x30a] sm:$0xff]
      %v7335 = vld [vmem:[%s511 + $0x31a] sm:$0xff]
      %v7336 = vld [vmem:[%s511 + $0x322] sm:$0xff]
      %v7337 = vpack.c.bf16 %v7274, %v7273
      %v7338 = vpack.c.bf16 %v7276, %v7275
      %v7339 = vpack.c.bf16 %v7278, %v7277
      %v7340 = vpack.c.bf16 %v7280, %v7279
      %v7341 = vpack.c.bf16 %v7282, %v7281
      %v7342 = vpack.c.bf16 %v7284, %v7283
      %v7343 = vpack.c.bf16 %v7286, %v7285
      %v7344 = vpack.c.bf16 %v7288, %v7287
      %v7345 = vpack.c.bf16 %v7290, %v7289
      %v7346 = vpack.c.bf16 %v7292, %v7291
      %v7347 = vpack.c.bf16 %v7294, %v7293
      %v7348 = vpack.c.bf16 %v7296, %v7295
      %v7349 = vpack.c.bf16 %v7298, %v7297
      %v7350 = vpack.c.bf16 %v7300, %v7299
      %v7351 = vpack.c.bf16 %v7302, %v7301
      %v7352 = vpack.c.bf16 %v7304, %v7303
      %v7353 = vpack.c.bf16 %v7306, %v7305
      %v7354 = vpack.c.bf16 %v7308, %v7307
      %v7355 = vpack.c.bf16 %v7310, %v7309
      %v7356 = vpack.c.bf16 %v7312, %v7311
      %v7357 = vpack.c.bf16 %v7314, %v7313
      %v7358 = vpack.c.bf16 %v7316, %v7315
      %v7359 = vpack.c.bf16 %v7318, %v7317
      %v7360 = vpack.c.bf16 %v7320, %v7319
      %v7361 = vpack.c.bf16 %v7322, %v7321
      %v7362 = vpack.c.bf16 %v7324, %v7323
      %v7363 = vpack.c.bf16 %v7326, %v7325
      %v7364 = vpack.c.bf16 %v7328, %v7327
      %v7365 = vpack.c.bf16 %v7330, %v7329
      %v7366 = vpack.c.bf16 %v7332, %v7331
      %v7367 = vpack.c.bf16 %v7334, %v7333
      %v7368 = vpack.c.bf16 %v7336, %v7335
      %7401 = vrot.lane.b32.xlu0 %v7337, 40
      %v7402 = vpop.permute.xlu0 %7401
      %7403 = vrot.lane.b32.xlu0 %v7338, 40
      %v7404 = vpop.permute.xlu0 %7403
      %7405 = vrot.lane.b32.xlu0 %v7339, 40
      %v7406 = vpop.permute.xlu0 %7405
      %7407 = vrot.lane.b32.xlu0 %v7340, 40
      %v7408 = vpop.permute.xlu0 %7407
      %7409 = vrot.lane.b32.xlu0 %v7341, 40
      %v7410 = vpop.permute.xlu0 %7409
      %7411 = vrot.lane.b32.xlu0 %v7342, 40
      %v7412 = vpop.permute.xlu0 %7411
      %7413 = vrot.lane.b32.xlu0 %v7343, 40
      %v7414 = vpop.permute.xlu0 %7413
      %7415 = vrot.lane.b32.xlu0 %v7344, 40
      %v7416 = vpop.permute.xlu0 %7415
      %7417 = vrot.lane.b32.xlu0 %v7345, 40
      %v7418 = vpop.permute.xlu0 %7417
      %7419 = vrot.lane.b32.xlu0 %v7346, 40
      %v7420 = vpop.permute.xlu0 %7419
      %7421 = vrot.lane.b32.xlu0 %v7347, 40
      %v7422 = vpop.permute.xlu0 %7421
      %7423 = vrot.lane.b32.xlu0 %v7348, 40
      %v7424 = vpop.permute.xlu0 %7423
      %7425 = vrot.lane.b32.xlu0 %v7349, 40
      %v7426 = vpop.permute.xlu0 %7425
      %7427 = vrot.lane.b32.xlu0 %v7350, 40
      %v7428 = vpop.permute.xlu0 %7427
      %7429 = vrot.lane.b32.xlu0 %v7351, 40
      %v7430 = vpop.permute.xlu0 %7429
      %7431 = vrot.lane.b32.xlu0 %v7352, 40
      %v7432 = vpop.permute.xlu0 %7431
      %7433 = vrot.lane.b32.xlu0 %v7353, 40
      %v7434 = vpop.permute.xlu0 %7433
      %7435 = vrot.lane.b32.xlu0 %v7354, 40
      %v7436 = vpop.permute.xlu0 %7435
      %7437 = vrot.lane.b32.xlu0 %v7355, 40
      %v7438 = vpop.permute.xlu0 %7437
      %7439 = vrot.lane.b32.xlu0 %v7356, 40
      %v7440 = vpop.permute.xlu0 %7439
      %7441 = vrot.lane.b32.xlu0 %v7357, 40
      %v7442 = vpop.permute.xlu0 %7441
      %7443 = vrot.lane.b32.xlu0 %v7358, 40
      %v7444 = vpop.permute.xlu0 %7443
      %7445 = vrot.lane.b32.xlu0 %v7359, 40
      %v7446 = vpop.permute.xlu0 %7445
      %7447 = vrot.lane.b32.xlu0 %v7360, 40
      %v7448 = vpop.permute.xlu0 %7447
      %7449 = vrot.lane.b32.xlu0 %v7361, 40
      %v7450 = vpop.permute.xlu0 %7449
      %7451 = vrot.lane.b32.xlu0 %v7362, 40
      %v7452 = vpop.permute.xlu0 %7451
      %7453 = vrot.lane.b32.xlu0 %v7363, 40
      %v7454 = vpop.permute.xlu0 %7453
      %7455 = vrot.lane.b32.xlu0 %v7364, 40
      %v7456 = vpop.permute.xlu0 %7455
      %7457 = vrot.lane.b32.xlu0 %v7365, 40
      %v7458 = vpop.permute.xlu0 %7457
      %7459 = vrot.lane.b32.xlu0 %v7366, 40
      %v7460 = vpop.permute.xlu0 %7459
      %7461 = vrot.lane.b32.xlu0 %v7367, 40
      %v7462 = vpop.permute.xlu0 %7461
      %7463 = vrot.lane.b32.xlu0 %v7368, 40
      %v7464 = vpop.permute.xlu0 %7463
      %7497 = vst.msk [vmem:[#allocation3] sm:$0xff] %vm1956, %v7402
      %7498 = vst.msk [vmem:[#allocation3 + $0x8] sm:$0xff] %vm1956, %v7404
      %7499 = vst.msk [vmem:[#allocation3 + $0x10] sm:$0xff] %vm1956, %v7406
      %7500 = vst.msk [vmem:[#allocation3 + $0x18] sm:$0xff] %vm1956, %v7408
      %7501 = vst.msk [vmem:[#allocation3 + $0x20] sm:$0xff] %vm1956, %v7410
      %7502 = vst.msk [vmem:[#allocation3 + $0x28] sm:$0xff] %vm1956, %v7412
      %7503 = vst.msk [vmem:[#allocation3 + $0x30] sm:$0xff] %vm1956, %v7414
      %7504 = vst.msk [vmem:[#allocation3 + $0x38] sm:$0xff] %vm1956, %v7416
      %7505 = vst.msk [vmem:[#allocation3 + $0x40] sm:$0xff] %vm1956, %v7418
      %7506 = vst.msk [vmem:[#allocation3 + $0x48] sm:$0xff] %vm1956, %v7420
      %7507 = vst.msk [vmem:[#allocation3 + $0x50] sm:$0xff] %vm1956, %v7422
      %7508 = vst.msk [vmem:[#allocation3 + $0x58] sm:$0xff] %vm1956, %v7424
      %7509 = vst.msk [vmem:[#allocation3 + $0x60] sm:$0xff] %vm1956, %v7426
      %7510 = vst.msk [vmem:[#allocation3 + $0x68] sm:$0xff] %vm1956, %v7428
      %7511 = vst.msk [vmem:[#allocation3 + $0x70] sm:$0xff] %vm1956, %v7430
      %7512 = vst.msk [vmem:[#allocation3 + $0x78] sm:$0xff] %vm1956, %v7432
      %7513 = vst.msk [vmem:[#allocation3 + $0x80] sm:$0xff] %vm1956, %v7434
      %7514 = vst.msk [vmem:[#allocation3 + $0x88] sm:$0xff] %vm1956, %v7436
      %7515 = vst.msk [vmem:[#allocation3 + $0x90] sm:$0xff] %vm1956, %v7438
      %7516 = vst.msk [vmem:[#allocation3 + $0x98] sm:$0xff] %vm1956, %v7440
      %7517 = vst.msk [vmem:[#allocation3 + $0xa0] sm:$0xff] %vm1956, %v7442
      %7518 = vst.msk [vmem:[#allocation3 + $0xa8] sm:$0xff] %vm1956, %v7444
      %7519 = vst.msk [vmem:[#allocation3 + $0xb0] sm:$0xff] %vm1956, %v7446
      %7520 = vst.msk [vmem:[#allocation3 + $0xb8] sm:$0xff] %vm1956, %v7448
      %7521 = vst.msk [vmem:[#allocation3 + $0xc0] sm:$0xff] %vm1956, %v7450
      %7522 = vst.msk [vmem:[#allocation3 + $0xc8] sm:$0xff] %vm1956, %v7452
      %7523 = vst.msk [vmem:[#allocation3 + $0xd0] sm:$0xff] %vm1956, %v7454
      %7524 = vst.msk [vmem:[#allocation3 + $0xd8] sm:$0xff] %vm1956, %v7456
      %7525 = vst.msk [vmem:[#allocation3 + $0xe0] sm:$0xff] %vm1956, %v7458
      %7526 = vst.msk [vmem:[#allocation3 + $0xe8] sm:$0xff] %vm1956, %v7460
      %7527 = vst.msk [vmem:[#allocation3 + $0xf0] sm:$0xff] %vm1956, %v7462
      %7528 = vst.msk [vmem:[#allocation3 + $0xf8] sm:$0xff] %vm1956, %v7464
      %v7529 = vld [vmem:[%s1989] sm:$0xff]
      %v7530 = vld [vmem:[%s1989 + $0x8] sm:$0xff]
      %v7531 = vld [vmem:[%s1989 + $0x18] sm:$0xff]
      %v7532 = vld [vmem:[%s1989 + $0x20] sm:$0xff]
      %v7533 = vld [vmem:[%s1989 + $0x30] sm:$0xff]
      %v7534 = vld [vmem:[%s1989 + $0x38] sm:$0xff]
      %v7535 = vld [vmem:[%s1989 + $0x48] sm:$0xff]
      %v7536 = vld [vmem:[%s1989 + $0x50] sm:$0xff]
      %v7537 = vld [vmem:[%s1989 + $0x60] sm:$0xff]
      %v7538 = vld [vmem:[%s1989 + $0x68] sm:$0xff]
      %v7539 = vld [vmem:[%s1989 + $0x78] sm:$0xff]
      %v7540 = vld [vmem:[%s1989 + $0x80] sm:$0xff]
      %v7541 = vld [vmem:[%s1989 + $0x90] sm:$0xff]
      %v7542 = vld [vmem:[%s1989 + $0x98] sm:$0xff]
      %v7543 = vld [vmem:[%s1989 + $0xa8] sm:$0xff]
      %v7544 = vld [vmem:[%s1989 + $0xb0] sm:$0xff]
      %v7545 = vld [vmem:[%s1989 + $0xc0] sm:$0xff]
      %v7546 = vld [vmem:[%s1989 + $0xc8] sm:$0xff]
      %v7547 = vld [vmem:[%s1989 + $0xd8] sm:$0xff]
      %v7548 = vld [vmem:[%s1989 + $0xe0] sm:$0xff]
      %v7549 = vld [vmem:[%s1989 + $0xf0] sm:$0xff]
      %v7550 = vld [vmem:[%s1989 + $0xf8] sm:$0xff]
      %v7551 = vld [vmem:[%s1989 + $0x108] sm:$0xff]
      %v7552 = vld [vmem:[%s1989 + $0x110] sm:$0xff]
      %v7553 = vld [vmem:[%s1989 + $0x120] sm:$0xff]
      %v7554 = vld [vmem:[%s1989 + $0x128] sm:$0xff]
      %v7555 = vld [vmem:[%s1989 + $0x138] sm:$0xff]
      %v7556 = vld [vmem:[%s1989 + $0x140] sm:$0xff]
      %v7557 = vld [vmem:[%s1989 + $0x150] sm:$0xff]
      %v7558 = vld [vmem:[%s1989 + $0x158] sm:$0xff]
      %v7559 = vld [vmem:[%s1989 + $0x168] sm:$0xff]
      %v7560 = vld [vmem:[%s1989 + $0x170] sm:$0xff]
      %v7561 = vld [vmem:[%s1989 + $0x1b0] sm:$0xff]
      %v7562 = vld [vmem:[%s1989 + $0x1b8] sm:$0xff]
      %v7563 = vld [vmem:[%s1989 + $0x1c8] sm:$0xff]
      %v7564 = vld [vmem:[%s1989 + $0x1d0] sm:$0xff]
      %v7565 = vld [vmem:[%s1989 + $0x1e0] sm:$0xff]
      %v7566 = vld [vmem:[%s1989 + $0x1e8] sm:$0xff]
      %v7567 = vld [vmem:[%s1989 + $0x1f8] sm:$0xff]
      %v7568 = vld [vmem:[%s1989 + $0x200] sm:$0xff]
      %v7569 = vld [vmem:[%s1989 + $0x210] sm:$0xff]
      %v7570 = vld [vmem:[%s1989 + $0x218] sm:$0xff]
      %v7571 = vld [vmem:[%s1989 + $0x228] sm:$0xff]
      %v7572 = vld [vmem:[%s1989 + $0x230] sm:$0xff]
      %v7573 = vld [vmem:[%s1989 + $0x240] sm:$0xff]
      %v7574 = vld [vmem:[%s1989 + $0x248] sm:$0xff]
      %v7575 = vld [vmem:[%s1989 + $0x258] sm:$0xff]
      %v7576 = vld [vmem:[%s1989 + $0x260] sm:$0xff]
      %v7577 = vld [vmem:[%s1989 + $0x270] sm:$0xff]
      %v7578 = vld [vmem:[%s1989 + $0x278] sm:$0xff]
      %v7579 = vld [vmem:[%s1989 + $0x288] sm:$0xff]
      %v7580 = vld [vmem:[%s1989 + $0x290] sm:$0xff]
      %v7581 = vld [vmem:[%s1989 + $0x2a0] sm:$0xff]
      %v7582 = vld [vmem:[%s1989 + $0x2a8] sm:$0xff]
      %v7583 = vld [vmem:[%s1989 + $0x2b8] sm:$0xff]
      %v7584 = vld [vmem:[%s1989 + $0x2c0] sm:$0xff]
      %v7585 = vld [vmem:[%s1989 + $0x2d0] sm:$0xff]
      %v7586 = vld [vmem:[%s1989 + $0x2d8] sm:$0xff]
      %v7587 = vld [vmem:[%s1989 + $0x2e8] sm:$0xff]
      %v7588 = vld [vmem:[%s1989 + $0x2f0] sm:$0xff]
      %v7589 = vld [vmem:[%s1989 + $0x300] sm:$0xff]
      %v7590 = vld [vmem:[%s1989 + $0x308] sm:$0xff]
      %v7591 = vld [vmem:[%s1989 + $0x318] sm:$0xff]
      %v7592 = vld [vmem:[%s1989 + $0x320] sm:$0xff]
      %v7593 = vpack.c.bf16 %v7530, %v7529
      %v7594 = vpack.c.bf16 %v7532, %v7531
      %v7595 = vpack.c.bf16 %v7534, %v7533
      %v7596 = vpack.c.bf16 %v7536, %v7535
      %v7597 = vpack.c.bf16 %v7538, %v7537
      %v7598 = vpack.c.bf16 %v7540, %v7539
      %v7599 = vpack.c.bf16 %v7542, %v7541
      %v7600 = vpack.c.bf16 %v7544, %v7543
      %v7601 = vpack.c.bf16 %v7546, %v7545
      %v7602 = vpack.c.bf16 %v7548, %v7547
      %v7603 = vpack.c.bf16 %v7550, %v7549
      %v7604 = vpack.c.bf16 %v7552, %v7551
      %v7605 = vpack.c.bf16 %v7554, %v7553
      %v7606 = vpack.c.bf16 %v7556, %v7555
      %v7607 = vpack.c.bf16 %v7558, %v7557
      %v7608 = vpack.c.bf16 %v7560, %v7559
      %v7609 = vpack.c.bf16 %v7562, %v7561
      %v7610 = vpack.c.bf16 %v7564, %v7563
      %v7611 = vpack.c.bf16 %v7566, %v7565
      %v7612 = vpack.c.bf16 %v7568, %v7567
      %v7613 = vpack.c.bf16 %v7570, %v7569
      %v7614 = vpack.c.bf16 %v7572, %v7571
      %v7615 = vpack.c.bf16 %v7574, %v7573
      %v7616 = vpack.c.bf16 %v7576, %v7575
      %v7617 = vpack.c.bf16 %v7578, %v7577
      %v7618 = vpack.c.bf16 %v7580, %v7579
      %v7619 = vpack.c.bf16 %v7582, %v7581
      %v7620 = vpack.c.bf16 %v7584, %v7583
      %v7621 = vpack.c.bf16 %v7586, %v7585
      %v7622 = vpack.c.bf16 %v7588, %v7587
      %v7623 = vpack.c.bf16 %v7590, %v7589
      %v7624 = vpack.c.bf16 %v7592, %v7591
      %7657 = vrot.lane.b32.xlu0 %v7593, 48
      %v7658 = vpop.permute.xlu0 %7657
      %7659 = vrot.lane.b32.xlu0 %v7594, 48
      %v7660 = vpop.permute.xlu0 %7659
      %7661 = vrot.lane.b32.xlu0 %v7595, 48
      %v7662 = vpop.permute.xlu0 %7661
      %7663 = vrot.lane.b32.xlu0 %v7596, 48
      %v7664 = vpop.permute.xlu0 %7663
      %7665 = vrot.lane.b32.xlu0 %v7597, 48
      %v7666 = vpop.permute.xlu0 %7665
      %7667 = vrot.lane.b32.xlu0 %v7598, 48
      %v7668 = vpop.permute.xlu0 %7667
      %7669 = vrot.lane.b32.xlu0 %v7599, 48
      %v7670 = vpop.permute.xlu0 %7669
      %7671 = vrot.lane.b32.xlu0 %v7600, 48
      %v7672 = vpop.permute.xlu0 %7671
      %7673 = vrot.lane.b32.xlu0 %v7601, 48
      %v7674 = vpop.permute.xlu0 %7673
      %7675 = vrot.lane.b32.xlu0 %v7602, 48
      %v7676 = vpop.permute.xlu0 %7675
      %7677 = vrot.lane.b32.xlu0 %v7603, 48
      %v7678 = vpop.permute.xlu0 %7677
      %7679 = vrot.lane.b32.xlu0 %v7604, 48
      %v7680 = vpop.permute.xlu0 %7679
      %7681 = vrot.lane.b32.xlu0 %v7605, 48
      %v7682 = vpop.permute.xlu0 %7681
      %7683 = vrot.lane.b32.xlu0 %v7606, 48
      %v7684 = vpop.permute.xlu0 %7683
      %7685 = vrot.lane.b32.xlu0 %v7607, 48
      %v7686 = vpop.permute.xlu0 %7685
      %7687 = vrot.lane.b32.xlu0 %v7608, 48
      %v7688 = vpop.permute.xlu0 %7687
      %7689 = vrot.lane.b32.xlu0 %v7609, 48
      %v7690 = vpop.permute.xlu0 %7689
      %7691 = vrot.lane.b32.xlu0 %v7610, 48
      %v7692 = vpop.permute.xlu0 %7691
      %7693 = vrot.lane.b32.xlu0 %v7611, 48
      %v7694 = vpop.permute.xlu0 %7693
      %7695 = vrot.lane.b32.xlu0 %v7612, 48
      %v7696 = vpop.permute.xlu0 %7695
      %7697 = vrot.lane.b32.xlu0 %v7613, 48
      %v7698 = vpop.permute.xlu0 %7697
      %7699 = vrot.lane.b32.xlu0 %v7614, 48
      %v7700 = vpop.permute.xlu0 %7699
      %7701 = vrot.lane.b32.xlu0 %v7615, 48
      %v7702 = vpop.permute.xlu0 %7701
      %7703 = vrot.lane.b32.xlu0 %v7616, 48
      %v7704 = vpop.permute.xlu0 %7703
      %7705 = vrot.lane.b32.xlu0 %v7617, 48
      %v7706 = vpop.permute.xlu0 %7705
      %7707 = vrot.lane.b32.xlu0 %v7618, 48
      %v7708 = vpop.permute.xlu0 %7707
      %7709 = vrot.lane.b32.xlu0 %v7619, 48
      %v7710 = vpop.permute.xlu0 %7709
      %7711 = vrot.lane.b32.xlu0 %v7620, 48
      %v7712 = vpop.permute.xlu0 %7711
      %7713 = vrot.lane.b32.xlu0 %v7621, 48
      %v7714 = vpop.permute.xlu0 %7713
      %7715 = vrot.lane.b32.xlu0 %v7622, 48
      %v7716 = vpop.permute.xlu0 %7715
      %7717 = vrot.lane.b32.xlu0 %v7623, 48
      %v7718 = vpop.permute.xlu0 %7717
      %7719 = vrot.lane.b32.xlu0 %v7624, 48
      %v7720 = vpop.permute.xlu0 %7719
      %7753 = vst.msk [vmem:[#allocation3] sm:$0xff] %vm2214, %v7658
      %7754 = vst.msk [vmem:[#allocation3 + $0x8] sm:$0xff] %vm2214, %v7660
      %7755 = vst.msk [vmem:[#allocation3 + $0x10] sm:$0xff] %vm2214, %v7662
      %7756 = vst.msk [vmem:[#allocation3 + $0x18] sm:$0xff] %vm2214, %v7664
      %7757 = vst.msk [vmem:[#allocation3 + $0x20] sm:$0xff] %vm2214, %v7666
      %7758 = vst.msk [vmem:[#allocation3 + $0x28] sm:$0xff] %vm2214, %v7668
      %7759 = vst.msk [vmem:[#allocation3 + $0x30] sm:$0xff] %vm2214, %v7670
      %7760 = vst.msk [vmem:[#allocation3 + $0x38] sm:$0xff] %vm2214, %v7672
      %7761 = vst.msk [vmem:[#allocation3 + $0x40] sm:$0xff] %vm2214, %v7674
      %7762 = vst.msk [vmem:[#allocation3 + $0x48] sm:$0xff] %vm2214, %v7676
      %7763 = vst.msk [vmem:[#allocation3 + $0x50] sm:$0xff] %vm2214, %v7678
      %7764 = vst.msk [vmem:[#allocation3 + $0x58] sm:$0xff] %vm2214, %v7680
      %7765 = vst.msk [vmem:[#allocation3 + $0x60] sm:$0xff] %vm2214, %v7682
      %7766 = vst.msk [vmem:[#allocation3 + $0x68] sm:$0xff] %vm2214, %v7684
      %7767 = vst.msk [vmem:[#allocation3 + $0x70] sm:$0xff] %vm2214, %v7686
      %7768 = vst.msk [vmem:[#allocation3 + $0x78] sm:$0xff] %vm2214, %v7688
      %7769 = vst.msk [vmem:[#allocation3 + $0x80] sm:$0xff] %vm2214, %v7690
      %7770 = vst.msk [vmem:[#allocation3 + $0x88] sm:$0xff] %vm2214, %v7692
      %7771 = vst.msk [vmem:[#allocation3 + $0x90] sm:$0xff] %vm2214, %v7694
      %7772 = vst.msk [vmem:[#allocation3 + $0x98] sm:$0xff] %vm2214, %v7696
      %7773 = vst.msk [vmem:[#allocation3 + $0xa0] sm:$0xff] %vm2214, %v7698
      %7774 = vst.msk [vmem:[#allocation3 + $0xa8] sm:$0xff] %vm2214, %v7700
      %7775 = vst.msk [vmem:[#allocation3 + $0xb0] sm:$0xff] %vm2214, %v7702
      %7776 = vst.msk [vmem:[#allocation3 + $0xb8] sm:$0xff] %vm2214, %v7704
      %7777 = vst.msk [vmem:[#allocation3 + $0xc0] sm:$0xff] %vm2214, %v7706
      %7778 = vst.msk [vmem:[#allocation3 + $0xc8] sm:$0xff] %vm2214, %v7708
      %7779 = vst.msk [vmem:[#allocation3 + $0xd0] sm:$0xff] %vm2214, %v7710
      %7780 = vst.msk [vmem:[#allocation3 + $0xd8] sm:$0xff] %vm2214, %v7712
      %7781 = vst.msk [vmem:[#allocation3 + $0xe0] sm:$0xff] %vm2214, %v7714
      %7782 = vst.msk [vmem:[#allocation3 + $0xe8] sm:$0xff] %vm2214, %v7716
      %7783 = vst.msk [vmem:[#allocation3 + $0xf0] sm:$0xff] %vm2214, %v7718
      %7784 = vst.msk [vmem:[#allocation3 + $0xf8] sm:$0xff] %vm2214, %v7720
      %v7785 = vld [vmem:[%s1989 + $0x1] sm:$0xff]
      %v7786 = vld [vmem:[%s1989 + $0x9] sm:$0xff]
      %v7787 = vld [vmem:[%s1989 + $0x19] sm:$0xff]
      %v7788 = vld [vmem:[%s1989 + $0x21] sm:$0xff]
      %v7789 = vld [vmem:[%s1989 + $0x31] sm:$0xff]
      %v7790 = vld [vmem:[%s1989 + $0x39] sm:$0xff]
      %v7791 = vld [vmem:[%s1989 + $0x49] sm:$0xff]
      %v7792 = vld [vmem:[%s1989 + $0x51] sm:$0xff]
      %v7793 = vld [vmem:[%s1989 + $0x61] sm:$0xff]
      %v7794 = vld [vmem:[%s1989 + $0x69] sm:$0xff]
      %v7795 = vld [vmem:[%s1989 + $0x79] sm:$0xff]
      %v7796 = vld [vmem:[%s1989 + $0x81] sm:$0xff]
      %v7797 = vld [vmem:[%s1989 + $0x91] sm:$0xff]
      %v7798 = vld [vmem:[%s1989 + $0x99] sm:$0xff]
      %v7799 = vld [vmem:[%s1989 + $0xa9] sm:$0xff]
      %v7800 = vld [vmem:[%s1989 + $0xb1] sm:$0xff]
      %v7801 = vld [vmem:[%s1989 + $0xc1] sm:$0xff]
      %v7802 = vld [vmem:[%s1989 + $0xc9] sm:$0xff]
      %v7803 = vld [vmem:[%s1989 + $0xd9] sm:$0xff]
      %v7804 = vld [vmem:[%s1989 + $0xe1] sm:$0xff]
      %v7805 = vld [vmem:[%s1989 + $0xf1] sm:$0xff]
      %v7806 = vld [vmem:[%s1989 + $0xf9] sm:$0xff]
      %v7807 = vld [vmem:[%s1989 + $0x109] sm:$0xff]
      %v7808 = vld [vmem:[%s1989 + $0x111] sm:$0xff]
      %v7809 = vld [vmem:[%s1989 + $0x121] sm:$0xff]
      %v7810 = vld [vmem:[%s1989 + $0x129] sm:$0xff]
      %v7811 = vld [vmem:[%s1989 + $0x139] sm:$0xff]
      %v7812 = vld [vmem:[%s1989 + $0x141] sm:$0xff]
      %v7813 = vld [vmem:[%s1989 + $0x151] sm:$0xff]
      %v7814 = vld [vmem:[%s1989 + $0x159] sm:$0xff]
      %v7815 = vld [vmem:[%s1989 + $0x169] sm:$0xff]
      %v7816 = vld [vmem:[%s1989 + $0x171] sm:$0xff]
      %v7817 = vld [vmem:[%s1989 + $0x1b1] sm:$0xff]
      %v7818 = vld [vmem:[%s1989 + $0x1b9] sm:$0xff]
      %v7819 = vld [vmem:[%s1989 + $0x1c9] sm:$0xff]
      %v7820 = vld [vmem:[%s1989 + $0x1d1] sm:$0xff]
      %v7821 = vld [vmem:[%s1989 + $0x1e1] sm:$0xff]
      %v7822 = vld [vmem:[%s1989 + $0x1e9] sm:$0xff]
      %v7823 = vld [vmem:[%s1989 + $0x1f9] sm:$0xff]
      %v7824 = vld [vmem:[%s1989 + $0x201] sm:$0xff]
      %v7825 = vld [vmem:[%s1989 + $0x211] sm:$0xff]
      %v7826 = vld [vmem:[%s1989 + $0x219] sm:$0xff]
      %v7827 = vld [vmem:[%s1989 + $0x229] sm:$0xff]
      %v7828 = vld [vmem:[%s1989 + $0x231] sm:$0xff]
      %v7829 = vld [vmem:[%s1989 + $0x241] sm:$0xff]
      %v7830 = vld [vmem:[%s1989 + $0x249] sm:$0xff]
      %v7831 = vld [vmem:[%s1989 + $0x259] sm:$0xff]
      %v7832 = vld [vmem:[%s1989 + $0x261] sm:$0xff]
      %v7833 = vld [vmem:[%s1989 + $0x271] sm:$0xff]
      %v7834 = vld [vmem:[%s1989 + $0x279] sm:$0xff]
      %v7835 = vld [vmem:[%s1989 + $0x289] sm:$0xff]
      %v7836 = vld [vmem:[%s1989 + $0x291] sm:$0xff]
      %v7837 = vld [vmem:[%s1989 + $0x2a1] sm:$0xff]
      %v7838 = vld [vmem:[%s1989 + $0x2a9] sm:$0xff]
      %v7839 = vld [vmem:[%s1989 + $0x2b9] sm:$0xff]
      %v7840 = vld [vmem:[%s1989 + $0x2c1] sm:$0xff]
      %v7841 = vld [vmem:[%s1989 + $0x2d1] sm:$0xff]
      %v7842 = vld [vmem:[%s1989 + $0x2d9] sm:$0xff]
      %v7843 = vld [vmem:[%s1989 + $0x2e9] sm:$0xff]
      %v7844 = vld [vmem:[%s1989 + $0x2f1] sm:$0xff]
      %v7845 = vld [vmem:[%s1989 + $0x301] sm:$0xff]
      %v7846 = vld [vmem:[%s1989 + $0x309] sm:$0xff]
      %v7847 = vld [vmem:[%s1989 + $0x319] sm:$0xff]
      %v7848 = vld [vmem:[%s1989 + $0x321] sm:$0xff]
      %v7849 = vpack.c.bf16 %v7786, %v7785
      %v7850 = vpack.c.bf16 %v7788, %v7787
      %v7851 = vpack.c.bf16 %v7790, %v7789
      %v7852 = vpack.c.bf16 %v7792, %v7791
      %v7853 = vpack.c.bf16 %v7794, %v7793
      %v7854 = vpack.c.bf16 %v7796, %v7795
      %v7855 = vpack.c.bf16 %v7798, %v7797
      %v7856 = vpack.c.bf16 %v7800, %v7799
      %v7857 = vpack.c.bf16 %v7802, %v7801
      %v7858 = vpack.c.bf16 %v7804, %v7803
      %v7859 = vpack.c.bf16 %v7806, %v7805
      %v7860 = vpack.c.bf16 %v7808, %v7807
      %v7861 = vpack.c.bf16 %v7810, %v7809
      %v7862 = vpack.c.bf16 %v7812, %v7811
      %v7863 = vpack.c.bf16 %v7814, %v7813
      %v7864 = vpack.c.bf16 %v7816, %v7815
      %v7865 = vpack.c.bf16 %v7818, %v7817
      %v7866 = vpack.c.bf16 %v7820, %v7819
      %v7867 = vpack.c.bf16 %v7822, %v7821
      %v7868 = vpack.c.bf16 %v7824, %v7823
      %v7869 = vpack.c.bf16 %v7826, %v7825
      %v7870 = vpack.c.bf16 %v7828, %v7827
      %v7871 = vpack.c.bf16 %v7830, %v7829
      %v7872 = vpack.c.bf16 %v7832, %v7831
      %v7873 = vpack.c.bf16 %v7834, %v7833
      %v7874 = vpack.c.bf16 %v7836, %v7835
      %v7875 = vpack.c.bf16 %v7838, %v7837
      %v7876 = vpack.c.bf16 %v7840, %v7839
      %v7877 = vpack.c.bf16 %v7842, %v7841
      %v7878 = vpack.c.bf16 %v7844, %v7843
      %v7879 = vpack.c.bf16 %v7846, %v7845
      %v7880 = vpack.c.bf16 %v7848, %v7847
      %7913 = vrot.lane.b32.xlu0 %v7849, 56
      %v7914 = vpop.permute.xlu0 %7913
      %7915 = vrot.lane.b32.xlu0 %v7850, 56
      %v7916 = vpop.permute.xlu0 %7915
      %7917 = vrot.lane.b32.xlu0 %v7851, 56
      %v7918 = vpop.permute.xlu0 %7917
      %7919 = vrot.lane.b32.xlu0 %v7852, 56
      %v7920 = vpop.permute.xlu0 %7919
      %7921 = vrot.lane.b32.xlu0 %v7853, 56
      %v7922 = vpop.permute.xlu0 %7921
      %7923 = vrot.lane.b32.xlu0 %v7854, 56
      %v7924 = vpop.permute.xlu0 %7923
      %7925 = vrot.lane.b32.xlu0 %v7855, 56
      %v7926 = vpop.permute.xlu0 %7925
      %7927 = vrot.lane.b32.xlu0 %v7856, 56
      %v7928 = vpop.permute.xlu0 %7927
      %7929 = vrot.lane.b32.xlu0 %v7857, 56
      %v7930 = vpop.permute.xlu0 %7929
      %7931 = vrot.lane.b32.xlu0 %v7858, 56
      %v7932 = vpop.permute.xlu0 %7931
      %7933 = vrot.lane.b32.xlu0 %v7859, 56
      %v7934 = vpop.permute.xlu0 %7933
      %7935 = vrot.lane.b32.xlu0 %v7860, 56
      %v7936 = vpop.permute.xlu0 %7935
      %7937 = vrot.lane.b32.xlu0 %v7861, 56
      %v7938 = vpop.permute.xlu0 %7937
      %7939 = vrot.lane.b32.xlu0 %v7862, 56
      %v7940 = vpop.permute.xlu0 %7939
      %7941 = vrot.lane.b32.xlu0 %v7863, 56
      %v7942 = vpop.permute.xlu0 %7941
      %7943 = vrot.lane.b32.xlu0 %v7864, 56
      %v7944 = vpop.permute.xlu0 %7943
      %7945 = vrot.lane.b32.xlu0 %v7865, 56
      %v7946 = vpop.permute.xlu0 %7945
      %7947 = vrot.lane.b32.xlu0 %v7866, 56
      %v7948 = vpop.permute.xlu0 %7947
      %7949 = vrot.lane.b32.xlu0 %v7867, 56
      %v7950 = vpop.permute.xlu0 %7949
      %7951 = vrot.lane.b32.xlu0 %v7868, 56
      %v7952 = vpop.permute.xlu0 %7951
      %7953 = vrot.lane.b32.xlu0 %v7869, 56
      %v7954 = vpop.permute.xlu0 %7953
      %7955 = vrot.lane.b32.xlu0 %v7870, 56
      %v7956 = vpop.permute.xlu0 %7955
      %7957 = vrot.lane.b32.xlu0 %v7871, 56
      %v7958 = vpop.permute.xlu0 %7957
      %7959 = vrot.lane.b32.xlu0 %v7872, 56
      %v7960 = vpop.permute.xlu0 %7959
      %7961 = vrot.lane.b32.xlu0 %v7873, 56
      %v7962 = vpop.permute.xlu0 %7961
      %7963 = vrot.lane.b32.xlu0 %v7874, 56
      %v7964 = vpop.permute.xlu0 %7963
      %7965 = vrot.lane.b32.xlu0 %v7875, 56
      %v7966 = vpop.permute.xlu0 %7965
      %7967 = vrot.lane.b32.xlu0 %v7876, 56
      %v7968 = vpop.permute.xlu0 %7967
      %7969 = vrot.lane.b32.xlu0 %v7877, 56
      %v7970 = vpop.permute.xlu0 %7969
      %7971 = vrot.lane.b32.xlu0 %v7878, 56
      %v7972 = vpop.permute.xlu0 %7971
      %7973 = vrot.lane.b32.xlu0 %v7879, 56
      %v7974 = vpop.permute.xlu0 %7973
      %7975 = vrot.lane.b32.xlu0 %v7880, 56
      %v7976 = vpop.permute.xlu0 %7975
      %8009 = vst.msk [vmem:[#allocation3] sm:$0xff] %vm2471, %v7914
      %8010 = vst.msk [vmem:[#allocation3 + $0x8] sm:$0xff] %vm2471, %v7916
      %8011 = vst.msk [vmem:[#allocation3 + $0x10] sm:$0xff] %vm2471, %v7918
      %8012 = vst.msk [vmem:[#allocation3 + $0x18] sm:$0xff] %vm2471, %v7920
      %8013 = vst.msk [vmem:[#allocation3 + $0x20] sm:$0xff] %vm2471, %v7922
      %8014 = vst.msk [vmem:[#allocation3 + $0x28] sm:$0xff] %vm2471, %v7924
      %8015 = vst.msk [vmem:[#allocation3 + $0x30] sm:$0xff] %vm2471, %v7926
      %8016 = vst.msk [vmem:[#allocation3 + $0x38] sm:$0xff] %vm2471, %v7928
      %8017 = vst.msk [vmem:[#allocation3 + $0x40] sm:$0xff] %vm2471, %v7930
      %8018 = vst.msk [vmem:[#allocation3 + $0x48] sm:$0xff] %vm2471, %v7932
      %8019 = vst.msk [vmem:[#allocation3 + $0x50] sm:$0xff] %vm2471, %v7934
      %8020 = vst.msk [vmem:[#allocation3 + $0x58] sm:$0xff] %vm2471, %v7936
      %8021 = vst.msk [vmem:[#allocation3 + $0x60] sm:$0xff] %vm2471, %v7938
      %8022 = vst.msk [vmem:[#allocation3 + $0x68] sm:$0xff] %vm2471, %v7940
      %8023 = vst.msk [vmem:[#allocation3 + $0x70] sm:$0xff] %vm2471, %v7942
      %8024 = vst.msk [vmem:[#allocation3 + $0x78] sm:$0xff] %vm2471, %v7944
      %8025 = vst.msk [vmem:[#allocation3 + $0x80] sm:$0xff] %vm2471, %v7946
      %8026 = vst.msk [vmem:[#allocation3 + $0x88] sm:$0xff] %vm2471, %v7948
      %8027 = vst.msk [vmem:[#allocation3 + $0x90] sm:$0xff] %vm2471, %v7950
      %8028 = vst.msk [vmem:[#allocation3 + $0x98] sm:$0xff] %vm2471, %v7952
      %8029 = vst.msk [vmem:[#allocation3 + $0xa0] sm:$0xff] %vm2471, %v7954
      %8030 = vst.msk [vmem:[#allocation3 + $0xa8] sm:$0xff] %vm2471, %v7956
      %8031 = vst.msk [vmem:[#allocation3 + $0xb0] sm:$0xff] %vm2471, %v7958
      %8032 = vst.msk [vmem:[#allocation3 + $0xb8] sm:$0xff] %vm2471, %v7960
      %8033 = vst.msk [vmem:[#allocation3 + $0xc0] sm:$0xff] %vm2471, %v7962
      %8034 = vst.msk [vmem:[#allocation3 + $0xc8] sm:$0xff] %vm2471, %v7964
      %8035 = vst.msk [vmem:[#allocation3 + $0xd0] sm:$0xff] %vm2471, %v7966
      %8036 = vst.msk [vmem:[#allocation3 + $0xd8] sm:$0xff] %vm2471, %v7968
      %8037 = vst.msk [vmem:[#allocation3 + $0xe0] sm:$0xff] %vm2471, %v7970
      %8038 = vst.msk [vmem:[#allocation3 + $0xe8] sm:$0xff] %vm2471, %v7972
      %8039 = vst.msk [vmem:[#allocation3 + $0xf0] sm:$0xff] %vm2471, %v7974
      %8040 = vst.msk [vmem:[#allocation3 + $0xf8] sm:$0xff] %vm2471, %v7976
      %v8041 = vld [vmem:[%s1989 + $0x2] sm:$0xff]
      %v8042 = vld [vmem:[%s1989 + $0xa] sm:$0xff]
      %v8043 = vld [vmem:[%s1989 + $0x1a] sm:$0xff]
      %v8044 = vld [vmem:[%s1989 + $0x22] sm:$0xff]
      %v8045 = vld [vmem:[%s1989 + $0x32] sm:$0xff]
      %v8046 = vld [vmem:[%s1989 + $0x3a] sm:$0xff]
      %v8047 = vld [vmem:[%s1989 + $0x4a] sm:$0xff]
      %v8048 = vld [vmem:[%s1989 + $0x52] sm:$0xff]
      %v8049 = vld [vmem:[%s1989 + $0x62] sm:$0xff]
      %v8050 = vld [vmem:[%s1989 + $0x6a] sm:$0xff]
      %v8051 = vld [vmem:[%s1989 + $0x7a] sm:$0xff]
      %v8052 = vld [vmem:[%s1989 + $0x82] sm:$0xff]
      %v8053 = vld [vmem:[%s1989 + $0x92] sm:$0xff]
      %v8054 = vld [vmem:[%s1989 + $0x9a] sm:$0xff]
      %v8055 = vld [vmem:[%s1989 + $0xaa] sm:$0xff]
      %v8056 = vld [vmem:[%s1989 + $0xb2] sm:$0xff]
      %v8057 = vld [vmem:[%s1989 + $0xc2] sm:$0xff]
      %v8058 = vld [vmem:[%s1989 + $0xca] sm:$0xff]
      %v8059 = vld [vmem:[%s1989 + $0xda] sm:$0xff]
      %v8060 = vld [vmem:[%s1989 + $0xe2] sm:$0xff]
      %v8061 = vld [vmem:[%s1989 + $0xf2] sm:$0xff]
      %v8062 = vld [vmem:[%s1989 + $0xfa] sm:$0xff]
      %v8063 = vld [vmem:[%s1989 + $0x10a] sm:$0xff]
      %v8064 = vld [vmem:[%s1989 + $0x112] sm:$0xff]
      %v8065 = vld [vmem:[%s1989 + $0x122] sm:$0xff]
      %v8066 = vld [vmem:[%s1989 + $0x12a] sm:$0xff]
      %v8067 = vld [vmem:[%s1989 + $0x13a] sm:$0xff]
      %v8068 = vld [vmem:[%s1989 + $0x142] sm:$0xff]
      %v8069 = vld [vmem:[%s1989 + $0x152] sm:$0xff]
      %v8070 = vld [vmem:[%s1989 + $0x15a] sm:$0xff]
      %v8071 = vld [vmem:[%s1989 + $0x16a] sm:$0xff]
      %v8072 = vld [vmem:[%s1989 + $0x172] sm:$0xff]
      %v8073 = vld [vmem:[%s1989 + $0x1b2] sm:$0xff]
      %v8074 = vld [vmem:[%s1989 + $0x1ba] sm:$0xff]
      %v8075 = vld [vmem:[%s1989 + $0x1ca] sm:$0xff]
      %v8076 = vld [vmem:[%s1989 + $0x1d2] sm:$0xff]
      %v8077 = vld [vmem:[%s1989 + $0x1e2] sm:$0xff]
      %v8078 = vld [vmem:[%s1989 + $0x1ea] sm:$0xff]
      %v8079 = vld [vmem:[%s1989 + $0x1fa] sm:$0xff]
      %v8080 = vld [vmem:[%s1989 + $0x202] sm:$0xff]
      %v8081 = vld [vmem:[%s1989 + $0x212] sm:$0xff]
      %v8082 = vld [vmem:[%s1989 + $0x21a] sm:$0xff]
      %v8083 = vld [vmem:[%s1989 + $0x22a] sm:$0xff]
      %v8084 = vld [vmem:[%s1989 + $0x232] sm:$0xff]
      %v8085 = vld [vmem:[%s1989 + $0x242] sm:$0xff]
      %v8086 = vld [vmem:[%s1989 + $0x24a] sm:$0xff]
      %v8087 = vld [vmem:[%s1989 + $0x25a] sm:$0xff]
      %v8088 = vld [vmem:[%s1989 + $0x262] sm:$0xff]
      %v8089 = vld [vmem:[%s1989 + $0x272] sm:$0xff]
      %v8090 = vld [vmem:[%s1989 + $0x27a] sm:$0xff]
      %v8091 = vld [vmem:[%s1989 + $0x28a] sm:$0xff]
      %v8092 = vld [vmem:[%s1989 + $0x292] sm:$0xff]
      %v8093 = vld [vmem:[%s1989 + $0x2a2] sm:$0xff]
      %v8094 = vld [vmem:[%s1989 + $0x2aa] sm:$0xff]
      %v8095 = vld [vmem:[%s1989 + $0x2ba] sm:$0xff]
      %v8096 = vld [vmem:[%s1989 + $0x2c2] sm:$0xff]
      %v8097 = vld [vmem:[%s1989 + $0x2d2] sm:$0xff]
      %v8098 = vld [vmem:[%s1989 + $0x2da] sm:$0xff]
      %v8099 = vld [vmem:[%s1989 + $0x2ea] sm:$0xff]
      %v8100 = vld [vmem:[%s1989 + $0x2f2] sm:$0xff]
      %v8101 = vld [vmem:[%s1989 + $0x302] sm:$0xff]
      %v8102 = vld [vmem:[%s1989 + $0x30a] sm:$0xff]
      %v8103 = vld [vmem:[%s1989 + $0x31a] sm:$0xff]
      %v8104 = vld [vmem:[%s1989 + $0x322] sm:$0xff]
      %v8105 = vpack.c.bf16 %v8042, %v8041
      %v8106 = vpack.c.bf16 %v8044, %v8043
      %v8107 = vpack.c.bf16 %v8046, %v8045
      %v8108 = vpack.c.bf16 %v8048, %v8047
      %v8109 = vpack.c.bf16 %v8050, %v8049
      %v8110 = vpack.c.bf16 %v8052, %v8051
      %v8111 = vpack.c.bf16 %v8054, %v8053
      %v8112 = vpack.c.bf16 %v8056, %v8055
      %v8113 = vpack.c.bf16 %v8058, %v8057
      %v8114 = vpack.c.bf16 %v8060, %v8059
      %v8115 = vpack.c.bf16 %v8062, %v8061
      %v8116 = vpack.c.bf16 %v8064, %v8063
      %v8117 = vpack.c.bf16 %v8066, %v8065
      %v8118 = vpack.c.bf16 %v8068, %v8067
      %v8119 = vpack.c.bf16 %v8070, %v8069
      %v8120 = vpack.c.bf16 %v8072, %v8071
      %v8121 = vpack.c.bf16 %v8074, %v8073
      %v8122 = vpack.c.bf16 %v8076, %v8075
      %v8123 = vpack.c.bf16 %v8078, %v8077
      %v8124 = vpack.c.bf16 %v8080, %v8079
      %v8125 = vpack.c.bf16 %v8082, %v8081
      %v8126 = vpack.c.bf16 %v8084, %v8083
      %v8127 = vpack.c.bf16 %v8086, %v8085
      %v8128 = vpack.c.bf16 %v8088, %v8087
      %v8129 = vpack.c.bf16 %v8090, %v8089
      %v8130 = vpack.c.bf16 %v8092, %v8091
      %v8131 = vpack.c.bf16 %v8094, %v8093
      %v8132 = vpack.c.bf16 %v8096, %v8095
      %v8133 = vpack.c.bf16 %v8098, %v8097
      %v8134 = vpack.c.bf16 %v8100, %v8099
      %v8135 = vpack.c.bf16 %v8102, %v8101
      %v8136 = vpack.c.bf16 %v8104, %v8103
      %8169 = vrot.lane.b32.xlu0 %v8105, 64
      %v8170 = vpop.permute.xlu0 %8169
      %8171 = vrot.lane.b32.xlu0 %v8106, 64
      %v8172 = vpop.permute.xlu0 %8171
      %8173 = vrot.lane.b32.xlu0 %v8107, 64
      %v8174 = vpop.permute.xlu0 %8173
      %8175 = vrot.lane.b32.xlu0 %v8108, 64
      %v8176 = vpop.permute.xlu0 %8175
      %8177 = vrot.lane.b32.xlu0 %v8109, 64
      %v8178 = vpop.permute.xlu0 %8177
      %8179 = vrot.lane.b32.xlu0 %v8110, 64
      %v8180 = vpop.permute.xlu0 %8179
      %8181 = vrot.lane.b32.xlu0 %v8111, 64
      %v8182 = vpop.permute.xlu0 %8181
      %8183 = vrot.lane.b32.xlu0 %v8112, 64
      %v8184 = vpop.permute.xlu0 %8183
      %8185 = vrot.lane.b32.xlu0 %v8113, 64
      %v8186 = vpop.permute.xlu0 %8185
      %8187 = vrot.lane.b32.xlu0 %v8114, 64
      %v8188 = vpop.permute.xlu0 %8187
      %8189 = vrot.lane.b32.xlu0 %v8115, 64
      %v8190 = vpop.permute.xlu0 %8189
      %8191 = vrot.lane.b32.xlu0 %v8116, 64
      %v8192 = vpop.permute.xlu0 %8191
      %8193 = vrot.lane.b32.xlu0 %v8117, 64
      %v8194 = vpop.permute.xlu0 %8193
      %8195 = vrot.lane.b32.xlu0 %v8118, 64
      %v8196 = vpop.permute.xlu0 %8195
      %8197 = vrot.lane.b32.xlu0 %v8119, 64
      %v8198 = vpop.permute.xlu0 %8197
      %8199 = vrot.lane.b32.xlu0 %v8120, 64
      %v8200 = vpop.permute.xlu0 %8199
      %8201 = vrot.lane.b32.xlu0 %v8121, 64
      %v8202 = vpop.permute.xlu0 %8201
      %8203 = vrot.lane.b32.xlu0 %v8122, 64
      %v8204 = vpop.permute.xlu0 %8203
      %8205 = vrot.lane.b32.xlu0 %v8123, 64
      %v8206 = vpop.permute.xlu0 %8205
      %8207 = vrot.lane.b32.xlu0 %v8124, 64
      %v8208 = vpop.permute.xlu0 %8207
      %8209 = vrot.lane.b32.xlu0 %v8125, 64
      %v8210 = vpop.permute.xlu0 %8209
      %8211 = vrot.lane.b32.xlu0 %v8126, 64
      %v8212 = vpop.permute.xlu0 %8211
      %8213 = vrot.lane.b32.xlu0 %v8127, 64
      %v8214 = vpop.permute.xlu0 %8213
      %8215 = vrot.lane.b32.xlu0 %v8128, 64
      %v8216 = vpop.permute.xlu0 %8215
      %8217 = vrot.lane.b32.xlu0 %v8129, 64
      %v8218 = vpop.permute.xlu0 %8217
      %8219 = vrot.lane.b32.xlu0 %v8130, 64
      %v8220 = vpop.permute.xlu0 %8219
      %8221 = vrot.lane.b32.xlu0 %v8131, 64
      %v8222 = vpop.permute.xlu0 %8221
      %8223 = vrot.lane.b32.xlu0 %v8132, 64
      %v8224 = vpop.permute.xlu0 %8223
      %8225 = vrot.lane.b32.xlu0 %v8133, 64
      %v8226 = vpop.permute.xlu0 %8225
      %8227 = vrot.lane.b32.xlu0 %v8134, 64
      %v8228 = vpop.permute.xlu0 %8227
      %8229 = vrot.lane.b32.xlu0 %v8135, 64
      %v8230 = vpop.permute.xlu0 %8229
      %8231 = vrot.lane.b32.xlu0 %v8136, 64
      %v8232 = vpop.permute.xlu0 %8231
      %8265 = vst.msk [vmem:[#allocation3] sm:$0xff] %vm2728, %v8170
      %8266 = vst.msk [vmem:[#allocation3 + $0x8] sm:$0xff] %vm2728, %v8172
      %8267 = vst.msk [vmem:[#allocation3 + $0x10] sm:$0xff] %vm2728, %v8174
      %8268 = vst.msk [vmem:[#allocation3 + $0x18] sm:$0xff] %vm2728, %v8176
      %8269 = vst.msk [vmem:[#allocation3 + $0x20] sm:$0xff] %vm2728, %v8178
      %8270 = vst.msk [vmem:[#allocation3 + $0x28] sm:$0xff] %vm2728, %v8180
      %8271 = vst.msk [vmem:[#allocation3 + $0x30] sm:$0xff] %vm2728, %v8182
      %8272 = vst.msk [vmem:[#allocation3 + $0x38] sm:$0xff] %vm2728, %v8184
      %8273 = vst.msk [vmem:[#allocation3 + $0x40] sm:$0xff] %vm2728, %v8186
      %8274 = vst.msk [vmem:[#allocation3 + $0x48] sm:$0xff] %vm2728, %v8188
      %8275 = vst.msk [vmem:[#allocation3 + $0x50] sm:$0xff] %vm2728, %v8190
      %8276 = vst.msk [vmem:[#allocation3 + $0x58] sm:$0xff] %vm2728, %v8192
      %8277 = vst.msk [vmem:[#allocation3 + $0x60] sm:$0xff] %vm2728, %v8194
      %8278 = vst.msk [vmem:[#allocation3 + $0x68] sm:$0xff] %vm2728, %v8196
      %8279 = vst.msk [vmem:[#allocation3 + $0x70] sm:$0xff] %vm2728, %v8198
      %8280 = vst.msk [vmem:[#allocation3 + $0x78] sm:$0xff] %vm2728, %v8200
      %8281 = vst.msk [vmem:[#allocation3 + $0x80] sm:$0xff] %vm2728, %v8202
      %8282 = vst.msk [vmem:[#allocation3 + $0x88] sm:$0xff] %vm2728, %v8204
      %8283 = vst.msk [vmem:[#allocation3 + $0x90] sm:$0xff] %vm2728, %v8206
      %8284 = vst.msk [vmem:[#allocation3 + $0x98] sm:$0xff] %vm2728, %v8208
      %8285 = vst.msk [vmem:[#allocation3 + $0xa0] sm:$0xff] %vm2728, %v8210
      %8286 = vst.msk [vmem:[#allocation3 + $0xa8] sm:$0xff] %vm2728, %v8212
      %8287 = vst.msk [vmem:[#allocation3 + $0xb0] sm:$0xff] %vm2728, %v8214
      %8288 = vst.msk [vmem:[#allocation3 + $0xb8] sm:$0xff] %vm2728, %v8216
      %8289 = vst.msk [vmem:[#allocation3 + $0xc0] sm:$0xff] %vm2728, %v8218
      %8290 = vst.msk [vmem:[#allocation3 + $0xc8] sm:$0xff] %vm2728, %v8220
      %8291 = vst.msk [vmem:[#allocation3 + $0xd0] sm:$0xff] %vm2728, %v8222
      %8292 = vst.msk [vmem:[#allocation3 + $0xd8] sm:$0xff] %vm2728, %v8224
      %8293 = vst.msk [vmem:[#allocation3 + $0xe0] sm:$0xff] %vm2728, %v8226
      %8294 = vst.msk [vmem:[#allocation3 + $0xe8] sm:$0xff] %vm2728, %v8228
      %8295 = vst.msk [vmem:[#allocation3 + $0xf0] sm:$0xff] %vm2728, %v8230
      %8296 = vst.msk [vmem:[#allocation3 + $0xf8] sm:$0xff] %vm2728, %v8232
      %v8297 = vld [vmem:[#allocation3] sm:$0xff]
      %v8298 = vld [vmem:[#allocation3 + $0x8] sm:$0xff]
      %v8299 = vld [vmem:[#allocation3 + $0x10] sm:$0xff]
      %v8300 = vld [vmem:[#allocation3 + $0x18] sm:$0xff]
      %v8301 = vld [vmem:[#allocation3 + $0x20] sm:$0xff]
      %v8302 = vld [vmem:[#allocation3 + $0x28] sm:$0xff]
      %v8303 = vld [vmem:[#allocation3 + $0x30] sm:$0xff]
      %v8304 = vld [vmem:[#allocation3 + $0x38] sm:$0xff]
      %v8305 = vld [vmem:[#allocation3 + $0x40] sm:$0xff]
      %v8306 = vld [vmem:[#allocation3 + $0x48] sm:$0xff]
      %v8307 = vld [vmem:[#allocation3 + $0x50] sm:$0xff]
      %v8308 = vld [vmem:[#allocation3 + $0x58] sm:$0xff]
      %v8309 = vld [vmem:[#allocation3 + $0x60] sm:$0xff]
      %v8310 = vld [vmem:[#allocation3 + $0x68] sm:$0xff]
      %v8311 = vld [vmem:[#allocation3 + $0x70] sm:$0xff]
      %v8312 = vld [vmem:[#allocation3 + $0x78] sm:$0xff]
      %v8313 = vld [vmem:[#allocation3 + $0x80] sm:$0xff]
      %v8314 = vld [vmem:[#allocation3 + $0x88] sm:$0xff]
      %v8315 = vld [vmem:[#allocation3 + $0x90] sm:$0xff]
      %v8316 = vld [vmem:[#allocation3 + $0x98] sm:$0xff]
      %v8317 = vld [vmem:[#allocation3 + $0xa0] sm:$0xff]
      %v8318 = vld [vmem:[#allocation3 + $0xa8] sm:$0xff]
      %v8319 = vld [vmem:[#allocation3 + $0xb0] sm:$0xff]
      %v8320 = vld [vmem:[#allocation3 + $0xb8] sm:$0xff]
      %v8321 = vld [vmem:[#allocation3 + $0xc0] sm:$0xff]
      %v8322 = vld [vmem:[#allocation3 + $0xc8] sm:$0xff]
      %v8323 = vld [vmem:[#allocation3 + $0xd0] sm:$0xff]
      %v8324 = vld [vmem:[#allocation3 + $0xd8] sm:$0xff]
      %v8325 = vld [vmem:[#allocation3 + $0xe0] sm:$0xff]
      %v8326 = vld [vmem:[#allocation3 + $0xe8] sm:$0xff]
      %v8327 = vld [vmem:[#allocation3 + $0xf0] sm:$0xff]
      %v8328 = vld [vmem:[#allocation3 + $0xf8] sm:$0xff]
      %v8329 = vld [vmem:[%s5] sm:$0xf]
      %v8330 = vld [vmem:[%s5 + $0x4] sm:$0xf]
      %v8331 = vld [vmem:[%s5 + $0x8] sm:$0xf]
      %v8332 = vld [vmem:[%s5 + $0xc] sm:$0xf]
      %v8333 = vld [vmem:[%s5 + $0x10] sm:$0xf]
      %v8334 = vld [vmem:[%s5 + $0x14] sm:$0xf]
      %v8335 = vld [vmem:[%s5 + $0x18] sm:$0xf]
      %v8336 = vld [vmem:[%s5 + $0x1c] sm:$0xf]
      %v8337 = vld [vmem:[%s5 + $0x20] sm:$0xf]
      %v8338 = vld [vmem:[%s6] sm:$0x1]
      %v8340 = vlaneseq
      %v8341 = vshrl.u32 %v8340, 7
      %v8342 = vsub.s32 0, %v8341
      %v8343 = vrot.slane %v8338, %v8342
      %v8354 = vunpack.c.l.b16 %v8329
      %v8355 = vunpack.c.l.b16 %v8330
      %v8356 = vunpack.c.l.b16 %v8331
      %v8357 = vunpack.c.l.b16 %v8332
      %v8358 = vunpack.c.l.b16 %v8333
      %v8359 = vunpack.c.l.b16 %v8334
      %v8360 = vunpack.c.l.b16 %v8335
      %v8361 = vunpack.c.l.b16 %v8336
      %v8362 = vunpack.c.l.b16 %v8337
      %v8363 = vpack.c.b16 %v8355, %v8354
      %v8364 = vpack.c.b16 %v8357, %v8356
      %v8365 = vpack.c.b16 %v8359, %v8358
      %v8366 = vpack.c.b16 %v8361, %v8360
      %v8367 = vpack.c.b16 %v8362, %v8362
      %v8373 = vsel %vm2836, %v8297, 0
      %v8376 = vsel %vm2836, %v8298, 0
      %v8379 = vsel %vm2836, %v8299, 0
      %v8382 = vsel %vm2836, %v8300, 0
      %v8385 = vsel %vm2836, %v8301, 0
      %v8388 = vsel %vm2836, %v8302, 0
      %v8391 = vsel %vm2836, %v8303, 0
      %v8394 = vsel %vm2836, %v8304, 0
      %v8397 = vsel %vm2836, %v8305, 0
      %v8400 = vsel %vm2836, %v8306, 0
      %v8403 = vsel %vm2836, %v8307, 0
      %v8406 = vsel %vm2836, %v8308, 0
      %v8409 = vsel %vm2836, %v8309, 0
      %v8412 = vsel %vm2836, %v8310, 0
      %v8415 = vsel %vm2836, %v8311, 0
      %v8418 = vsel %vm2836, %v8312, 0
      %v8421 = vsel %vm2836, %v8313, 0
      %v8424 = vsel %vm2836, %v8314, 0
      %v8427 = vsel %vm2836, %v8315, 0
      %v8430 = vsel %vm2836, %v8316, 0
      %v8433 = vsel %vm2836, %v8317, 0
      %v8436 = vsel %vm2836, %v8318, 0
      %v8439 = vsel %vm2836, %v8319, 0
      %v8442 = vsel %vm2836, %v8320, 0
      %v8445 = vsel %vm2836, %v8321, 0
      %v8448 = vsel %vm2836, %v8322, 0
      %v8451 = vsel %vm2836, %v8323, 0
      %v8454 = vsel %vm2836, %v8324, 0
      %v8457 = vsel %vm2836, %v8325, 0
      %v8460 = vsel %vm2836, %v8326, 0
      %v8463 = vsel %vm2836, %v8327, 0
      %v8466 = vsel %vm2836, %v8328, 0
      %v8469 = vsel %vm2933, %v8367, 0
      %8471 = vmatprep.subr.bf16.mxu0 0
      %8472 = vmatpush1.bf16.msra.mxu0 %v8363
      %8473 = vmatprep.subr.bf16.mxu0 0
      %8474 = vmatpush1.bf16.msra.mxu0 %v8364
      %8475 = vmatprep.subr.bf16.mxu0 0
      %8476 = vmatpush1.bf16.msra.mxu0 %v8365
      %8477 = vmatprep.subr.bf16.mxu0 0
      %8478 = vmatpush1.bf16.msra.mxu0 %v8366
      %8479 = vmatprep.subr.bf16.mxu0 0
      %8480 = vmatpush1.bf16.msra.mxu0 %v8469
      %8481 = vmatprep.subr.bf16.mxu0 0
      %8482 = vmatpush1.bf16.msra.mxu0 0
      %8483 = vmatprep.subr.bf16.mxu0 0
      %8484 = vmatpush1.bf16.msra.mxu0 0
      %8485 = vmatprep.subr.bf16.mxu0 0
      %8486 = vmatpush1.bf16.msra.mxu0 0
      %8487 = vmatprep.subr.bf16.mxu0 0
      %8488 = vmatpush1.bf16.msra.mxu0 0
      %8489 = vmatprep.subr.bf16.mxu0 0
      %8490 = vmatpush1.bf16.msra.mxu0 0
      %8491 = vmatprep.subr.bf16.mxu0 0
      %8492 = vmatpush1.bf16.msra.mxu0 0
      %8493 = vmatprep.subr.bf16.mxu0 0
      %8494 = vmatpush1.bf16.msra.mxu0 0
      %8495 = vmatprep.subr.bf16.mxu0 0
      %8496 = vmatpush1.bf16.msra.mxu0 0
      %8497 = vmatprep.subr.bf16.mxu0 0
      %8498 = vmatpush1.bf16.msra.mxu0 0
      %8499 = vmatprep.subr.bf16.mxu0 0
      %8500 = vmatpush1.bf16.msra.mxu0 0
      %8501 = vmatprep.subr.bf16.mxu0 0
      %8502 = vmatpush1.bf16.msra.mxu0 0
      %8503 = vmatprep.mubr.bf16.mxu0 0
      %8504 = vmatmul.mubr.bf16.gmra.mrb[0].mxu0 %v8373
      %v8505 = vpop.f32.mrb[0].mxu0
      %v8506 = vadd.f32 %v8343, %v8505
      %v8507 = vpop.f32.mrb[0].mxu0
      %v8508 = vpop.f32.mrb[0].mxu0
      %v8509 = vadd.f32 %v8343, %v8508
      %v8510 = vpop.f32.mrb[0].mxu0
      %8511 = vmatprep.mubr.bf16.mxu0 0
      %8512 = vmatmul.mubr.bf16.gmra.mrb[0].mxu0 %v8376
      %v8513 = vpop.f32.mrb[0].mxu0
      %v8514 = vadd.f32 %v8343, %v8513
      %v8515 = vpop.f32.mrb[0].mxu0
      %v8516 = vpop.f32.mrb[0].mxu0
      %v8517 = vadd.f32 %v8343, %v8516
      %v8518 = vpop.f32.mrb[0].mxu0
      %8519 = vmatprep.mubr.bf16.mxu0 0
      %8520 = vmatmul.mubr.bf16.gmra.mrb[0].mxu0 %v8379
      %v8521 = vpop.f32.mrb[0].mxu0
      %v8522 = vadd.f32 %v8343, %v8521
      %v8523 = vpop.f32.mrb[0].mxu0
      %v8524 = vpop.f32.mrb[0].mxu0
      %v8525 = vadd.f32 %v8343, %v8524
      %v8526 = vpop.f32.mrb[0].mxu0
      %8527 = vmatprep.mubr.bf16.mxu0 0
      %8528 = vmatmul.mubr.bf16.gmra.mrb[0].mxu0 %v8382
      %v8529 = vpop.f32.mrb[0].mxu0
      %v8530 = vadd.f32 %v8343, %v8529
      %v8531 = vpop.f32.mrb[0].mxu0
      %v8532 = vpop.f32.mrb[0].mxu0
      %v8533 = vadd.f32 %v8343, %v8532
      %v8534 = vpop.f32.mrb[0].mxu0
      %8535 = vmatprep.mubr.bf16.mxu0 0
      %8536 = vmatmul.mubr.bf16.gmra.mrb[0].mxu0 %v8385
      %v8537 = vpop.f32.mrb[0].mxu0
      %v8538 = vadd.f32 %v8343, %v8537
      %v8539 = vpop.f32.mrb[0].mxu0
      %v8540 = vpop.f32.mrb[0].mxu0
      %v8541 = vadd.f32 %v8343, %v8540
      %v8542 = vpop.f32.mrb[0].mxu0
      %8543 = vmatprep.mubr.bf16.mxu0 0
      %8544 = vmatmul.mubr.bf16.gmra.mrb[0].mxu0 %v8388
      %v8545 = vpop.f32.mrb[0].mxu0
      %v8546 = vadd.f32 %v8343, %v8545
      %v8547 = vpop.f32.mrb[0].mxu0
      %v8548 = vpop.f32.mrb[0].mxu0
      %v8549 = vadd.f32 %v8343, %v8548
      %v8550 = vpop.f32.mrb[0].mxu0
      %8551 = vmatprep.mubr.bf16.mxu0 0
      %8552 = vmatmul.mubr.bf16.gmra.mrb[0].mxu0 %v8391
      %v8553 = vpop.f32.mrb[0].mxu0
      %v8554 = vadd.f32 %v8343, %v8553
      %v8555 = vpop.f32.mrb[0].mxu0
      %v8556 = vpop.f32.mrb[0].mxu0
      %v8557 = vadd.f32 %v8343, %v8556
      %v8558 = vpop.f32.mrb[0].mxu0
      %8559 = vmatprep.mubr.bf16.mxu0 0
      %8560 = vmatmul.mubr.bf16.gmra.mrb[0].mxu0 %v8394
      %v8561 = vpop.f32.mrb[0].mxu0
      %v8562 = vadd.f32 %v8343, %v8561
      %v8563 = vpop.f32.mrb[0].mxu0
      %v8564 = vpop.f32.mrb[0].mxu0
      %v8565 = vadd.f32 %v8343, %v8564
      %v8566 = vpop.f32.mrb[0].mxu0
      %8567 = vmatprep.mubr.bf16.mxu0 0
      %8568 = vmatmul.mubr.bf16.gmra.mrb[0].mxu0 %v8397
      %v8569 = vpop.f32.mrb[0].mxu0
      %v8570 = vadd.f32 %v8343, %v8569
      %v8571 = vpop.f32.mrb[0].mxu0
      %v8572 = vpop.f32.mrb[0].mxu0
      %v8573 = vadd.f32 %v8343, %v8572
      %v8574 = vpop.f32.mrb[0].mxu0
      %8575 = vmatprep.mubr.bf16.mxu0 0
      %8576 = vmatmul.mubr.bf16.gmra.mrb[0].mxu0 %v8400
      %v8577 = vpop.f32.mrb[0].mxu0
      %v8578 = vadd.f32 %v8343, %v8577
      %v8579 = vpop.f32.mrb[0].mxu0
      %v8580 = vpop.f32.mrb[0].mxu0
      %v8581 = vadd.f32 %v8343, %v8580
      %v8582 = vpop.f32.mrb[0].mxu0
      %8583 = vmatprep.mubr.bf16.mxu0 0
      %8584 = vmatmul.mubr.bf16.gmra.mrb[0].mxu0 %v8403
      %v8585 = vpop.f32.mrb[0].mxu0
      %v8586 = vadd.f32 %v8343, %v8585
      %v8587 = vpop.f32.mrb[0].mxu0
      %v8588 = vpop.f32.mrb[0].mxu0
      %v8589 = vadd.f32 %v8343, %v8588
      %v8590 = vpop.f32.mrb[0].mxu0
      %8591 = vmatprep.mubr.bf16.mxu0 0
      %8592 = vmatmul.mubr.bf16.gmra.mrb[0].mxu0 %v8406
      %v8593 = vpop.f32.mrb[0].mxu0
      %v8594 = vadd.f32 %v8343, %v8593
      %v8595 = vpop.f32.mrb[0].mxu0
      %v8596 = vpop.f32.mrb[0].mxu0
      %v8597 = vadd.f32 %v8343, %v8596
      %v8598 = vpop.f32.mrb[0].mxu0
      %8599 = vmatprep.mubr.bf16.mxu0 0
      %8600 = vmatmul.mubr.bf16.gmra.mrb[0].mxu0 %v8409
      %v8601 = vpop.f32.mrb[0].mxu0
      %v8602 = vadd.f32 %v8343, %v8601
      %v8603 = vpop.f32.mrb[0].mxu0
      %v8604 = vpop.f32.mrb[0].mxu0
      %v8605 = vadd.f32 %v8343, %v8604
      %v8606 = vpop.f32.mrb[0].mxu0
      %8607 = vmatprep.mubr.bf16.mxu0 0
      %8608 = vmatmul.mubr.bf16.gmra.mrb[0].mxu0 %v8412
      %v8609 = vpop.f32.mrb[0].mxu0
      %v8610 = vadd.f32 %v8343, %v8609
      %v8611 = vpop.f32.mrb[0].mxu0
      %v8612 = vpop.f32.mrb[0].mxu0
      %v8613 = vadd.f32 %v8343, %v8612
      %v8614 = vpop.f32.mrb[0].mxu0
      %8615 = vmatprep.mubr.bf16.mxu0 0
      %8616 = vmatmul.mubr.bf16.gmra.mrb[0].mxu0 %v8415
      %v8617 = vpop.f32.mrb[0].mxu0
      %v8618 = vadd.f32 %v8343, %v8617
      %v8619 = vpop.f32.mrb[0].mxu0
      %v8620 = vpop.f32.mrb[0].mxu0
      %v8621 = vadd.f32 %v8343, %v8620
      %v8622 = vpop.f32.mrb[0].mxu0
      %8623 = vmatprep.mubr.bf16.mxu0 0
      %8624 = vmatmul.mubr.bf16.gmra.mrb[0].mxu0 %v8418
      %v8625 = vpop.f32.mrb[0].mxu0
      %v8626 = vadd.f32 %v8343, %v8625
      %v8627 = vpop.f32.mrb[0].mxu0
      %v8628 = vpop.f32.mrb[0].mxu0
      %v8629 = vadd.f32 %v8343, %v8628
      %v8630 = vpop.f32.mrb[0].mxu0
      %8631 = vmatprep.mubr.bf16.mxu0 0
      %8632 = vmatmul.mubr.bf16.gmra.mrb[0].mxu0 %v8421
      %v8633 = vpop.f32.mrb[0].mxu0
      %v8634 = vadd.f32 %v8343, %v8633
      %v8635 = vpop.f32.mrb[0].mxu0
      %v8636 = vpop.f32.mrb[0].mxu0
      %v8637 = vadd.f32 %v8343, %v8636
      %v8638 = vpop.f32.mrb[0].mxu0
      %8639 = vmatprep.mubr.bf16.mxu0 0
      %8640 = vmatmul.mubr.bf16.gmra.mrb[0].mxu0 %v8424
      %v8641 = vpop.f32.mrb[0].mxu0
      %v8642 = vadd.f32 %v8343, %v8641
      %v8643 = vpop.f32.mrb[0].mxu0
      %v8644 = vpop.f32.mrb[0].mxu0
      %v8645 = vadd.f32 %v8343, %v8644
      %v8646 = vpop.f32.mrb[0].mxu0
      %8647 = vmatprep.mubr.bf16.mxu0 0
      %8648 = vmatmul.mubr.bf16.gmra.mrb[0].mxu0 %v8427
      %v8649 = vpop.f32.mrb[0].mxu0
      %v8650 = vadd.f32 %v8343, %v8649
      %v8651 = vpop.f32.mrb[0].mxu0
      %v8652 = vpop.f32.mrb[0].mxu0
      %v8653 = vadd.f32 %v8343, %v8652
      %v8654 = vpop.f32.mrb[0].mxu0
      %8655 = vmatprep.mubr.bf16.mxu0 0
      %8656 = vmatmul.mubr.bf16.gmra.mrb[0].mxu0 %v8430
      %v8657 = vpop.f32.mrb[0].mxu0
      %v8658 = vadd.f32 %v8343, %v8657
      %v8659 = vpop.f32.mrb[0].mxu0
      %v8660 = vpop.f32.mrb[0].mxu0
      %v8661 = vadd.f32 %v8343, %v8660
      %v8662 = vpop.f32.mrb[0].mxu0
      %8663 = vmatprep.mubr.bf16.mxu0 0
      %8664 = vmatmul.mubr.bf16.gmra.mrb[0].mxu0 %v8433
      %v8665 = vpop.f32.mrb[0].mxu0
      %v8666 = vadd.f32 %v8343, %v8665
      %v8667 = vpop.f32.mrb[0].mxu0
      %v8668 = vpop.f32.mrb[0].mxu0
      %v8669 = vadd.f32 %v8343, %v8668
      %v8670 = vpop.f32.mrb[0].mxu0
      %8671 = vmatprep.mubr.bf16.mxu0 0
      %8672 = vmatmul.mubr.bf16.gmra.mrb[0].mxu0 %v8436
      %v8673 = vpop.f32.mrb[0].mxu0
      %v8674 = vadd.f32 %v8343, %v8673
      %v8675 = vpop.f32.mrb[0].mxu0
      %v8676 = vpop.f32.mrb[0].mxu0
      %v8677 = vadd.f32 %v8343, %v8676
      %v8678 = vpop.f32.mrb[0].mxu0
      %8679 = vmatprep.mubr.bf16.mxu0 0
      %8680 = vmatmul.mubr.bf16.gmra.mrb[0].mxu0 %v8439
      %v8681 = vpop.f32.mrb[0].mxu0
      %v8682 = vadd.f32 %v8343, %v8681
      %v8683 = vpop.f32.mrb[0].mxu0
      %v8684 = vpop.f32.mrb[0].mxu0
      %v8685 = vadd.f32 %v8343, %v8684
      %v8686 = vpop.f32.mrb[0].mxu0
      %8687 = vmatprep.mubr.bf16.mxu0 0
      %8688 = vmatmul.mubr.bf16.gmra.mrb[0].mxu0 %v8442
      %v8689 = vpop.f32.mrb[0].mxu0
      %v8690 = vadd.f32 %v8343, %v8689
      %v8691 = vpop.f32.mrb[0].mxu0
      %v8692 = vpop.f32.mrb[0].mxu0
      %v8693 = vadd.f32 %v8343, %v8692
      %v8694 = vpop.f32.mrb[0].mxu0
      %8695 = vmatprep.mubr.bf16.mxu0 0
      %8696 = vmatmul.mubr.bf16.gmra.mrb[0].mxu0 %v8445
      %v8697 = vpop.f32.mrb[0].mxu0
      %v8698 = vadd.f32 %v8343, %v8697
      %v8699 = vpop.f32.mrb[0].mxu0
      %v8700 = vpop.f32.mrb[0].mxu0
      %v8701 = vadd.f32 %v8343, %v8700
      %v8702 = vpop.f32.mrb[0].mxu0
      %8703 = vmatprep.mubr.bf16.mxu0 0
      %8704 = vmatmul.mubr.bf16.gmra.mrb[0].mxu0 %v8448
      %v8705 = vpop.f32.mrb[0].mxu0
      %v8706 = vadd.f32 %v8343, %v8705
      %v8707 = vpop.f32.mrb[0].mxu0
      %v8708 = vpop.f32.mrb[0].mxu0
      %v8709 = vadd.f32 %v8343, %v8708
      %v8710 = vpop.f32.mrb[0].mxu0
      %8711 = vmatprep.mubr.bf16.mxu0 0
      %8712 = vmatmul.mubr.bf16.gmra.mrb[0].mxu0 %v8451
      %v8713 = vpop.f32.mrb[0].mxu0
      %v8714 = vadd.f32 %v8343, %v8713
      %v8715 = vpop.f32.mrb[0].mxu0
      %v8716 = vpop.f32.mrb[0].mxu0
      %v8717 = vadd.f32 %v8343, %v8716
      %v8718 = vpop.f32.mrb[0].mxu0
      %8719 = vmatprep.mubr.bf16.mxu0 0
      %8720 = vmatmul.mubr.bf16.gmra.mrb[0].mxu0 %v8454
      %v8721 = vpop.f32.mrb[0].mxu0
      %v8722 = vadd.f32 %v8343, %v8721
      %v8723 = vpop.f32.mrb[0].mxu0
      %v8724 = vpop.f32.mrb[0].mxu0
      %v8725 = vadd.f32 %v8343, %v8724
      %v8726 = vpop.f32.mrb[0].mxu0
      %8727 = vmatprep.mubr.bf16.mxu0 0
      %8728 = vmatmul.mubr.bf16.gmra.mrb[0].mxu0 %v8457
      %v8729 = vpop.f32.mrb[0].mxu0
      %v8730 = vadd.f32 %v8343, %v8729
      %v8731 = vpop.f32.mrb[0].mxu0
      %v8732 = vpop.f32.mrb[0].mxu0
      %v8733 = vadd.f32 %v8343, %v8732
      %v8734 = vpop.f32.mrb[0].mxu0
      %8735 = vmatprep.mubr.bf16.mxu0 0
      %8736 = vmatmul.mubr.bf16.gmra.mrb[0].mxu0 %v8460
      %v8737 = vpop.f32.mrb[0].mxu0
      %v8738 = vadd.f32 %v8343, %v8737
      %v8739 = vpop.f32.mrb[0].mxu0
      %v8740 = vpop.f32.mrb[0].mxu0
      %v8741 = vadd.f32 %v8343, %v8740
      %v8742 = vpop.f32.mrb[0].mxu0
      %8743 = vmatprep.mubr.bf16.mxu0 0
      %8744 = vmatmul.mubr.bf16.gmra.mrb[0].mxu0 %v8463
      %v8745 = vpop.f32.mrb[0].mxu0
      %v8746 = vadd.f32 %v8343, %v8745
      %v8747 = vpop.f32.mrb[0].mxu0
      %v8748 = vpop.f32.mrb[0].mxu0
      %v8749 = vadd.f32 %v8343, %v8748
      %v8750 = vpop.f32.mrb[0].mxu0
      %8751 = vmatprep.mubr.bf16.mxu0 0
      %8752 = vmatmul.mubr.bf16.gmra.mrb[0].mxu0 %v8466
      %v8753 = vpop.f32.mrb[0].mxu0
      %v8754 = vadd.f32 %v8343, %v8753
      %v8755 = vpop.f32.mrb[0].mxu0
      %v8756 = vpop.f32.mrb[0].mxu0
      %v8757 = vadd.f32 %v8343, %v8756
      %v8758 = vpop.f32.mrb[0].mxu0
      %8759 = vdwg.mxu0
      %v8760 = vadd.f32 %v8506, %v3226
      %v8761 = vadd.f32 %v8509, %v3227
      %v8762 = vadd.f32 %v8514, %v3228
      %v8763 = vadd.f32 %v8517, %v3229
      %v8764 = vadd.f32 %v8522, %v3230
      %v8765 = vadd.f32 %v8525, %v3231
      %v8766 = vadd.f32 %v8530, %v3232
      %v8767 = vadd.f32 %v8533, %v3233
      %v8768 = vadd.f32 %v8538, %v3234
      %v8769 = vadd.f32 %v8541, %v3235
      %v8770 = vadd.f32 %v8546, %v3236
      %v8771 = vadd.f32 %v8549, %v3237
      %v8772 = vadd.f32 %v8554, %v3238
      %v8773 = vadd.f32 %v8557, %v3239
      %v8774 = vadd.f32 %v8562, %v3240
      %v8775 = vadd.f32 %v8565, %v3241
      %v8776 = vadd.f32 %v8570, %v3242
      %v8777 = vadd.f32 %v8573, %v3243
      %v8778 = vadd.f32 %v8578, %v3244
      %v8779 = vadd.f32 %v8581, %v3245
      %v8780 = vadd.f32 %v8586, %v3246
      %v8781 = vadd.f32 %v8589, %v3247
      %v8782 = vadd.f32 %v8594, %v3248
      %v8783 = vadd.f32 %v8597, %v3249
      %v8784 = vadd.f32 %v8602, %v3250
      %v8785 = vadd.f32 %v8605, %v3251
      %v8786 = vadd.f32 %v8610, %v3252
      %v8787 = vadd.f32 %v8613, %v3253
      %v8788 = vadd.f32 %v8618, %v3254
      %v8789 = vadd.f32 %v8621, %v3255
      %v8790 = vadd.f32 %v8626, %v3256
      %v8791 = vadd.f32 %v8629, %v3257
      %v8792 = vadd.f32 %v8634, %v3258
      %v8793 = vadd.f32 %v8637, %v3259
      %v8794 = vadd.f32 %v8642, %v3260
      %v8795 = vadd.f32 %v8645, %v3261
      %v8796 = vadd.f32 %v8650, %v3262
      %v8797 = vadd.f32 %v8653, %v3263
      %v8798 = vadd.f32 %v8658, %v3264
      %v8799 = vadd.f32 %v8661, %v3265
      %v8800 = vadd.f32 %v8666, %v3266
      %v8801 = vadd.f32 %v8669, %v3267
      %v8802 = vadd.f32 %v8674, %v3268
      %v8803 = vadd.f32 %v8677, %v3269
      %v8804 = vadd.f32 %v8682, %v3270
      %v8805 = vadd.f32 %v8685, %v3271
      %v8806 = vadd.f32 %v8690, %v3272
      %v8807 = vadd.f32 %v8693, %v3273
      %v8808 = vadd.f32 %v8698, %v3274
      %v8809 = vadd.f32 %v8701, %v3275
      %v8810 = vadd.f32 %v8706, %v3276
      %v8811 = vadd.f32 %v8709, %v3277
      %v8812 = vadd.f32 %v8714, %v3278
      %v8813 = vadd.f32 %v8717, %v3279
      %v8814 = vadd.f32 %v8722, %v3280
      %v8815 = vadd.f32 %v8725, %v3281
      %v8816 = vadd.f32 %v8730, %v3282
      %v8817 = vadd.f32 %v8733, %v3283
      %v8818 = vadd.f32 %v8738, %v3284
      %v8819 = vadd.f32 %v8741, %v3285
      %v8820 = vadd.f32 %v8746, %v3286
      %v8821 = vadd.f32 %v8749, %v3287
      %v8822 = vadd.f32 %v8754, %v3288
      %v8823 = vadd.f32 %v8757, %v3289
      %v8824 = vmax.f32 %v8760, 0.0
      %v8825 = vmax.f32 %v8761, 0.0
      %v8826 = vmax.f32 %v8762, 0.0
      %v8827 = vmax.f32 %v8763, 0.0
      %v8828 = vmax.f32 %v8764, 0.0
      %v8829 = vmax.f32 %v8765, 0.0
      %v8830 = vmax.f32 %v8766, 0.0
      %v8831 = vmax.f32 %v8767, 0.0
      %v8832 = vmax.f32 %v8768, 0.0
      %v8833 = vmax.f32 %v8769, 0.0
      %v8834 = vmax.f32 %v8770, 0.0
      %v8835 = vmax.f32 %v8771, 0.0
      %v8836 = vmax.f32 %v8772, 0.0
      %v8837 = vmax.f32 %v8773, 0.0
      %v8838 = vmax.f32 %v8774, 0.0
      %v8839 = vmax.f32 %v8775, 0.0
      %v8840 = vmax.f32 %v8776, 0.0
      %v8841 = vmax.f32 %v8777, 0.0
      %v8842 = vmax.f32 %v8778, 0.0
      %v8843 = vmax.f32 %v8779, 0.0
      %v8844 = vmax.f32 %v8780, 0.0
      %v8845 = vmax.f32 %v8781, 0.0
      %v8846 = vmax.f32 %v8782, 0.0
      %v8847 = vmax.f32 %v8783, 0.0
      %v8848 = vmax.f32 %v8784, 0.0
      %v8849 = vmax.f32 %v8785, 0.0
      %v8850 = vmax.f32 %v8786, 0.0
      %v8851 = vmax.f32 %v8787, 0.0
      %v8852 = vmax.f32 %v8788, 0.0
      %v8853 = vmax.f32 %v8789, 0.0
      %v8854 = vmax.f32 %v8790, 0.0
      %v8855 = vmax.f32 %v8791, 0.0
      %v8856 = vmax.f32 %v8792, 0.0
      %v8857 = vmax.f32 %v8793, 0.0
      %v8858 = vmax.f32 %v8794, 0.0
      %v8859 = vmax.f32 %v8795, 0.0
      %v8860 = vmax.f32 %v8796, 0.0
      %v8861 = vmax.f32 %v8797, 0.0
      %v8862 = vmax.f32 %v8798, 0.0
      %v8863 = vmax.f32 %v8799, 0.0
      %v8864 = vmax.f32 %v8800, 0.0
      %v8865 = vmax.f32 %v8801, 0.0
      %v8866 = vmax.f32 %v8802, 0.0
      %v8867 = vmax.f32 %v8803, 0.0
      %v8868 = vmax.f32 %v8804, 0.0
      %v8869 = vmax.f32 %v8805, 0.0
      %v8870 = vmax.f32 %v8806, 0.0
      %v8871 = vmax.f32 %v8807, 0.0
      %v8872 = vmax.f32 %v8808, 0.0
      %v8873 = vmax.f32 %v8809, 0.0
      %v8874 = vmax.f32 %v8810, 0.0
      %v8875 = vmax.f32 %v8811, 0.0
      %v8876 = vmax.f32 %v8812, 0.0
      %v8877 = vmax.f32 %v8813, 0.0
      %v8878 = vmax.f32 %v8814, 0.0
      %v8879 = vmax.f32 %v8815, 0.0
      %v8880 = vmax.f32 %v8816, 0.0
      %v8881 = vmax.f32 %v8817, 0.0
      %v8882 = vmax.f32 %v8818, 0.0
      %v8883 = vmax.f32 %v8819, 0.0
      %v8884 = vmax.f32 %v8820, 0.0
      %v8885 = vmax.f32 %v8821, 0.0
      %v8886 = vmax.f32 %v8822, 0.0
      %v8887 = vmax.f32 %v8823, 0.0
      %v8888 = vsel %vm337, %v8824, 0.0
      %v8889 = vsel %vm337, %v8825, 0.0
      %v8890 = vadd.f32 %v8888, %v8889
      %v8891 = vsel %vm337, %v8826, 0.0
      %v8892 = vadd.f32 %v8890, %v8891
      %v8893 = vsel %vm337, %v8827, 0.0
      %v8894 = vadd.f32 %v8892, %v8893
      %v8895 = vsel %vm337, %v8828, 0.0
      %v8896 = vadd.f32 %v8894, %v8895
      %v8897 = vsel %vm337, %v8829, 0.0
      %v8898 = vadd.f32 %v8896, %v8897
      %v8899 = vsel %vm337, %v8830, 0.0
      %v8900 = vadd.f32 %v8898, %v8899
      %v8901 = vsel %vm337, %v8831, 0.0
      %v8902 = vadd.f32 %v8900, %v8901
      %v8903 = vsel %vm337, %v8832, 0.0
      %v8904 = vadd.f32 %v8902, %v8903
      %v8905 = vsel %vm337, %v8833, 0.0
      %v8906 = vadd.f32 %v8904, %v8905
      %v8907 = vsel %vm337, %v8834, 0.0
      %v8908 = vadd.f32 %v8906, %v8907
      %v8909 = vsel %vm337, %v8835, 0.0
      %v8910 = vadd.f32 %v8908, %v8909
      %v8911 = vsel %vm337, %v8836, 0.0
      %v8912 = vadd.f32 %v8910, %v8911
      %v8913 = vsel %vm337, %v8837, 0.0
      %v8914 = vadd.f32 %v8912, %v8913
      %v8915 = vsel %vm337, %v8838, 0.0
      %v8916 = vadd.f32 %v8914, %v8915
      %v8917 = vsel %vm337, %v8839, 0.0
      %v8918 = vadd.f32 %v8916, %v8917
      %v8919 = vsel %vm337, %v8840, 0.0
      %v8920 = vadd.f32 %v8918, %v8919
      %v8921 = vsel %vm337, %v8841, 0.0
      %v8922 = vadd.f32 %v8920, %v8921
      %v8923 = vsel %vm337, %v8842, 0.0
      %v8924 = vadd.f32 %v8922, %v8923
      %v8925 = vsel %vm337, %v8843, 0.0
      %v8926 = vadd.f32 %v8924, %v8925
      %v8927 = vsel %vm337, %v8844, 0.0
      %v8928 = vadd.f32 %v8926, %v8927
      %v8929 = vsel %vm337, %v8845, 0.0
      %v8930 = vadd.f32 %v8928, %v8929
      %v8931 = vsel %vm337, %v8846, 0.0
      %v8932 = vadd.f32 %v8930, %v8931
      %v8933 = vsel %vm337, %v8847, 0.0
      %v8934 = vadd.f32 %v8932, %v8933
      %v8935 = vsel %vm337, %v8848, 0.0
      %v8936 = vadd.f32 %v8934, %v8935
      %v8937 = vsel %vm337, %v8849, 0.0
      %v8938 = vadd.f32 %v8936, %v8937
      %v8939 = vsel %vm337, %v8850, 0.0
      %v8940 = vadd.f32 %v8938, %v8939
      %v8941 = vsel %vm337, %v8851, 0.0
      %v8942 = vadd.f32 %v8940, %v8941
      %v8943 = vsel %vm337, %v8852, 0.0
      %v8944 = vadd.f32 %v8942, %v8943
      %v8945 = vsel %vm337, %v8853, 0.0
      %v8946 = vadd.f32 %v8944, %v8945
      %v8947 = vsel %vm337, %v8854, 0.0
      %v8948 = vadd.f32 %v8946, %v8947
      %v8949 = vsel %vm337, %v8855, 0.0
      %v8950 = vadd.f32 %v8948, %v8949
      %v8951 = vrot.slane %v8950, 4
      %v8952 = vadd.f32 %v8950, %v8951
      %v8953 = vrot.slane %v8952, 2
      %v8954 = vadd.f32 %v8952, %v8953
      %v8955 = vrot.slane %v8954, 1
      %v8956 = vadd.f32 %v8954, %v8955
      %v8957 = vsel %vm337, %v8856, 0.0
      %v8958 = vsel %vm337, %v8857, 0.0
      %v8959 = vadd.f32 %v8957, %v8958
      %v8960 = vsel %vm337, %v8858, 0.0
      %v8961 = vadd.f32 %v8959, %v8960
      %v8962 = vsel %vm337, %v8859, 0.0
      %v8963 = vadd.f32 %v8961, %v8962
      %v8964 = vsel %vm337, %v8860, 0.0
      %v8965 = vadd.f32 %v8963, %v8964
      %v8966 = vsel %vm337, %v8861, 0.0
      %v8967 = vadd.f32 %v8965, %v8966
      %v8968 = vsel %vm337, %v8862, 0.0
      %v8969 = vadd.f32 %v8967, %v8968
      %v8970 = vsel %vm337, %v8863, 0.0
      %v8971 = vadd.f32 %v8969, %v8970
      %v8972 = vsel %vm337, %v8864, 0.0
      %v8973 = vadd.f32 %v8971, %v8972
      %v8974 = vsel %vm337, %v8865, 0.0
      %v8975 = vadd.f32 %v8973, %v8974
      %v8976 = vsel %vm337, %v8866, 0.0
      %v8977 = vadd.f32 %v8975, %v8976
      %v8978 = vsel %vm337, %v8867, 0.0
      %v8979 = vadd.f32 %v8977, %v8978
      %v8980 = vsel %vm337, %v8868, 0.0
      %v8981 = vadd.f32 %v8979, %v8980
      %v8982 = vsel %vm337, %v8869, 0.0
      %v8983 = vadd.f32 %v8981, %v8982
      %v8984 = vsel %vm337, %v8870, 0.0
      %v8985 = vadd.f32 %v8983, %v8984
      %v8986 = vsel %vm337, %v8871, 0.0
      %v8987 = vadd.f32 %v8985, %v8986
      %v8988 = vsel %vm337, %v8872, 0.0
      %v8989 = vadd.f32 %v8987, %v8988
      %v8990 = vsel %vm337, %v8873, 0.0
      %v8991 = vadd.f32 %v8989, %v8990
      %v8992 = vsel %vm337, %v8874, 0.0
      %v8993 = vadd.f32 %v8991, %v8992
      %v8994 = vsel %vm337, %v8875, 0.0
      %v8995 = vadd.f32 %v8993, %v8994
      %v8996 = vsel %vm337, %v8876, 0.0
      %v8997 = vadd.f32 %v8995, %v8996
      %v8998 = vsel %vm337, %v8877, 0.0
      %v8999 = vadd.f32 %v8997, %v8998
      %v9000 = vsel %vm337, %v8878, 0.0
      %v9001 = vadd.f32 %v8999, %v9000
      %v9002 = vsel %vm337, %v8879, 0.0
      %v9003 = vadd.f32 %v9001, %v9002
      %v9004 = vsel %vm337, %v8880, 0.0
      %v9005 = vadd.f32 %v9003, %v9004
      %v9006 = vsel %vm337, %v8881, 0.0
      %v9007 = vadd.f32 %v9005, %v9006
      %v9008 = vsel %vm337, %v8882, 0.0
      %v9009 = vadd.f32 %v9007, %v9008
      %v9010 = vsel %vm337, %v8883, 0.0
      %v9011 = vadd.f32 %v9009, %v9010
      %v9012 = vsel %vm337, %v8884, 0.0
      %v9013 = vadd.f32 %v9011, %v9012
      %v9014 = vsel %vm337, %v8885, 0.0
      %v9015 = vadd.f32 %v9013, %v9014
      %v9016 = vsel %vm337, %v8886, 0.0
      %v9017 = vadd.f32 %v9015, %v9016
      %v9018 = vsel %vm337, %v8887, 0.0
      %v9019 = vadd.f32 %v9017, %v9018
      %v9020 = vrot.slane %v9019, 4
      %v9021 = vadd.f32 %v9019, %v9020
      %v9022 = vrot.slane %v9021, 2
      %v9023 = vadd.f32 %v9021, %v9022
      %v9024 = vrot.slane %v9023, 1
      %v9025 = vadd.f32 %v9023, %v9024
      %v9026 = vmul.f32 %v8956, 0.00390625
      %v9027 = vmul.f32 %v9025, 0.00390625
      %v9028 = vpack.c.bf16 %v9026, %v9026
      %v9029 = vpack.c.bf16 %v9027, %v9027
      %v9030 = vld [vmem:[%s7] sm:$0xf]
      %v9031 = vld [vmem:[%s8] sm:$0x1]
      %v9033 = vlaneseq
      %v9034 = vshrl.u32 %v9033, 7
      %v9035 = vsub.s32 0, %v9034
      %v9036 = vrot.slane %v9031, %v9035
      %v9040 = vunpack.c.l.b16 %v9028
      %v9041 = vunpack.c.l.b16 %v9029
      %vm9042 = vcmask 1041409
      %v9043 = vsel %vm9042, %v9041, %v9040
      %v9044 = vpack.c.b16 %v9043, %v9043
      %v9046 = vsel %vm337, %v9044, 0
      %v9049 = vsel %vm2933, %v9030, 0
      %9051 = vmatprep.subr.bf16.mxu0 0
      %9052 = vmatpush1.bf16.msra.mxu0 %v9049
      %9053 = vmatprep.subr.bf16.mxu0 0
      %9054 = vmatpush1.bf16.msra.mxu0 0
      %9055 = vmatprep.subr.bf16.mxu0 0
      %9056 = vmatpush1.bf16.msra.mxu0 0
      %9057 = vmatprep.subr.bf16.mxu0 0
      %9058 = vmatpush1.bf16.msra.mxu0 0
      %9059 = vmatprep.subr.bf16.mxu0 0
      %9060 = vmatpush1.bf16.msra.mxu0 0
      %9061 = vmatprep.subr.bf16.mxu0 0
      %9062 = vmatpush1.bf16.msra.mxu0 0
      %9063 = vmatprep.subr.bf16.mxu0 0
      %9064 = vmatpush1.bf16.msra.mxu0 0
      %9065 = vmatprep.subr.bf16.mxu0 0
      %9066 = vmatpush1.bf16.msra.mxu0 0
      %9067 = vmatprep.subr.bf16.mxu0 0
      %9068 = vmatpush1.bf16.msra.mxu0 0
      %9069 = vmatprep.subr.bf16.mxu0 0
      %9070 = vmatpush1.bf16.msra.mxu0 0
      %9071 = vmatprep.subr.bf16.mxu0 0
      %9072 = vmatpush1.bf16.msra.mxu0 0
      %9073 = vmatprep.subr.bf16.mxu0 0
      %9074 = vmatpush1.bf16.msra.mxu0 0
      %9075 = vmatprep.subr.bf16.mxu0 0
      %9076 = vmatpush1.bf16.msra.mxu0 0
      %9077 = vmatprep.subr.bf16.mxu0 0
      %9078 = vmatpush1.bf16.msra.mxu0 0
      %9079 = vmatprep.subr.bf16.mxu0 0
      %9080 = vmatpush1.bf16.msra.mxu0 0
      %9081 = vmatprep.subr.bf16.mxu0 0
      %9082 = vmatpush1.bf16.msra.mxu0 0
      %9083 = vmatprep.mubr.bf16.mxu0 0
      %9084 = vmatmul.mubr.bf16.gmra.mrb[0].mxu0 %v9046
      %v9085 = vpop.f32.mrb[0].mxu0
      %v9086 = vadd.f32 %v9036, %v9085
      %v9087 = vpop.f32.mrb[0].mxu0
      %v9088 = vpop.f32.mrb[0].mxu0
      %v9089 = vpop.f32.mrb[0].mxu0
      %9090 = vdwg.mxu0
      %vm9091 = vcmask 123904
      %9092 = vst.msk [vmem:[%s335] sm:$0x3] %vm9091, %v9086
      %p9093 = scmp.lt.s32.totalorder %s20, 1
      %s9094 = scalar_select %p9093, %s20, 1
      %s9095 = smul.addr %s9094, 2
      %s9096 = scalar_lea.vmem %s9, %s9095
      // Predicated region
      $region57: #{siamese_resnet_forward.1} parent=55 // pred_check
        %p9097 = pneg %p232
      $region58: #{siamese_resnet_forward.1} parent=55 // pred_check_branch
        %9099 = sbr.rel (%p9097) target = $region60
      $region59: #{siamese_resnet_forward.1} parent=55 // pred_region
        _
      $region60: #{siamese_resnet_forward.1} parent=55 // pred_fallthru
        _
    $region56: #{siamese_resnet_forward.1} parent=5 // pred_fallthru
      _
    %p9100 = scmp.le.s32.totalorder 2, %s15
    // Predicated region
    $region61: #{siamese_resnet_forward.1} parent=5 // pred_check
      %p9101 = pneg %p9100
    $region62: #{siamese_resnet_forward.1} parent=5 // pred_check_branch
      %9103 = sbr.rel (%p9101) target = $region64
    $region63: #{siamese_resnet_forward.1} parent=5 // pred_region
      %s9104 = ssub.s32 %s15, 2
      // Predicated region
      $region65: #{siamese_resnet_forward.1} parent=63 // pred_check
        %p9105 = pneg %p238
      $region66: #{siamese_resnet_forward.1} parent=63 // pred_check_branch
        %9107 = sbr.rel (%p9105) target = $region68
      $region67: #{siamese_resnet_forward.1} parent=63 // pred_region
        %p9108 = scmp.lt.s32.totalorder %s21, 1
        %s9109 = scalar_select %p9108, %s21, 1
        %s9110 = smul.addr %s9109, 2
        %s9111 = scalar_lea.vmem %s9, %s9110
      $region68: #{siamese_resnet_forward.1} parent=63 // pred_fallthru
        _
    $region64: #{siamese_resnet_forward.1} parent=5 // pred_fallthru
      _
  $region6: #{siamese_resnet_forward.1} parent=0 // loop_footer
    %s19 = sadd.s32 1, %s15
  $region7: #{siamese_resnet_forward.1} parent=0 // loop_footer_branch
    %14 = sbr.rel target = $region3
  $region8: #{siamese_resnet_forward.1} parent=0 // loop_exit
    _

</llo_original>
